<compile_context>
chip_gen: v6e
topology: v6e:2x2x1
jax: 0.10.0
libtpu: 0.0.40
codegen_flags: <defaults>
</compile_context>

<pallas_src>
import math

import numpy as np
import jax
import jax.numpy as jnp
from jax import lax
from jax.experimental import pallas as pl
from jax.experimental.pallas import tpu as pltpu


def _round_up(x, m):
    return ((x + m - 1) // m) * m


def make_head_kernel(num_head_blocks, h_beta, max_inv_scale, min_inv_scale,
                     tm, chunk):
    """Build the fused Head forward kernel (closure over static config)."""
    inv_h_beta = float(1.0 / h_beta)
    n_chunks = tm // chunk

    def kernel(x_ref, w_ref, b_ref, mean_ref, out_ref):
        # x_ref:    (Cmax, tm)        activation tile, channel-major
        # w_ref:    (L, Cmax, Cmax)   packed weights, (Cout, Cin) per layer
        # b_ref:    (L, Cmax, 1)      packed biases
        # mean_ref: (3, 1)
        # out_ref:  (3, tm)
        mean = mean_ref[...]                                   # (3, 1)

        def conv(a, i):   # 1x1 conv == (Cout,Cin) @ (Cin,chunk) matmul + bias
            return jnp.dot(w_ref[i], a,
                           preferred_element_type=jnp.float32) + b_ref[i]

        def process(off):
            x0 = x_ref[:, pl.ds(off, chunk)]

            # res3 block
            x = jax.nn.relu(conv(x0, 0))
            x = jax.nn.relu(conv(x, 1))
            x = jax.nn.relu(conv(x, 2))
            res = x0 + x   # head_skip is Identity (in_channels == head_channels)

            li = 3
            for _ in range(num_head_blocks):
                y = jax.nn.relu(conv(res, li)); li += 1
                y = jax.nn.relu(conv(y, li)); li += 1
                y = jax.nn.relu(conv(y, li)); li += 1
                res = res + y

            sc = jax.nn.relu(conv(res, li)); li += 1           # fc1
            sc = jax.nn.relu(conv(sc, li)); li += 1            # fc2
            sc = conv(sc, li); li += 1                         # fc3 -> rows 0..3

            # homogeneous coordinates:
            # softplus(h, beta=h_beta, threshold=20) + max_inv_scale,
            # clamp(max=min_inv_scale), divide xyz by it, add mean.
            h = sc[3:4, :]                                     # (1, chunk)
            bh = h_beta * h
            sp = jnp.where(bh > 20.0,
                           h,
                           jnp.log1p(jnp.exp(jnp.minimum(bh, 20.0))) * inv_h_beta)
            h_slice = jnp.minimum(sp + max_inv_scale, min_inv_scale)
            inv_h = 1.0 / h_slice                              # 1 recip per column
            out_ref[:, pl.ds(off, chunk)] = sc[:3, :] * inv_h + mean

        if n_chunks == 1:
            process(0)
        else:
            def body(c, carry):
                process(pl.multiple_of(c * chunk, 128))
                return carry
            lax.fori_loop(0, n_chunks, body, 0, unroll=True)

    return kernel


def pack_head_params(params, mean3):
    """One-time host-side (numpy) packing of layer weights/biases.

    params: list of (w, b) with w of shape (Cout, Cin), b of shape (Cout,).
    Returns (w_stack, b_stack, mean_col, Cmax) as device arrays / int.
    """
    L = len(params)
    Cmax = 8
    for w, _ in params:
        Cmax = max(Cmax, int(w.shape[0]), int(w.shape[1]))
    Cmax = _round_up(Cmax, 8)

    w_stack = np.zeros((L, Cmax, Cmax), np.float32)
    b_stack = np.zeros((L, Cmax, 1), np.float32)
    for i, (w, b) in enumerate(params):
        w_np = np.asarray(w, dtype=np.float32)
        b_np = np.asarray(b, dtype=np.float32)
        co, ci = w_np.shape
        w_stack[i, :co, :ci] = w_np          # zero padding is inert
        b_stack[i, :co, 0] = b_np
    mean_col = np.asarray(mean3, dtype=np.float32).reshape(3, 1)
    return jnp.asarray(w_stack), jnp.asarray(b_stack), jnp.asarray(mean_col), Cmax


def head_forward_pallas(x_nchw, packed, *, num_head_blocks, h_beta,
                        max_inv_scale, min_inv_scale, tm_target=2048):
    w_stack, b_stack, mean_col, Cmax = packed
    B, C, H, W = x_nchw.shape
    HW = H * W
    L = w_stack.shape[0]
    assert Cmax >= C

    # pixel tile: big (up to tm_target), multiple of 128; NO pixel padding —
    # the last block may be ragged, which the Pallas pipeliner handles.
    tm = min(_round_up(tm_target, 128), _round_up(HW, 128))
    if B == 1:
        # v7x has 2 TensorCores; keep >= 2 parallel grid steps when possible.
        half = _round_up((HW + 1) // 2, 128)
        if half < _round_up(HW, 128):
            tm = min(tm, half)
    n_t = (HW + tm - 1) // tm

    # in-kernel pixel chunk (largest of 512/256/128 dividing tm)
    chunk = tm
    for cand in (512, 256, 128):
        if cand <= tm and tm % cand == 0:
            chunk = cand
            break

    # pure reshape (no transpose): NCHW -> (B, C, H*W)
    x = x_nchw.reshape(B, C, HW).astype(jnp.float32)
    if Cmax != C:
        # channel padding only (needed for the fixed Cmax x Cmax matmuls)
        x = jnp.pad(x, ((0, 0), (0, Cmax - C), (0, 0)))

    kernel = make_head_kernel(num_head_blocks, h_beta, max_inv_scale,
                              min_inv_scale, tm, chunk)

    # NOTE: w/b/mean have constant index_maps; pipeline_mode=pl.Buffered(1)
    # would shave one VMEM copy each — negligible at Cmax=32, revisit for
    # large Cmax on v7x/v5e.
    out = pl.pallas_call(
        kernel,
        out_shape=jax.ShapeDtypeStruct((B, 3, HW), jnp.float32),
        grid=(B, n_t),
        in_specs=[
            pl.BlockSpec((None, Cmax, tm), lambda b, t: (b, 0, t)),
            pl.BlockSpec((L, Cmax, Cmax), lambda b, t: (0, 0, 0)),
            pl.BlockSpec((L, Cmax, 1), lambda b, t: (0, 0, 0)),
            pl.BlockSpec((3, 1), lambda b, t: (0, 0)),
        ],
        out_specs=pl.BlockSpec((None, 3, tm), lambda b, t: (b, 0, t)),
        compiler_params=pltpu.CompilerParams(
            dimension_semantics=("parallel", "parallel"),
            vmem_limit_bytes=32 * 1024 * 1024),
    )(x, w_stack, b_stack, mean_col)

    # already NCHW-flat; pure reshape back, no slicing/padding needed
    return out.reshape(B, 3, H, W)


def head_forward_ref(x_nchw, params, mean3, *, num_head_blocks,
                     h_beta, max_inv_scale, min_inv_scale):
    """Pure-JAX f32 reference mirroring the PyTorch forward (for validation)."""
    B, C, H, W = x_nchw.shape
    x = x_nchw.reshape(B, C, H * W).astype(jnp.float32)   # (B, C, M)

    def conv(v, i):
        w, b = params[i]                                   # (Cout, Cin), (Cout,)
        return jnp.einsum('oc,bcm->bom', w, v) + b.reshape(1, -1, 1)

    x0 = x
    y = jax.nn.relu(conv(x0, 0))
    y = jax.nn.relu(conv(y, 1))
    y = jax.nn.relu(conv(y, 2))
    res = x0 + y
    li = 3
    for _ in range(num_head_blocks):
        z = jax.nn.relu(conv(res, li)); li += 1
        z = jax.nn.relu(conv(z, li)); li += 1
        z = jax.nn.relu(conv(z, li)); li += 1
        res = res + z
    sc = jax.nn.relu(conv(res, li)); li += 1
    sc = jax.nn.relu(conv(sc, li)); li += 1
    sc = conv(sc, li); li += 1
    h = sc[:, 3:4, :]
    bh = h_beta * h
    sp = jnp.where(bh > 20.0, h,
                   jnp.log1p(jnp.exp(jnp.minimum(bh, 20.0))) / h_beta)
    h_slice = jnp.minimum(sp + max_inv_scale, min_inv_scale)
    out = sc[:, :3, :] / h_slice + mean3.reshape(1, 3, 1)
    return out.reshape(B, 3, H, W)


def _make_params(key, in_channels, head_channels, block_channels, num_head_blocks):
    layer_dims = [
        (head_channels, in_channels),       # res3_conv1
        (block_channels, head_channels),    # res3_conv2
        (head_channels, block_channels),    # res3_conv3
    ]
    for _ in range(num_head_blocks):
        layer_dims += [
            (head_channels, head_channels),   # blk c0
            (block_channels, head_channels),  # blk c1
            (head_channels, block_channels),  # blk c2
        ]
    layer_dims += [
        (head_channels, head_channels),     # fc1
        (block_channels, head_channels),    # fc2
        (4, block_channels),                # fc3 (homogeneous -> 4 outputs)
    ]
    params = []
    for (cout, cin) in layer_dims:
        key, kw, kb = jax.random.split(key, 3)
        w = jax.random.normal(kw, (cout, cin), dtype=jnp.float32) * 0.05
        b = jax.random.normal(kb, (cout,), dtype=jnp.float32) * 0.01
        params.append((w, b))
    return key, params


if __name__ == "__main__":
    # ---- configuration (small, consistent with the module) ----
    in_channels = 32
    head_channels = 32                  # == in_channels -> head_skip is Identity
    assert in_channels == head_channels, "kernel assumes Identity head_skip"
    mlp_ratio = 1.0
    block_channels = int(head_channels * mlp_ratio)
    num_head_blocks = 1
    homogeneous_max_scale = 4.0
    homogeneous_min_scale = 0.01
    max_inv_scale = 1.0 / homogeneous_max_scale
    min_inv_scale = 1.0 / homogeneous_min_scale
    h_beta = math.log(2.0) / (1.0 - max_inv_scale)

    key = jax.random.PRNGKey(0)
    key, params = _make_params(key, in_channels, head_channels,
                               block_channels, num_head_blocks)
    key, km = jax.random.split(key)
    mean3 = jax.random.normal(km, (3,), dtype=jnp.float32)

    packed = pack_head_params(params, mean3)   # host-side, once per model
    cfg = dict(num_head_blocks=num_head_blocks, h_beta=h_beta,
               max_inv_scale=max_inv_scale, min_inv_scale=min_inv_scale)

    # Case 1: tile-aligned pixel count (HW = 2048 -> single 2048-pixel tile)
    # Case 2: ragged pixel count (HW = 1200 -> ragged last block, no padding)
    for (B, H, W) in [(2, 32, 64), (2, 30, 40)]:
        key, kx = jax.random.split(key)
        x_nchw = jax.random.normal(kx, (B, in_channels, H, W), dtype=jnp.float32)

        out = head_forward_pallas(x_nchw, packed, **cfg)
        out = jax.block_until_ready(out)

        ref = head_forward_ref(x_nchw, params, mean3, **cfg)
        ref = jax.block_until_ready(ref)

        assert out.shape == (B, 3, H, W)
        assert jnp.allclose(out, ref, atol=1e-4, rtol=1e-4), (B, H, W)

    print("KERNEL_OK")
</pallas_src>

<mosaic_0001>
module attributes {stable_mosaic.version = 11 : i64} {
  func.func @kernel(%arg0: i32, %arg1: i32, %arg2: memref<1x32x2048xf32, #tpu.memory_space<vmem>>, %arg3: memref<9x32x32xf32, #tpu.memory_space<vmem>>, %arg4: memref<9x32x1xf32, #tpu.memory_space<vmem>>, %arg5: memref<3x1xf32, #tpu.memory_space<vmem>>, %arg6: memref<1x3x2048xf32, #tpu.memory_space<vmem>>) attributes {dimension_semantics = [#tpu.dimension_semantics<parallel>, #tpu.dimension_semantics<parallel>], iteration_bounds = array<i64: 2, 1>, scalar_prefetch = 0 : i64, scratch_operands = 0 : i64, tpu.core_type = #tpu.core_type<tc>, window_params = [{transform_indices = @transform_0, window_bounds = array<i64: 1, 32, 2048>}, {pipeline_mode = #tpu.pipeline_mode<synchronous>, transform_indices = @transform_1, window_bounds = array<i64: 9, 32, 32>}, {pipeline_mode = #tpu.pipeline_mode<synchronous>, transform_indices = @transform_2, window_bounds = array<i64: 9, 32, 1>}, {pipeline_mode = #tpu.pipeline_mode<synchronous>, transform_indices = @transform_3, window_bounds = array<i64: 3, 1>}, {transform_indices = @transform_4, window_bounds = array<i64: 1, 3, 2048>}]} {
    %c0 = arith.constant 0 : index
    %c0_0 = arith.constant 0 : index
    %0 = vector.load %arg5[%c0, %c0_0] : memref<3x1xf32, #tpu.memory_space<vmem>>, vector<3x1xf32>
    %c0_i32 = arith.constant 0 : i32
    %c512_i32 = arith.constant 512 : i32
    %1 = arith.muli %c0_i32, %c512_i32 : i32
    %2 = tpu.assume_multiple %1, 128 : i32
    %c0_1 = arith.constant 0 : index
    %c0_2 = arith.constant 0 : index
    %3 = arith.index_cast %2 : i32 to index
    %4 = vector.load %arg2[%c0_1, %c0_2, %3] : memref<1x32x2048xf32, #tpu.memory_space<vmem>>, vector<1x32x512xf32>
    %5 = vector.shape_cast %4 : vector<1x32x512xf32> to vector<32x512xf32>
    %c0_3 = arith.constant 0 : index
    %c0_4 = arith.constant 0 : index
    %c0_5 = arith.constant 0 : index
    %6 = vector.load %arg3[%c0_3, %c0_4, %c0_5] : memref<9x32x32xf32, #tpu.memory_space<vmem>>, vector<1x32x32xf32>
    %7 = vector.shape_cast %6 : vector<1x32x32xf32> to vector<32x32xf32>
    %cst = arith.constant dense<0.000000e+00> : vector<32x512xf32>
    %8 = tpu.matmul %7, %5, %cst {dimension_numbers = #tpu.dot_dimension_numbers<[1], [0], [0], [1], [0, 0, 1, 1], [], []>} : vector<32x32xf32>, vector<32x512xf32>, vector<32x512xf32> -> vector<32x512xf32>
    %c0_6 = arith.constant 0 : index
    %c0_7 = arith.constant 0 : index
    %c0_8 = arith.constant 0 : index
    %9 = vector.load %arg4[%c0_6, %c0_7, %c0_8] : memref<9x32x1xf32, #tpu.memory_space<vmem>>, vector<1x32x1xf32>
    %10 = vector.shape_cast %9 : vector<1x32x1xf32> to vector<32x1xf32>
    %11 = vector.broadcast %10 : vector<32x1xf32> to vector<32x512xf32>
    %12 = arith.addf %8, %11 : vector<32x512xf32>
    %cst_9 = arith.constant 0.000000e+00 : f32
    %13 = vector.broadcast %cst_9 : f32 to vector<32x512xf32>
    %14 = arith.maximumf %12, %13 : vector<32x512xf32>
    %c1 = arith.constant 1 : index
    %c0_10 = arith.constant 0 : index
    %c0_11 = arith.constant 0 : index
    %15 = vector.load %arg3[%c1, %c0_10, %c0_11] : memref<9x32x32xf32, #tpu.memory_space<vmem>>, vector<1x32x32xf32>
    %16 = vector.shape_cast %15 : vector<1x32x32xf32> to vector<32x32xf32>
    %cst_12 = arith.constant dense<0.000000e+00> : vector<32x512xf32>
    %17 = tpu.matmul %16, %14, %cst_12 {dimension_numbers = #tpu.dot_dimension_numbers<[1], [0], [0], [1], [0, 0, 1, 1], [], []>} : vector<32x32xf32>, vector<32x512xf32>, vector<32x512xf32> -> vector<32x512xf32>
    %c1_13 = arith.constant 1 : index
    %c0_14 = arith.constant 0 : index
    %c0_15 = arith.constant 0 : index
    %18 = vector.load %arg4[%c1_13, %c0_14, %c0_15] : memref<9x32x1xf32, #tpu.memory_space<vmem>>, vector<1x32x1xf32>
    %19 = vector.shape_cast %18 : vector<1x32x1xf32> to vector<32x1xf32>
    %20 = vector.broadcast %19 : vector<32x1xf32> to vector<32x512xf32>
    %21 = arith.addf %17, %20 : vector<32x512xf32>
    %cst_16 = arith.constant 0.000000e+00 : f32
    %22 = vector.broadcast %cst_16 : f32 to vector<32x512xf32>
    %23 = arith.maximumf %21, %22 : vector<32x512xf32>
    %c2 = arith.constant 2 : index
    %c0_17 = arith.constant 0 : index
    %c0_18 = arith.constant 0 : index
    %24 = vector.load %arg3[%c2, %c0_17, %c0_18] : memref<9x32x32xf32, #tpu.memory_space<vmem>>, vector<1x32x32xf32>
    %25 = vector.shape_cast %24 : vector<1x32x32xf32> to vector<32x32xf32>
    %cst_19 = arith.constant dense<0.000000e+00> : vector<32x512xf32>
    %26 = tpu.matmul %25, %23, %cst_19 {dimension_numbers = #tpu.dot_dimension_numbers<[1], [0], [0], [1], [0, 0, 1, 1], [], []>} : vector<32x32xf32>, vector<32x512xf32>, vector<32x512xf32> -> vector<32x512xf32>
    %c2_20 = arith.constant 2 : index
    %c0_21 = arith.constant 0 : index
    %c0_22 = arith.constant 0 : index
    %27 = vector.load %arg4[%c2_20, %c0_21, %c0_22] : memref<9x32x1xf32, #tpu.memory_space<vmem>>, vector<1x32x1xf32>
    %28 = vector.shape_cast %27 : vector<1x32x1xf32> to vector<32x1xf32>
    %29 = vector.broadcast %28 : vector<32x1xf32> to vector<32x512xf32>
    %30 = arith.addf %26, %29 : vector<32x512xf32>
    %cst_23 = arith.constant 0.000000e+00 : f32
    %31 = vector.broadcast %cst_23 : f32 to vector<32x512xf32>
    %32 = arith.maximumf %30, %31 : vector<32x512xf32>
    %33 = arith.addf %5, %32 : vector<32x512xf32>
    %c3 = arith.constant 3 : index
    %c0_24 = arith.constant 0 : index
    %c0_25 = arith.constant 0 : index
    %34 = vector.load %arg3[%c3, %c0_24, %c0_25] : memref<9x32x32xf32, #tpu.memory_space<vmem>>, vector<1x32x32xf32>
    %35 = vector.shape_cast %34 : vector<1x32x32xf32> to vector<32x32xf32>
    %cst_26 = arith.constant dense<0.000000e+00> : vector<32x512xf32>
    %36 = tpu.matmul %35, %33, %cst_26 {dimension_numbers = #tpu.dot_dimension_numbers<[1], [0], [0], [1], [0, 0, 1, 1], [], []>} : vector<32x32xf32>, vector<32x512xf32>, vector<32x512xf32> -> vector<32x512xf32>
    %c3_27 = arith.constant 3 : index
    %c0_28 = arith.constant 0 : index
    %c0_29 = arith.constant 0 : index
    %37 = vector.load %arg4[%c3_27, %c0_28, %c0_29] : memref<9x32x1xf32, #tpu.memory_space<vmem>>, vector<1x32x1xf32>
    %38 = vector.shape_cast %37 : vector<1x32x1xf32> to vector<32x1xf32>
    %39 = vector.broadcast %38 : vector<32x1xf32> to vector<32x512xf32>
    %40 = arith.addf %36, %39 : vector<32x512xf32>
    %cst_30 = arith.constant 0.000000e+00 : f32
    %41 = vector.broadcast %cst_30 : f32 to vector<32x512xf32>
    %42 = arith.maximumf %40, %41 : vector<32x512xf32>
    %c4 = arith.constant 4 : index
    %c0_31 = arith.constant 0 : index
    %c0_32 = arith.constant 0 : index
    %43 = vector.load %arg3[%c4, %c0_31, %c0_32] : memref<9x32x32xf32, #tpu.memory_space<vmem>>, vector<1x32x32xf32>
    %44 = vector.shape_cast %43 : vector<1x32x32xf32> to vector<32x32xf32>
    %cst_33 = arith.constant dense<0.000000e+00> : vector<32x512xf32>
    %45 = tpu.matmul %44, %42, %cst_33 {dimension_numbers = #tpu.dot_dimension_numbers<[1], [0], [0], [1], [0, 0, 1, 1], [], []>} : vector<32x32xf32>, vector<32x512xf32>, vector<32x512xf32> -> vector<32x512xf32>
    %c4_34 = arith.constant 4 : index
    %c0_35 = arith.constant 0 : index
    %c0_36 = arith.constant 0 : index
    %46 = vector.load %arg4[%c4_34, %c0_35, %c0_36] : memref<9x32x1xf32, #tpu.memory_space<vmem>>, vector<1x32x1xf32>
    %47 = vector.shape_cast %46 : vector<1x32x1xf32> to vector<32x1xf32>
    %48 = vector.broadcast %47 : vector<32x1xf32> to vector<32x512xf32>
    %49 = arith.addf %45, %48 : vector<32x512xf32>
    %cst_37 = arith.constant 0.000000e+00 : f32
    %50 = vector.broadcast %cst_37 : f32 to vector<32x512xf32>
    %51 = arith.maximumf %49, %50 : vector<32x512xf32>
    %c5 = arith.constant 5 : index
    %c0_38 = arith.constant 0 : index
    %c0_39 = arith.constant 0 : index
    %52 = vector.load %arg3[%c5, %c0_38, %c0_39] : memref<9x32x32xf32, #tpu.memory_space<vmem>>, vector<1x32x32xf32>
    %53 = vector.shape_cast %52 : vector<1x32x32xf32> to vector<32x32xf32>
    %cst_40 = arith.constant dense<0.000000e+00> : vector<32x512xf32>
    %54 = tpu.matmul %53, %51, %cst_40 {dimension_numbers = #tpu.dot_dimension_numbers<[1], [0], [0], [1], [0, 0, 1, 1], [], []>} : vector<32x32xf32>, vector<32x512xf32>, vector<32x512xf32> -> vector<32x512xf32>
    %c5_41 = arith.constant 5 : index
    %c0_42 = arith.constant 0 : index
    %c0_43 = arith.constant 0 : index
    %55 = vector.load %arg4[%c5_41, %c0_42, %c0_43] : memref<9x32x1xf32, #tpu.memory_space<vmem>>, vector<1x32x1xf32>
    %56 = vector.shape_cast %55 : vector<1x32x1xf32> to vector<32x1xf32>
    %57 = vector.broadcast %56 : vector<32x1xf32> to vector<32x512xf32>
    %58 = arith.addf %54, %57 : vector<32x512xf32>
    %cst_44 = arith.constant 0.000000e+00 : f32
    %59 = vector.broadcast %cst_44 : f32 to vector<32x512xf32>
    %60 = arith.maximumf %58, %59 : vector<32x512xf32>
    %61 = arith.addf %33, %60 : vector<32x512xf32>
    %c6 = arith.constant 6 : index
    %c0_45 = arith.constant 0 : index
    %c0_46 = arith.constant 0 : index
    %62 = vector.load %arg3[%c6, %c0_45, %c0_46] : memref<9x32x32xf32, #tpu.memory_space<vmem>>, vector<1x32x32xf32>
    %63 = vector.shape_cast %62 : vector<1x32x32xf32> to vector<32x32xf32>
    %cst_47 = arith.constant dense<0.000000e+00> : vector<32x512xf32>
    %64 = tpu.matmul %63, %61, %cst_47 {dimension_numbers = #tpu.dot_dimension_numbers<[1], [0], [0], [1], [0, 0, 1, 1], [], []>} : vector<32x32xf32>, vector<32x512xf32>, vector<32x512xf32> -> vector<32x512xf32>
    %c6_48 = arith.constant 6 : index
    %c0_49 = arith.constant 0 : index
    %c0_50 = arith.constant 0 : index
    %65 = vector.load %arg4[%c6_48, %c0_49, %c0_50] : memref<9x32x1xf32, #tpu.memory_space<vmem>>, vector<1x32x1xf32>
    %66 = vector.shape_cast %65 : vector<1x32x1xf32> to vector<32x1xf32>
    %67 = vector.broadcast %66 : vector<32x1xf32> to vector<32x512xf32>
    %68 = arith.addf %64, %67 : vector<32x512xf32>
    %cst_51 = arith.constant 0.000000e+00 : f32
    %69 = vector.broadcast %cst_51 : f32 to vector<32x512xf32>
    %70 = arith.maximumf %68, %69 : vector<32x512xf32>
    %c7 = arith.constant 7 : index
    %c0_52 = arith.constant 0 : index
    %c0_53 = arith.constant 0 : index
    %71 = vector.load %arg3[%c7, %c0_52, %c0_53] : memref<9x32x32xf32, #tpu.memory_space<vmem>>, vector<1x32x32xf32>
    %72 = vector.shape_cast %71 : vector<1x32x32xf32> to vector<32x32xf32>
    %cst_54 = arith.constant dense<0.000000e+00> : vector<32x512xf32>
    %73 = tpu.matmul %72, %70, %cst_54 {dimension_numbers = #tpu.dot_dimension_numbers<[1], [0], [0], [1], [0, 0, 1, 1], [], []>} : vector<32x32xf32>, vector<32x512xf32>, vector<32x512xf32> -> vector<32x512xf32>
    %c7_55 = arith.constant 7 : index
    %c0_56 = arith.constant 0 : index
    %c0_57 = arith.constant 0 : index
    %74 = vector.load %arg4[%c7_55, %c0_56, %c0_57] : memref<9x32x1xf32, #tpu.memory_space<vmem>>, vector<1x32x1xf32>
    %75 = vector.shape_cast %74 : vector<1x32x1xf32> to vector<32x1xf32>
    %76 = vector.broadcast %75 : vector<32x1xf32> to vector<32x512xf32>
    %77 = arith.addf %73, %76 : vector<32x512xf32>
    %cst_58 = arith.constant 0.000000e+00 : f32
    %78 = vector.broadcast %cst_58 : f32 to vector<32x512xf32>
    %79 = arith.maximumf %77, %78 : vector<32x512xf32>
    %c8 = arith.constant 8 : index
    %c0_59 = arith.constant 0 : index
    %c0_60 = arith.constant 0 : index
    %80 = vector.load %arg3[%c8, %c0_59, %c0_60] : memref<9x32x32xf32, #tpu.memory_space<vmem>>, vector<1x32x32xf32>
    %81 = vector.shape_cast %80 : vector<1x32x32xf32> to vector<32x32xf32>
    %cst_61 = arith.constant dense<0.000000e+00> : vector<32x512xf32>
    %82 = tpu.matmul %81, %79, %cst_61 {dimension_numbers = #tpu.dot_dimension_numbers<[1], [0], [0], [1], [0, 0, 1, 1], [], []>} : vector<32x32xf32>, vector<32x512xf32>, vector<32x512xf32> -> vector<32x512xf32>
    %c8_62 = arith.constant 8 : index
    %c0_63 = arith.constant 0 : index
    %c0_64 = arith.constant 0 : index
    %83 = vector.load %arg4[%c8_62, %c0_63, %c0_64] : memref<9x32x1xf32, #tpu.memory_space<vmem>>, vector<1x32x1xf32>
    %84 = vector.shape_cast %83 : vector<1x32x1xf32> to vector<32x1xf32>
    %85 = vector.broadcast %84 : vector<32x1xf32> to vector<32x512xf32>
    %86 = arith.addf %82, %85 : vector<32x512xf32>
    %87 = vector.extract_strided_slice %86 {offsets = [3, 0], sizes = [1, 512], strides = [1, 1]} : vector<32x512xf32> to vector<1x512xf32>
    %cst_65 = arith.constant 0.924196243 : f32
    %88 = vector.broadcast %cst_65 : f32 to vector<1x512xf32>
    %89 = arith.mulf %88, %87 : vector<1x512xf32>
    %cst_66 = arith.constant 2.000000e+01 : f32
    %90 = vector.broadcast %cst_66 : f32 to vector<1x512xf32>
    %91 = arith.cmpf ogt, %89, %90 : vector<1x512xf32>
    %cst_67 = arith.constant 2.000000e+01 : f32
    %92 = vector.broadcast %cst_67 : f32 to vector<1x512xf32>
    %93 = arith.minimumf %89, %92 : vector<1x512xf32>
    %94 = math.exp %93 : vector<1x512xf32>
    %95 = math.log1p %94 : vector<1x512xf32>
    %cst_68 = arith.constant 1.08202124 : f32
    %96 = vector.broadcast %cst_68 : f32 to vector<1x512xf32>
    %97 = arith.mulf %95, %96 : vector<1x512xf32>
    %98 = arith.select %91, %87, %97 : vector<1x512xi1>, vector<1x512xf32>
    %cst_69 = arith.constant 2.500000e-01 : f32
    %99 = vector.broadcast %cst_69 : f32 to vector<1x512xf32>
    %100 = arith.addf %98, %99 : vector<1x512xf32>
    %cst_70 = arith.constant 1.000000e+02 : f32
    %101 = vector.broadcast %cst_70 : f32 to vector<1x512xf32>
    %102 = arith.minimumf %100, %101 : vector<1x512xf32>
    %cst_71 = arith.constant 1.000000e+00 : f32
    %103 = vector.broadcast %cst_71 : f32 to vector<1x512xf32>
    %104 = arith.divf %103, %102 : vector<1x512xf32>
    %105 = vector.extract_strided_slice %86 {offsets = [0, 0], sizes = [3, 512], strides = [1, 1]} : vector<32x512xf32> to vector<3x512xf32>
    %106 = vector.broadcast %104 : vector<1x512xf32> to vector<3x512xf32>
    %107 = arith.mulf %105, %106 : vector<3x512xf32>
    %108 = vector.broadcast %0 : vector<3x1xf32> to vector<3x512xf32>
    %109 = arith.addf %107, %108 : vector<3x512xf32>
    %c0_72 = arith.constant 0 : index
    %c0_73 = arith.constant 0 : index
    %110 = arith.index_cast %2 : i32 to index
    %111 = vector.load %arg6[%c0_72, %c0_73, %110] : memref<1x3x2048xf32, #tpu.memory_space<vmem>>, vector<1x3x512xf32>
    %112 = vector.shape_cast %111 : vector<1x3x512xf32> to vector<3x512xf32>
    %113 = vector.shape_cast %109 : vector<3x512xf32> to vector<1x3x512xf32>
    tpu.vector_store %arg6[%c0_72, %c0_73, %110], %113 {strides = array<i32>} : memref<1x3x2048xf32, #tpu.memory_space<vmem>>, vector<1x3x512xf32>,
    %c1_i32 = arith.constant 1 : i32
    %c512_i32_74 = arith.constant 512 : i32
    %114 = arith.muli %c1_i32, %c512_i32_74 : i32
    %115 = tpu.assume_multiple %114, 128 : i32
    %c0_75 = arith.constant 0 : index
    %c0_76 = arith.constant 0 : index
    %116 = arith.index_cast %115 : i32 to index
    %117 = vector.load %arg2[%c0_75, %c0_76, %116] : memref<1x32x2048xf32, #tpu.memory_space<vmem>>, vector<1x32x512xf32>
    %118 = vector.shape_cast %117 : vector<1x32x512xf32> to vector<32x512xf32>
    %c0_77 = arith.constant 0 : index
    %c0_78 = arith.constant 0 : index
    %c0_79 = arith.constant 0 : index
    %119 = vector.load %arg3[%c0_77, %c0_78, %c0_79] : memref<9x32x32xf32, #tpu.memory_space<vmem>>, vector<1x32x32xf32>
    %120 = vector.shape_cast %119 : vector<1x32x32xf32> to vector<32x32xf32>
    %cst_80 = arith.constant dense<0.000000e+00> : vector<32x512xf32>
    %121 = tpu.matmul %120, %118, %cst_80 {dimension_numbers = #tpu.dot_dimension_numbers<[1], [0], [0], [1], [0, 0, 1, 1], [], []>} : vector<32x32xf32>, vector<32x512xf32>, vector<32x512xf32> -> vector<32x512xf32>
    %c0_81 = arith.constant 0 : index
    %c0_82 = arith.constant 0 : index
    %c0_83 = arith.constant 0 : index
    %122 = vector.load %arg4[%c0_81, %c0_82, %c0_83] : memref<9x32x1xf32, #tpu.memory_space<vmem>>, vector<1x32x1xf32>
    %123 = vector.shape_cast %122 : vector<1x32x1xf32> to vector<32x1xf32>
    %124 = vector.broadcast %123 : vector<32x1xf32> to vector<32x512xf32>
    %125 = arith.addf %121, %124 : vector<32x512xf32>
    %cst_84 = arith.constant 0.000000e+00 : f32
    %126 = vector.broadcast %cst_84 : f32 to vector<32x512xf32>
    %127 = arith.maximumf %125, %126 : vector<32x512xf32>
    %c1_85 = arith.constant 1 : index
    %c0_86 = arith.constant 0 : index
    %c0_87 = arith.constant 0 : index
    %128 = vector.load %arg3[%c1_85, %c0_86, %c0_87] : memref<9x32x32xf32, #tpu.memory_space<vmem>>, vector<1x32x32xf32>
    %129 = vector.shape_cast %128 : vector<1x32x32xf32> to vector<32x32xf32>
    %cst_88 = arith.constant dense<0.000000e+00> : vector<32x512xf32>
    %130 = tpu.matmul %129, %127, %cst_88 {dimension_numbers = #tpu.dot_dimension_numbers<[1], [0], [0], [1], [0, 0, 1, 1], [], []>} : vector<32x32xf32>, vector<32x512xf32>, vector<32x512xf32> -> vector<32x512xf32>
    %c1_89 = arith.constant 1 : index
    %c0_90 = arith.constant 0 : index
    %c0_91 = arith.constant 0 : index
    %131 = vector.load %arg4[%c1_89, %c0_90, %c0_91] : memref<9x32x1xf32, #tpu.memory_space<vmem>>, vector<1x32x1xf32>
    %132 = vector.shape_cast %131 : vector<1x32x1xf32> to vector<32x1xf32>
    %133 = vector.broadcast %132 : vector<32x1xf32> to vector<32x512xf32>
    %134 = arith.addf %130, %133 : vector<32x512xf32>
    %cst_92 = arith.constant 0.000000e+00 : f32
    %135 = vector.broadcast %cst_92 : f32 to vector<32x512xf32>
    %136 = arith.maximumf %134, %135 : vector<32x512xf32>
    %c2_93 = arith.constant 2 : index
    %c0_94 = arith.constant 0 : index
    %c0_95 = arith.constant 0 : index
    %137 = vector.load %arg3[%c2_93, %c0_94, %c0_95] : memref<9x32x32xf32, #tpu.memory_space<vmem>>, vector<1x32x32xf32>
    %138 = vector.shape_cast %137 : vector<1x32x32xf32> to vector<32x32xf32>
    %cst_96 = arith.constant dense<0.000000e+00> : vector<32x512xf32>
    %139 = tpu.matmul %138, %136, %cst_96 {dimension_numbers = #tpu.dot_dimension_numbers<[1], [0], [0], [1], [0, 0, 1, 1], [], []>} : vector<32x32xf32>, vector<32x512xf32>, vector<32x512xf32> -> vector<32x512xf32>
    %c2_97 = arith.constant 2 : index
    %c0_98 = arith.constant 0 : index
    %c0_99 = arith.constant 0 : index
    %140 = vector.load %arg4[%c2_97, %c0_98, %c0_99] : memref<9x32x1xf32, #tpu.memory_space<vmem>>, vector<1x32x1xf32>
    %141 = vector.shape_cast %140 : vector<1x32x1xf32> to vector<32x1xf32>
    %142 = vector.broadcast %141 : vector<32x1xf32> to vector<32x512xf32>
    %143 = arith.addf %139, %142 : vector<32x512xf32>
    %cst_100 = arith.constant 0.000000e+00 : f32
    %144 = vector.broadcast %cst_100 : f32 to vector<32x512xf32>
    %145 = arith.maximumf %143, %144 : vector<32x512xf32>
    %146 = arith.addf %118, %145 : vector<32x512xf32>
    %c3_101 = arith.constant 3 : index
    %c0_102 = arith.constant 0 : index
    %c0_103 = arith.constant 0 : index
    %147 = vector.load %arg3[%c3_101, %c0_102, %c0_103] : memref<9x32x32xf32, #tpu.memory_space<vmem>>, vector<1x32x32xf32>
    %148 = vector.shape_cast %147 : vector<1x32x32xf32> to vector<32x32xf32>
    %cst_104 = arith.constant dense<0.000000e+00> : vector<32x512xf32>
    %149 = tpu.matmul %148, %146, %cst_104 {dimension_numbers = #tpu.dot_dimension_numbers<[1], [0], [0], [1], [0, 0, 1, 1], [], []>} : vector<32x32xf32>, vector<32x512xf32>, vector<32x512xf32> -> vector<32x512xf32>
    %c3_105 = arith.constant 3 : index
    %c0_106 = arith.constant 0 : index
    %c0_107 = arith.constant 0 : index
    %150 = vector.load %arg4[%c3_105, %c0_106, %c0_107] : memref<9x32x1xf32, #tpu.memory_space<vmem>>, vector<1x32x1xf32>
    %151 = vector.shape_cast %150 : vector<1x32x1xf32> to vector<32x1xf32>
    %152 = vector.broadcast %151 : vector<32x1xf32> to vector<32x512xf32>
    %153 = arith.addf %149, %152 : vector<32x512xf32>
    %cst_108 = arith.constant 0.000000e+00 : f32
    %154 = vector.broadcast %cst_108 : f32 to vector<32x512xf32>
    %155 = arith.maximumf %153, %154 : vector<32x512xf32>
    %c4_109 = arith.constant 4 : index
    %c0_110 = arith.constant 0 : index
    %c0_111 = arith.constant 0 : index
    %156 = vector.load %arg3[%c4_109, %c0_110, %c0_111] : memref<9x32x32xf32, #tpu.memory_space<vmem>>, vector<1x32x32xf32>
    %157 = vector.shape_cast %156 : vector<1x32x32xf32> to vector<32x32xf32>
    %cst_112 = arith.constant dense<0.000000e+00> : vector<32x512xf32>
    %158 = tpu.matmul %157, %155, %cst_112 {dimension_numbers = #tpu.dot_dimension_numbers<[1], [0], [0], [1], [0, 0, 1, 1], [], []>} : vector<32x32xf32>, vector<32x512xf32>, vector<32x512xf32> -> vector<32x512xf32>
    %c4_113 = arith.constant 4 : index
    %c0_114 = arith.constant 0 : index
    %c0_115 = arith.constant 0 : index
    %159 = vector.load %arg4[%c4_113, %c0_114, %c0_115] : memref<9x32x1xf32, #tpu.memory_space<vmem>>, vector<1x32x1xf32>
    %160 = vector.shape_cast %159 : vector<1x32x1xf32> to vector<32x1xf32>
    %161 = vector.broadcast %160 : vector<32x1xf32> to vector<32x512xf32>
    %162 = arith.addf %158, %161 : vector<32x512xf32>
    %cst_116 = arith.constant 0.000000e+00 : f32
    %163 = vector.broadcast %cst_116 : f32 to vector<32x512xf32>
    %164 = arith.maximumf %162, %163 : vector<32x512xf32>
    %c5_117 = arith.constant 5 : index
    %c0_118 = arith.constant 0 : index
    %c0_119 = arith.constant 0 : index
    %165 = vector.load %arg3[%c5_117, %c0_118, %c0_119] : memref<9x32x32xf32, #tpu.memory_space<vmem>>, vector<1x32x32xf32>
    %166 = vector.shape_cast %165 : vector<1x32x32xf32> to vector<32x32xf32>
    %cst_120 = arith.constant dense<0.000000e+00> : vector<32x512xf32>
    %167 = tpu.matmul %166, %164, %cst_120 {dimension_numbers = #tpu.dot_dimension_numbers<[1], [0], [0], [1], [0, 0, 1, 1], [], []>} : vector<32x32xf32>, vector<32x512xf32>, vector<32x512xf32> -> vector<32x512xf32>
    %c5_121 = arith.constant 5 : index
    %c0_122 = arith.constant 0 : index
    %c0_123 = arith.constant 0 : index
    %168 = vector.load %arg4[%c5_121, %c0_122, %c0_123] : memref<9x32x1xf32, #tpu.memory_space<vmem>>, vector<1x32x1xf32>
    %169 = vector.shape_cast %168 : vector<1x32x1xf32> to vector<32x1xf32>
    %170 = vector.broadcast %169 : vector<32x1xf32> to vector<32x512xf32>
    %171 = arith.addf %167, %170 : vector<32x512xf32>
    %cst_124 = arith.constant 0.000000e+00 : f32
    %172 = vector.broadcast %cst_124 : f32 to vector<32x512xf32>
    %173 = arith.maximumf %171, %172 : vector<32x512xf32>
    %174 = arith.addf %146, %173 : vector<32x512xf32>
    %c6_125 = arith.constant 6 : index
    %c0_126 = arith.constant 0 : index
    %c0_127 = arith.constant 0 : index
    %175 = vector.load %arg3[%c6_125, %c0_126, %c0_127] : memref<9x32x32xf32, #tpu.memory_space<vmem>>, vector<1x32x32xf32>
    %176 = vector.shape_cast %175 : vector<1x32x32xf32> to vector<32x32xf32>
    %cst_128 = arith.constant dense<0.000000e+00> : vector<32x512xf32>
    %177 = tpu.matmul %176, %174, %cst_128 {dimension_numbers = #tpu.dot_dimension_numbers<[1], [0], [0], [1], [0, 0, 1, 1], [], []>} : vector<32x32xf32>, vector<32x512xf32>, vector<32x512xf32> -> vector<32x512xf32>
    %c6_129 = arith.constant 6 : index
    %c0_130 = arith.constant 0 : index
    %c0_131 = arith.constant 0 : index
    %178 = vector.load %arg4[%c6_129, %c0_130, %c0_131] : memref<9x32x1xf32, #tpu.memory_space<vmem>>, vector<1x32x1xf32>
    %179 = vector.shape_cast %178 : vector<1x32x1xf32> to vector<32x1xf32>
    %180 = vector.broadcast %179 : vector<32x1xf32> to vector<32x512xf32>
    %181 = arith.addf %177, %180 : vector<32x512xf32>
    %cst_132 = arith.constant 0.000000e+00 : f32
    %182 = vector.broadcast %cst_132 : f32 to vector<32x512xf32>
    %183 = arith.maximumf %181, %182 : vector<32x512xf32>
    %c7_133 = arith.constant 7 : index
    %c0_134 = arith.constant 0 : index
    %c0_135 = arith.constant 0 : index
    %184 = vector.load %arg3[%c7_133, %c0_134, %c0_135] : memref<9x32x32xf32, #tpu.memory_space<vmem>>, vector<1x32x32xf32>
    %185 = vector.shape_cast %184 : vector<1x32x32xf32> to vector<32x32xf32>
    %cst_136 = arith.constant dense<0.000000e+00> : vector<32x512xf32>
    %186 = tpu.matmul %185, %183, %cst_136 {dimension_numbers = #tpu.dot_dimension_numbers<[1], [0], [0], [1], [0, 0, 1, 1], [], []>} : vector<32x32xf32>, vector<32x512xf32>, vector<32x512xf32> -> vector<32x512xf32>
    %c7_137 = arith.constant 7 : index
    %c0_138 = arith.constant 0 : index
    %c0_139 = arith.constant 0 : index
    %187 = vector.load %arg4[%c7_137, %c0_138, %c0_139] : memref<9x32x1xf32, #tpu.memory_space<vmem>>, vector<1x32x1xf32>
    %188 = vector.shape_cast %187 : vector<1x32x1xf32> to vector<32x1xf32>
    %189 = vector.broadcast %188 : vector<32x1xf32> to vector<32x512xf32>
    %190 = arith.addf %186, %189 : vector<32x512xf32>
    %cst_140 = arith.constant 0.000000e+00 : f32
    %191 = vector.broadcast %cst_140 : f32 to vector<32x512xf32>
    %192 = arith.maximumf %190, %191 : vector<32x512xf32>
    %c8_141 = arith.constant 8 : index
    %c0_142 = arith.constant 0 : index
    %c0_143 = arith.constant 0 : index
    %193 = vector.load %arg3[%c8_141, %c0_142, %c0_143] : memref<9x32x32xf32, #tpu.memory_space<vmem>>, vector<1x32x32xf32>
    %194 = vector.shape_cast %193 : vector<1x32x32xf32> to vector<32x32xf32>
    %cst_144 = arith.constant dense<0.000000e+00> : vector<32x512xf32>
    %195 = tpu.matmul %194, %192, %cst_144 {dimension_numbers = #tpu.dot_dimension_numbers<[1], [0], [0], [1], [0, 0, 1, 1], [], []>} : vector<32x32xf32>, vector<32x512xf32>, vector<32x512xf32> -> vector<32x512xf32>
    %c8_145 = arith.constant 8 : index
    %c0_146 = arith.constant 0 : index
    %c0_147 = arith.constant 0 : index
    %196 = vector.load %arg4[%c8_145, %c0_146, %c0_147] : memref<9x32x1xf32, #tpu.memory_space<vmem>>, vector<1x32x1xf32>
    %197 = vector.shape_cast %196 : vector<1x32x1xf32> to vector<32x1xf32>
    %198 = vector.broadcast %197 : vector<32x1xf32> to vector<32x512xf32>
    %199 = arith.addf %195, %198 : vector<32x512xf32>
    %200 = vector.extract_strided_slice %199 {offsets = [3, 0], sizes = [1, 512], strides = [1, 1]} : vector<32x512xf32> to vector<1x512xf32>
    %cst_148 = arith.constant 0.924196243 : f32
    %201 = vector.broadcast %cst_148 : f32 to vector<1x512xf32>
    %202 = arith.mulf %201, %200 : vector<1x512xf32>
    %cst_149 = arith.constant 2.000000e+01 : f32
    %203 = vector.broadcast %cst_149 : f32 to vector<1x512xf32>
    %204 = arith.cmpf ogt, %202, %203 : vector<1x512xf32>
    %cst_150 = arith.constant 2.000000e+01 : f32
    %205 = vector.broadcast %cst_150 : f32 to vector<1x512xf32>
    %206 = arith.minimumf %202, %205 : vector<1x512xf32>
    %207 = math.exp %206 : vector<1x512xf32>
    %208 = math.log1p %207 : vector<1x512xf32>
    %cst_151 = arith.constant 1.08202124 : f32
    %209 = vector.broadcast %cst_151 : f32 to vector<1x512xf32>
    %210 = arith.mulf %208, %209 : vector<1x512xf32>
    %211 = arith.select %204, %200, %210 : vector<1x512xi1>, vector<1x512xf32>
    %cst_152 = arith.constant 2.500000e-01 : f32
    %212 = vector.broadcast %cst_152 : f32 to vector<1x512xf32>
    %213 = arith.addf %211, %212 : vector<1x512xf32>
    %cst_153 = arith.constant 1.000000e+02 : f32
    %214 = vector.broadcast %cst_153 : f32 to vector<1x512xf32>
    %215 = arith.minimumf %213, %214 : vector<1x512xf32>
    %cst_154 = arith.constant 1.000000e+00 : f32
    %216 = vector.broadcast %cst_154 : f32 to vector<1x512xf32>
    %217 = arith.divf %216, %215 : vector<1x512xf32>
    %218 = vector.extract_strided_slice %199 {offsets = [0, 0], sizes = [3, 512], strides = [1, 1]} : vector<32x512xf32> to vector<3x512xf32>
    %219 = vector.broadcast %217 : vector<1x512xf32> to vector<3x512xf32>
    %220 = arith.mulf %218, %219 : vector<3x512xf32>
    %221 = vector.broadcast %0 : vector<3x1xf32> to vector<3x512xf32>
    %222 = arith.addf %220, %221 : vector<3x512xf32>
    %c0_155 = arith.constant 0 : index
    %c0_156 = arith.constant 0 : index
    %223 = arith.index_cast %115 : i32 to index
    %224 = vector.load %arg6[%c0_155, %c0_156, %223] : memref<1x3x2048xf32, #tpu.memory_space<vmem>>, vector<1x3x512xf32>
    %225 = vector.shape_cast %224 : vector<1x3x512xf32> to vector<3x512xf32>
    %226 = vector.shape_cast %222 : vector<3x512xf32> to vector<1x3x512xf32>
    tpu.vector_store %arg6[%c0_155, %c0_156, %223], %226 {strides = array<i32>} : memref<1x3x2048xf32, #tpu.memory_space<vmem>>, vector<1x3x512xf32>,
    %c2_i32 = arith.constant 2 : i32
    %c512_i32_157 = arith.constant 512 : i32
    %227 = arith.muli %c2_i32, %c512_i32_157 : i32
    %228 = tpu.assume_multiple %227, 128 : i32
    %c0_158 = arith.constant 0 : index
    %c0_159 = arith.constant 0 : index
    %229 = arith.index_cast %228 : i32 to index
    %230 = vector.load %arg2[%c0_158, %c0_159, %229] : memref<1x32x2048xf32, #tpu.memory_space<vmem>>, vector<1x32x512xf32>
    %231 = vector.shape_cast %230 : vector<1x32x512xf32> to vector<32x512xf32>
    %c0_160 = arith.constant 0 : index
    %c0_161 = arith.constant 0 : index
    %c0_162 = arith.constant 0 : index
    %232 = vector.load %arg3[%c0_160, %c0_161, %c0_162] : memref<9x32x32xf32, #tpu.memory_space<vmem>>, vector<1x32x32xf32>
    %233 = vector.shape_cast %232 : vector<1x32x32xf32> to vector<32x32xf32>
    %cst_163 = arith.constant dense<0.000000e+00> : vector<32x512xf32>
    %234 = tpu.matmul %233, %231, %cst_163 {dimension_numbers = #tpu.dot_dimension_numbers<[1], [0], [0], [1], [0, 0, 1, 1], [], []>} : vector<32x32xf32>, vector<32x512xf32>, vector<32x512xf32> -> vector<32x512xf32>
    %c0_164 = arith.constant 0 : index
    %c0_165 = arith.constant 0 : index
    %c0_166 = arith.constant 0 : index
    %235 = vector.load %arg4[%c0_164, %c0_165, %c0_166] : memref<9x32x1xf32, #tpu.memory_space<vmem>>, vector<1x32x1xf32>
    %236 = vector.shape_cast %235 : vector<1x32x1xf32> to vector<32x1xf32>
    %237 = vector.broadcast %236 : vector<32x1xf32> to vector<32x512xf32>
    %238 = arith.addf %234, %237 : vector<32x512xf32>
    %cst_167 = arith.constant 0.000000e+00 : f32
    %239 = vector.broadcast %cst_167 : f32 to vector<32x512xf32>
    %240 = arith.maximumf %238, %239 : vector<32x512xf32>
    %c1_168 = arith.constant 1 : index
    %c0_169 = arith.constant 0 : index
    %c0_170 = arith.constant 0 : index
    %241 = vector.load %arg3[%c1_168, %c0_169, %c0_170] : memref<9x32x32xf32, #tpu.memory_space<vmem>>, vector<1x32x32xf32>
    %242 = vector.shape_cast %241 : vector<1x32x32xf32> to vector<32x32xf32>
    %cst_171 = arith.constant dense<0.000000e+00> : vector<32x512xf32>
    %243 = tpu.matmul %242, %240, %cst_171 {dimension_numbers = #tpu.dot_dimension_numbers<[1], [0], [0], [1], [0, 0, 1, 1], [], []>} : vector<32x32xf32>, vector<32x512xf32>, vector<32x512xf32> -> vector<32x512xf32>
    %c1_172 = arith.constant 1 : index
    %c0_173 = arith.constant 0 : index
    %c0_174 = arith.constant 0 : index
    %244 = vector.load %arg4[%c1_172, %c0_173, %c0_174] : memref<9x32x1xf32, #tpu.memory_space<vmem>>, vector<1x32x1xf32>
    %245 = vector.shape_cast %244 : vector<1x32x1xf32> to vector<32x1xf32>
    %246 = vector.broadcast %245 : vector<32x1xf32> to vector<32x512xf32>
    %247 = arith.addf %243, %246 : vector<32x512xf32>
    %cst_175 = arith.constant 0.000000e+00 : f32
    %248 = vector.broadcast %cst_175 : f32 to vector<32x512xf32>
    %249 = arith.maximumf %247, %248 : vector<32x512xf32>
    %c2_176 = arith.constant 2 : index
    %c0_177 = arith.constant 0 : index
    %c0_178 = arith.constant 0 : index
    %250 = vector.load %arg3[%c2_176, %c0_177, %c0_178] : memref<9x32x32xf32, #tpu.memory_space<vmem>>, vector<1x32x32xf32>
    %251 = vector.shape_cast %250 : vector<1x32x32xf32> to vector<32x32xf32>
    %cst_179 = arith.constant dense<0.000000e+00> : vector<32x512xf32>
    %252 = tpu.matmul %251, %249, %cst_179 {dimension_numbers = #tpu.dot_dimension_numbers<[1], [0], [0], [1], [0, 0, 1, 1], [], []>} : vector<32x32xf32>, vector<32x512xf32>, vector<32x512xf32> -> vector<32x512xf32>
    %c2_180 = arith.constant 2 : index
    %c0_181 = arith.constant 0 : index
    %c0_182 = arith.constant 0 : index
    %253 = vector.load %arg4[%c2_180, %c0_181, %c0_182] : memref<9x32x1xf32, #tpu.memory_space<vmem>>, vector<1x32x1xf32>
    %254 = vector.shape_cast %253 : vector<1x32x1xf32> to vector<32x1xf32>
    %255 = vector.broadcast %254 : vector<32x1xf32> to vector<32x512xf32>
    %256 = arith.addf %252, %255 : vector<32x512xf32>
    %cst_183 = arith.constant 0.000000e+00 : f32
    %257 = vector.broadcast %cst_183 : f32 to vector<32x512xf32>
    %258 = arith.maximumf %256, %257 : vector<32x512xf32>
    %259 = arith.addf %231, %258 : vector<32x512xf32>
    %c3_184 = arith.constant 3 : index
    %c0_185 = arith.constant 0 : index
    %c0_186 = arith.constant 0 : index
    %260 = vector.load %arg3[%c3_184, %c0_185, %c0_186] : memref<9x32x32xf32, #tpu.memory_space<vmem>>, vector<1x32x32xf32>
    %261 = vector.shape_cast %260 : vector<1x32x32xf32> to vector<32x32xf32>
    %cst_187 = arith.constant dense<0.000000e+00> : vector<32x512xf32>
    %262 = tpu.matmul %261, %259, %cst_187 {dimension_numbers = #tpu.dot_dimension_numbers<[1], [0], [0], [1], [0, 0, 1, 1], [], []>} : vector<32x32xf32>, vector<32x512xf32>, vector<32x512xf32> -> vector<32x512xf32>
    %c3_188 = arith.constant 3 : index
    %c0_189 = arith.constant 0 : index
    %c0_190 = arith.constant 0 : index
    %263 = vector.load %arg4[%c3_188, %c0_189, %c0_190] : memref<9x32x1xf32, #tpu.memory_space<vmem>>, vector<1x32x1xf32>
    %264 = vector.shape_cast %263 : vector<1x32x1xf32> to vector<32x1xf32>
    %265 = vector.broadcast %264 : vector<32x1xf32> to vector<32x512xf32>
    %266 = arith.addf %262, %265 : vector<32x512xf32>
    %cst_191 = arith.constant 0.000000e+00 : f32
    %267 = vector.broadcast %cst_191 : f32 to vector<32x512xf32>
    %268 = arith.maximumf %266, %267 : vector<32x512xf32>
    %c4_192 = arith.constant 4 : index
    %c0_193 = arith.constant 0 : index
    %c0_194 = arith.constant 0 : index
    %269 = vector.load %arg3[%c4_192, %c0_193, %c0_194] : memref<9x32x32xf32, #tpu.memory_space<vmem>>, vector<1x32x32xf32>
    %270 = vector.shape_cast %269 : vector<1x32x32xf32> to vector<32x32xf32>
    %cst_195 = arith.constant dense<0.000000e+00> : vector<32x512xf32>
    %271 = tpu.matmul %270, %268, %cst_195 {dimension_numbers = #tpu.dot_dimension_numbers<[1], [0], [0], [1], [0, 0, 1, 1], [], []>} : vector<32x32xf32>, vector<32x512xf32>, vector<32x512xf32> -> vector<32x512xf32>
    %c4_196 = arith.constant 4 : index
    %c0_197 = arith.constant 0 : index
    %c0_198 = arith.constant 0 : index
    %272 = vector.load %arg4[%c4_196, %c0_197, %c0_198] : memref<9x32x1xf32, #tpu.memory_space<vmem>>, vector<1x32x1xf32>
    %273 = vector.shape_cast %272 : vector<1x32x1xf32> to vector<32x1xf32>
    %274 = vector.broadcast %273 : vector<32x1xf32> to vector<32x512xf32>
    %275 = arith.addf %271, %274 : vector<32x512xf32>
    %cst_199 = arith.constant 0.000000e+00 : f32
    %276 = vector.broadcast %cst_199 : f32 to vector<32x512xf32>
    %277 = arith.maximumf %275, %276 : vector<32x512xf32>
    %c5_200 = arith.constant 5 : index
    %c0_201 = arith.constant 0 : index
    %c0_202 = arith.constant 0 : index
    %278 = vector.load %arg3[%c5_200, %c0_201, %c0_202] : memref<9x32x32xf32, #tpu.memory_space<vmem>>, vector<1x32x32xf32>
    %279 = vector.shape_cast %278 : vector<1x32x32xf32> to vector<32x32xf32>
    %cst_203 = arith.constant dense<0.000000e+00> : vector<32x512xf32>
    %280 = tpu.matmul %279, %277, %cst_203 {dimension_numbers = #tpu.dot_dimension_numbers<[1], [0], [0], [1], [0, 0, 1, 1], [], []>} : vector<32x32xf32>, vector<32x512xf32>, vector<32x512xf32> -> vector<32x512xf32>
    %c5_204 = arith.constant 5 : index
    %c0_205 = arith.constant 0 : index
    %c0_206 = arith.constant 0 : index
    %281 = vector.load %arg4[%c5_204, %c0_205, %c0_206] : memref<9x32x1xf32, #tpu.memory_space<vmem>>, vector<1x32x1xf32>
    %282 = vector.shape_cast %281 : vector<1x32x1xf32> to vector<32x1xf32>
    %283 = vector.broadcast %282 : vector<32x1xf32> to vector<32x512xf32>
    %284 = arith.addf %280, %283 : vector<32x512xf32>
    %cst_207 = arith.constant 0.000000e+00 : f32
    %285 = vector.broadcast %cst_207 : f32 to vector<32x512xf32>
    %286 = arith.maximumf %284, %285 : vector<32x512xf32>
    %287 = arith.addf %259, %286 : vector<32x512xf32>
    %c6_208 = arith.constant 6 : index
    %c0_209 = arith.constant 0 : index
    %c0_210 = arith.constant 0 : index
    %288 = vector.load %arg3[%c6_208, %c0_209, %c0_210] : memref<9x32x32xf32, #tpu.memory_space<vmem>>, vector<1x32x32xf32>
    %289 = vector.shape_cast %288 : vector<1x32x32xf32> to vector<32x32xf32>
    %cst_211 = arith.constant dense<0.000000e+00> : vector<32x512xf32>
    %290 = tpu.matmul %289, %287, %cst_211 {dimension_numbers = #tpu.dot_dimension_numbers<[1], [0], [0], [1], [0, 0, 1, 1], [], []>} : vector<32x32xf32>, vector<32x512xf32>, vector<32x512xf32> -> vector<32x512xf32>
    %c6_212 = arith.constant 6 : index
    %c0_213 = arith.constant 0 : index
    %c0_214 = arith.constant 0 : index
    %291 = vector.load %arg4[%c6_212, %c0_213, %c0_214] : memref<9x32x1xf32, #tpu.memory_space<vmem>>, vector<1x32x1xf32>
    %292 = vector.shape_cast %291 : vector<1x32x1xf32> to vector<32x1xf32>
    %293 = vector.broadcast %292 : vector<32x1xf32> to vector<32x512xf32>
    %294 = arith.addf %290, %293 : vector<32x512xf32>
    %cst_215 = arith.constant 0.000000e+00 : f32
    %295 = vector.broadcast %cst_215 : f32 to vector<32x512xf32>
    %296 = arith.maximumf %294, %295 : vector<32x512xf32>
    %c7_216 = arith.constant 7 : index
    %c0_217 = arith.constant 0 : index
    %c0_218 = arith.constant 0 : index
    %297 = vector.load %arg3[%c7_216, %c0_217, %c0_218] : memref<9x32x32xf32, #tpu.memory_space<vmem>>, vector<1x32x32xf32>
    %298 = vector.shape_cast %297 : vector<1x32x32xf32> to vector<32x32xf32>
    %cst_219 = arith.constant dense<0.000000e+00> : vector<32x512xf32>
    %299 = tpu.matmul %298, %296, %cst_219 {dimension_numbers = #tpu.dot_dimension_numbers<[1], [0], [0], [1], [0, 0, 1, 1], [], []>} : vector<32x32xf32>, vector<32x512xf32>, vector<32x512xf32> -> vector<32x512xf32>
    %c7_220 = arith.constant 7 : index
    %c0_221 = arith.constant 0 : index
    %c0_222 = arith.constant 0 : index
    %300 = vector.load %arg4[%c7_220, %c0_221, %c0_222] : memref<9x32x1xf32, #tpu.memory_space<vmem>>, vector<1x32x1xf32>
    %301 = vector.shape_cast %300 : vector<1x32x1xf32> to vector<32x1xf32>
    %302 = vector.broadcast %301 : vector<32x1xf32> to vector<32x512xf32>
    %303 = arith.addf %299, %302 : vector<32x512xf32>
    %cst_223 = arith.constant 0.000000e+00 : f32
    %304 = vector.broadcast %cst_223 : f32 to vector<32x512xf32>
    %305 = arith.maximumf %303, %304 : vector<32x512xf32>
    %c8_224 = arith.constant 8 : index
    %c0_225 = arith.constant 0 : index
    %c0_226 = arith.constant 0 : index
    %306 = vector.load %arg3[%c8_224, %c0_225, %c0_226] : memref<9x32x32xf32, #tpu.memory_space<vmem>>, vector<1x32x32xf32>
    %307 = vector.shape_cast %306 : vector<1x32x32xf32> to vector<32x32xf32>
    %cst_227 = arith.constant dense<0.000000e+00> : vector<32x512xf32>
    %308 = tpu.matmul %307, %305, %cst_227 {dimension_numbers = #tpu.dot_dimension_numbers<[1], [0], [0], [1], [0, 0, 1, 1], [], []>} : vector<32x32xf32>, vector<32x512xf32>, vector<32x512xf32> -> vector<32x512xf32>
    %c8_228 = arith.constant 8 : index
    %c0_229 = arith.constant 0 : index
    %c0_230 = arith.constant 0 : index
    %309 = vector.load %arg4[%c8_228, %c0_229, %c0_230] : memref<9x32x1xf32, #tpu.memory_space<vmem>>, vector<1x32x1xf32>
    %310 = vector.shape_cast %309 : vector<1x32x1xf32> to vector<32x1xf32>
    %311 = vector.broadcast %310 : vector<32x1xf32> to vector<32x512xf32>
    %312 = arith.addf %308, %311 : vector<32x512xf32>
    %313 = vector.extract_strided_slice %312 {offsets = [3, 0], sizes = [1, 512], strides = [1, 1]} : vector<32x512xf32> to vector<1x512xf32>
    %cst_231 = arith.constant 0.924196243 : f32
    %314 = vector.broadcast %cst_231 : f32 to vector<1x512xf32>
    %315 = arith.mulf %314, %313 : vector<1x512xf32>
    %cst_232 = arith.constant 2.000000e+01 : f32
    %316 = vector.broadcast %cst_232 : f32 to vector<1x512xf32>
    %317 = arith.cmpf ogt, %315, %316 : vector<1x512xf32>
    %cst_233 = arith.constant 2.000000e+01 : f32
    %318 = vector.broadcast %cst_233 : f32 to vector<1x512xf32>
    %319 = arith.minimumf %315, %318 : vector<1x512xf32>
    %320 = math.exp %319 : vector<1x512xf32>
    %321 = math.log1p %320 : vector<1x512xf32>
    %cst_234 = arith.constant 1.08202124 : f32
    %322 = vector.broadcast %cst_234 : f32 to vector<1x512xf32>
    %323 = arith.mulf %321, %322 : vector<1x512xf32>
    %324 = arith.select %317, %313, %323 : vector<1x512xi1>, vector<1x512xf32>
    %cst_235 = arith.constant 2.500000e-01 : f32
    %325 = vector.broadcast %cst_235 : f32 to vector<1x512xf32>
    %326 = arith.addf %324, %325 : vector<1x512xf32>
    %cst_236 = arith.constant 1.000000e+02 : f32
    %327 = vector.broadcast %cst_236 : f32 to vector<1x512xf32>
    %328 = arith.minimumf %326, %327 : vector<1x512xf32>
    %cst_237 = arith.constant 1.000000e+00 : f32
    %329 = vector.broadcast %cst_237 : f32 to vector<1x512xf32>
    %330 = arith.divf %329, %328 : vector<1x512xf32>
    %331 = vector.extract_strided_slice %312 {offsets = [0, 0], sizes = [3, 512], strides = [1, 1]} : vector<32x512xf32> to vector<3x512xf32>
    %332 = vector.broadcast %330 : vector<1x512xf32> to vector<3x512xf32>
    %333 = arith.mulf %331, %332 : vector<3x512xf32>
    %334 = vector.broadcast %0 : vector<3x1xf32> to vector<3x512xf32>
    %335 = arith.addf %333, %334 : vector<3x512xf32>
    %c0_238 = arith.constant 0 : index
    %c0_239 = arith.constant 0 : index
    %336 = arith.index_cast %228 : i32 to index
    %337 = vector.load %arg6[%c0_238, %c0_239, %336] : memref<1x3x2048xf32, #tpu.memory_space<vmem>>, vector<1x3x512xf32>
    %338 = vector.shape_cast %337 : vector<1x3x512xf32> to vector<3x512xf32>
    %339 = vector.shape_cast %335 : vector<3x512xf32> to vector<1x3x512xf32>
    tpu.vector_store %arg6[%c0_238, %c0_239, %336], %339 {strides = array<i32>} : memref<1x3x2048xf32, #tpu.memory_space<vmem>>, vector<1x3x512xf32>,
    %c3_i32 = arith.constant 3 : i32
    %c512_i32_240 = arith.constant 512 : i32
    %340 = arith.muli %c3_i32, %c512_i32_240 : i32
    %341 = tpu.assume_multiple %340, 128 : i32
    %c0_241 = arith.constant 0 : index
    %c0_242 = arith.constant 0 : index
    %342 = arith.index_cast %341 : i32 to index
    %343 = vector.load %arg2[%c0_241, %c0_242, %342] : memref<1x32x2048xf32, #tpu.memory_space<vmem>>, vector<1x32x512xf32>
    %344 = vector.shape_cast %343 : vector<1x32x512xf32> to vector<32x512xf32>
    %c0_243 = arith.constant 0 : index
    %c0_244 = arith.constant 0 : index
    %c0_245 = arith.constant 0 : index
    %345 = vector.load %arg3[%c0_243, %c0_244, %c0_245] : memref<9x32x32xf32, #tpu.memory_space<vmem>>, vector<1x32x32xf32>
    %346 = vector.shape_cast %345 : vector<1x32x32xf32> to vector<32x32xf32>
    %cst_246 = arith.constant dense<0.000000e+00> : vector<32x512xf32>
    %347 = tpu.matmul %346, %344, %cst_246 {dimension_numbers = #tpu.dot_dimension_numbers<[1], [0], [0], [1], [0, 0, 1, 1], [], []>} : vector<32x32xf32>, vector<32x512xf32>, vector<32x512xf32> -> vector<32x512xf32>
    %c0_247 = arith.constant 0 : index
    %c0_248 = arith.constant 0 : index
    %c0_249 = arith.constant 0 : index
    %348 = vector.load %arg4[%c0_247, %c0_248, %c0_249] : memref<9x32x1xf32, #tpu.memory_space<vmem>>, vector<1x32x1xf32>
    %349 = vector.shape_cast %348 : vector<1x32x1xf32> to vector<32x1xf32>
    %350 = vector.broadcast %349 : vector<32x1xf32> to vector<32x512xf32>
    %351 = arith.addf %347, %350 : vector<32x512xf32>
    %cst_250 = arith.constant 0.000000e+00 : f32
    %352 = vector.broadcast %cst_250 : f32 to vector<32x512xf32>
    %353 = arith.maximumf %351, %352 : vector<32x512xf32>
    %c1_251 = arith.constant 1 : index
    %c0_252 = arith.constant 0 : index
    %c0_253 = arith.constant 0 : index
    %354 = vector.load %arg3[%c1_251, %c0_252, %c0_253] : memref<9x32x32xf32, #tpu.memory_space<vmem>>, vector<1x32x32xf32>
    %355 = vector.shape_cast %354 : vector<1x32x32xf32> to vector<32x32xf32>
    %cst_254 = arith.constant dense<0.000000e+00> : vector<32x512xf32>
    %356 = tpu.matmul %355, %353, %cst_254 {dimension_numbers = #tpu.dot_dimension_numbers<[1], [0], [0], [1], [0, 0, 1, 1], [], []>} : vector<32x32xf32>, vector<32x512xf32>, vector<32x512xf32> -> vector<32x512xf32>
    %c1_255 = arith.constant 1 : index
    %c0_256 = arith.constant 0 : index
    %c0_257 = arith.constant 0 : index
    %357 = vector.load %arg4[%c1_255, %c0_256, %c0_257] : memref<9x32x1xf32, #tpu.memory_space<vmem>>, vector<1x32x1xf32>
    %358 = vector.shape_cast %357 : vector<1x32x1xf32> to vector<32x1xf32>
    %359 = vector.broadcast %358 : vector<32x1xf32> to vector<32x512xf32>
    %360 = arith.addf %356, %359 : vector<32x512xf32>
    %cst_258 = arith.constant 0.000000e+00 : f32
    %361 = vector.broadcast %cst_258 : f32 to vector<32x512xf32>
    %362 = arith.maximumf %360, %361 : vector<32x512xf32>
    %c2_259 = arith.constant 2 : index
    %c0_260 = arith.constant 0 : index
    %c0_261 = arith.constant 0 : index
    %363 = vector.load %arg3[%c2_259, %c0_260, %c0_261] : memref<9x32x32xf32, #tpu.memory_space<vmem>>, vector<1x32x32xf32>
    %364 = vector.shape_cast %363 : vector<1x32x32xf32> to vector<32x32xf32>
    %cst_262 = arith.constant dense<0.000000e+00> : vector<32x512xf32>
    %365 = tpu.matmul %364, %362, %cst_262 {dimension_numbers = #tpu.dot_dimension_numbers<[1], [0], [0], [1], [0, 0, 1, 1], [], []>} : vector<32x32xf32>, vector<32x512xf32>, vector<32x512xf32> -> vector<32x512xf32>
    %c2_263 = arith.constant 2 : index
    %c0_264 = arith.constant 0 : index
    %c0_265 = arith.constant 0 : index
    %366 = vector.load %arg4[%c2_263, %c0_264, %c0_265] : memref<9x32x1xf32, #tpu.memory_space<vmem>>, vector<1x32x1xf32>
    %367 = vector.shape_cast %366 : vector<1x32x1xf32> to vector<32x1xf32>
    %368 = vector.broadcast %367 : vector<32x1xf32> to vector<32x512xf32>
    %369 = arith.addf %365, %368 : vector<32x512xf32>
    %cst_266 = arith.constant 0.000000e+00 : f32
    %370 = vector.broadcast %cst_266 : f32 to vector<32x512xf32>
    %371 = arith.maximumf %369, %370 : vector<32x512xf32>
    %372 = arith.addf %344, %371 : vector<32x512xf32>
    %c3_267 = arith.constant 3 : index
    %c0_268 = arith.constant 0 : index
    %c0_269 = arith.constant 0 : index
    %373 = vector.load %arg3[%c3_267, %c0_268, %c0_269] : memref<9x32x32xf32, #tpu.memory_space<vmem>>, vector<1x32x32xf32>
    %374 = vector.shape_cast %373 : vector<1x32x32xf32> to vector<32x32xf32>
    %cst_270 = arith.constant dense<0.000000e+00> : vector<32x512xf32>
    %375 = tpu.matmul %374, %372, %cst_270 {dimension_numbers = #tpu.dot_dimension_numbers<[1], [0], [0], [1], [0, 0, 1, 1], [], []>} : vector<32x32xf32>, vector<32x512xf32>, vector<32x512xf32> -> vector<32x512xf32>
    %c3_271 = arith.constant 3 : index
    %c0_272 = arith.constant 0 : index
    %c0_273 = arith.constant 0 : index
    %376 = vector.load %arg4[%c3_271, %c0_272, %c0_273] : memref<9x32x1xf32, #tpu.memory_space<vmem>>, vector<1x32x1xf32>
    %377 = vector.shape_cast %376 : vector<1x32x1xf32> to vector<32x1xf32>
    %378 = vector.broadcast %377 : vector<32x1xf32> to vector<32x512xf32>
    %379 = arith.addf %375, %378 : vector<32x512xf32>
    %cst_274 = arith.constant 0.000000e+00 : f32
    %380 = vector.broadcast %cst_274 : f32 to vector<32x512xf32>
    %381 = arith.maximumf %379, %380 : vector<32x512xf32>
    %c4_275 = arith.constant 4 : index
    %c0_276 = arith.constant 0 : index
    %c0_277 = arith.constant 0 : index
    %382 = vector.load %arg3[%c4_275, %c0_276, %c0_277] : memref<9x32x32xf32, #tpu.memory_space<vmem>>, vector<1x32x32xf32>
    %383 = vector.shape_cast %382 : vector<1x32x32xf32> to vector<32x32xf32>
    %cst_278 = arith.constant dense<0.000000e+00> : vector<32x512xf32>
    %384 = tpu.matmul %383, %381, %cst_278 {dimension_numbers = #tpu.dot_dimension_numbers<[1], [0], [0], [1], [0, 0, 1, 1], [], []>} : vector<32x32xf32>, vector<32x512xf32>, vector<32x512xf32> -> vector<32x512xf32>
    %c4_279 = arith.constant 4 : index
    %c0_280 = arith.constant 0 : index
    %c0_281 = arith.constant 0 : index
    %385 = vector.load %arg4[%c4_279, %c0_280, %c0_281] : memref<9x32x1xf32, #tpu.memory_space<vmem>>, vector<1x32x1xf32>
    %386 = vector.shape_cast %385 : vector<1x32x1xf32> to vector<32x1xf32>
    %387 = vector.broadcast %386 : vector<32x1xf32> to vector<32x512xf32>
    %388 = arith.addf %384, %387 : vector<32x512xf32>
    %cst_282 = arith.constant 0.000000e+00 : f32
    %389 = vector.broadcast %cst_282 : f32 to vector<32x512xf32>
    %390 = arith.maximumf %388, %389 : vector<32x512xf32>
    %c5_283 = arith.constant 5 : index
    %c0_284 = arith.constant 0 : index
    %c0_285 = arith.constant 0 : index
    %391 = vector.load %arg3[%c5_283, %c0_284, %c0_285] : memref<9x32x32xf32, #tpu.memory_space<vmem>>, vector<1x32x32xf32>
    %392 = vector.shape_cast %391 : vector<1x32x32xf32> to vector<32x32xf32>
    %cst_286 = arith.constant dense<0.000000e+00> : vector<32x512xf32>
    %393 = tpu.matmul %392, %390, %cst_286 {dimension_numbers = #tpu.dot_dimension_numbers<[1], [0], [0], [1], [0, 0, 1, 1], [], []>} : vector<32x32xf32>, vector<32x512xf32>, vector<32x512xf32> -> vector<32x512xf32>
    %c5_287 = arith.constant 5 : index
    %c0_288 = arith.constant 0 : index
    %c0_289 = arith.constant 0 : index
    %394 = vector.load %arg4[%c5_287, %c0_288, %c0_289] : memref<9x32x1xf32, #tpu.memory_space<vmem>>, vector<1x32x1xf32>
    %395 = vector.shape_cast %394 : vector<1x32x1xf32> to vector<32x1xf32>
    %396 = vector.broadcast %395 : vector<32x1xf32> to vector<32x512xf32>
    %397 = arith.addf %393, %396 : vector<32x512xf32>
    %cst_290 = arith.constant 0.000000e+00 : f32
    %398 = vector.broadcast %cst_290 : f32 to vector<32x512xf32>
    %399 = arith.maximumf %397, %398 : vector<32x512xf32>
    %400 = arith.addf %372, %399 : vector<32x512xf32>
    %c6_291 = arith.constant 6 : index
    %c0_292 = arith.constant 0 : index
    %c0_293 = arith.constant 0 : index
    %401 = vector.load %arg3[%c6_291, %c0_292, %c0_293] : memref<9x32x32xf32, #tpu.memory_space<vmem>>, vector<1x32x32xf32>
    %402 = vector.shape_cast %401 : vector<1x32x32xf32> to vector<32x32xf32>
    %cst_294 = arith.constant dense<0.000000e+00> : vector<32x512xf32>
    %403 = tpu.matmul %402, %400, %cst_294 {dimension_numbers = #tpu.dot_dimension_numbers<[1], [0], [0], [1], [0, 0, 1, 1], [], []>} : vector<32x32xf32>, vector<32x512xf32>, vector<32x512xf32> -> vector<32x512xf32>
    %c6_295 = arith.constant 6 : index
    %c0_296 = arith.constant 0 : index
    %c0_297 = arith.constant 0 : index
    %404 = vector.load %arg4[%c6_295, %c0_296, %c0_297] : memref<9x32x1xf32, #tpu.memory_space<vmem>>, vector<1x32x1xf32>
    %405 = vector.shape_cast %404 : vector<1x32x1xf32> to vector<32x1xf32>
    %406 = vector.broadcast %405 : vector<32x1xf32> to vector<32x512xf32>
    %407 = arith.addf %403, %406 : vector<32x512xf32>
    %cst_298 = arith.constant 0.000000e+00 : f32
    %408 = vector.broadcast %cst_298 : f32 to vector<32x512xf32>
    %409 = arith.maximumf %407, %408 : vector<32x512xf32>
    %c7_299 = arith.constant 7 : index
    %c0_300 = arith.constant 0 : index
    %c0_301 = arith.constant 0 : index
    %410 = vector.load %arg3[%c7_299, %c0_300, %c0_301] : memref<9x32x32xf32, #tpu.memory_space<vmem>>, vector<1x32x32xf32>
    %411 = vector.shape_cast %410 : vector<1x32x32xf32> to vector<32x32xf32>
    %cst_302 = arith.constant dense<0.000000e+00> : vector<32x512xf32>
    %412 = tpu.matmul %411, %409, %cst_302 {dimension_numbers = #tpu.dot_dimension_numbers<[1], [0], [0], [1], [0, 0, 1, 1], [], []>} : vector<32x32xf32>, vector<32x512xf32>, vector<32x512xf32> -> vector<32x512xf32>
    %c7_303 = arith.constant 7 : index
    %c0_304 = arith.constant 0 : index
    %c0_305 = arith.constant 0 : index
    %413 = vector.load %arg4[%c7_303, %c0_304, %c0_305] : memref<9x32x1xf32, #tpu.memory_space<vmem>>, vector<1x32x1xf32>
    %414 = vector.shape_cast %413 : vector<1x32x1xf32> to vector<32x1xf32>
    %415 = vector.broadcast %414 : vector<32x1xf32> to vector<32x512xf32>
    %416 = arith.addf %412, %415 : vector<32x512xf32>
    %cst_306 = arith.constant 0.000000e+00 : f32
    %417 = vector.broadcast %cst_306 : f32 to vector<32x512xf32>
    %418 = arith.maximumf %416, %417 : vector<32x512xf32>
    %c8_307 = arith.constant 8 : index
    %c0_308 = arith.constant 0 : index
    %c0_309 = arith.constant 0 : index
    %419 = vector.load %arg3[%c8_307, %c0_308, %c0_309] : memref<9x32x32xf32, #tpu.memory_space<vmem>>, vector<1x32x32xf32>
    %420 = vector.shape_cast %419 : vector<1x32x32xf32> to vector<32x32xf32>
    %cst_310 = arith.constant dense<0.000000e+00> : vector<32x512xf32>
    %421 = tpu.matmul %420, %418, %cst_310 {dimension_numbers = #tpu.dot_dimension_numbers<[1], [0], [0], [1], [0, 0, 1, 1], [], []>} : vector<32x32xf32>, vector<32x512xf32>, vector<32x512xf32> -> vector<32x512xf32>
    %c8_311 = arith.constant 8 : index
    %c0_312 = arith.constant 0 : index
    %c0_313 = arith.constant 0 : index
    %422 = vector.load %arg4[%c8_311, %c0_312, %c0_313] : memref<9x32x1xf32, #tpu.memory_space<vmem>>, vector<1x32x1xf32>
    %423 = vector.shape_cast %422 : vector<1x32x1xf32> to vector<32x1xf32>
    %424 = vector.broadcast %423 : vector<32x1xf32> to vector<32x512xf32>
    %425 = arith.addf %421, %424 : vector<32x512xf32>
    %426 = vector.extract_strided_slice %425 {offsets = [3, 0], sizes = [1, 512], strides = [1, 1]} : vector<32x512xf32> to vector<1x512xf32>
    %cst_314 = arith.constant 0.924196243 : f32
    %427 = vector.broadcast %cst_314 : f32 to vector<1x512xf32>
    %428 = arith.mulf %427, %426 : vector<1x512xf32>
    %cst_315 = arith.constant 2.000000e+01 : f32
    %429 = vector.broadcast %cst_315 : f32 to vector<1x512xf32>
    %430 = arith.cmpf ogt, %428, %429 : vector<1x512xf32>
    %cst_316 = arith.constant 2.000000e+01 : f32
    %431 = vector.broadcast %cst_316 : f32 to vector<1x512xf32>
    %432 = arith.minimumf %428, %431 : vector<1x512xf32>
    %433 = math.exp %432 : vector<1x512xf32>
    %434 = math.log1p %433 : vector<1x512xf32>
    %cst_317 = arith.constant 1.08202124 : f32
    %435 = vector.broadcast %cst_317 : f32 to vector<1x512xf32>
    %436 = arith.mulf %434, %435 : vector<1x512xf32>
    %437 = arith.select %430, %426, %436 : vector<1x512xi1>, vector<1x512xf32>
    %cst_318 = arith.constant 2.500000e-01 : f32
    %438 = vector.broadcast %cst_318 : f32 to vector<1x512xf32>
    %439 = arith.addf %437, %438 : vector<1x512xf32>
    %cst_319 = arith.constant 1.000000e+02 : f32
    %440 = vector.broadcast %cst_319 : f32 to vector<1x512xf32>
    %441 = arith.minimumf %439, %440 : vector<1x512xf32>
    %cst_320 = arith.constant 1.000000e+00 : f32
    %442 = vector.broadcast %cst_320 : f32 to vector<1x512xf32>
    %443 = arith.divf %442, %441 : vector<1x512xf32>
    %444 = vector.extract_strided_slice %425 {offsets = [0, 0], sizes = [3, 512], strides = [1, 1]} : vector<32x512xf32> to vector<3x512xf32>
    %445 = vector.broadcast %443 : vector<1x512xf32> to vector<3x512xf32>
    %446 = arith.mulf %444, %445 : vector<3x512xf32>
    %447 = vector.broadcast %0 : vector<3x1xf32> to vector<3x512xf32>
    %448 = arith.addf %446, %447 : vector<3x512xf32>
    %c0_321 = arith.constant 0 : index
    %c0_322 = arith.constant 0 : index
    %449 = arith.index_cast %341 : i32 to index
    %450 = vector.load %arg6[%c0_321, %c0_322, %449] : memref<1x3x2048xf32, #tpu.memory_space<vmem>>, vector<1x3x512xf32>
    %451 = vector.shape_cast %450 : vector<1x3x512xf32> to vector<3x512xf32>
    %452 = vector.shape_cast %448 : vector<3x512xf32> to vector<1x3x512xf32>
    tpu.vector_store %arg6[%c0_321, %c0_322, %449], %452 {strides = array<i32>} : memref<1x3x2048xf32, #tpu.memory_space<vmem>>, vector<1x3x512xf32>,
    %c4_i32 = arith.constant 4 : i32
    return
  }
  func.func @transform_0(%arg0: i32, %arg1: i32) -> (i32, i32, i32) {
    %c0_i32 = arith.constant 0 : i32
    %c0_i32_0 = arith.constant 0 : i32
    return %arg0, %c0_i32, %arg1 : i32, i32, i32
  }
  func.func @transform_1(%arg0: i32, %arg1: i32) -> (i32, i32, i32) {
    %c0_i32 = arith.constant 0 : i32
    %c0_i32_0 = arith.constant 0 : i32
    %c0_i32_1 = arith.constant 0 : i32
    %c0_i32_2 = arith.constant 0 : i32
    return %c0_i32, %c0_i32_0, %c0_i32_1 : i32, i32, i32
  }
  func.func @transform_2(%arg0: i32, %arg1: i32) -> (i32, i32, i32) {
    %c0_i32 = arith.constant 0 : i32
    %c0_i32_0 = arith.constant 0 : i32
    %c0_i32_1 = arith.constant 0 : i32
    %c0_i32_2 = arith.constant 0 : i32
    return %c0_i32, %c0_i32_0, %c0_i32_1 : i32, i32, i32
  }
  func.func @transform_3(%arg0: i32, %arg1: i32) -> (i32, i32) {
    %c0_i32 = arith.constant 0 : i32
    %c0_i32_0 = arith.constant 0 : i32
    %c0_i32_1 = arith.constant 0 : i32
    return %c0_i32, %c0_i32_0 : i32, i32
  }
  func.func @transform_4(%arg0: i32, %arg1: i32) -> (i32, i32, i32) {
    %c0_i32 = arith.constant 0 : i32
    %c0_i32_0 = arith.constant 0 : i32
    return %arg0, %c0_i32, %arg1 : i32, i32, i32
  }
}

</mosaic_0001>

<llo_original>
// kernel: tpu_custom_call.1
$region0: #{tpu_custom_call.1}
  #allocation0 [shape = 'u32[]', space=smem, size = 0x4, offset = 0x4, fixed_abs, tag = 'smem constant byte address 0x4 - core index']
  #allocation1 [shape = 'u32[144,128]{1,0:T(1,128)}', space=vmem, size = 0x12000, scoped, tag = 'internal scratch']
  %s0 = inlined_call_operand.hbm [shape: f32[2,32,2048], index: 0, kind: input, shape index: {}]
  %s1 = inlined_call_operand.vmem [shape: f32[9,32,32], index: 1, kind: input, shape index: {}]
  %s2 = inlined_call_operand.vmem [shape: f32[9,32,1], index: 2, kind: input, shape index: {}]
  %s3 = inlined_call_operand.vmem [shape: f32[3,1], index: 3, kind: input, shape index: {}]
  %s4 = inlined_call_operand.vmem [shape: f32[2,3,2048], index: 4, kind: output, shape index: {}]
  %s5 = sld [smem:[#allocation0]]
  $region53: #{tpu_custom_call.1} parent=0
    _
  %s7 = ssub.s32 1, %s5
  %s8 = scalar_select 0, %s7, %s5
  $region1: #{tpu_custom_call.1} parent=0
    #allocation2 [shape = 'u8[524288]{0}', space=vmem, size = 0x80000, scoped, tag = 'input window, operand 0']
    #allocation3 [shape = 's32[2]{0}', space=sflag, size = 0x8, scoped, tag = 'scoped memory for tpu_custom_call.1']
    %9 = vsyncpa [#allocation3], 0
    %s10 = scalar_lea.sflag [#allocation3], 1
    %11 = vsyncpa %s10, 0
    loop: start=0, step=1, limit=4
    $region2: #{tpu_custom_call.1} parent=1 // loop_pre_header
      _
    $region3: #{tpu_custom_call.1} parent=1 // loop_header
      %s13 = sphi 0, %s17
      %p14 = scmp.ge.s32.totalorder %s13, 4
      %s20 = sphi 0, %s32
      %s21 = sphi 0, %s28
      %s22 = sphi 0, %s20
      %s23 = sphi 0, %s21
      %s24 = sphi 0, %s22
      %s25 = sphi 0, %s23
      %s37 = sphi 0, %s39
      %s40 = sphi 0, %s37
      %s41 = sphi 0, %s40
      %s57 = sphi 0, %s41
      %s61 = sphi 0, %s61
      %s63 = sphi 0, %s61
      %s64 = sphi 0, %s63
      %s78 = sphi 0, %s64
      %s82 = sphi 0, %s82
      %s84 = sphi 0, %s82
      %s85 = sphi 0, %s84
      %s99 = sphi 0, %s85
      %s103 = sphi 0, %s103
      %s105 = sphi 0, %s103
      %s106 = sphi 0, %s105
      %s120 = sphi 0, %s106
      %s128 = sphi 0, %s130
      %s131 = sphi 0, %s128
      %s132 = sphi 0, %s131
      %s148 = sphi 0, %s132
    $region4: #{tpu_custom_call.1} parent=1 // loop_header_branch
      %16 = sbr.rel (%p14) target = $region8
    $region5: #{tpu_custom_call.1} parent=1 // loop_body
      %s18 = ssub.s32 %s13, 1
      %s19 = ssub.s32 %s13, 2
      %s26 = sadd.s32 1, %s21
      %p27 = scmp.ge.s32.totalorder %s26, 1
      %s28 = scalar_select %p27, 0, %s26
      %s29 = sadd.s32 1, %s20
      %s30 = scalar_select %p27, %s29, %s20
      %p31 = scmp.ge.s32.totalorder %s30, 2
      %s32 = scalar_select %p31, 0, %s30
      %s33 = ssub.s32 %s20, %s32
      %s34 = ssub.s32 %s21, %s28
      %s35 = sor.u32 %s33, %s34
      %p36 = scmp.eq.s32.totalorder %s35, 0
      %s38 = sadd.s32 %s37, 1
      %s39 = scalar_select %p36, %s37, %s38
      %p42 = pneg %p36
      %p43 = scmp.eq.s32.totalorder %s13, 1
      %p44 = por %p42, %p43
      %p45 = scmp.ne.s32.totalorder %s37, %s40
      %p46 = scmp.eq.s32.totalorder %s13, 0
      %p47 = por %p45, %p46
      %p48 = scmp.ne.s32.totalorder %s37, %s40
      %p49 = scmp.eq.s32.totalorder %s18, 1
      %p50 = por %p48, %p49
      %p51 = scmp.ne.s32.totalorder %s40, %s41
      %p52 = scmp.eq.s32.totalorder %s18, 0
      %p53 = por %p51, %p52
      %p54 = scmp.ne.s32.totalorder %s40, %s41
      %p55 = scmp.eq.s32.totalorder %s19, 1
      %p56 = por %p54, %p55
      %p58 = scmp.ne.s32.totalorder %s41, %s57
      %p59 = scmp.eq.s32.totalorder %s19, 0
      %p60 = por %p58, %p59
      %s62 = sadd.s32 %s61, 1
      %p65 = scmp.eq.s32.totalorder %s13, 1
      %p66 = scmp.ne.s32.totalorder %s61, %s63
      %p67 = scmp.eq.s32.totalorder %s13, 0
      %p68 = por %p66, %p67
      %p69 = scmp.ne.s32.totalorder %s61, %s63
      %p70 = scmp.eq.s32.totalorder %s18, 1
      %p71 = por %p69, %p70
      %p72 = scmp.ne.s32.totalorder %s63, %s64
      %p73 = scmp.eq.s32.totalorder %s18, 0
      %p74 = por %p72, %p73
      %p75 = scmp.ne.s32.totalorder %s63, %s64
      %p76 = scmp.eq.s32.totalorder %s19, 1
      %p77 = por %p75, %p76
      %p79 = scmp.ne.s32.totalorder %s64, %s78
      %p80 = scmp.eq.s32.totalorder %s19, 0
      %p81 = por %p79, %p80
      %s83 = sadd.s32 %s82, 1
      %p86 = scmp.eq.s32.totalorder %s13, 1
      %p87 = scmp.ne.s32.totalorder %s82, %s84
      %p88 = scmp.eq.s32.totalorder %s13, 0
      %p89 = por %p87, %p88
      %p90 = scmp.ne.s32.totalorder %s82, %s84
      %p91 = scmp.eq.s32.totalorder %s18, 1
      %p92 = por %p90, %p91
      %p93 = scmp.ne.s32.totalorder %s84, %s85
      %p94 = scmp.eq.s32.totalorder %s18, 0
      %p95 = por %p93, %p94
      %p96 = scmp.ne.s32.totalorder %s84, %s85
      %p97 = scmp.eq.s32.totalorder %s19, 1
      %p98 = por %p96, %p97
      %p100 = scmp.ne.s32.totalorder %s85, %s99
      %p101 = scmp.eq.s32.totalorder %s19, 0
      %p102 = por %p100, %p101
      %s104 = sadd.s32 %s103, 1
      %p107 = scmp.eq.s32.totalorder %s13, 1
      %p108 = scmp.ne.s32.totalorder %s103, %s105
      %p109 = scmp.eq.s32.totalorder %s13, 0
      %p110 = por %p108, %p109
      %p111 = scmp.ne.s32.totalorder %s103, %s105
      %p112 = scmp.eq.s32.totalorder %s18, 1
      %p113 = por %p111, %p112
      %p114 = scmp.ne.s32.totalorder %s105, %s106
      %p115 = scmp.eq.s32.totalorder %s18, 0
      %p116 = por %p114, %p115
      %p117 = scmp.ne.s32.totalorder %s105, %s106
      %p118 = scmp.eq.s32.totalorder %s19, 1
      %p119 = por %p117, %p118
      %p121 = scmp.ne.s32.totalorder %s106, %s120
      %p122 = scmp.eq.s32.totalorder %s19, 0
      %p123 = por %p121, %p122
      %s124 = ssub.s32 %s20, %s32
      %s125 = ssub.s32 %s21, %s28
      %s126 = sor.u32 %s124, %s125
      %p127 = scmp.eq.s32.totalorder %s126, 0
      %s129 = sadd.s32 %s128, 1
      %s130 = scalar_select %p127, %s128, %s129
      %p133 = pneg %p127
      %p134 = scmp.eq.s32.totalorder %s13, 1
      %p135 = por %p133, %p134
      %p136 = scmp.ne.s32.totalorder %s128, %s131
      %p137 = scmp.eq.s32.totalorder %s13, 0
      %p138 = por %p136, %p137
      %p139 = scmp.ne.s32.totalorder %s128, %s131
      %p140 = scmp.eq.s32.totalorder %s18, 1
      %p141 = por %p139, %p140
      %p142 = scmp.ne.s32.totalorder %s131, %s132
      %p143 = scmp.eq.s32.totalorder %s18, 0
      %p144 = por %p142, %p143
      %p145 = scmp.ne.s32.totalorder %s131, %s132
      %p146 = scmp.eq.s32.totalorder %s19, 1
      %p147 = por %p145, %p146
      %p149 = scmp.ne.s32.totalorder %s132, %s148
      %p150 = scmp.eq.s32.totalorder %s19, 0
      %p151 = por %p149, %p150
      %p152 = scmp.le.s32.totalorder 1, %s13
      %p153 = scmp.lt.s32.totalorder %s13, 3
      %p154 = pnand %p152, %p153
      %p155 = pneg %p154
      // Predicated region
      $region9: #{tpu_custom_call.1} parent=5 // pred_check
        _
      $region10: #{tpu_custom_call.1} parent=5 // pred_check_branch
        %157 = sbr.rel (%p154) target = $region12
      $region11: #{tpu_custom_call.1} parent=5 // pred_region
        %s158 = ssub.s32 %s13, 1
        // Predicated region
        $region13: #{tpu_custom_call.1} parent=11 // pred_check
          %p159 = pneg %p74
        $region14: #{tpu_custom_call.1} parent=11 // pred_check_branch
          %161 = sbr.rel (%p159) target = $region16
        $region15: #{tpu_custom_call.1} parent=11 // pred_region
          _
        $region16: #{tpu_custom_call.1} parent=11 // pred_fallthru
          _
        // Predicated region
        $region17: #{tpu_custom_call.1} parent=11 // pred_check
          %p162 = pneg %p95
        $region18: #{tpu_custom_call.1} parent=11 // pred_check_branch
          %164 = sbr.rel (%p162) target = $region20
        $region19: #{tpu_custom_call.1} parent=11 // pred_region
          _
        $region20: #{tpu_custom_call.1} parent=11 // pred_fallthru
          _
        // Predicated region
        $region21: #{tpu_custom_call.1} parent=11 // pred_check
          %p165 = pneg %p116
        $region22: #{tpu_custom_call.1} parent=11 // pred_check_branch
          %167 = sbr.rel (%p165) target = $region24
        $region23: #{tpu_custom_call.1} parent=11 // pred_region
          _
        $region24: #{tpu_custom_call.1} parent=11 // pred_fallthru
          _
      $region12: #{tpu_custom_call.1} parent=5 // pred_fallthru
        _
      %p168 = scmp.lt.s32.totalorder %s13, 2
      // Predicated region
      $region25: #{tpu_custom_call.1} parent=5 // pred_check
        %p169 = pneg %p168
      $region26: #{tpu_custom_call.1} parent=5 // pred_check_branch
        %171 = sbr.rel (%p169) target = $region28
      $region27: #{tpu_custom_call.1} parent=5 // pred_region
        // Predicated region
        $region29: #{tpu_custom_call.1} parent=27 // pred_check
          %p172 = pneg %p47
        $region30: #{tpu_custom_call.1} parent=27 // pred_check_branch
          %174 = sbr.rel (%p172) target = $region32
        $region31: #{tpu_custom_call.1} parent=27 // pred_region
          %s175 = sand.u32 %s37, 1
          %s176 = scalar_lea.sflag [#allocation3], %s175
          %s177 = sand.u32 %s37, 1
          %s178 = smul.addr %s177, 512
          %s179 = scalar_lea.vmem [#allocation2], %s178
          %s180 = smul.u32 16, %s21
          %s182 = ssub.s32 8192, 8192
          %183 = vsyncadd %s176, %s182
          %s184 = smul.addr %s20, 64
          %s185 = sadd.s32 %s180, %s184
          %s186 = smul.addr %s185, 128
          %s187 = scalar_lea.hbm %s0, %s186
          %s188 = sshll.u32 %s179, 4
          %s189 = int_to_ptr.vmem [resolvable:$true] %s188
          %194 = dma.hbm_to_vmem [thread:$0]  %s187, 8192, %s189, %s176, 2048, 2048, 128
        $region32: #{tpu_custom_call.1} parent=27 // pred_fallthru
          _
      $region28: #{tpu_custom_call.1} parent=5 // pred_fallthru
        _
      %p195 = scmp.le.s32.totalorder 1, %s13
      %p196 = scmp.lt.s32.totalorder %s13, 3
      %p197 = pnand %p195, %p196
      %p198 = pneg %p197
      // Predicated region
      $region33: #{tpu_custom_call.1} parent=5 // pred_check
        _
      $region34: #{tpu_custom_call.1} parent=5 // pred_check_branch
        %200 = sbr.rel (%p197) target = $region36
      $region35: #{tpu_custom_call.1} parent=5 // pred_region
        %s201 = ssub.s32 %s13, 1
        %s202 = sand.u32 %s40, 1
        %s203 = scalar_lea.sflag [#allocation3], %s202
        %s204 = sand.u32 %s40, 1
        %s205 = smul.addr %s204, 512
        %s206 = scalar_lea.vmem [#allocation2], %s205
        // Predicated region
        $region37: #{tpu_custom_call.1} parent=35 // pred_check
          %p207 = pneg %p53
        $region38: #{tpu_custom_call.1} parent=35 // pred_check_branch
          %209 = sbr.rel (%p207) target = $region40
        $region39: #{tpu_custom_call.1} parent=35 // pred_region
          %210 = dma.done %s203, 8192
        $region40: #{tpu_custom_call.1} parent=35 // pred_fallthru
          _
        %s211 = sand.u32 %s40, 1
        %s212 = scalar_lea.sflag [#allocation3], %s211
        %s213 = sand.u32 %s40, 1
        %s214 = smul.addr %s213, 512
        %s215 = scalar_lea.vmem [#allocation2], %s214
        %p216 = pneg %p53
        %p217 = pneg %p50
        %p218 = pneg %p74
        %p219 = pneg %p71
        %p220 = pneg %p95
        %p221 = pneg %p92
        %p222 = pneg %p116
        %p223 = pneg %p113
        %p224 = pneg %p144
        %p225 = pneg %p141
        %s226 = smul.u32 16, %s23
        %p227 = scmp.lt.s32.totalorder %s22, 1
        %s228 = scalar_select %p227, %s22, 1
        %p229 = scmp.lt.s32.totalorder %s226, 15
        %s230 = scalar_select %p229, %s226, 15
        %s231 = smul.addr %s228, 16
        %s232 = sadd.s32 %s230, %s231
        %s233 = smul.addr %s232, 4
        %s234 = scalar_lea.vmem %s4, %s233
        %s235 = smul.u32 16, %s23
        %s236 = smul.u32 16, %s23
        %p237 = scmp.lt.s32.totalorder %s22, 1
        %s238 = scalar_select %p237, %s22, 1
        %p239 = scmp.lt.s32.totalorder %s236, 15
        %s240 = scalar_select %p239, %s236, 15
        %s241 = smul.addr %s238, 16
        %s242 = sadd.s32 %s240, %s241
        %s243 = smul.addr %s242, 4
        %s244 = scalar_lea.vmem %s4, %s243
        %s245 = smul.u32 16, %s23
        %v246 = vld [vmem:[%s3] sm:$0x7]
        %v247 = vld [vmem:[%s206] sm:$0xff]
        %v248 = vld [vmem:[%s206 + $0x8] sm:$0xff]
        %v249 = vld [vmem:[%s206 + $0x10] sm:$0xff]
        %v250 = vld [vmem:[%s206 + $0x18] sm:$0xff]
        %v251 = vld [vmem:[%s206 + $0x80] sm:$0xff]
        %v252 = vld [vmem:[%s206 + $0x88] sm:$0xff]
        %v253 = vld [vmem:[%s206 + $0x90] sm:$0xff]
        %v254 = vld [vmem:[%s206 + $0x98] sm:$0xff]
        %v255 = vld [vmem:[%s206 + $0x100] sm:$0xff]
        %v256 = vld [vmem:[%s206 + $0x108] sm:$0xff]
        %v257 = vld [vmem:[%s206 + $0x110] sm:$0xff]
        %v258 = vld [vmem:[%s206 + $0x118] sm:$0xff]
        %v259 = vld [vmem:[%s206 + $0x180] sm:$0xff]
        %v260 = vld [vmem:[%s206 + $0x188] sm:$0xff]
        %v261 = vld [vmem:[%s206 + $0x190] sm:$0xff]
        %v262 = vld [vmem:[%s206 + $0x198] sm:$0xff]
        %v263 = vld [vmem:[%s1] sm:$0xff]
        %v264 = vld [vmem:[%s1 + $0x8] sm:$0xff]
        %v265 = vld [vmem:[%s1 + $0x10] sm:$0xff]
        %v266 = vld [vmem:[%s1 + $0x18] sm:$0xff]
        %v267 = vld [vmem:[%s2] sm:$0xff]
        %v268 = vld [vmem:[%s2 + $0x8] sm:$0xff]
        %v269 = vld [vmem:[%s2 + $0x10] sm:$0xff]
        %v270 = vld [vmem:[%s2 + $0x18] sm:$0xff]
        %272 = vset.pattern.permute.xlu0 0
        %273 = vperm.xlu0 %272, %v267
        %v274 = vpop.permute.xlu0 %273
        %277 = vset.pattern.permute.xlu0 0
        %278 = vperm.xlu0 %277, %v268
        %v279 = vpop.permute.xlu0 %278
        %282 = vset.pattern.permute.xlu0 0
        %283 = vperm.xlu0 %282, %v269
        %v284 = vpop.permute.xlu0 %283
        %287 = vset.pattern.permute.xlu0 0
        %288 = vperm.xlu0 %287, %v270
        %v289 = vpop.permute.xlu0 %288
        %vm291 = vcmask 261120
        %v293 = vsel %vm291, %v263, 0
        %v296 = vsel %vm291, %v264, 0
        %v299 = vsel %vm291, %v265, 0
        %v302 = vsel %vm291, %v266, 0
        %304 = vmatprep.subr.mxu0 0.0
        %305 = vmatpush1.msra.mxu0 0.0
        %306 = vmatprep.subr.mxu0 0.0
        %307 = vmatpush1.msra.mxu0 0.0
        %308 = vmatprep.subr.mxu0 0.0
        %309 = vmatpush1.msra.mxu0 0.0
        %310 = vmatprep.subr.mxu0 0.0
        %311 = vmatpush1.msra.mxu0 0.0
        %312 = vmatprep.subr.mxu0 0.0
        %313 = vmatpush1.msra.mxu0 0.0
        %314 = vmatprep.subr.mxu0 0.0
        %315 = vmatpush1.msra.mxu0 0.0
        %316 = vmatprep.subr.mxu0 0.0
        %317 = vmatpush1.msra.mxu0 0.0
        %318 = vmatprep.subr.mxu0 0.0
        %319 = vmatpush1.msra.mxu0 0.0
        %320 = vmatprep.subr.mxu0 0.0
        %321 = vmatpush1.msra.mxu0 0.0
        %322 = vmatprep.subr.mxu0 0.0
        %323 = vmatpush1.msra.mxu0 0.0
        %324 = vmatprep.subr.mxu0 0.0
        %325 = vmatpush1.msra.mxu0 0.0
        %326 = vmatprep.subr.mxu0 0.0
        %327 = vmatpush1.msra.mxu0 0.0
        %328 = vmatprep.subr.mxu0 %v260
        %329 = vmatpush1.msra.mxu0 %v259
        %330 = vmatprep.subr.mxu0 %v256
        %331 = vmatpush1.msra.mxu0 %v255
        %332 = vmatprep.subr.mxu0 %v252
        %333 = vmatpush1.msra.mxu0 %v251
        %334 = vmatprep.subr.mxu0 %v248
        %335 = vmatpush1.msra.mxu0 %v247
        %336 = vmatprep.subr.mxu0 0.0
        %337 = vmatpush2.msra.mxu0 0.0
        %338 = vmatprep.subr.mxu0 0.0
        %339 = vmatpush2.msra.mxu0 0.0
        %340 = vmatprep.subr.mxu0 0.0
        %341 = vmatpush2.msra.mxu0 0.0
        %342 = vmatprep.subr.mxu0 0.0
        %343 = vmatpush2.msra.mxu0 0.0
        %344 = vmatprep.subr.mxu0 0.0
        %345 = vmatpush2.msra.mxu0 0.0
        %346 = vmatprep.subr.mxu0 0.0
        %347 = vmatpush2.msra.mxu0 0.0
        %348 = vmatprep.subr.mxu0 0.0
        %349 = vmatpush2.msra.mxu0 0.0
        %350 = vmatprep.subr.mxu0 0.0
        %351 = vmatpush2.msra.mxu0 0.0
        %352 = vmatprep.subr.mxu0 0.0
        %353 = vmatpush2.msra.mxu0 0.0
        %354 = vmatprep.subr.mxu0 0.0
        %355 = vmatpush2.msra.mxu0 0.0
        %356 = vmatprep.subr.mxu0 0.0
        %357 = vmatpush2.msra.mxu0 0.0
        %358 = vmatprep.subr.mxu0 0.0
        %359 = vmatpush2.msra.mxu0 0.0
        %360 = vmatprep.subr.mxu0 0.0
        %361 = vmatpush2.msra.mxu0 0.0
        %362 = vmatprep.subr.mxu0 0.0
        %363 = vmatpush2.msra.mxu0 0.0
        %364 = vmatprep.subr.mxu0 0.0
        %365 = vmatpush2.msra.mxu0 0.0
        %366 = vmatprep.subr.mxu0 0.0
        %367 = vmatpush2.msra.mxu0 0.0
        %368 = vmatprep.mubr.f32.mxu0 0.0
        %369 = vmatmul.mubr.f32.gmra.mxu0 %v293
        %v370 = vpop.f32.mrf.mxu0
        %v371 = vadd.f32 %v274, %v370
        %v372 = vpop.f32.mrf.mxu0
        %v373 = vadd.f32 %v274, %v372
        %374 = vmatprep.mubr.f32.mxu0 0.0
        %375 = vmatmul.mubr.f32.gmra.mxu0 %v296
        %v376 = vpop.f32.mrf.mxu0
        %v377 = vadd.f32 %v279, %v376
        %v378 = vpop.f32.mrf.mxu0
        %v379 = vadd.f32 %v279, %v378
        %380 = vmatprep.mubr.f32.mxu0 0.0
        %381 = vmatmul.mubr.f32.gmra.mxu0 %v299
        %v382 = vpop.f32.mrf.mxu0
        %v383 = vadd.f32 %v284, %v382
        %v384 = vpop.f32.mrf.mxu0
        %v385 = vadd.f32 %v284, %v384
        %386 = vmatprep.mubr.f32.mxu0 0.0
        %387 = vmatmul.mubr.f32.gmra.mxu0 %v302
        %v388 = vpop.f32.mrf.mxu0
        %v389 = vadd.f32 %v289, %v388
        %v390 = vpop.f32.mrf.mxu0
        %v391 = vadd.f32 %v289, %v390
        %392 = vdwg.mxu0
        %393 = vmatprep.subr.mxu0 0.0
        %394 = vmatpush1.msra.mxu0 0.0
        %395 = vmatprep.subr.mxu0 0.0
        %396 = vmatpush1.msra.mxu0 0.0
        %397 = vmatprep.subr.mxu0 0.0
        %398 = vmatpush1.msra.mxu0 0.0
        %399 = vmatprep.subr.mxu0 0.0
        %400 = vmatpush1.msra.mxu0 0.0
        %401 = vmatprep.subr.mxu0 0.0
        %402 = vmatpush1.msra.mxu0 0.0
        %403 = vmatprep.subr.mxu0 0.0
        %404 = vmatpush1.msra.mxu0 0.0
        %405 = vmatprep.subr.mxu0 0.0
        %406 = vmatpush1.msra.mxu0 0.0
        %407 = vmatprep.subr.mxu0 0.0
        %408 = vmatpush1.msra.mxu0 0.0
        %409 = vmatprep.subr.mxu0 0.0
        %410 = vmatpush1.msra.mxu0 0.0
        %411 = vmatprep.subr.mxu0 0.0
        %412 = vmatpush1.msra.mxu0 0.0
        %413 = vmatprep.subr.mxu0 0.0
        %414 = vmatpush1.msra.mxu0 0.0
        %415 = vmatprep.subr.mxu0 0.0
        %416 = vmatpush1.msra.mxu0 0.0
        %417 = vmatprep.subr.mxu0 %v262
        %418 = vmatpush1.msra.mxu0 %v261
        %419 = vmatprep.subr.mxu0 %v258
        %420 = vmatpush1.msra.mxu0 %v257
        %421 = vmatprep.subr.mxu0 %v254
        %422 = vmatpush1.msra.mxu0 %v253
        %423 = vmatprep.subr.mxu0 %v250
        %424 = vmatpush1.msra.mxu0 %v249
        %425 = vmatprep.subr.mxu0 0.0
        %426 = vmatpush2.msra.mxu0 0.0
        %427 = vmatprep.subr.mxu0 0.0
        %428 = vmatpush2.msra.mxu0 0.0
        %429 = vmatprep.subr.mxu0 0.0
        %430 = vmatpush2.msra.mxu0 0.0
        %431 = vmatprep.subr.mxu0 0.0
        %432 = vmatpush2.msra.mxu0 0.0
        %433 = vmatprep.subr.mxu0 0.0
        %434 = vmatpush2.msra.mxu0 0.0
        %435 = vmatprep.subr.mxu0 0.0
        %436 = vmatpush2.msra.mxu0 0.0
        %437 = vmatprep.subr.mxu0 0.0
        %438 = vmatpush2.msra.mxu0 0.0
        %439 = vmatprep.subr.mxu0 0.0
        %440 = vmatpush2.msra.mxu0 0.0
        %441 = vmatprep.subr.mxu0 0.0
        %442 = vmatpush2.msra.mxu0 0.0
        %443 = vmatprep.subr.mxu0 0.0
        %444 = vmatpush2.msra.mxu0 0.0
        %445 = vmatprep.subr.mxu0 0.0
        %446 = vmatpush2.msra.mxu0 0.0
        %447 = vmatprep.subr.mxu0 0.0
        %448 = vmatpush2.msra.mxu0 0.0
        %449 = vmatprep.subr.mxu0 0.0
        %450 = vmatpush2.msra.mxu0 0.0
        %451 = vmatprep.subr.mxu0 0.0
        %452 = vmatpush2.msra.mxu0 0.0
        %453 = vmatprep.subr.mxu0 0.0
        %454 = vmatpush2.msra.mxu0 0.0
        %455 = vmatprep.subr.mxu0 0.0
        %456 = vmatpush2.msra.mxu0 0.0
        %457 = vmatprep.mubr.f32.mxu0 0.0
        %458 = vmatmul.mubr.f32.gmra.mxu0 %v293
        %v459 = vpop.f32.mrf.mxu0
        %v460 = vadd.f32 %v274, %v459
        %v461 = vpop.f32.mrf.mxu0
        %v462 = vadd.f32 %v274, %v461
        %463 = vmatprep.mubr.f32.mxu0 0.0
        %464 = vmatmul.mubr.f32.gmra.mxu0 %v296
        %v465 = vpop.f32.mrf.mxu0
        %v466 = vadd.f32 %v279, %v465
        %v467 = vpop.f32.mrf.mxu0
        %v468 = vadd.f32 %v279, %v467
        %469 = vmatprep.mubr.f32.mxu0 0.0
        %470 = vmatmul.mubr.f32.gmra.mxu0 %v299
        %v471 = vpop.f32.mrf.mxu0
        %v472 = vadd.f32 %v284, %v471
        %v473 = vpop.f32.mrf.mxu0
        %v474 = vadd.f32 %v284, %v473
        %475 = vmatprep.mubr.f32.mxu0 0.0
        %476 = vmatmul.mubr.f32.gmra.mxu0 %v302
        %v477 = vpop.f32.mrf.mxu0
        %v478 = vadd.f32 %v289, %v477
        %v479 = vpop.f32.mrf.mxu0
        %v480 = vadd.f32 %v289, %v479
        %481 = vdwg.mxu0
        %v482 = vmax.f32 %v371, 0.0
        %v483 = vmax.f32 %v373, 0.0
        %v484 = vmax.f32 %v460, 0.0
        %v485 = vmax.f32 %v462, 0.0
        %v486 = vmax.f32 %v377, 0.0
        %v487 = vmax.f32 %v379, 0.0
        %v488 = vmax.f32 %v466, 0.0
        %v489 = vmax.f32 %v468, 0.0
        %v490 = vmax.f32 %v383, 0.0
        %v491 = vmax.f32 %v385, 0.0
        %v492 = vmax.f32 %v472, 0.0
        %v493 = vmax.f32 %v474, 0.0
        %v494 = vmax.f32 %v389, 0.0
        %v495 = vmax.f32 %v391, 0.0
        %v496 = vmax.f32 %v478, 0.0
        %v497 = vmax.f32 %v480, 0.0
        %s498 = scalar_lea.vmem %s1, 32
        %v499 = vld [vmem:[%s498] sm:$0xff]
        %v500 = vld [vmem:[%s498 + $0x8] sm:$0xff]
        %v501 = vld [vmem:[%s498 + $0x10] sm:$0xff]
        %v502 = vld [vmem:[%s498 + $0x18] sm:$0xff]
        %s503 = scalar_lea.vmem %s2, 32
        %v504 = vld [vmem:[%s503] sm:$0xff]
        %v505 = vld [vmem:[%s503 + $0x8] sm:$0xff]
        %v506 = vld [vmem:[%s503 + $0x10] sm:$0xff]
        %v507 = vld [vmem:[%s503 + $0x18] sm:$0xff]
        %509 = vset.pattern.permute.xlu0 0
        %510 = vperm.xlu0 %509, %v504
        %v511 = vpop.permute.xlu0 %510
        %514 = vset.pattern.permute.xlu0 0
        %515 = vperm.xlu0 %514, %v505
        %v516 = vpop.permute.xlu0 %515
        %519 = vset.pattern.permute.xlu0 0
        %520 = vperm.xlu0 %519, %v506
        %v521 = vpop.permute.xlu0 %520
        %524 = vset.pattern.permute.xlu0 0
        %525 = vperm.xlu0 %524, %v507
        %v526 = vpop.permute.xlu0 %525
        %v529 = vsel %vm291, %v499, 0
        %v532 = vsel %vm291, %v500, 0
        %v535 = vsel %vm291, %v501, 0
        %v538 = vsel %vm291, %v502, 0
        %540 = vmatprep.subr.mxu0 0.0
        %541 = vmatpush1.msra.mxu0 0.0
        %542 = vmatprep.subr.mxu0 0.0
        %543 = vmatpush1.msra.mxu0 0.0
        %544 = vmatprep.subr.mxu0 0.0
        %545 = vmatpush1.msra.mxu0 0.0
        %546 = vmatprep.subr.mxu0 0.0
        %547 = vmatpush1.msra.mxu0 0.0
        %548 = vmatprep.subr.mxu0 0.0
        %549 = vmatpush1.msra.mxu0 0.0
        %550 = vmatprep.subr.mxu0 0.0
        %551 = vmatpush1.msra.mxu0 0.0
        %552 = vmatprep.subr.mxu0 0.0
        %553 = vmatpush1.msra.mxu0 0.0
        %554 = vmatprep.subr.mxu0 0.0
        %555 = vmatpush1.msra.mxu0 0.0
        %556 = vmatprep.subr.mxu0 0.0
        %557 = vmatpush1.msra.mxu0 0.0
        %558 = vmatprep.subr.mxu0 0.0
        %559 = vmatpush1.msra.mxu0 0.0
        %560 = vmatprep.subr.mxu0 0.0
        %561 = vmatpush1.msra.mxu0 0.0
        %562 = vmatprep.subr.mxu0 0.0
        %563 = vmatpush1.msra.mxu0 0.0
        %564 = vmatprep.subr.mxu0 %v495
        %565 = vmatpush1.msra.mxu0 %v494
        %566 = vmatprep.subr.mxu0 %v491
        %567 = vmatpush1.msra.mxu0 %v490
        %568 = vmatprep.subr.mxu0 %v487
        %569 = vmatpush1.msra.mxu0 %v486
        %570 = vmatprep.subr.mxu0 %v483
        %571 = vmatpush1.msra.mxu0 %v482
        %572 = vmatprep.subr.mxu0 0.0
        %573 = vmatpush2.msra.mxu0 0.0
        %574 = vmatprep.subr.mxu0 0.0
        %575 = vmatpush2.msra.mxu0 0.0
        %576 = vmatprep.subr.mxu0 0.0
        %577 = vmatpush2.msra.mxu0 0.0
        %578 = vmatprep.subr.mxu0 0.0
        %579 = vmatpush2.msra.mxu0 0.0
        %580 = vmatprep.subr.mxu0 0.0
        %581 = vmatpush2.msra.mxu0 0.0
        %582 = vmatprep.subr.mxu0 0.0
        %583 = vmatpush2.msra.mxu0 0.0
        %584 = vmatprep.subr.mxu0 0.0
        %585 = vmatpush2.msra.mxu0 0.0
        %586 = vmatprep.subr.mxu0 0.0
        %587 = vmatpush2.msra.mxu0 0.0
        %588 = vmatprep.subr.mxu0 0.0
        %589 = vmatpush2.msra.mxu0 0.0
        %590 = vmatprep.subr.mxu0 0.0
        %591 = vmatpush2.msra.mxu0 0.0
        %592 = vmatprep.subr.mxu0 0.0
        %593 = vmatpush2.msra.mxu0 0.0
        %594 = vmatprep.subr.mxu0 0.0
        %595 = vmatpush2.msra.mxu0 0.0
        %596 = vmatprep.subr.mxu0 0.0
        %597 = vmatpush2.msra.mxu0 0.0
        %598 = vmatprep.subr.mxu0 0.0
        %599 = vmatpush2.msra.mxu0 0.0
        %600 = vmatprep.subr.mxu0 0.0
        %601 = vmatpush2.msra.mxu0 0.0
        %602 = vmatprep.subr.mxu0 0.0
        %603 = vmatpush2.msra.mxu0 0.0
        %604 = vmatprep.mubr.f32.mxu0 0.0
        %605 = vmatmul.mubr.f32.gmra.mxu0 %v529
        %v606 = vpop.f32.mrf.mxu0
        %v607 = vadd.f32 %v511, %v606
        %v608 = vpop.f32.mrf.mxu0
        %v609 = vadd.f32 %v511, %v608
        %610 = vmatprep.mubr.f32.mxu0 0.0
        %611 = vmatmul.mubr.f32.gmra.mxu0 %v532
        %v612 = vpop.f32.mrf.mxu0
        %v613 = vadd.f32 %v516, %v612
        %v614 = vpop.f32.mrf.mxu0
        %v615 = vadd.f32 %v516, %v614
        %616 = vmatprep.mubr.f32.mxu0 0.0
        %617 = vmatmul.mubr.f32.gmra.mxu0 %v535
        %v618 = vpop.f32.mrf.mxu0
        %v619 = vadd.f32 %v521, %v618
        %v620 = vpop.f32.mrf.mxu0
        %v621 = vadd.f32 %v521, %v620
        %622 = vmatprep.mubr.f32.mxu0 0.0
        %623 = vmatmul.mubr.f32.gmra.mxu0 %v538
        %v624 = vpop.f32.mrf.mxu0
        %v625 = vadd.f32 %v526, %v624
        %v626 = vpop.f32.mrf.mxu0
        %v627 = vadd.f32 %v526, %v626
        %628 = vdwg.mxu0
        %629 = vmatprep.subr.mxu0 0.0
        %630 = vmatpush1.msra.mxu0 0.0
        %631 = vmatprep.subr.mxu0 0.0
        %632 = vmatpush1.msra.mxu0 0.0
        %633 = vmatprep.subr.mxu0 0.0
        %634 = vmatpush1.msra.mxu0 0.0
        %635 = vmatprep.subr.mxu0 0.0
        %636 = vmatpush1.msra.mxu0 0.0
        %637 = vmatprep.subr.mxu0 0.0
        %638 = vmatpush1.msra.mxu0 0.0
        %639 = vmatprep.subr.mxu0 0.0
        %640 = vmatpush1.msra.mxu0 0.0
        %641 = vmatprep.subr.mxu0 0.0
        %642 = vmatpush1.msra.mxu0 0.0
        %643 = vmatprep.subr.mxu0 0.0
        %644 = vmatpush1.msra.mxu0 0.0
        %645 = vmatprep.subr.mxu0 0.0
        %646 = vmatpush1.msra.mxu0 0.0
        %647 = vmatprep.subr.mxu0 0.0
        %648 = vmatpush1.msra.mxu0 0.0
        %649 = vmatprep.subr.mxu0 0.0
        %650 = vmatpush1.msra.mxu0 0.0
        %651 = vmatprep.subr.mxu0 0.0
        %652 = vmatpush1.msra.mxu0 0.0
        %653 = vmatprep.subr.mxu0 %v497
        %654 = vmatpush1.msra.mxu0 %v496
        %655 = vmatprep.subr.mxu0 %v493
        %656 = vmatpush1.msra.mxu0 %v492
        %657 = vmatprep.subr.mxu0 %v489
        %658 = vmatpush1.msra.mxu0 %v488
        %659 = vmatprep.subr.mxu0 %v485
        %660 = vmatpush1.msra.mxu0 %v484
        %661 = vmatprep.subr.mxu0 0.0
        %662 = vmatpush2.msra.mxu0 0.0
        %663 = vmatprep.subr.mxu0 0.0
        %664 = vmatpush2.msra.mxu0 0.0
        %665 = vmatprep.subr.mxu0 0.0
        %666 = vmatpush2.msra.mxu0 0.0
        %667 = vmatprep.subr.mxu0 0.0
        %668 = vmatpush2.msra.mxu0 0.0
        %669 = vmatprep.subr.mxu0 0.0
        %670 = vmatpush2.msra.mxu0 0.0
        %671 = vmatprep.subr.mxu0 0.0
        %672 = vmatpush2.msra.mxu0 0.0
        %673 = vmatprep.subr.mxu0 0.0
        %674 = vmatpush2.msra.mxu0 0.0
        %675 = vmatprep.subr.mxu0 0.0
        %676 = vmatpush2.msra.mxu0 0.0
        %677 = vmatprep.subr.mxu0 0.0
        %678 = vmatpush2.msra.mxu0 0.0
        %679 = vmatprep.subr.mxu0 0.0
        %680 = vmatpush2.msra.mxu0 0.0
        %681 = vmatprep.subr.mxu0 0.0
        %682 = vmatpush2.msra.mxu0 0.0
        %683 = vmatprep.subr.mxu0 0.0
        %684 = vmatpush2.msra.mxu0 0.0
        %685 = vmatprep.subr.mxu0 0.0
        %686 = vmatpush2.msra.mxu0 0.0
        %687 = vmatprep.subr.mxu0 0.0
        %688 = vmatpush2.msra.mxu0 0.0
        %689 = vmatprep.subr.mxu0 0.0
        %690 = vmatpush2.msra.mxu0 0.0
        %691 = vmatprep.subr.mxu0 0.0
        %692 = vmatpush2.msra.mxu0 0.0
        %693 = vmatprep.mubr.f32.mxu0 0.0
        %694 = vmatmul.mubr.f32.gmra.mxu0 %v529
        %v695 = vpop.f32.mrf.mxu0
        %v696 = vadd.f32 %v511, %v695
        %v697 = vpop.f32.mrf.mxu0
        %v698 = vadd.f32 %v511, %v697
        %699 = vmatprep.mubr.f32.mxu0 0.0
        %700 = vmatmul.mubr.f32.gmra.mxu0 %v532
        %v701 = vpop.f32.mrf.mxu0
        %v702 = vadd.f32 %v516, %v701
        %v703 = vpop.f32.mrf.mxu0
        %v704 = vadd.f32 %v516, %v703
        %705 = vmatprep.mubr.f32.mxu0 0.0
        %706 = vmatmul.mubr.f32.gmra.mxu0 %v535
        %v707 = vpop.f32.mrf.mxu0
        %v708 = vadd.f32 %v521, %v707
        %v709 = vpop.f32.mrf.mxu0
        %v710 = vadd.f32 %v521, %v709
        %711 = vmatprep.mubr.f32.mxu0 0.0
        %712 = vmatmul.mubr.f32.gmra.mxu0 %v538
        %v713 = vpop.f32.mrf.mxu0
        %v714 = vadd.f32 %v526, %v713
        %v715 = vpop.f32.mrf.mxu0
        %v716 = vadd.f32 %v526, %v715
        %717 = vdwg.mxu0
        %v718 = vmax.f32 %v607, 0.0
        %v719 = vmax.f32 %v609, 0.0
        %v720 = vmax.f32 %v696, 0.0
        %v721 = vmax.f32 %v698, 0.0
        %v722 = vmax.f32 %v613, 0.0
        %v723 = vmax.f32 %v615, 0.0
        %v724 = vmax.f32 %v702, 0.0
        %v725 = vmax.f32 %v704, 0.0
        %v726 = vmax.f32 %v619, 0.0
        %v727 = vmax.f32 %v621, 0.0
        %v728 = vmax.f32 %v708, 0.0
        %v729 = vmax.f32 %v710, 0.0
        %v730 = vmax.f32 %v625, 0.0
        %v731 = vmax.f32 %v627, 0.0
        %v732 = vmax.f32 %v714, 0.0
        %v733 = vmax.f32 %v716, 0.0
        %s734 = scalar_lea.vmem %s1, 64
        %v735 = vld [vmem:[%s734] sm:$0xff]
        %v736 = vld [vmem:[%s734 + $0x8] sm:$0xff]
        %v737 = vld [vmem:[%s734 + $0x10] sm:$0xff]
        %v738 = vld [vmem:[%s734 + $0x18] sm:$0xff]
        %s739 = scalar_lea.vmem %s2, 64
        %v740 = vld [vmem:[%s739] sm:$0xff]
        %v741 = vld [vmem:[%s739 + $0x8] sm:$0xff]
        %v742 = vld [vmem:[%s739 + $0x10] sm:$0xff]
        %v743 = vld [vmem:[%s739 + $0x18] sm:$0xff]
        %745 = vset.pattern.permute.xlu0 0
        %746 = vperm.xlu0 %745, %v740
        %v747 = vpop.permute.xlu0 %746
        %750 = vset.pattern.permute.xlu0 0
        %751 = vperm.xlu0 %750, %v741
        %v752 = vpop.permute.xlu0 %751
        %755 = vset.pattern.permute.xlu0 0
        %756 = vperm.xlu0 %755, %v742
        %v757 = vpop.permute.xlu0 %756
        %760 = vset.pattern.permute.xlu0 0
        %761 = vperm.xlu0 %760, %v743
        %v762 = vpop.permute.xlu0 %761
        %v765 = vsel %vm291, %v735, 0
        %v768 = vsel %vm291, %v736, 0
        %v771 = vsel %vm291, %v737, 0
        %v774 = vsel %vm291, %v738, 0
        %776 = vmatprep.subr.mxu0 0.0
        %777 = vmatpush1.msra.mxu0 0.0
        %778 = vmatprep.subr.mxu0 0.0
        %779 = vmatpush1.msra.mxu0 0.0
        %780 = vmatprep.subr.mxu0 0.0
        %781 = vmatpush1.msra.mxu0 0.0
        %782 = vmatprep.subr.mxu0 0.0
        %783 = vmatpush1.msra.mxu0 0.0
        %784 = vmatprep.subr.mxu0 0.0
        %785 = vmatpush1.msra.mxu0 0.0
        %786 = vmatprep.subr.mxu0 0.0
        %787 = vmatpush1.msra.mxu0 0.0
        %788 = vmatprep.subr.mxu0 0.0
        %789 = vmatpush1.msra.mxu0 0.0
        %790 = vmatprep.subr.mxu0 0.0
        %791 = vmatpush1.msra.mxu0 0.0
        %792 = vmatprep.subr.mxu0 0.0
        %793 = vmatpush1.msra.mxu0 0.0
        %794 = vmatprep.subr.mxu0 0.0
        %795 = vmatpush1.msra.mxu0 0.0
        %796 = vmatprep.subr.mxu0 0.0
        %797 = vmatpush1.msra.mxu0 0.0
        %798 = vmatprep.subr.mxu0 0.0
        %799 = vmatpush1.msra.mxu0 0.0
        %800 = vmatprep.subr.mxu0 %v731
        %801 = vmatpush1.msra.mxu0 %v730
        %802 = vmatprep.subr.mxu0 %v727
        %803 = vmatpush1.msra.mxu0 %v726
        %804 = vmatprep.subr.mxu0 %v723
        %805 = vmatpush1.msra.mxu0 %v722
        %806 = vmatprep.subr.mxu0 %v719
        %807 = vmatpush1.msra.mxu0 %v718
        %808 = vmatprep.subr.mxu0 0.0
        %809 = vmatpush2.msra.mxu0 0.0
        %810 = vmatprep.subr.mxu0 0.0
        %811 = vmatpush2.msra.mxu0 0.0
        %812 = vmatprep.subr.mxu0 0.0
        %813 = vmatpush2.msra.mxu0 0.0
        %814 = vmatprep.subr.mxu0 0.0
        %815 = vmatpush2.msra.mxu0 0.0
        %816 = vmatprep.subr.mxu0 0.0
        %817 = vmatpush2.msra.mxu0 0.0
        %818 = vmatprep.subr.mxu0 0.0
        %819 = vmatpush2.msra.mxu0 0.0
        %820 = vmatprep.subr.mxu0 0.0
        %821 = vmatpush2.msra.mxu0 0.0
        %822 = vmatprep.subr.mxu0 0.0
        %823 = vmatpush2.msra.mxu0 0.0
        %824 = vmatprep.subr.mxu0 0.0
        %825 = vmatpush2.msra.mxu0 0.0
        %826 = vmatprep.subr.mxu0 0.0
        %827 = vmatpush2.msra.mxu0 0.0
        %828 = vmatprep.subr.mxu0 0.0
        %829 = vmatpush2.msra.mxu0 0.0
        %830 = vmatprep.subr.mxu0 0.0
        %831 = vmatpush2.msra.mxu0 0.0
        %832 = vmatprep.subr.mxu0 0.0
        %833 = vmatpush2.msra.mxu0 0.0
        %834 = vmatprep.subr.mxu0 0.0
        %835 = vmatpush2.msra.mxu0 0.0
        %836 = vmatprep.subr.mxu0 0.0
        %837 = vmatpush2.msra.mxu0 0.0
        %838 = vmatprep.subr.mxu0 0.0
        %839 = vmatpush2.msra.mxu0 0.0
        %840 = vmatprep.mubr.f32.mxu0 0.0
        %841 = vmatmul.mubr.f32.gmra.mxu0 %v765
        %v842 = vpop.f32.mrf.mxu0
        %v843 = vadd.f32 %v747, %v842
        %v844 = vpop.f32.mrf.mxu0
        %v845 = vadd.f32 %v747, %v844
        %846 = vmatprep.mubr.f32.mxu0 0.0
        %847 = vmatmul.mubr.f32.gmra.mxu0 %v768
        %v848 = vpop.f32.mrf.mxu0
        %v849 = vadd.f32 %v752, %v848
        %v850 = vpop.f32.mrf.mxu0
        %v851 = vadd.f32 %v752, %v850
        %852 = vmatprep.mubr.f32.mxu0 0.0
        %853 = vmatmul.mubr.f32.gmra.mxu0 %v771
        %v854 = vpop.f32.mrf.mxu0
        %v855 = vadd.f32 %v757, %v854
        %v856 = vpop.f32.mrf.mxu0
        %v857 = vadd.f32 %v757, %v856
        %858 = vmatprep.mubr.f32.mxu0 0.0
        %859 = vmatmul.mubr.f32.gmra.mxu0 %v774
        %v860 = vpop.f32.mrf.mxu0
        %v861 = vadd.f32 %v762, %v860
        %v862 = vpop.f32.mrf.mxu0
        %v863 = vadd.f32 %v762, %v862
        %864 = vdwg.mxu0
        %865 = vmatprep.subr.mxu0 0.0
        %866 = vmatpush1.msra.mxu0 0.0
        %867 = vmatprep.subr.mxu0 0.0
        %868 = vmatpush1.msra.mxu0 0.0
        %869 = vmatprep.subr.mxu0 0.0
        %870 = vmatpush1.msra.mxu0 0.0
        %871 = vmatprep.subr.mxu0 0.0
        %872 = vmatpush1.msra.mxu0 0.0
        %873 = vmatprep.subr.mxu0 0.0
        %874 = vmatpush1.msra.mxu0 0.0
        %875 = vmatprep.subr.mxu0 0.0
        %876 = vmatpush1.msra.mxu0 0.0
        %877 = vmatprep.subr.mxu0 0.0
        %878 = vmatpush1.msra.mxu0 0.0
        %879 = vmatprep.subr.mxu0 0.0
        %880 = vmatpush1.msra.mxu0 0.0
        %881 = vmatprep.subr.mxu0 0.0
        %882 = vmatpush1.msra.mxu0 0.0
        %883 = vmatprep.subr.mxu0 0.0
        %884 = vmatpush1.msra.mxu0 0.0
        %885 = vmatprep.subr.mxu0 0.0
        %886 = vmatpush1.msra.mxu0 0.0
        %887 = vmatprep.subr.mxu0 0.0
        %888 = vmatpush1.msra.mxu0 0.0
        %889 = vmatprep.subr.mxu0 %v733
        %890 = vmatpush1.msra.mxu0 %v732
        %891 = vmatprep.subr.mxu0 %v729
        %892 = vmatpush1.msra.mxu0 %v728
        %893 = vmatprep.subr.mxu0 %v725
        %894 = vmatpush1.msra.mxu0 %v724
        %895 = vmatprep.subr.mxu0 %v721
        %896 = vmatpush1.msra.mxu0 %v720
        %897 = vmatprep.subr.mxu0 0.0
        %898 = vmatpush2.msra.mxu0 0.0
        %899 = vmatprep.subr.mxu0 0.0
        %900 = vmatpush2.msra.mxu0 0.0
        %901 = vmatprep.subr.mxu0 0.0
        %902 = vmatpush2.msra.mxu0 0.0
        %903 = vmatprep.subr.mxu0 0.0
        %904 = vmatpush2.msra.mxu0 0.0
        %905 = vmatprep.subr.mxu0 0.0
        %906 = vmatpush2.msra.mxu0 0.0
        %907 = vmatprep.subr.mxu0 0.0
        %908 = vmatpush2.msra.mxu0 0.0
        %909 = vmatprep.subr.mxu0 0.0
        %910 = vmatpush2.msra.mxu0 0.0
        %911 = vmatprep.subr.mxu0 0.0
        %912 = vmatpush2.msra.mxu0 0.0
        %913 = vmatprep.subr.mxu0 0.0
        %914 = vmatpush2.msra.mxu0 0.0
        %915 = vmatprep.subr.mxu0 0.0
        %916 = vmatpush2.msra.mxu0 0.0
        %917 = vmatprep.subr.mxu0 0.0
        %918 = vmatpush2.msra.mxu0 0.0
        %919 = vmatprep.subr.mxu0 0.0
        %920 = vmatpush2.msra.mxu0 0.0
        %921 = vmatprep.subr.mxu0 0.0
        %922 = vmatpush2.msra.mxu0 0.0
        %923 = vmatprep.subr.mxu0 0.0
        %924 = vmatpush2.msra.mxu0 0.0
        %925 = vmatprep.subr.mxu0 0.0
        %926 = vmatpush2.msra.mxu0 0.0
        %927 = vmatprep.subr.mxu0 0.0
        %928 = vmatpush2.msra.mxu0 0.0
        %929 = vmatprep.mubr.f32.mxu0 0.0
        %930 = vmatmul.mubr.f32.gmra.mxu0 %v765
        %v931 = vpop.f32.mrf.mxu0
        %v932 = vadd.f32 %v747, %v931
        %v933 = vpop.f32.mrf.mxu0
        %v934 = vadd.f32 %v747, %v933
        %935 = vmatprep.mubr.f32.mxu0 0.0
        %936 = vmatmul.mubr.f32.gmra.mxu0 %v768
        %v937 = vpop.f32.mrf.mxu0
        %v938 = vadd.f32 %v752, %v937
        %v939 = vpop.f32.mrf.mxu0
        %v940 = vadd.f32 %v752, %v939
        %941 = vmatprep.mubr.f32.mxu0 0.0
        %942 = vmatmul.mubr.f32.gmra.mxu0 %v771
        %v943 = vpop.f32.mrf.mxu0
        %v944 = vadd.f32 %v757, %v943
        %v945 = vpop.f32.mrf.mxu0
        %v946 = vadd.f32 %v757, %v945
        %947 = vmatprep.mubr.f32.mxu0 0.0
        %948 = vmatmul.mubr.f32.gmra.mxu0 %v774
        %v949 = vpop.f32.mrf.mxu0
        %v950 = vadd.f32 %v762, %v949
        %v951 = vpop.f32.mrf.mxu0
        %v952 = vadd.f32 %v762, %v951
        %953 = vdwg.mxu0
        %v954 = vmax.f32 %v843, 0.0
        %v955 = vmax.f32 %v845, 0.0
        %v956 = vmax.f32 %v932, 0.0
        %v957 = vmax.f32 %v934, 0.0
        %v958 = vmax.f32 %v849, 0.0
        %v959 = vmax.f32 %v851, 0.0
        %v960 = vmax.f32 %v938, 0.0
        %v961 = vmax.f32 %v940, 0.0
        %v962 = vmax.f32 %v855, 0.0
        %v963 = vmax.f32 %v857, 0.0
        %v964 = vmax.f32 %v944, 0.0
        %v965 = vmax.f32 %v946, 0.0
        %v966 = vmax.f32 %v861, 0.0
        %v967 = vmax.f32 %v863, 0.0
        %v968 = vmax.f32 %v950, 0.0
        %v969 = vmax.f32 %v952, 0.0
        %v970 = vadd.f32 %v247, %v954
        %v971 = vadd.f32 %v248, %v955
        %v972 = vadd.f32 %v249, %v956
        %v973 = vadd.f32 %v250, %v957
        %v974 = vadd.f32 %v251, %v958
        %v975 = vadd.f32 %v252, %v959
        %v976 = vadd.f32 %v253, %v960
        %v977 = vadd.f32 %v254, %v961
        %v978 = vadd.f32 %v255, %v962
        %v979 = vadd.f32 %v256, %v963
        %v980 = vadd.f32 %v257, %v964
        %v981 = vadd.f32 %v258, %v965
        %v982 = vadd.f32 %v259, %v966
        %v983 = vadd.f32 %v260, %v967
        %v984 = vadd.f32 %v261, %v968
        %v985 = vadd.f32 %v262, %v969
        %s986 = scalar_lea.vmem %s1, 96
        %v987 = vld [vmem:[%s986] sm:$0xff]
        %v988 = vld [vmem:[%s986 + $0x8] sm:$0xff]
        %v989 = vld [vmem:[%s986 + $0x10] sm:$0xff]
        %v990 = vld [vmem:[%s986 + $0x18] sm:$0xff]
        %s991 = scalar_lea.vmem %s2, 96
        %v992 = vld [vmem:[%s991] sm:$0xff]
        %v993 = vld [vmem:[%s991 + $0x8] sm:$0xff]
        %v994 = vld [vmem:[%s991 + $0x10] sm:$0xff]
        %v995 = vld [vmem:[%s991 + $0x18] sm:$0xff]
        %997 = vset.pattern.permute.xlu0 0
        %998 = vperm.xlu0 %997, %v992
        %v999 = vpop.permute.xlu0 %998
        %1002 = vset.pattern.permute.xlu0 0
        %1003 = vperm.xlu0 %1002, %v993
        %v1004 = vpop.permute.xlu0 %1003
        %1007 = vset.pattern.permute.xlu0 0
        %1008 = vperm.xlu0 %1007, %v994
        %v1009 = vpop.permute.xlu0 %1008
        %1012 = vset.pattern.permute.xlu0 0
        %1013 = vperm.xlu0 %1012, %v995
        %v1014 = vpop.permute.xlu0 %1013
        %v1017 = vsel %vm291, %v987, 0
        %v1020 = vsel %vm291, %v988, 0
        %v1023 = vsel %vm291, %v989, 0
        %v1026 = vsel %vm291, %v990, 0
        %1028 = vmatprep.subr.mxu0 0.0
        %1029 = vmatpush1.msra.mxu0 0.0
        %1030 = vmatprep.subr.mxu0 0.0
        %1031 = vmatpush1.msra.mxu0 0.0
        %1032 = vmatprep.subr.mxu0 0.0
        %1033 = vmatpush1.msra.mxu0 0.0
        %1034 = vmatprep.subr.mxu0 0.0
        %1035 = vmatpush1.msra.mxu0 0.0
        %1036 = vmatprep.subr.mxu0 0.0
        %1037 = vmatpush1.msra.mxu0 0.0
        %1038 = vmatprep.subr.mxu0 0.0
        %1039 = vmatpush1.msra.mxu0 0.0
        %1040 = vmatprep.subr.mxu0 0.0
        %1041 = vmatpush1.msra.mxu0 0.0
        %1042 = vmatprep.subr.mxu0 0.0
        %1043 = vmatpush1.msra.mxu0 0.0
        %1044 = vmatprep.subr.mxu0 0.0
        %1045 = vmatpush1.msra.mxu0 0.0
        %1046 = vmatprep.subr.mxu0 0.0
        %1047 = vmatpush1.msra.mxu0 0.0
        %1048 = vmatprep.subr.mxu0 0.0
        %1049 = vmatpush1.msra.mxu0 0.0
        %1050 = vmatprep.subr.mxu0 0.0
        %1051 = vmatpush1.msra.mxu0 0.0
        %1052 = vmatprep.subr.mxu0 %v983
        %1053 = vmatpush1.msra.mxu0 %v982
        %1054 = vmatprep.subr.mxu0 %v979
        %1055 = vmatpush1.msra.mxu0 %v978
        %1056 = vmatprep.subr.mxu0 %v975
        %1057 = vmatpush1.msra.mxu0 %v974
        %1058 = vmatprep.subr.mxu0 %v971
        %1059 = vmatpush1.msra.mxu0 %v970
        %1060 = vmatprep.subr.mxu0 0.0
        %1061 = vmatpush2.msra.mxu0 0.0
        %1062 = vmatprep.subr.mxu0 0.0
        %1063 = vmatpush2.msra.mxu0 0.0
        %1064 = vmatprep.subr.mxu0 0.0
        %1065 = vmatpush2.msra.mxu0 0.0
        %1066 = vmatprep.subr.mxu0 0.0
        %1067 = vmatpush2.msra.mxu0 0.0
        %1068 = vmatprep.subr.mxu0 0.0
        %1069 = vmatpush2.msra.mxu0 0.0
        %1070 = vmatprep.subr.mxu0 0.0
        %1071 = vmatpush2.msra.mxu0 0.0
        %1072 = vmatprep.subr.mxu0 0.0
        %1073 = vmatpush2.msra.mxu0 0.0
        %1074 = vmatprep.subr.mxu0 0.0
        %1075 = vmatpush2.msra.mxu0 0.0
        %1076 = vmatprep.subr.mxu0 0.0
        %1077 = vmatpush2.msra.mxu0 0.0
        %1078 = vmatprep.subr.mxu0 0.0
        %1079 = vmatpush2.msra.mxu0 0.0
        %1080 = vmatprep.subr.mxu0 0.0
        %1081 = vmatpush2.msra.mxu0 0.0
        %1082 = vmatprep.subr.mxu0 0.0
        %1083 = vmatpush2.msra.mxu0 0.0
        %1084 = vmatprep.subr.mxu0 0.0
        %1085 = vmatpush2.msra.mxu0 0.0
        %1086 = vmatprep.subr.mxu0 0.0
        %1087 = vmatpush2.msra.mxu0 0.0
        %1088 = vmatprep.subr.mxu0 0.0
        %1089 = vmatpush2.msra.mxu0 0.0
        %1090 = vmatprep.subr.mxu0 0.0
        %1091 = vmatpush2.msra.mxu0 0.0
        %1092 = vmatprep.mubr.f32.mxu0 0.0
        %1093 = vmatmul.mubr.f32.gmra.mxu0 %v1017
        %v1094 = vpop.f32.mrf.mxu0
        %v1095 = vadd.f32 %v999, %v1094
        %v1096 = vpop.f32.mrf.mxu0
        %v1097 = vadd.f32 %v999, %v1096
        %1098 = vmatprep.mubr.f32.mxu0 0.0
        %1099 = vmatmul.mubr.f32.gmra.mxu0 %v1020
        %v1100 = vpop.f32.mrf.mxu0
        %v1101 = vadd.f32 %v1004, %v1100
        %v1102 = vpop.f32.mrf.mxu0
        %v1103 = vadd.f32 %v1004, %v1102
        %1104 = vmatprep.mubr.f32.mxu0 0.0
        %1105 = vmatmul.mubr.f32.gmra.mxu0 %v1023
        %v1106 = vpop.f32.mrf.mxu0
        %v1107 = vadd.f32 %v1009, %v1106
        %v1108 = vpop.f32.mrf.mxu0
        %v1109 = vadd.f32 %v1009, %v1108
        %1110 = vmatprep.mubr.f32.mxu0 0.0
        %1111 = vmatmul.mubr.f32.gmra.mxu0 %v1026
        %v1112 = vpop.f32.mrf.mxu0
        %v1113 = vadd.f32 %v1014, %v1112
        %v1114 = vpop.f32.mrf.mxu0
        %v1115 = vadd.f32 %v1014, %v1114
        %1116 = vdwg.mxu0
        %1117 = vmatprep.subr.mxu0 0.0
        %1118 = vmatpush1.msra.mxu0 0.0
        %1119 = vmatprep.subr.mxu0 0.0
        %1120 = vmatpush1.msra.mxu0 0.0
        %1121 = vmatprep.subr.mxu0 0.0
        %1122 = vmatpush1.msra.mxu0 0.0
        %1123 = vmatprep.subr.mxu0 0.0
        %1124 = vmatpush1.msra.mxu0 0.0
        %1125 = vmatprep.subr.mxu0 0.0
        %1126 = vmatpush1.msra.mxu0 0.0
        %1127 = vmatprep.subr.mxu0 0.0
        %1128 = vmatpush1.msra.mxu0 0.0
        %1129 = vmatprep.subr.mxu0 0.0
        %1130 = vmatpush1.msra.mxu0 0.0
        %1131 = vmatprep.subr.mxu0 0.0
        %1132 = vmatpush1.msra.mxu0 0.0
        %1133 = vmatprep.subr.mxu0 0.0
        %1134 = vmatpush1.msra.mxu0 0.0
        %1135 = vmatprep.subr.mxu0 0.0
        %1136 = vmatpush1.msra.mxu0 0.0
        %1137 = vmatprep.subr.mxu0 0.0
        %1138 = vmatpush1.msra.mxu0 0.0
        %1139 = vmatprep.subr.mxu0 0.0
        %1140 = vmatpush1.msra.mxu0 0.0
        %1141 = vmatprep.subr.mxu0 %v985
        %1142 = vmatpush1.msra.mxu0 %v984
        %1143 = vmatprep.subr.mxu0 %v981
        %1144 = vmatpush1.msra.mxu0 %v980
        %1145 = vmatprep.subr.mxu0 %v977
        %1146 = vmatpush1.msra.mxu0 %v976
        %1147 = vmatprep.subr.mxu0 %v973
        %1148 = vmatpush1.msra.mxu0 %v972
        %1149 = vmatprep.subr.mxu0 0.0
        %1150 = vmatpush2.msra.mxu0 0.0
        %1151 = vmatprep.subr.mxu0 0.0
        %1152 = vmatpush2.msra.mxu0 0.0
        %1153 = vmatprep.subr.mxu0 0.0
        %1154 = vmatpush2.msra.mxu0 0.0
        %1155 = vmatprep.subr.mxu0 0.0
        %1156 = vmatpush2.msra.mxu0 0.0
        %1157 = vmatprep.subr.mxu0 0.0
        %1158 = vmatpush2.msra.mxu0 0.0
        %1159 = vmatprep.subr.mxu0 0.0
        %1160 = vmatpush2.msra.mxu0 0.0
        %1161 = vmatprep.subr.mxu0 0.0
        %1162 = vmatpush2.msra.mxu0 0.0
        %1163 = vmatprep.subr.mxu0 0.0
        %1164 = vmatpush2.msra.mxu0 0.0
        %1165 = vmatprep.subr.mxu0 0.0
        %1166 = vmatpush2.msra.mxu0 0.0
        %1167 = vmatprep.subr.mxu0 0.0
        %1168 = vmatpush2.msra.mxu0 0.0
        %1169 = vmatprep.subr.mxu0 0.0
        %1170 = vmatpush2.msra.mxu0 0.0
        %1171 = vmatprep.subr.mxu0 0.0
        %1172 = vmatpush2.msra.mxu0 0.0
        %1173 = vmatprep.subr.mxu0 0.0
        %1174 = vmatpush2.msra.mxu0 0.0
        %1175 = vmatprep.subr.mxu0 0.0
        %1176 = vmatpush2.msra.mxu0 0.0
        %1177 = vmatprep.subr.mxu0 0.0
        %1178 = vmatpush2.msra.mxu0 0.0
        %1179 = vmatprep.subr.mxu0 0.0
        %1180 = vmatpush2.msra.mxu0 0.0
        %1181 = vmatprep.mubr.f32.mxu0 0.0
        %1182 = vmatmul.mubr.f32.gmra.mxu0 %v1017
        %v1183 = vpop.f32.mrf.mxu0
        %v1184 = vadd.f32 %v999, %v1183
        %v1185 = vpop.f32.mrf.mxu0
        %v1186 = vadd.f32 %v999, %v1185
        %1187 = vmatprep.mubr.f32.mxu0 0.0
        %1188 = vmatmul.mubr.f32.gmra.mxu0 %v1020
        %v1189 = vpop.f32.mrf.mxu0
        %v1190 = vadd.f32 %v1004, %v1189
        %v1191 = vpop.f32.mrf.mxu0
        %v1192 = vadd.f32 %v1004, %v1191
        %1193 = vmatprep.mubr.f32.mxu0 0.0
        %1194 = vmatmul.mubr.f32.gmra.mxu0 %v1023
        %v1195 = vpop.f32.mrf.mxu0
        %v1196 = vadd.f32 %v1009, %v1195
        %v1197 = vpop.f32.mrf.mxu0
        %v1198 = vadd.f32 %v1009, %v1197
        %1199 = vmatprep.mubr.f32.mxu0 0.0
        %1200 = vmatmul.mubr.f32.gmra.mxu0 %v1026
        %v1201 = vpop.f32.mrf.mxu0
        %v1202 = vadd.f32 %v1014, %v1201
        %v1203 = vpop.f32.mrf.mxu0
        %v1204 = vadd.f32 %v1014, %v1203
        %1205 = vdwg.mxu0
        %v1206 = vmax.f32 %v1095, 0.0
        %v1207 = vmax.f32 %v1097, 0.0
        %v1208 = vmax.f32 %v1184, 0.0
        %v1209 = vmax.f32 %v1186, 0.0
        %v1210 = vmax.f32 %v1101, 0.0
        %v1211 = vmax.f32 %v1103, 0.0
        %v1212 = vmax.f32 %v1190, 0.0
        %v1213 = vmax.f32 %v1192, 0.0
        %v1214 = vmax.f32 %v1107, 0.0
        %v1215 = vmax.f32 %v1109, 0.0
        %v1216 = vmax.f32 %v1196, 0.0
        %v1217 = vmax.f32 %v1198, 0.0
        %v1218 = vmax.f32 %v1113, 0.0
        %v1219 = vmax.f32 %v1115, 0.0
        %v1220 = vmax.f32 %v1202, 0.0
        %v1221 = vmax.f32 %v1204, 0.0
        %s1222 = scalar_lea.vmem %s1, 128
        %v1223 = vld [vmem:[%s1222] sm:$0xff]
        %v1224 = vld [vmem:[%s1222 + $0x8] sm:$0xff]
        %v1225 = vld [vmem:[%s1222 + $0x10] sm:$0xff]
        %v1226 = vld [vmem:[%s1222 + $0x18] sm:$0xff]
        %s1227 = scalar_lea.vmem %s2, 128
        %v1228 = vld [vmem:[%s1227] sm:$0xff]
        %v1229 = vld [vmem:[%s1227 + $0x8] sm:$0xff]
        %v1230 = vld [vmem:[%s1227 + $0x10] sm:$0xff]
        %v1231 = vld [vmem:[%s1227 + $0x18] sm:$0xff]
        %1233 = vset.pattern.permute.xlu0 0
        %1234 = vperm.xlu0 %1233, %v1228
        %v1235 = vpop.permute.xlu0 %1234
        %1238 = vset.pattern.permute.xlu0 0
        %1239 = vperm.xlu0 %1238, %v1229
        %v1240 = vpop.permute.xlu0 %1239
        %1243 = vset.pattern.permute.xlu0 0
        %1244 = vperm.xlu0 %1243, %v1230
        %v1245 = vpop.permute.xlu0 %1244
        %1248 = vset.pattern.permute.xlu0 0
        %1249 = vperm.xlu0 %1248, %v1231
        %v1250 = vpop.permute.xlu0 %1249
        %v1253 = vsel %vm291, %v1223, 0
        %v1256 = vsel %vm291, %v1224, 0
        %v1259 = vsel %vm291, %v1225, 0
        %v1262 = vsel %vm291, %v1226, 0
        %1264 = vmatprep.subr.mxu0 0.0
        %1265 = vmatpush1.msra.mxu0 0.0
        %1266 = vmatprep.subr.mxu0 0.0
        %1267 = vmatpush1.msra.mxu0 0.0
        %1268 = vmatprep.subr.mxu0 0.0
        %1269 = vmatpush1.msra.mxu0 0.0
        %1270 = vmatprep.subr.mxu0 0.0
        %1271 = vmatpush1.msra.mxu0 0.0
        %1272 = vmatprep.subr.mxu0 0.0
        %1273 = vmatpush1.msra.mxu0 0.0
        %1274 = vmatprep.subr.mxu0 0.0
        %1275 = vmatpush1.msra.mxu0 0.0
        %1276 = vmatprep.subr.mxu0 0.0
        %1277 = vmatpush1.msra.mxu0 0.0
        %1278 = vmatprep.subr.mxu0 0.0
        %1279 = vmatpush1.msra.mxu0 0.0
        %1280 = vmatprep.subr.mxu0 0.0
        %1281 = vmatpush1.msra.mxu0 0.0
        %1282 = vmatprep.subr.mxu0 0.0
        %1283 = vmatpush1.msra.mxu0 0.0
        %1284 = vmatprep.subr.mxu0 0.0
        %1285 = vmatpush1.msra.mxu0 0.0
        %1286 = vmatprep.subr.mxu0 0.0
        %1287 = vmatpush1.msra.mxu0 0.0
        %1288 = vmatprep.subr.mxu0 %v1219
        %1289 = vmatpush1.msra.mxu0 %v1218
        %1290 = vmatprep.subr.mxu0 %v1215
        %1291 = vmatpush1.msra.mxu0 %v1214
        %1292 = vmatprep.subr.mxu0 %v1211
        %1293 = vmatpush1.msra.mxu0 %v1210
        %1294 = vmatprep.subr.mxu0 %v1207
        %1295 = vmatpush1.msra.mxu0 %v1206
        %1296 = vmatprep.subr.mxu0 0.0
        %1297 = vmatpush2.msra.mxu0 0.0
        %1298 = vmatprep.subr.mxu0 0.0
        %1299 = vmatpush2.msra.mxu0 0.0
        %1300 = vmatprep.subr.mxu0 0.0
        %1301 = vmatpush2.msra.mxu0 0.0
        %1302 = vmatprep.subr.mxu0 0.0
        %1303 = vmatpush2.msra.mxu0 0.0
        %1304 = vmatprep.subr.mxu0 0.0
        %1305 = vmatpush2.msra.mxu0 0.0
        %1306 = vmatprep.subr.mxu0 0.0
        %1307 = vmatpush2.msra.mxu0 0.0
        %1308 = vmatprep.subr.mxu0 0.0
        %1309 = vmatpush2.msra.mxu0 0.0
        %1310 = vmatprep.subr.mxu0 0.0
        %1311 = vmatpush2.msra.mxu0 0.0
        %1312 = vmatprep.subr.mxu0 0.0
        %1313 = vmatpush2.msra.mxu0 0.0
        %1314 = vmatprep.subr.mxu0 0.0
        %1315 = vmatpush2.msra.mxu0 0.0
        %1316 = vmatprep.subr.mxu0 0.0
        %1317 = vmatpush2.msra.mxu0 0.0
        %1318 = vmatprep.subr.mxu0 0.0
        %1319 = vmatpush2.msra.mxu0 0.0
        %1320 = vmatprep.subr.mxu0 0.0
        %1321 = vmatpush2.msra.mxu0 0.0
        %1322 = vmatprep.subr.mxu0 0.0
        %1323 = vmatpush2.msra.mxu0 0.0
        %1324 = vmatprep.subr.mxu0 0.0
        %1325 = vmatpush2.msra.mxu0 0.0
        %1326 = vmatprep.subr.mxu0 0.0
        %1327 = vmatpush2.msra.mxu0 0.0
        %1328 = vmatprep.mubr.f32.mxu0 0.0
        %1329 = vmatmul.mubr.f32.gmra.mxu0 %v1253
        %v1330 = vpop.f32.mrf.mxu0
        %v1331 = vadd.f32 %v1235, %v1330
        %v1332 = vpop.f32.mrf.mxu0
        %v1333 = vadd.f32 %v1235, %v1332
        %1334 = vmatprep.mubr.f32.mxu0 0.0
        %1335 = vmatmul.mubr.f32.gmra.mxu0 %v1256
        %v1336 = vpop.f32.mrf.mxu0
        %v1337 = vadd.f32 %v1240, %v1336
        %v1338 = vpop.f32.mrf.mxu0
        %v1339 = vadd.f32 %v1240, %v1338
        %1340 = vmatprep.mubr.f32.mxu0 0.0
        %1341 = vmatmul.mubr.f32.gmra.mxu0 %v1259
        %v1342 = vpop.f32.mrf.mxu0
        %v1343 = vadd.f32 %v1245, %v1342
        %v1344 = vpop.f32.mrf.mxu0
        %v1345 = vadd.f32 %v1245, %v1344
        %1346 = vmatprep.mubr.f32.mxu0 0.0
        %1347 = vmatmul.mubr.f32.gmra.mxu0 %v1262
        %v1348 = vpop.f32.mrf.mxu0
        %v1349 = vadd.f32 %v1250, %v1348
        %v1350 = vpop.f32.mrf.mxu0
        %v1351 = vadd.f32 %v1250, %v1350
        %1352 = vdwg.mxu0
        %1353 = vmatprep.subr.mxu0 0.0
        %1354 = vmatpush1.msra.mxu0 0.0
        %1355 = vmatprep.subr.mxu0 0.0
        %1356 = vmatpush1.msra.mxu0 0.0
        %1357 = vmatprep.subr.mxu0 0.0
        %1358 = vmatpush1.msra.mxu0 0.0
        %1359 = vmatprep.subr.mxu0 0.0
        %1360 = vmatpush1.msra.mxu0 0.0
        %1361 = vmatprep.subr.mxu0 0.0
        %1362 = vmatpush1.msra.mxu0 0.0
        %1363 = vmatprep.subr.mxu0 0.0
        %1364 = vmatpush1.msra.mxu0 0.0
        %1365 = vmatprep.subr.mxu0 0.0
        %1366 = vmatpush1.msra.mxu0 0.0
        %1367 = vmatprep.subr.mxu0 0.0
        %1368 = vmatpush1.msra.mxu0 0.0
        %1369 = vmatprep.subr.mxu0 0.0
        %1370 = vmatpush1.msra.mxu0 0.0
        %1371 = vmatprep.subr.mxu0 0.0
        %1372 = vmatpush1.msra.mxu0 0.0
        %1373 = vmatprep.subr.mxu0 0.0
        %1374 = vmatpush1.msra.mxu0 0.0
        %1375 = vmatprep.subr.mxu0 0.0
        %1376 = vmatpush1.msra.mxu0 0.0
        %1377 = vmatprep.subr.mxu0 %v1221
        %1378 = vmatpush1.msra.mxu0 %v1220
        %1379 = vmatprep.subr.mxu0 %v1217
        %1380 = vmatpush1.msra.mxu0 %v1216
        %1381 = vmatprep.subr.mxu0 %v1213
        %1382 = vmatpush1.msra.mxu0 %v1212
        %1383 = vmatprep.subr.mxu0 %v1209
        %1384 = vmatpush1.msra.mxu0 %v1208
        %1385 = vmatprep.subr.mxu0 0.0
        %1386 = vmatpush2.msra.mxu0 0.0
        %1387 = vmatprep.subr.mxu0 0.0
        %1388 = vmatpush2.msra.mxu0 0.0
        %1389 = vmatprep.subr.mxu0 0.0
        %1390 = vmatpush2.msra.mxu0 0.0
        %1391 = vmatprep.subr.mxu0 0.0
        %1392 = vmatpush2.msra.mxu0 0.0
        %1393 = vmatprep.subr.mxu0 0.0
        %1394 = vmatpush2.msra.mxu0 0.0
        %1395 = vmatprep.subr.mxu0 0.0
        %1396 = vmatpush2.msra.mxu0 0.0
        %1397 = vmatprep.subr.mxu0 0.0
        %1398 = vmatpush2.msra.mxu0 0.0
        %1399 = vmatprep.subr.mxu0 0.0
        %1400 = vmatpush2.msra.mxu0 0.0
        %1401 = vmatprep.subr.mxu0 0.0
        %1402 = vmatpush2.msra.mxu0 0.0
        %1403 = vmatprep.subr.mxu0 0.0
        %1404 = vmatpush2.msra.mxu0 0.0
        %1405 = vmatprep.subr.mxu0 0.0
        %1406 = vmatpush2.msra.mxu0 0.0
        %1407 = vmatprep.subr.mxu0 0.0
        %1408 = vmatpush2.msra.mxu0 0.0
        %1409 = vmatprep.subr.mxu0 0.0
        %1410 = vmatpush2.msra.mxu0 0.0
        %1411 = vmatprep.subr.mxu0 0.0
        %1412 = vmatpush2.msra.mxu0 0.0
        %1413 = vmatprep.subr.mxu0 0.0
        %1414 = vmatpush2.msra.mxu0 0.0
        %1415 = vmatprep.subr.mxu0 0.0
        %1416 = vmatpush2.msra.mxu0 0.0
        %1417 = vmatprep.mubr.f32.mxu0 0.0
        %1418 = vmatmul.mubr.f32.gmra.mxu0 %v1253
        %v1419 = vpop.f32.mrf.mxu0
        %v1420 = vadd.f32 %v1235, %v1419
        %v1421 = vpop.f32.mrf.mxu0
        %v1422 = vadd.f32 %v1235, %v1421
        %1423 = vmatprep.mubr.f32.mxu0 0.0
        %1424 = vmatmul.mubr.f32.gmra.mxu0 %v1256
        %v1425 = vpop.f32.mrf.mxu0
        %v1426 = vadd.f32 %v1240, %v1425
        %v1427 = vpop.f32.mrf.mxu0
        %v1428 = vadd.f32 %v1240, %v1427
        %1429 = vmatprep.mubr.f32.mxu0 0.0
        %1430 = vmatmul.mubr.f32.gmra.mxu0 %v1259
        %v1431 = vpop.f32.mrf.mxu0
        %v1432 = vadd.f32 %v1245, %v1431
        %v1433 = vpop.f32.mrf.mxu0
        %v1434 = vadd.f32 %v1245, %v1433
        %1435 = vmatprep.mubr.f32.mxu0 0.0
        %1436 = vmatmul.mubr.f32.gmra.mxu0 %v1262
        %v1437 = vpop.f32.mrf.mxu0
        %v1438 = vadd.f32 %v1250, %v1437
        %v1439 = vpop.f32.mrf.mxu0
        %v1440 = vadd.f32 %v1250, %v1439
        %1441 = vdwg.mxu0
        %v1442 = vmax.f32 %v1331, 0.0
        %v1443 = vmax.f32 %v1333, 0.0
        %v1444 = vmax.f32 %v1420, 0.0
        %v1445 = vmax.f32 %v1422, 0.0
        %v1446 = vmax.f32 %v1337, 0.0
        %v1447 = vmax.f32 %v1339, 0.0
        %v1448 = vmax.f32 %v1426, 0.0
        %v1449 = vmax.f32 %v1428, 0.0
        %v1450 = vmax.f32 %v1343, 0.0
        %v1451 = vmax.f32 %v1345, 0.0
        %v1452 = vmax.f32 %v1432, 0.0
        %v1453 = vmax.f32 %v1434, 0.0
        %v1454 = vmax.f32 %v1349, 0.0
        %v1455 = vmax.f32 %v1351, 0.0
        %v1456 = vmax.f32 %v1438, 0.0
        %v1457 = vmax.f32 %v1440, 0.0
        %s1458 = scalar_lea.vmem %s1, 160
        %v1459 = vld [vmem:[%s1458] sm:$0xff]
        %v1460 = vld [vmem:[%s1458 + $0x8] sm:$0xff]
        %v1461 = vld [vmem:[%s1458 + $0x10] sm:$0xff]
        %v1462 = vld [vmem:[%s1458 + $0x18] sm:$0xff]
        %s1463 = scalar_lea.vmem %s2, 160
        %v1464 = vld [vmem:[%s1463] sm:$0xff]
        %v1465 = vld [vmem:[%s1463 + $0x8] sm:$0xff]
        %v1466 = vld [vmem:[%s1463 + $0x10] sm:$0xff]
        %v1467 = vld [vmem:[%s1463 + $0x18] sm:$0xff]
        %1469 = vset.pattern.permute.xlu0 0
        %1470 = vperm.xlu0 %1469, %v1464
        %v1471 = vpop.permute.xlu0 %1470
        %1474 = vset.pattern.permute.xlu0 0
        %1475 = vperm.xlu0 %1474, %v1465
        %v1476 = vpop.permute.xlu0 %1475
        %1479 = vset.pattern.permute.xlu0 0
        %1480 = vperm.xlu0 %1479, %v1466
        %v1481 = vpop.permute.xlu0 %1480
        %1484 = vset.pattern.permute.xlu0 0
        %1485 = vperm.xlu0 %1484, %v1467
        %v1486 = vpop.permute.xlu0 %1485
        %v1489 = vsel %vm291, %v1459, 0
        %v1492 = vsel %vm291, %v1460, 0
        %v1495 = vsel %vm291, %v1461, 0
        %v1498 = vsel %vm291, %v1462, 0
        %1500 = vmatprep.subr.mxu0 0.0
        %1501 = vmatpush1.msra.mxu0 0.0
        %1502 = vmatprep.subr.mxu0 0.0
        %1503 = vmatpush1.msra.mxu0 0.0
        %1504 = vmatprep.subr.mxu0 0.0
        %1505 = vmatpush1.msra.mxu0 0.0
        %1506 = vmatprep.subr.mxu0 0.0
        %1507 = vmatpush1.msra.mxu0 0.0
        %1508 = vmatprep.subr.mxu0 0.0
        %1509 = vmatpush1.msra.mxu0 0.0
        %1510 = vmatprep.subr.mxu0 0.0
        %1511 = vmatpush1.msra.mxu0 0.0
        %1512 = vmatprep.subr.mxu0 0.0
        %1513 = vmatpush1.msra.mxu0 0.0
        %1514 = vmatprep.subr.mxu0 0.0
        %1515 = vmatpush1.msra.mxu0 0.0
        %1516 = vmatprep.subr.mxu0 0.0
        %1517 = vmatpush1.msra.mxu0 0.0
        %1518 = vmatprep.subr.mxu0 0.0
        %1519 = vmatpush1.msra.mxu0 0.0
        %1520 = vmatprep.subr.mxu0 0.0
        %1521 = vmatpush1.msra.mxu0 0.0
        %1522 = vmatprep.subr.mxu0 0.0
        %1523 = vmatpush1.msra.mxu0 0.0
        %1524 = vmatprep.subr.mxu0 %v1455
        %1525 = vmatpush1.msra.mxu0 %v1454
        %1526 = vmatprep.subr.mxu0 %v1451
        %1527 = vmatpush1.msra.mxu0 %v1450
        %1528 = vmatprep.subr.mxu0 %v1447
        %1529 = vmatpush1.msra.mxu0 %v1446
        %1530 = vmatprep.subr.mxu0 %v1443
        %1531 = vmatpush1.msra.mxu0 %v1442
        %1532 = vmatprep.subr.mxu0 0.0
        %1533 = vmatpush2.msra.mxu0 0.0
        %1534 = vmatprep.subr.mxu0 0.0
        %1535 = vmatpush2.msra.mxu0 0.0
        %1536 = vmatprep.subr.mxu0 0.0
        %1537 = vmatpush2.msra.mxu0 0.0
        %1538 = vmatprep.subr.mxu0 0.0
        %1539 = vmatpush2.msra.mxu0 0.0
        %1540 = vmatprep.subr.mxu0 0.0
        %1541 = vmatpush2.msra.mxu0 0.0
        %1542 = vmatprep.subr.mxu0 0.0
        %1543 = vmatpush2.msra.mxu0 0.0
        %1544 = vmatprep.subr.mxu0 0.0
        %1545 = vmatpush2.msra.mxu0 0.0
        %1546 = vmatprep.subr.mxu0 0.0
        %1547 = vmatpush2.msra.mxu0 0.0
        %1548 = vmatprep.subr.mxu0 0.0
        %1549 = vmatpush2.msra.mxu0 0.0
        %1550 = vmatprep.subr.mxu0 0.0
        %1551 = vmatpush2.msra.mxu0 0.0
        %1552 = vmatprep.subr.mxu0 0.0
        %1553 = vmatpush2.msra.mxu0 0.0
        %1554 = vmatprep.subr.mxu0 0.0
        %1555 = vmatpush2.msra.mxu0 0.0
        %1556 = vmatprep.subr.mxu0 0.0
        %1557 = vmatpush2.msra.mxu0 0.0
        %1558 = vmatprep.subr.mxu0 0.0
        %1559 = vmatpush2.msra.mxu0 0.0
        %1560 = vmatprep.subr.mxu0 0.0
        %1561 = vmatpush2.msra.mxu0 0.0
        %1562 = vmatprep.subr.mxu0 0.0
        %1563 = vmatpush2.msra.mxu0 0.0
        %1564 = vmatprep.mubr.f32.mxu0 0.0
        %1565 = vmatmul.mubr.f32.gmra.mxu0 %v1489
        %v1566 = vpop.f32.mrf.mxu0
        %v1567 = vadd.f32 %v1471, %v1566
        %v1568 = vpop.f32.mrf.mxu0
        %v1569 = vadd.f32 %v1471, %v1568
        %1570 = vmatprep.mubr.f32.mxu0 0.0
        %1571 = vmatmul.mubr.f32.gmra.mxu0 %v1492
        %v1572 = vpop.f32.mrf.mxu0
        %v1573 = vadd.f32 %v1476, %v1572
        %v1574 = vpop.f32.mrf.mxu0
        %v1575 = vadd.f32 %v1476, %v1574
        %1576 = vmatprep.mubr.f32.mxu0 0.0
        %1577 = vmatmul.mubr.f32.gmra.mxu0 %v1495
        %v1578 = vpop.f32.mrf.mxu0
        %v1579 = vadd.f32 %v1481, %v1578
        %v1580 = vpop.f32.mrf.mxu0
        %v1581 = vadd.f32 %v1481, %v1580
        %1582 = vmatprep.mubr.f32.mxu0 0.0
        %1583 = vmatmul.mubr.f32.gmra.mxu0 %v1498
        %v1584 = vpop.f32.mrf.mxu0
        %v1585 = vadd.f32 %v1486, %v1584
        %v1586 = vpop.f32.mrf.mxu0
        %v1587 = vadd.f32 %v1486, %v1586
        %1588 = vdwg.mxu0
        %1589 = vmatprep.subr.mxu0 0.0
        %1590 = vmatpush1.msra.mxu0 0.0
        %1591 = vmatprep.subr.mxu0 0.0
        %1592 = vmatpush1.msra.mxu0 0.0
        %1593 = vmatprep.subr.mxu0 0.0
        %1594 = vmatpush1.msra.mxu0 0.0
        %1595 = vmatprep.subr.mxu0 0.0
        %1596 = vmatpush1.msra.mxu0 0.0
        %1597 = vmatprep.subr.mxu0 0.0
        %1598 = vmatpush1.msra.mxu0 0.0
        %1599 = vmatprep.subr.mxu0 0.0
        %1600 = vmatpush1.msra.mxu0 0.0
        %1601 = vmatprep.subr.mxu0 0.0
        %1602 = vmatpush1.msra.mxu0 0.0
        %1603 = vmatprep.subr.mxu0 0.0
        %1604 = vmatpush1.msra.mxu0 0.0
        %1605 = vmatprep.subr.mxu0 0.0
        %1606 = vmatpush1.msra.mxu0 0.0
        %1607 = vmatprep.subr.mxu0 0.0
        %1608 = vmatpush1.msra.mxu0 0.0
        %1609 = vmatprep.subr.mxu0 0.0
        %1610 = vmatpush1.msra.mxu0 0.0
        %1611 = vmatprep.subr.mxu0 0.0
        %1612 = vmatpush1.msra.mxu0 0.0
        %1613 = vmatprep.subr.mxu0 %v1457
        %1614 = vmatpush1.msra.mxu0 %v1456
        %1615 = vmatprep.subr.mxu0 %v1453
        %1616 = vmatpush1.msra.mxu0 %v1452
        %1617 = vmatprep.subr.mxu0 %v1449
        %1618 = vmatpush1.msra.mxu0 %v1448
        %1619 = vmatprep.subr.mxu0 %v1445
        %1620 = vmatpush1.msra.mxu0 %v1444
        %1621 = vmatprep.subr.mxu0 0.0
        %1622 = vmatpush2.msra.mxu0 0.0
        %1623 = vmatprep.subr.mxu0 0.0
        %1624 = vmatpush2.msra.mxu0 0.0
        %1625 = vmatprep.subr.mxu0 0.0
        %1626 = vmatpush2.msra.mxu0 0.0
        %1627 = vmatprep.subr.mxu0 0.0
        %1628 = vmatpush2.msra.mxu0 0.0
        %1629 = vmatprep.subr.mxu0 0.0
        %1630 = vmatpush2.msra.mxu0 0.0
        %1631 = vmatprep.subr.mxu0 0.0
        %1632 = vmatpush2.msra.mxu0 0.0
        %1633 = vmatprep.subr.mxu0 0.0
        %1634 = vmatpush2.msra.mxu0 0.0
        %1635 = vmatprep.subr.mxu0 0.0
        %1636 = vmatpush2.msra.mxu0 0.0
        %1637 = vmatprep.subr.mxu0 0.0
        %1638 = vmatpush2.msra.mxu0 0.0
        %1639 = vmatprep.subr.mxu0 0.0
        %1640 = vmatpush2.msra.mxu0 0.0
        %1641 = vmatprep.subr.mxu0 0.0
        %1642 = vmatpush2.msra.mxu0 0.0
        %1643 = vmatprep.subr.mxu0 0.0
        %1644 = vmatpush2.msra.mxu0 0.0
        %1645 = vmatprep.subr.mxu0 0.0
        %1646 = vmatpush2.msra.mxu0 0.0
        %1647 = vmatprep.subr.mxu0 0.0
        %1648 = vmatpush2.msra.mxu0 0.0
        %1649 = vmatprep.subr.mxu0 0.0
        %1650 = vmatpush2.msra.mxu0 0.0
        %1651 = vmatprep.subr.mxu0 0.0
        %1652 = vmatpush2.msra.mxu0 0.0
        %1653 = vmatprep.mubr.f32.mxu0 0.0
        %1654 = vmatmul.mubr.f32.gmra.mxu0 %v1489
        %v1655 = vpop.f32.mrf.mxu0
        %v1656 = vadd.f32 %v1471, %v1655
        %v1657 = vpop.f32.mrf.mxu0
        %v1658 = vadd.f32 %v1471, %v1657
        %1659 = vmatprep.mubr.f32.mxu0 0.0
        %1660 = vmatmul.mubr.f32.gmra.mxu0 %v1492
        %v1661 = vpop.f32.mrf.mxu0
        %v1662 = vadd.f32 %v1476, %v1661
        %v1663 = vpop.f32.mrf.mxu0
        %v1664 = vadd.f32 %v1476, %v1663
        %1665 = vmatprep.mubr.f32.mxu0 0.0
        %1666 = vmatmul.mubr.f32.gmra.mxu0 %v1495
        %v1667 = vpop.f32.mrf.mxu0
        %v1668 = vadd.f32 %v1481, %v1667
        %v1669 = vpop.f32.mrf.mxu0
        %v1670 = vadd.f32 %v1481, %v1669
        %1671 = vmatprep.mubr.f32.mxu0 0.0
        %1672 = vmatmul.mubr.f32.gmra.mxu0 %v1498
        %v1673 = vpop.f32.mrf.mxu0
        %v1674 = vadd.f32 %v1486, %v1673
        %v1675 = vpop.f32.mrf.mxu0
        %v1676 = vadd.f32 %v1486, %v1675
        %1677 = vdwg.mxu0
        %v1678 = vmax.f32 %v1567, 0.0
        %v1679 = vmax.f32 %v1569, 0.0
        %v1680 = vmax.f32 %v1656, 0.0
        %v1681 = vmax.f32 %v1658, 0.0
        %v1682 = vmax.f32 %v1573, 0.0
        %v1683 = vmax.f32 %v1575, 0.0
        %v1684 = vmax.f32 %v1662, 0.0
        %v1685 = vmax.f32 %v1664, 0.0
        %v1686 = vmax.f32 %v1579, 0.0
        %v1687 = vmax.f32 %v1581, 0.0
        %v1688 = vmax.f32 %v1668, 0.0
        %v1689 = vmax.f32 %v1670, 0.0
        %v1690 = vmax.f32 %v1585, 0.0
        %v1691 = vmax.f32 %v1587, 0.0
        %v1692 = vmax.f32 %v1674, 0.0
        %v1693 = vmax.f32 %v1676, 0.0
        %v1694 = vadd.f32 %v970, %v1678
        %v1695 = vadd.f32 %v971, %v1679
        %v1696 = vadd.f32 %v972, %v1680
        %v1697 = vadd.f32 %v973, %v1681
        %v1698 = vadd.f32 %v974, %v1682
        %v1699 = vadd.f32 %v975, %v1683
        %v1700 = vadd.f32 %v976, %v1684
        %v1701 = vadd.f32 %v977, %v1685
        %v1702 = vadd.f32 %v978, %v1686
        %v1703 = vadd.f32 %v979, %v1687
        %v1704 = vadd.f32 %v980, %v1688
        %v1705 = vadd.f32 %v981, %v1689
        %v1706 = vadd.f32 %v982, %v1690
        %v1707 = vadd.f32 %v983, %v1691
        %v1708 = vadd.f32 %v984, %v1692
        %v1709 = vadd.f32 %v985, %v1693
        %s1710 = scalar_lea.vmem %s1, 192
        %v1711 = vld [vmem:[%s1710] sm:$0xff]
        %v1712 = vld [vmem:[%s1710 + $0x8] sm:$0xff]
        %v1713 = vld [vmem:[%s1710 + $0x10] sm:$0xff]
        %v1714 = vld [vmem:[%s1710 + $0x18] sm:$0xff]
        %s1715 = scalar_lea.vmem %s2, 192
        %v1716 = vld [vmem:[%s1715] sm:$0xff]
        %v1717 = vld [vmem:[%s1715 + $0x8] sm:$0xff]
        %v1718 = vld [vmem:[%s1715 + $0x10] sm:$0xff]
        %v1719 = vld [vmem:[%s1715 + $0x18] sm:$0xff]
        %1721 = vset.pattern.permute.xlu0 0
        %1722 = vperm.xlu0 %1721, %v1716
        %v1723 = vpop.permute.xlu0 %1722
        %1726 = vset.pattern.permute.xlu0 0
        %1727 = vperm.xlu0 %1726, %v1717
        %v1728 = vpop.permute.xlu0 %1727
        %1731 = vset.pattern.permute.xlu0 0
        %1732 = vperm.xlu0 %1731, %v1718
        %v1733 = vpop.permute.xlu0 %1732
        %1736 = vset.pattern.permute.xlu0 0
        %1737 = vperm.xlu0 %1736, %v1719
        %v1738 = vpop.permute.xlu0 %1737
        %v1741 = vsel %vm291, %v1711, 0
        %v1744 = vsel %vm291, %v1712, 0
        %v1747 = vsel %vm291, %v1713, 0
        %v1750 = vsel %vm291, %v1714, 0
        %1752 = vmatprep.subr.mxu0 0.0
        %1753 = vmatpush1.msra.mxu0 0.0
        %1754 = vmatprep.subr.mxu0 0.0
        %1755 = vmatpush1.msra.mxu0 0.0
        %1756 = vmatprep.subr.mxu0 0.0
        %1757 = vmatpush1.msra.mxu0 0.0
        %1758 = vmatprep.subr.mxu0 0.0
        %1759 = vmatpush1.msra.mxu0 0.0
        %1760 = vmatprep.subr.mxu0 0.0
        %1761 = vmatpush1.msra.mxu0 0.0
        %1762 = vmatprep.subr.mxu0 0.0
        %1763 = vmatpush1.msra.mxu0 0.0
        %1764 = vmatprep.subr.mxu0 0.0
        %1765 = vmatpush1.msra.mxu0 0.0
        %1766 = vmatprep.subr.mxu0 0.0
        %1767 = vmatpush1.msra.mxu0 0.0
        %1768 = vmatprep.subr.mxu0 0.0
        %1769 = vmatpush1.msra.mxu0 0.0
        %1770 = vmatprep.subr.mxu0 0.0
        %1771 = vmatpush1.msra.mxu0 0.0
        %1772 = vmatprep.subr.mxu0 0.0
        %1773 = vmatpush1.msra.mxu0 0.0
        %1774 = vmatprep.subr.mxu0 0.0
        %1775 = vmatpush1.msra.mxu0 0.0
        %1776 = vmatprep.subr.mxu0 %v1707
        %1777 = vmatpush1.msra.mxu0 %v1706
        %1778 = vmatprep.subr.mxu0 %v1703
        %1779 = vmatpush1.msra.mxu0 %v1702
        %1780 = vmatprep.subr.mxu0 %v1699
        %1781 = vmatpush1.msra.mxu0 %v1698
        %1782 = vmatprep.subr.mxu0 %v1695
        %1783 = vmatpush1.msra.mxu0 %v1694
        %1784 = vmatprep.subr.mxu0 0.0
        %1785 = vmatpush2.msra.mxu0 0.0
        %1786 = vmatprep.subr.mxu0 0.0
        %1787 = vmatpush2.msra.mxu0 0.0
        %1788 = vmatprep.subr.mxu0 0.0
        %1789 = vmatpush2.msra.mxu0 0.0
        %1790 = vmatprep.subr.mxu0 0.0
        %1791 = vmatpush2.msra.mxu0 0.0
        %1792 = vmatprep.subr.mxu0 0.0
        %1793 = vmatpush2.msra.mxu0 0.0
        %1794 = vmatprep.subr.mxu0 0.0
        %1795 = vmatpush2.msra.mxu0 0.0
        %1796 = vmatprep.subr.mxu0 0.0
        %1797 = vmatpush2.msra.mxu0 0.0
        %1798 = vmatprep.subr.mxu0 0.0
        %1799 = vmatpush2.msra.mxu0 0.0
        %1800 = vmatprep.subr.mxu0 0.0
        %1801 = vmatpush2.msra.mxu0 0.0
        %1802 = vmatprep.subr.mxu0 0.0
        %1803 = vmatpush2.msra.mxu0 0.0
        %1804 = vmatprep.subr.mxu0 0.0
        %1805 = vmatpush2.msra.mxu0 0.0
        %1806 = vmatprep.subr.mxu0 0.0
        %1807 = vmatpush2.msra.mxu0 0.0
        %1808 = vmatprep.subr.mxu0 0.0
        %1809 = vmatpush2.msra.mxu0 0.0
        %1810 = vmatprep.subr.mxu0 0.0
        %1811 = vmatpush2.msra.mxu0 0.0
        %1812 = vmatprep.subr.mxu0 0.0
        %1813 = vmatpush2.msra.mxu0 0.0
        %1814 = vmatprep.subr.mxu0 0.0
        %1815 = vmatpush2.msra.mxu0 0.0
        %1816 = vmatprep.mubr.f32.mxu0 0.0
        %1817 = vmatmul.mubr.f32.gmra.mxu0 %v1741
        %v1818 = vpop.f32.mrf.mxu0
        %v1819 = vadd.f32 %v1723, %v1818
        %v1820 = vpop.f32.mrf.mxu0
        %v1821 = vadd.f32 %v1723, %v1820
        %1822 = vmatprep.mubr.f32.mxu0 0.0
        %1823 = vmatmul.mubr.f32.gmra.mxu0 %v1744
        %v1824 = vpop.f32.mrf.mxu0
        %v1825 = vadd.f32 %v1728, %v1824
        %v1826 = vpop.f32.mrf.mxu0
        %v1827 = vadd.f32 %v1728, %v1826
        %1828 = vmatprep.mubr.f32.mxu0 0.0
        %1829 = vmatmul.mubr.f32.gmra.mxu0 %v1747
        %v1830 = vpop.f32.mrf.mxu0
        %v1831 = vadd.f32 %v1733, %v1830
        %v1832 = vpop.f32.mrf.mxu0
        %v1833 = vadd.f32 %v1733, %v1832
        %1834 = vmatprep.mubr.f32.mxu0 0.0
        %1835 = vmatmul.mubr.f32.gmra.mxu0 %v1750
        %v1836 = vpop.f32.mrf.mxu0
        %v1837 = vadd.f32 %v1738, %v1836
        %v1838 = vpop.f32.mrf.mxu0
        %v1839 = vadd.f32 %v1738, %v1838
        %1840 = vdwg.mxu0
        %1841 = vmatprep.subr.mxu0 0.0
        %1842 = vmatpush1.msra.mxu0 0.0
        %1843 = vmatprep.subr.mxu0 0.0
        %1844 = vmatpush1.msra.mxu0 0.0
        %1845 = vmatprep.subr.mxu0 0.0
        %1846 = vmatpush1.msra.mxu0 0.0
        %1847 = vmatprep.subr.mxu0 0.0
        %1848 = vmatpush1.msra.mxu0 0.0
        %1849 = vmatprep.subr.mxu0 0.0
        %1850 = vmatpush1.msra.mxu0 0.0
        %1851 = vmatprep.subr.mxu0 0.0
        %1852 = vmatpush1.msra.mxu0 0.0
        %1853 = vmatprep.subr.mxu0 0.0
        %1854 = vmatpush1.msra.mxu0 0.0
        %1855 = vmatprep.subr.mxu0 0.0
        %1856 = vmatpush1.msra.mxu0 0.0
        %1857 = vmatprep.subr.mxu0 0.0
        %1858 = vmatpush1.msra.mxu0 0.0
        %1859 = vmatprep.subr.mxu0 0.0
        %1860 = vmatpush1.msra.mxu0 0.0
        %1861 = vmatprep.subr.mxu0 0.0
        %1862 = vmatpush1.msra.mxu0 0.0
        %1863 = vmatprep.subr.mxu0 0.0
        %1864 = vmatpush1.msra.mxu0 0.0
        %1865 = vmatprep.subr.mxu0 %v1709
        %1866 = vmatpush1.msra.mxu0 %v1708
        %1867 = vmatprep.subr.mxu0 %v1705
        %1868 = vmatpush1.msra.mxu0 %v1704
        %1869 = vmatprep.subr.mxu0 %v1701
        %1870 = vmatpush1.msra.mxu0 %v1700
        %1871 = vmatprep.subr.mxu0 %v1697
        %1872 = vmatpush1.msra.mxu0 %v1696
        %1873 = vmatprep.subr.mxu0 0.0
        %1874 = vmatpush2.msra.mxu0 0.0
        %1875 = vmatprep.subr.mxu0 0.0
        %1876 = vmatpush2.msra.mxu0 0.0
        %1877 = vmatprep.subr.mxu0 0.0
        %1878 = vmatpush2.msra.mxu0 0.0
        %1879 = vmatprep.subr.mxu0 0.0
        %1880 = vmatpush2.msra.mxu0 0.0
        %1881 = vmatprep.subr.mxu0 0.0
        %1882 = vmatpush2.msra.mxu0 0.0
        %1883 = vmatprep.subr.mxu0 0.0
        %1884 = vmatpush2.msra.mxu0 0.0
        %1885 = vmatprep.subr.mxu0 0.0
        %1886 = vmatpush2.msra.mxu0 0.0
        %1887 = vmatprep.subr.mxu0 0.0
        %1888 = vmatpush2.msra.mxu0 0.0
        %1889 = vmatprep.subr.mxu0 0.0
        %1890 = vmatpush2.msra.mxu0 0.0
        %1891 = vmatprep.subr.mxu0 0.0
        %1892 = vmatpush2.msra.mxu0 0.0
        %1893 = vmatprep.subr.mxu0 0.0
        %1894 = vmatpush2.msra.mxu0 0.0
        %1895 = vmatprep.subr.mxu0 0.0
        %1896 = vmatpush2.msra.mxu0 0.0
        %1897 = vmatprep.subr.mxu0 0.0
        %1898 = vmatpush2.msra.mxu0 0.0
        %1899 = vmatprep.subr.mxu0 0.0
        %1900 = vmatpush2.msra.mxu0 0.0
        %1901 = vmatprep.subr.mxu0 0.0
        %1902 = vmatpush2.msra.mxu0 0.0
        %1903 = vmatprep.subr.mxu0 0.0
        %1904 = vmatpush2.msra.mxu0 0.0
        %1905 = vmatprep.mubr.f32.mxu0 0.0
        %1906 = vmatmul.mubr.f32.gmra.mxu0 %v1741
        %v1907 = vpop.f32.mrf.mxu0
        %v1908 = vadd.f32 %v1723, %v1907
        %v1909 = vpop.f32.mrf.mxu0
        %v1910 = vadd.f32 %v1723, %v1909
        %1911 = vmatprep.mubr.f32.mxu0 0.0
        %1912 = vmatmul.mubr.f32.gmra.mxu0 %v1744
        %v1913 = vpop.f32.mrf.mxu0
        %v1914 = vadd.f32 %v1728, %v1913
        %v1915 = vpop.f32.mrf.mxu0
        %v1916 = vadd.f32 %v1728, %v1915
        %1917 = vmatprep.mubr.f32.mxu0 0.0
        %1918 = vmatmul.mubr.f32.gmra.mxu0 %v1747
        %v1919 = vpop.f32.mrf.mxu0
        %v1920 = vadd.f32 %v1733, %v1919
        %v1921 = vpop.f32.mrf.mxu0
        %v1922 = vadd.f32 %v1733, %v1921
        %1923 = vmatprep.mubr.f32.mxu0 0.0
        %1924 = vmatmul.mubr.f32.gmra.mxu0 %v1750
        %v1925 = vpop.f32.mrf.mxu0
        %v1926 = vadd.f32 %v1738, %v1925
        %v1927 = vpop.f32.mrf.mxu0
        %v1928 = vadd.f32 %v1738, %v1927
        %1929 = vdwg.mxu0
        %v1930 = vmax.f32 %v1819, 0.0
        %v1931 = vmax.f32 %v1821, 0.0
        %v1932 = vmax.f32 %v1908, 0.0
        %v1933 = vmax.f32 %v1910, 0.0
        %v1934 = vmax.f32 %v1825, 0.0
        %v1935 = vmax.f32 %v1827, 0.0
        %v1936 = vmax.f32 %v1914, 0.0
        %v1937 = vmax.f32 %v1916, 0.0
        %v1938 = vmax.f32 %v1831, 0.0
        %v1939 = vmax.f32 %v1833, 0.0
        %v1940 = vmax.f32 %v1920, 0.0
        %v1941 = vmax.f32 %v1922, 0.0
        %v1942 = vmax.f32 %v1837, 0.0
        %v1943 = vmax.f32 %v1839, 0.0
        %v1944 = vmax.f32 %v1926, 0.0
        %v1945 = vmax.f32 %v1928, 0.0
        %s1946 = scalar_lea.vmem %s1, 224
        %v1947 = vld [vmem:[%s1946] sm:$0xff]
        %v1948 = vld [vmem:[%s1946 + $0x8] sm:$0xff]
        %v1949 = vld [vmem:[%s1946 + $0x10] sm:$0xff]
        %v1950 = vld [vmem:[%s1946 + $0x18] sm:$0xff]
        %s1951 = scalar_lea.vmem %s2, 224
        %v1952 = vld [vmem:[%s1951] sm:$0xff]
        %v1953 = vld [vmem:[%s1951 + $0x8] sm:$0xff]
        %v1954 = vld [vmem:[%s1951 + $0x10] sm:$0xff]
        %v1955 = vld [vmem:[%s1951 + $0x18] sm:$0xff]
        %1957 = vset.pattern.permute.xlu0 0
        %1958 = vperm.xlu0 %1957, %v1952
        %v1959 = vpop.permute.xlu0 %1958
        %1962 = vset.pattern.permute.xlu0 0
        %1963 = vperm.xlu0 %1962, %v1953
        %v1964 = vpop.permute.xlu0 %1963
        %1967 = vset.pattern.permute.xlu0 0
        %1968 = vperm.xlu0 %1967, %v1954
        %v1969 = vpop.permute.xlu0 %1968
        %1972 = vset.pattern.permute.xlu0 0
        %1973 = vperm.xlu0 %1972, %v1955
        %v1974 = vpop.permute.xlu0 %1973
        %v1977 = vsel %vm291, %v1947, 0
        %v1980 = vsel %vm291, %v1948, 0
        %v1983 = vsel %vm291, %v1949, 0
        %v1986 = vsel %vm291, %v1950, 0
        %1988 = vmatprep.subr.mxu0 0.0
        %1989 = vmatpush1.msra.mxu0 0.0
        %1990 = vmatprep.subr.mxu0 0.0
        %1991 = vmatpush1.msra.mxu0 0.0
        %1992 = vmatprep.subr.mxu0 0.0
        %1993 = vmatpush1.msra.mxu0 0.0
        %1994 = vmatprep.subr.mxu0 0.0
        %1995 = vmatpush1.msra.mxu0 0.0
        %1996 = vmatprep.subr.mxu0 0.0
        %1997 = vmatpush1.msra.mxu0 0.0
        %1998 = vmatprep.subr.mxu0 0.0
        %1999 = vmatpush1.msra.mxu0 0.0
        %2000 = vmatprep.subr.mxu0 0.0
        %2001 = vmatpush1.msra.mxu0 0.0
        %2002 = vmatprep.subr.mxu0 0.0
        %2003 = vmatpush1.msra.mxu0 0.0
        %2004 = vmatprep.subr.mxu0 0.0
        %2005 = vmatpush1.msra.mxu0 0.0
        %2006 = vmatprep.subr.mxu0 0.0
        %2007 = vmatpush1.msra.mxu0 0.0
        %2008 = vmatprep.subr.mxu0 0.0
        %2009 = vmatpush1.msra.mxu0 0.0
        %2010 = vmatprep.subr.mxu0 0.0
        %2011 = vmatpush1.msra.mxu0 0.0
        %2012 = vmatprep.subr.mxu0 %v1943
        %2013 = vmatpush1.msra.mxu0 %v1942
        %2014 = vmatprep.subr.mxu0 %v1939
        %2015 = vmatpush1.msra.mxu0 %v1938
        %2016 = vmatprep.subr.mxu0 %v1935
        %2017 = vmatpush1.msra.mxu0 %v1934
        %2018 = vmatprep.subr.mxu0 %v1931
        %2019 = vmatpush1.msra.mxu0 %v1930
        %2020 = vmatprep.subr.mxu0 0.0
        %2021 = vmatpush2.msra.mxu0 0.0
        %2022 = vmatprep.subr.mxu0 0.0
        %2023 = vmatpush2.msra.mxu0 0.0
        %2024 = vmatprep.subr.mxu0 0.0
        %2025 = vmatpush2.msra.mxu0 0.0
        %2026 = vmatprep.subr.mxu0 0.0
        %2027 = vmatpush2.msra.mxu0 0.0
        %2028 = vmatprep.subr.mxu0 0.0
        %2029 = vmatpush2.msra.mxu0 0.0
        %2030 = vmatprep.subr.mxu0 0.0
        %2031 = vmatpush2.msra.mxu0 0.0
        %2032 = vmatprep.subr.mxu0 0.0
        %2033 = vmatpush2.msra.mxu0 0.0
        %2034 = vmatprep.subr.mxu0 0.0
        %2035 = vmatpush2.msra.mxu0 0.0
        %2036 = vmatprep.subr.mxu0 0.0
        %2037 = vmatpush2.msra.mxu0 0.0
        %2038 = vmatprep.subr.mxu0 0.0
        %2039 = vmatpush2.msra.mxu0 0.0
        %2040 = vmatprep.subr.mxu0 0.0
        %2041 = vmatpush2.msra.mxu0 0.0
        %2042 = vmatprep.subr.mxu0 0.0
        %2043 = vmatpush2.msra.mxu0 0.0
        %2044 = vmatprep.subr.mxu0 0.0
        %2045 = vmatpush2.msra.mxu0 0.0
        %2046 = vmatprep.subr.mxu0 0.0
        %2047 = vmatpush2.msra.mxu0 0.0
        %2048 = vmatprep.subr.mxu0 0.0
        %2049 = vmatpush2.msra.mxu0 0.0
        %2050 = vmatprep.subr.mxu0 0.0
        %2051 = vmatpush2.msra.mxu0 0.0
        %2052 = vmatprep.mubr.f32.mxu0 0.0
        %2053 = vmatmul.mubr.f32.gmra.mxu0 %v1977
        %v2054 = vpop.f32.mrf.mxu0
        %v2055 = vadd.f32 %v1959, %v2054
        %v2056 = vpop.f32.mrf.mxu0
        %v2057 = vadd.f32 %v1959, %v2056
        %2058 = vmatprep.mubr.f32.mxu0 0.0
        %2059 = vmatmul.mubr.f32.gmra.mxu0 %v1980
        %v2060 = vpop.f32.mrf.mxu0
        %v2061 = vadd.f32 %v1964, %v2060
        %v2062 = vpop.f32.mrf.mxu0
        %v2063 = vadd.f32 %v1964, %v2062
        %2064 = vmatprep.mubr.f32.mxu0 0.0
        %2065 = vmatmul.mubr.f32.gmra.mxu0 %v1983
        %v2066 = vpop.f32.mrf.mxu0
        %v2067 = vadd.f32 %v1969, %v2066
        %v2068 = vpop.f32.mrf.mxu0
        %v2069 = vadd.f32 %v1969, %v2068
        %2070 = vmatprep.mubr.f32.mxu0 0.0
        %2071 = vmatmul.mubr.f32.gmra.mxu0 %v1986
        %v2072 = vpop.f32.mrf.mxu0
        %v2073 = vadd.f32 %v1974, %v2072
        %v2074 = vpop.f32.mrf.mxu0
        %v2075 = vadd.f32 %v1974, %v2074
        %2076 = vdwg.mxu0
        %2077 = vmatprep.subr.mxu0 0.0
        %2078 = vmatpush1.msra.mxu0 0.0
        %2079 = vmatprep.subr.mxu0 0.0
        %2080 = vmatpush1.msra.mxu0 0.0
        %2081 = vmatprep.subr.mxu0 0.0
        %2082 = vmatpush1.msra.mxu0 0.0
        %2083 = vmatprep.subr.mxu0 0.0
        %2084 = vmatpush1.msra.mxu0 0.0
        %2085 = vmatprep.subr.mxu0 0.0
        %2086 = vmatpush1.msra.mxu0 0.0
        %2087 = vmatprep.subr.mxu0 0.0
        %2088 = vmatpush1.msra.mxu0 0.0
        %2089 = vmatprep.subr.mxu0 0.0
        %2090 = vmatpush1.msra.mxu0 0.0
        %2091 = vmatprep.subr.mxu0 0.0
        %2092 = vmatpush1.msra.mxu0 0.0
        %2093 = vmatprep.subr.mxu0 0.0
        %2094 = vmatpush1.msra.mxu0 0.0
        %2095 = vmatprep.subr.mxu0 0.0
        %2096 = vmatpush1.msra.mxu0 0.0
        %2097 = vmatprep.subr.mxu0 0.0
        %2098 = vmatpush1.msra.mxu0 0.0
        %2099 = vmatprep.subr.mxu0 0.0
        %2100 = vmatpush1.msra.mxu0 0.0
        %2101 = vmatprep.subr.mxu0 %v1945
        %2102 = vmatpush1.msra.mxu0 %v1944
        %2103 = vmatprep.subr.mxu0 %v1941
        %2104 = vmatpush1.msra.mxu0 %v1940
        %2105 = vmatprep.subr.mxu0 %v1937
        %2106 = vmatpush1.msra.mxu0 %v1936
        %2107 = vmatprep.subr.mxu0 %v1933
        %2108 = vmatpush1.msra.mxu0 %v1932
        %2109 = vmatprep.subr.mxu0 0.0
        %2110 = vmatpush2.msra.mxu0 0.0
        %2111 = vmatprep.subr.mxu0 0.0
        %2112 = vmatpush2.msra.mxu0 0.0
        %2113 = vmatprep.subr.mxu0 0.0
        %2114 = vmatpush2.msra.mxu0 0.0
        %2115 = vmatprep.subr.mxu0 0.0
        %2116 = vmatpush2.msra.mxu0 0.0
        %2117 = vmatprep.subr.mxu0 0.0
        %2118 = vmatpush2.msra.mxu0 0.0
        %2119 = vmatprep.subr.mxu0 0.0
        %2120 = vmatpush2.msra.mxu0 0.0
        %2121 = vmatprep.subr.mxu0 0.0
        %2122 = vmatpush2.msra.mxu0 0.0
        %2123 = vmatprep.subr.mxu0 0.0
        %2124 = vmatpush2.msra.mxu0 0.0
        %2125 = vmatprep.subr.mxu0 0.0
        %2126 = vmatpush2.msra.mxu0 0.0
        %2127 = vmatprep.subr.mxu0 0.0
        %2128 = vmatpush2.msra.mxu0 0.0
        %2129 = vmatprep.subr.mxu0 0.0
        %2130 = vmatpush2.msra.mxu0 0.0
        %2131 = vmatprep.subr.mxu0 0.0
        %2132 = vmatpush2.msra.mxu0 0.0
        %2133 = vmatprep.subr.mxu0 0.0
        %2134 = vmatpush2.msra.mxu0 0.0
        %2135 = vmatprep.subr.mxu0 0.0
        %2136 = vmatpush2.msra.mxu0 0.0
        %2137 = vmatprep.subr.mxu0 0.0
        %2138 = vmatpush2.msra.mxu0 0.0
        %2139 = vmatprep.subr.mxu0 0.0
        %2140 = vmatpush2.msra.mxu0 0.0
        %2141 = vmatprep.mubr.f32.mxu0 0.0
        %2142 = vmatmul.mubr.f32.gmra.mxu0 %v1977
        %v2143 = vpop.f32.mrf.mxu0
        %v2144 = vadd.f32 %v1959, %v2143
        %v2145 = vpop.f32.mrf.mxu0
        %v2146 = vadd.f32 %v1959, %v2145
        %2147 = vmatprep.mubr.f32.mxu0 0.0
        %2148 = vmatmul.mubr.f32.gmra.mxu0 %v1980
        %v2149 = vpop.f32.mrf.mxu0
        %v2150 = vadd.f32 %v1964, %v2149
        %v2151 = vpop.f32.mrf.mxu0
        %v2152 = vadd.f32 %v1964, %v2151
        %2153 = vmatprep.mubr.f32.mxu0 0.0
        %2154 = vmatmul.mubr.f32.gmra.mxu0 %v1983
        %v2155 = vpop.f32.mrf.mxu0
        %v2156 = vadd.f32 %v1969, %v2155
        %v2157 = vpop.f32.mrf.mxu0
        %v2158 = vadd.f32 %v1969, %v2157
        %2159 = vmatprep.mubr.f32.mxu0 0.0
        %2160 = vmatmul.mubr.f32.gmra.mxu0 %v1986
        %v2161 = vpop.f32.mrf.mxu0
        %v2162 = vadd.f32 %v1974, %v2161
        %v2163 = vpop.f32.mrf.mxu0
        %v2164 = vadd.f32 %v1974, %v2163
        %2165 = vdwg.mxu0
        %v2166 = vmax.f32 %v2055, 0.0
        %v2167 = vmax.f32 %v2057, 0.0
        %v2168 = vmax.f32 %v2144, 0.0
        %v2169 = vmax.f32 %v2146, 0.0
        %v2170 = vmax.f32 %v2061, 0.0
        %v2171 = vmax.f32 %v2063, 0.0
        %v2172 = vmax.f32 %v2150, 0.0
        %v2173 = vmax.f32 %v2152, 0.0
        %v2174 = vmax.f32 %v2067, 0.0
        %v2175 = vmax.f32 %v2069, 0.0
        %v2176 = vmax.f32 %v2156, 0.0
        %v2177 = vmax.f32 %v2158, 0.0
        %v2178 = vmax.f32 %v2073, 0.0
        %v2179 = vmax.f32 %v2075, 0.0
        %v2180 = vmax.f32 %v2162, 0.0
        %v2181 = vmax.f32 %v2164, 0.0
        %s2182 = scalar_lea.vmem %s1, 256
        %v2183 = vld [vmem:[%s2182] sm:$0xff]
        %v2184 = vld [vmem:[%s2182 + $0x8] sm:$0xff]
        %v2185 = vld [vmem:[%s2182 + $0x10] sm:$0xff]
        %v2186 = vld [vmem:[%s2182 + $0x18] sm:$0xff]
        %s2187 = scalar_lea.vmem %s2, 256
        %v2188 = vld [vmem:[%s2187] sm:$0xff]
        %v2189 = vld [vmem:[%s2187 + $0x8] sm:$0xff]
        %v2190 = vld [vmem:[%s2187 + $0x10] sm:$0xff]
        %v2191 = vld [vmem:[%s2187 + $0x18] sm:$0xff]
        %2193 = vset.pattern.permute.xlu0 0
        %2194 = vperm.xlu0 %2193, %v2188
        %v2195 = vpop.permute.xlu0 %2194
        %2198 = vset.pattern.permute.xlu0 0
        %2199 = vperm.xlu0 %2198, %v2189
        %v2200 = vpop.permute.xlu0 %2199
        %2202 = vset.pattern.permute.xlu0 0
        %2203 = vperm.xlu0 %2202, %v2190
        %v2204 = vpop.permute.xlu0 %2203
        %2206 = vset.pattern.permute.xlu0 0
        %2207 = vperm.xlu0 %2206, %v2191
        %v2208 = vpop.permute.xlu0 %2207
        %v2210 = vsel %vm291, %v2183, 0
        %v2213 = vsel %vm291, %v2184, 0
        %v2216 = vsel %vm291, %v2185, 0
        %v2219 = vsel %vm291, %v2186, 0
        %2221 = vmatprep.subr.mxu0 0.0
        %2222 = vmatpush1.msra.mxu0 0.0
        %2223 = vmatprep.subr.mxu0 0.0
        %2224 = vmatpush1.msra.mxu0 0.0
        %2225 = vmatprep.subr.mxu0 0.0
        %2226 = vmatpush1.msra.mxu0 0.0
        %2227 = vmatprep.subr.mxu0 0.0
        %2228 = vmatpush1.msra.mxu0 0.0
        %2229 = vmatprep.subr.mxu0 0.0
        %2230 = vmatpush1.msra.mxu0 0.0
        %2231 = vmatprep.subr.mxu0 0.0
        %2232 = vmatpush1.msra.mxu0 0.0
        %2233 = vmatprep.subr.mxu0 0.0
        %2234 = vmatpush1.msra.mxu0 0.0
        %2235 = vmatprep.subr.mxu0 0.0
        %2236 = vmatpush1.msra.mxu0 0.0
        %2237 = vmatprep.subr.mxu0 0.0
        %2238 = vmatpush1.msra.mxu0 0.0
        %2239 = vmatprep.subr.mxu0 0.0
        %2240 = vmatpush1.msra.mxu0 0.0
        %2241 = vmatprep.subr.mxu0 0.0
        %2242 = vmatpush1.msra.mxu0 0.0
        %2243 = vmatprep.subr.mxu0 0.0
        %2244 = vmatpush1.msra.mxu0 0.0
        %2245 = vmatprep.subr.mxu0 %v2179
        %2246 = vmatpush1.msra.mxu0 %v2178
        %2247 = vmatprep.subr.mxu0 %v2175
        %2248 = vmatpush1.msra.mxu0 %v2174
        %2249 = vmatprep.subr.mxu0 %v2171
        %2250 = vmatpush1.msra.mxu0 %v2170
        %2251 = vmatprep.subr.mxu0 %v2167
        %2252 = vmatpush1.msra.mxu0 %v2166
        %2253 = vmatprep.subr.mxu0 0.0
        %2254 = vmatpush2.msra.mxu0 0.0
        %2255 = vmatprep.subr.mxu0 0.0
        %2256 = vmatpush2.msra.mxu0 0.0
        %2257 = vmatprep.subr.mxu0 0.0
        %2258 = vmatpush2.msra.mxu0 0.0
        %2259 = vmatprep.subr.mxu0 0.0
        %2260 = vmatpush2.msra.mxu0 0.0
        %2261 = vmatprep.subr.mxu0 0.0
        %2262 = vmatpush2.msra.mxu0 0.0
        %2263 = vmatprep.subr.mxu0 0.0
        %2264 = vmatpush2.msra.mxu0 0.0
        %2265 = vmatprep.subr.mxu0 0.0
        %2266 = vmatpush2.msra.mxu0 0.0
        %2267 = vmatprep.subr.mxu0 0.0
        %2268 = vmatpush2.msra.mxu0 0.0
        %2269 = vmatprep.subr.mxu0 0.0
        %2270 = vmatpush2.msra.mxu0 0.0
        %2271 = vmatprep.subr.mxu0 0.0
        %2272 = vmatpush2.msra.mxu0 0.0
        %2273 = vmatprep.subr.mxu0 0.0
        %2274 = vmatpush2.msra.mxu0 0.0
        %2275 = vmatprep.subr.mxu0 0.0
        %2276 = vmatpush2.msra.mxu0 0.0
        %2277 = vmatprep.subr.mxu0 0.0
        %2278 = vmatpush2.msra.mxu0 0.0
        %2279 = vmatprep.subr.mxu0 0.0
        %2280 = vmatpush2.msra.mxu0 0.0
        %2281 = vmatprep.subr.mxu0 0.0
        %2282 = vmatpush2.msra.mxu0 0.0
        %2283 = vmatprep.subr.mxu0 0.0
        %2284 = vmatpush2.msra.mxu0 0.0
        %2285 = vmatprep.mubr.f32.mxu0 0.0
        %2286 = vmatmul.mubr.f32.gmra.mxu0 %v2210
        %v2287 = vpop.f32.mrf.mxu0
        %v2288 = vadd.f32 %v2195, %v2287
        %v2289 = vpop.f32.mrf.mxu0
        %v2290 = vadd.f32 %v2195, %v2289
        %2291 = vmatprep.mubr.f32.mxu0 0.0
        %2292 = vmatmul.mubr.f32.gmra.mxu0 %v2213
        %v2293 = vpop.f32.mrf.mxu0
        %v2294 = vpop.f32.mrf.mxu0
        %2295 = vmatprep.mubr.f32.mxu0 0.0
        %2296 = vmatmul.mubr.f32.gmra.mxu0 %v2216
        %v2297 = vpop.f32.mrf.mxu0
        %v2298 = vpop.f32.mrf.mxu0
        %2299 = vmatprep.mubr.f32.mxu0 0.0
        %2300 = vmatmul.mubr.f32.gmra.mxu0 %v2219
        %v2301 = vpop.f32.mrf.mxu0
        %v2302 = vpop.f32.mrf.mxu0
        %2303 = vdwg.mxu0
        %2304 = vmatprep.subr.mxu0 0.0
        %2305 = vmatpush1.msra.mxu0 0.0
        %2306 = vmatprep.subr.mxu0 0.0
        %2307 = vmatpush1.msra.mxu0 0.0
        %2308 = vmatprep.subr.mxu0 0.0
        %2309 = vmatpush1.msra.mxu0 0.0
        %2310 = vmatprep.subr.mxu0 0.0
        %2311 = vmatpush1.msra.mxu0 0.0
        %2312 = vmatprep.subr.mxu0 0.0
        %2313 = vmatpush1.msra.mxu0 0.0
        %2314 = vmatprep.subr.mxu0 0.0
        %2315 = vmatpush1.msra.mxu0 0.0
        %2316 = vmatprep.subr.mxu0 0.0
        %2317 = vmatpush1.msra.mxu0 0.0
        %2318 = vmatprep.subr.mxu0 0.0
        %2319 = vmatpush1.msra.mxu0 0.0
        %2320 = vmatprep.subr.mxu0 0.0
        %2321 = vmatpush1.msra.mxu0 0.0
        %2322 = vmatprep.subr.mxu0 0.0
        %2323 = vmatpush1.msra.mxu0 0.0
        %2324 = vmatprep.subr.mxu0 0.0
        %2325 = vmatpush1.msra.mxu0 0.0
        %2326 = vmatprep.subr.mxu0 0.0
        %2327 = vmatpush1.msra.mxu0 0.0
        %2328 = vmatprep.subr.mxu0 %v2181
        %2329 = vmatpush1.msra.mxu0 %v2180
        %2330 = vmatprep.subr.mxu0 %v2177
        %2331 = vmatpush1.msra.mxu0 %v2176
        %2332 = vmatprep.subr.mxu0 %v2173
        %2333 = vmatpush1.msra.mxu0 %v2172
        %2334 = vmatprep.subr.mxu0 %v2169
        %2335 = vmatpush1.msra.mxu0 %v2168
        %2336 = vmatprep.subr.mxu0 0.0
        %2337 = vmatpush2.msra.mxu0 0.0
        %2338 = vmatprep.subr.mxu0 0.0
        %2339 = vmatpush2.msra.mxu0 0.0
        %2340 = vmatprep.subr.mxu0 0.0
        %2341 = vmatpush2.msra.mxu0 0.0
        %2342 = vmatprep.subr.mxu0 0.0
        %2343 = vmatpush2.msra.mxu0 0.0
        %2344 = vmatprep.subr.mxu0 0.0
        %2345 = vmatpush2.msra.mxu0 0.0
        %2346 = vmatprep.subr.mxu0 0.0
        %2347 = vmatpush2.msra.mxu0 0.0
        %2348 = vmatprep.subr.mxu0 0.0
        %2349 = vmatpush2.msra.mxu0 0.0
        %2350 = vmatprep.subr.mxu0 0.0
        %2351 = vmatpush2.msra.mxu0 0.0
        %2352 = vmatprep.subr.mxu0 0.0
        %2353 = vmatpush2.msra.mxu0 0.0
        %2354 = vmatprep.subr.mxu0 0.0
        %2355 = vmatpush2.msra.mxu0 0.0
        %2356 = vmatprep.subr.mxu0 0.0
        %2357 = vmatpush2.msra.mxu0 0.0
        %2358 = vmatprep.subr.mxu0 0.0
        %2359 = vmatpush2.msra.mxu0 0.0
        %2360 = vmatprep.subr.mxu0 0.0
        %2361 = vmatpush2.msra.mxu0 0.0
        %2362 = vmatprep.subr.mxu0 0.0
        %2363 = vmatpush2.msra.mxu0 0.0
        %2364 = vmatprep.subr.mxu0 0.0
        %2365 = vmatpush2.msra.mxu0 0.0
        %2366 = vmatprep.subr.mxu0 0.0
        %2367 = vmatpush2.msra.mxu0 0.0
        %2368 = vmatprep.mubr.f32.mxu0 0.0
        %2369 = vmatmul.mubr.f32.gmra.mxu0 %v2210
        %v2370 = vpop.f32.mrf.mxu0
        %v2371 = vadd.f32 %v2195, %v2370
        %v2372 = vpop.f32.mrf.mxu0
        %v2373 = vadd.f32 %v2195, %v2372
        %2374 = vmatprep.mubr.f32.mxu0 0.0
        %2375 = vmatmul.mubr.f32.gmra.mxu0 %v2213
        %v2376 = vpop.f32.mrf.mxu0
        %v2377 = vpop.f32.mrf.mxu0
        %2378 = vmatprep.mubr.f32.mxu0 0.0
        %2379 = vmatmul.mubr.f32.gmra.mxu0 %v2216
        %v2380 = vpop.f32.mrf.mxu0
        %v2381 = vpop.f32.mrf.mxu0
        %2382 = vmatprep.mubr.f32.mxu0 0.0
        %2383 = vmatmul.mubr.f32.gmra.mxu0 %v2219
        %v2384 = vpop.f32.mrf.mxu0
        %v2385 = vpop.f32.mrf.mxu0
        %2386 = vdwg.mxu0
        %v2387 = vmul.f32 %v2288, 0.92419624
        %v2388 = vmul.f32 %v2290, 0.92419624
        %v2389 = vmul.f32 %v2371, 0.92419624
        %v2390 = vmul.f32 %v2373, 0.92419624
        %vm2391 = vcmp.gt.f32.partialorder %v2387, 20.0
        %vm2392 = vcmp.gt.f32.partialorder %v2388, 20.0
        %vm2393 = vcmp.gt.f32.partialorder %v2389, 20.0
        %vm2394 = vcmp.gt.f32.partialorder %v2390, 20.0
        %v2395 = vmin.f32 %v2387, 20.0
        %v2396 = vmin.f32 %v2388, 20.0
        %v2397 = vmin.f32 %v2389, 20.0
        %v2398 = vmin.f32 %v2390, 20.0
        %v2399 = vmul.f32 %v2395, 1.442695
        %v2400 = vpow.pop %v2399
        %v2401 = vmul.f32 %v2396, 1.442695
        %v2402 = vpow.pop %v2401
        %v2403 = vmul.f32 %v2397, 1.442695
        %v2404 = vpow.pop %v2403
        %v2405 = vmul.f32 %v2398, 1.442695
        %v2406 = vpow.pop %v2405
        %v2407 = vadd.f32 %v2400, 1.0
        %v2408 = vlog2.pop %v2407
        %v2409 = vmul.f32 %v2408, 0.6931472
        %v2410 = vmul.f32 -0.5, %v2400
        %v2411 = vadd.f32 %v2410, 1.0
        %v2412 = vmul.f32 %v2411, %v2400
        %v2413 = vand.u32 2147483647, %v2400
        %vm2414 = vcmp.lt.f32.partialorder %v2413, 0.0004427343
        %v2415 = vsel %vm2414, %v2412, %v2409
        %v2416 = vadd.f32 %v2402, 1.0
        %v2417 = vlog2.pop %v2416
        %v2418 = vmul.f32 %v2417, 0.6931472
        %v2419 = vmul.f32 -0.5, %v2402
        %v2420 = vadd.f32 %v2419, 1.0
        %v2421 = vmul.f32 %v2420, %v2402
        %v2422 = vand.u32 2147483647, %v2402
        %vm2423 = vcmp.lt.f32.partialorder %v2422, 0.0004427343
        %v2424 = vsel %vm2423, %v2421, %v2418
        %v2425 = vadd.f32 %v2404, 1.0
        %v2426 = vlog2.pop %v2425
        %v2427 = vmul.f32 %v2426, 0.6931472
        %v2428 = vmul.f32 -0.5, %v2404
        %v2429 = vadd.f32 %v2428, 1.0
        %v2430 = vmul.f32 %v2429, %v2404
        %v2431 = vand.u32 2147483647, %v2404
        %vm2432 = vcmp.lt.f32.partialorder %v2431, 0.0004427343
        %v2433 = vsel %vm2432, %v2430, %v2427
        %v2434 = vadd.f32 %v2406, 1.0
        %v2435 = vlog2.pop %v2434
        %v2436 = vmul.f32 %v2435, 0.6931472
        %v2437 = vmul.f32 -0.5, %v2406
        %v2438 = vadd.f32 %v2437, 1.0
        %v2439 = vmul.f32 %v2438, %v2406
        %v2440 = vand.u32 2147483647, %v2406
        %vm2441 = vcmp.lt.f32.partialorder %v2440, 0.0004427343
        %v2442 = vsel %vm2441, %v2439, %v2436
        %v2443 = vmul.f32 %v2415, 1.0820212
        %v2444 = vmul.f32 %v2424, 1.0820212
        %v2445 = vmul.f32 %v2433, 1.0820212
        %v2446 = vmul.f32 %v2442, 1.0820212
        %v2447 = vsel %vm2391, %v2288, %v2443
        %v2448 = vsel %vm2392, %v2290, %v2444
        %v2449 = vsel %vm2393, %v2371, %v2445
        %v2450 = vsel %vm2394, %v2373, %v2446
        %v2451 = vadd.f32 %v2447, 0.25
        %v2452 = vadd.f32 %v2448, 0.25
        %v2453 = vadd.f32 %v2449, 0.25
        %v2454 = vadd.f32 %v2450, 0.25
        %v2455 = vmin.f32 %v2451, 100.0
        %v2456 = vmin.f32 %v2452, 100.0
        %v2457 = vmin.f32 %v2453, 100.0
        %v2458 = vmin.f32 %v2454, 100.0
        %v2459 = vrcp.pop %v2455
        %v2460 = vmul.f32 1.0, %v2459
        %v2461 = vrcp.pop %v2456
        %v2462 = vmul.f32 1.0, %v2461
        %v2463 = vrcp.pop %v2457
        %v2464 = vmul.f32 1.0, %v2463
        %v2465 = vrcp.pop %v2458
        %v2466 = vmul.f32 1.0, %v2465
        %v2467 = vlaneseq
        %v2468 = vshrl.u32 %v2467, 7
        %v2469 = vsub.s32 3, %v2468
        %v2470 = vrot.slane %v2460, %v2469
        %v2471 = vlaneseq
        %v2472 = vshrl.u32 %v2471, 7
        %v2473 = vsub.s32 3, %v2472
        %v2474 = vrot.slane %v2462, %v2473
        %v2475 = vlaneseq
        %v2476 = vshrl.u32 %v2475, 7
        %v2477 = vsub.s32 3, %v2476
        %v2478 = vrot.slane %v2464, %v2477
        %v2479 = vlaneseq
        %v2480 = vshrl.u32 %v2479, 7
        %v2481 = vsub.s32 3, %v2480
        %v2482 = vrot.slane %v2466, %v2481
        %v2483 = vmul.f32 %v2288, %v2470
        %v2484 = vmul.f32 %v2290, %v2474
        %v2485 = vmul.f32 %v2371, %v2478
        %v2486 = vmul.f32 %v2373, %v2482
        %2488 = vset.pattern.permute.xlu0 0
        %2489 = vperm.xlu0 %2488, %v246
        %v2490 = vpop.permute.xlu0 %2489
        %v2492 = vadd.f32 %v2483, %v2490
        %v2493 = vadd.f32 %v2484, %v2490
        %v2494 = vadd.f32 %v2485, %v2490
        %v2495 = vadd.f32 %v2486, %v2490
        %v2500 = vcombine.low %v2492, %v2493
        %v2501 = vcombine.low %v2494, %v2495
        %2504 = vst [vmem:[%s244] sm:$0x77] %v2500
        %2505 = vst [vmem:[%s244 + $0x8] sm:$0x77] %v2501
        %s2506 = scalar_lea.vmem %s206, 32 [#allocation2]
        %v2507 = vld [vmem:[%s2506] sm:$0xff]
        %v2508 = vld [vmem:[%s2506 + $0x8] sm:$0xff]
        %v2509 = vld [vmem:[%s2506 + $0x10] sm:$0xff]
        %v2510 = vld [vmem:[%s2506 + $0x18] sm:$0xff]
        %v2511 = vld [vmem:[%s2506 + $0x80] sm:$0xff]
        %v2512 = vld [vmem:[%s2506 + $0x88] sm:$0xff]
        %v2513 = vld [vmem:[%s2506 + $0x90] sm:$0xff]
        %v2514 = vld [vmem:[%s2506 + $0x98] sm:$0xff]
        %v2515 = vld [vmem:[%s2506 + $0x100] sm:$0xff]
        %v2516 = vld [vmem:[%s2506 + $0x108] sm:$0xff]
        %v2517 = vld [vmem:[%s2506 + $0x110] sm:$0xff]
        %v2518 = vld [vmem:[%s2506 + $0x118] sm:$0xff]
        %v2519 = vld [vmem:[%s2506 + $0x180] sm:$0xff]
        %v2520 = vld [vmem:[%s2506 + $0x188] sm:$0xff]
        %v2521 = vld [vmem:[%s2506 + $0x190] sm:$0xff]
        %v2522 = vld [vmem:[%s2506 + $0x198] sm:$0xff]
        %v2523 = vld [vmem:[%s1] sm:$0xff]
        %v2524 = vld [vmem:[%s1 + $0x8] sm:$0xff]
        %v2525 = vld [vmem:[%s1 + $0x10] sm:$0xff]
        %v2526 = vld [vmem:[%s1 + $0x18] sm:$0xff]
        %v2527 = vld [vmem:[%s2] sm:$0xff]
        %v2528 = vld [vmem:[%s2 + $0x8] sm:$0xff]
        %v2529 = vld [vmem:[%s2 + $0x10] sm:$0xff]
        %v2530 = vld [vmem:[%s2 + $0x18] sm:$0xff]
        %2532 = vset.pattern.permute.xlu0 0
        %2533 = vperm.xlu0 %2532, %v2527
        %v2534 = vpop.permute.xlu0 %2533
        %2537 = vset.pattern.permute.xlu0 0
        %2538 = vperm.xlu0 %2537, %v2528
        %v2539 = vpop.permute.xlu0 %2538
        %2542 = vset.pattern.permute.xlu0 0
        %2543 = vperm.xlu0 %2542, %v2529
        %v2544 = vpop.permute.xlu0 %2543
        %2547 = vset.pattern.permute.xlu0 0
        %2548 = vperm.xlu0 %2547, %v2530
        %v2549 = vpop.permute.xlu0 %2548
        %v2552 = vsel %vm291, %v2523, 0
        %v2555 = vsel %vm291, %v2524, 0
        %v2558 = vsel %vm291, %v2525, 0
        %v2561 = vsel %vm291, %v2526, 0
        %2563 = vmatprep.subr.mxu0 0.0
        %2564 = vmatpush1.msra.mxu0 0.0
        %2565 = vmatprep.subr.mxu0 0.0
        %2566 = vmatpush1.msra.mxu0 0.0
        %2567 = vmatprep.subr.mxu0 0.0
        %2568 = vmatpush1.msra.mxu0 0.0
        %2569 = vmatprep.subr.mxu0 0.0
        %2570 = vmatpush1.msra.mxu0 0.0
        %2571 = vmatprep.subr.mxu0 0.0
        %2572 = vmatpush1.msra.mxu0 0.0
        %2573 = vmatprep.subr.mxu0 0.0
        %2574 = vmatpush1.msra.mxu0 0.0
        %2575 = vmatprep.subr.mxu0 0.0
        %2576 = vmatpush1.msra.mxu0 0.0
        %2577 = vmatprep.subr.mxu0 0.0
        %2578 = vmatpush1.msra.mxu0 0.0
        %2579 = vmatprep.subr.mxu0 0.0
        %2580 = vmatpush1.msra.mxu0 0.0
        %2581 = vmatprep.subr.mxu0 0.0
        %2582 = vmatpush1.msra.mxu0 0.0
        %2583 = vmatprep.subr.mxu0 0.0
        %2584 = vmatpush1.msra.mxu0 0.0
        %2585 = vmatprep.subr.mxu0 0.0
        %2586 = vmatpush1.msra.mxu0 0.0
        %2587 = vmatprep.subr.mxu0 %v2520
        %2588 = vmatpush1.msra.mxu0 %v2519
        %2589 = vmatprep.subr.mxu0 %v2516
        %2590 = vmatpush1.msra.mxu0 %v2515
        %2591 = vmatprep.subr.mxu0 %v2512
        %2592 = vmatpush1.msra.mxu0 %v2511
        %2593 = vmatprep.subr.mxu0 %v2508
        %2594 = vmatpush1.msra.mxu0 %v2507
        %2595 = vmatprep.subr.mxu0 0.0
        %2596 = vmatpush2.msra.mxu0 0.0
        %2597 = vmatprep.subr.mxu0 0.0
        %2598 = vmatpush2.msra.mxu0 0.0
        %2599 = vmatprep.subr.mxu0 0.0
        %2600 = vmatpush2.msra.mxu0 0.0
        %2601 = vmatprep.subr.mxu0 0.0
        %2602 = vmatpush2.msra.mxu0 0.0
        %2603 = vmatprep.subr.mxu0 0.0
        %2604 = vmatpush2.msra.mxu0 0.0
        %2605 = vmatprep.subr.mxu0 0.0
        %2606 = vmatpush2.msra.mxu0 0.0
        %2607 = vmatprep.subr.mxu0 0.0
        %2608 = vmatpush2.msra.mxu0 0.0
        %2609 = vmatprep.subr.mxu0 0.0
        %2610 = vmatpush2.msra.mxu0 0.0
        %2611 = vmatprep.subr.mxu0 0.0
        %2612 = vmatpush2.msra.mxu0 0.0
        %2613 = vmatprep.subr.mxu0 0.0
        %2614 = vmatpush2.msra.mxu0 0.0
        %2615 = vmatprep.subr.mxu0 0.0
        %2616 = vmatpush2.msra.mxu0 0.0
        %2617 = vmatprep.subr.mxu0 0.0
        %2618 = vmatpush2.msra.mxu0 0.0
        %2619 = vmatprep.subr.mxu0 0.0
        %2620 = vmatpush2.msra.mxu0 0.0
        %2621 = vmatprep.subr.mxu0 0.0
        %2622 = vmatpush2.msra.mxu0 0.0
        %2623 = vmatprep.subr.mxu0 0.0
        %2624 = vmatpush2.msra.mxu0 0.0
        %2625 = vmatprep.subr.mxu0 0.0
        %2626 = vmatpush2.msra.mxu0 0.0
        %2627 = vmatprep.mubr.f32.mxu0 0.0
        %2628 = vmatmul.mubr.f32.gmra.mxu0 %v2552
        %v2629 = vpop.f32.mrf.mxu0
        %v2630 = vadd.f32 %v2534, %v2629
        %v2631 = vpop.f32.mrf.mxu0
        %v2632 = vadd.f32 %v2534, %v2631
        %2633 = vmatprep.mubr.f32.mxu0 0.0
        %2634 = vmatmul.mubr.f32.gmra.mxu0 %v2555
        %v2635 = vpop.f32.mrf.mxu0
        %v2636 = vadd.f32 %v2539, %v2635
        %v2637 = vpop.f32.mrf.mxu0
        %v2638 = vadd.f32 %v2539, %v2637
        %2639 = vmatprep.mubr.f32.mxu0 0.0
        %2640 = vmatmul.mubr.f32.gmra.mxu0 %v2558
        %v2641 = vpop.f32.mrf.mxu0
        %v2642 = vadd.f32 %v2544, %v2641
        %v2643 = vpop.f32.mrf.mxu0
        %v2644 = vadd.f32 %v2544, %v2643
        %2645 = vmatprep.mubr.f32.mxu0 0.0
        %2646 = vmatmul.mubr.f32.gmra.mxu0 %v2561
        %v2647 = vpop.f32.mrf.mxu0
        %v2648 = vadd.f32 %v2549, %v2647
        %v2649 = vpop.f32.mrf.mxu0
        %v2650 = vadd.f32 %v2549, %v2649
        %2651 = vdwg.mxu0
        %2652 = vmatprep.subr.mxu0 0.0
        %2653 = vmatpush1.msra.mxu0 0.0
        %2654 = vmatprep.subr.mxu0 0.0
        %2655 = vmatpush1.msra.mxu0 0.0
        %2656 = vmatprep.subr.mxu0 0.0
        %2657 = vmatpush1.msra.mxu0 0.0
        %2658 = vmatprep.subr.mxu0 0.0
        %2659 = vmatpush1.msra.mxu0 0.0
        %2660 = vmatprep.subr.mxu0 0.0
        %2661 = vmatpush1.msra.mxu0 0.0
        %2662 = vmatprep.subr.mxu0 0.0
        %2663 = vmatpush1.msra.mxu0 0.0
        %2664 = vmatprep.subr.mxu0 0.0
        %2665 = vmatpush1.msra.mxu0 0.0
        %2666 = vmatprep.subr.mxu0 0.0
        %2667 = vmatpush1.msra.mxu0 0.0
        %2668 = vmatprep.subr.mxu0 0.0
        %2669 = vmatpush1.msra.mxu0 0.0
        %2670 = vmatprep.subr.mxu0 0.0
        %2671 = vmatpush1.msra.mxu0 0.0
        %2672 = vmatprep.subr.mxu0 0.0
        %2673 = vmatpush1.msra.mxu0 0.0
        %2674 = vmatprep.subr.mxu0 0.0
        %2675 = vmatpush1.msra.mxu0 0.0
        %2676 = vmatprep.subr.mxu0 %v2522
        %2677 = vmatpush1.msra.mxu0 %v2521
        %2678 = vmatprep.subr.mxu0 %v2518
        %2679 = vmatpush1.msra.mxu0 %v2517
        %2680 = vmatprep.subr.mxu0 %v2514
        %2681 = vmatpush1.msra.mxu0 %v2513
        %2682 = vmatprep.subr.mxu0 %v2510
        %2683 = vmatpush1.msra.mxu0 %v2509
        %2684 = vmatprep.subr.mxu0 0.0
        %2685 = vmatpush2.msra.mxu0 0.0
        %2686 = vmatprep.subr.mxu0 0.0
        %2687 = vmatpush2.msra.mxu0 0.0
        %2688 = vmatprep.subr.mxu0 0.0
        %2689 = vmatpush2.msra.mxu0 0.0
        %2690 = vmatprep.subr.mxu0 0.0
        %2691 = vmatpush2.msra.mxu0 0.0
        %2692 = vmatprep.subr.mxu0 0.0
        %2693 = vmatpush2.msra.mxu0 0.0
        %2694 = vmatprep.subr.mxu0 0.0
        %2695 = vmatpush2.msra.mxu0 0.0
        %2696 = vmatprep.subr.mxu0 0.0
        %2697 = vmatpush2.msra.mxu0 0.0
        %2698 = vmatprep.subr.mxu0 0.0
        %2699 = vmatpush2.msra.mxu0 0.0
        %2700 = vmatprep.subr.mxu0 0.0
        %2701 = vmatpush2.msra.mxu0 0.0
        %2702 = vmatprep.subr.mxu0 0.0
        %2703 = vmatpush2.msra.mxu0 0.0
        %2704 = vmatprep.subr.mxu0 0.0
        %2705 = vmatpush2.msra.mxu0 0.0
        %2706 = vmatprep.subr.mxu0 0.0
        %2707 = vmatpush2.msra.mxu0 0.0
        %2708 = vmatprep.subr.mxu0 0.0
        %2709 = vmatpush2.msra.mxu0 0.0
        %2710 = vmatprep.subr.mxu0 0.0
        %2711 = vmatpush2.msra.mxu0 0.0
        %2712 = vmatprep.subr.mxu0 0.0
        %2713 = vmatpush2.msra.mxu0 0.0
        %2714 = vmatprep.subr.mxu0 0.0
        %2715 = vmatpush2.msra.mxu0 0.0
        %2716 = vmatprep.mubr.f32.mxu0 0.0
        %2717 = vmatmul.mubr.f32.gmra.mxu0 %v2552
        %v2718 = vpop.f32.mrf.mxu0
        %v2719 = vadd.f32 %v2534, %v2718
        %v2720 = vpop.f32.mrf.mxu0
        %v2721 = vadd.f32 %v2534, %v2720
        %2722 = vmatprep.mubr.f32.mxu0 0.0
        %2723 = vmatmul.mubr.f32.gmra.mxu0 %v2555
        %v2724 = vpop.f32.mrf.mxu0
        %v2725 = vadd.f32 %v2539, %v2724
        %v2726 = vpop.f32.mrf.mxu0
        %v2727 = vadd.f32 %v2539, %v2726
        %2728 = vmatprep.mubr.f32.mxu0 0.0
        %2729 = vmatmul.mubr.f32.gmra.mxu0 %v2558
        %v2730 = vpop.f32.mrf.mxu0
        %v2731 = vadd.f32 %v2544, %v2730
        %v2732 = vpop.f32.mrf.mxu0
        %v2733 = vadd.f32 %v2544, %v2732
        %2734 = vmatprep.mubr.f32.mxu0 0.0
        %2735 = vmatmul.mubr.f32.gmra.mxu0 %v2561
        %v2736 = vpop.f32.mrf.mxu0
        %v2737 = vadd.f32 %v2549, %v2736
        %v2738 = vpop.f32.mrf.mxu0
        %v2739 = vadd.f32 %v2549, %v2738
        %2740 = vdwg.mxu0
        %v2741 = vmax.f32 %v2630, 0.0
        %v2742 = vmax.f32 %v2632, 0.0
        %v2743 = vmax.f32 %v2719, 0.0
        %v2744 = vmax.f32 %v2721, 0.0
        %v2745 = vmax.f32 %v2636, 0.0
        %v2746 = vmax.f32 %v2638, 0.0
        %v2747 = vmax.f32 %v2725, 0.0
        %v2748 = vmax.f32 %v2727, 0.0
        %v2749 = vmax.f32 %v2642, 0.0
        %v2750 = vmax.f32 %v2644, 0.0
        %v2751 = vmax.f32 %v2731, 0.0
        %v2752 = vmax.f32 %v2733, 0.0
        %v2753 = vmax.f32 %v2648, 0.0
        %v2754 = vmax.f32 %v2650, 0.0
        %v2755 = vmax.f32 %v2737, 0.0
        %v2756 = vmax.f32 %v2739, 0.0
        %v2757 = vld [vmem:[%s498] sm:$0xff]
        %v2758 = vld [vmem:[%s498 + $0x8] sm:$0xff]
        %v2759 = vld [vmem:[%s498 + $0x10] sm:$0xff]
        %v2760 = vld [vmem:[%s498 + $0x18] sm:$0xff]
        %v2761 = vld [vmem:[%s503] sm:$0xff]
        %v2762 = vld [vmem:[%s503 + $0x8] sm:$0xff]
        %v2763 = vld [vmem:[%s503 + $0x10] sm:$0xff]
        %v2764 = vld [vmem:[%s503 + $0x18] sm:$0xff]
        %2766 = vset.pattern.permute.xlu0 0
        %2767 = vperm.xlu0 %2766, %v2761
        %v2768 = vpop.permute.xlu0 %2767
        %2771 = vset.pattern.permute.xlu0 0
        %2772 = vperm.xlu0 %2771, %v2762
        %v2773 = vpop.permute.xlu0 %2772
        %2776 = vset.pattern.permute.xlu0 0
        %2777 = vperm.xlu0 %2776, %v2763
        %v2778 = vpop.permute.xlu0 %2777
        %2781 = vset.pattern.permute.xlu0 0
        %2782 = vperm.xlu0 %2781, %v2764
        %v2783 = vpop.permute.xlu0 %2782
        %v2786 = vsel %vm291, %v2757, 0
        %v2789 = vsel %vm291, %v2758, 0
        %v2792 = vsel %vm291, %v2759, 0
        %v2795 = vsel %vm291, %v2760, 0
        %2797 = vmatprep.subr.mxu0 0.0
        %2798 = vmatpush1.msra.mxu0 0.0
        %2799 = vmatprep.subr.mxu0 0.0
        %2800 = vmatpush1.msra.mxu0 0.0
        %2801 = vmatprep.subr.mxu0 0.0
        %2802 = vmatpush1.msra.mxu0 0.0
        %2803 = vmatprep.subr.mxu0 0.0
        %2804 = vmatpush1.msra.mxu0 0.0
        %2805 = vmatprep.subr.mxu0 0.0
        %2806 = vmatpush1.msra.mxu0 0.0
        %2807 = vmatprep.subr.mxu0 0.0
        %2808 = vmatpush1.msra.mxu0 0.0
        %2809 = vmatprep.subr.mxu0 0.0
        %2810 = vmatpush1.msra.mxu0 0.0
        %2811 = vmatprep.subr.mxu0 0.0
        %2812 = vmatpush1.msra.mxu0 0.0
        %2813 = vmatprep.subr.mxu0 0.0
        %2814 = vmatpush1.msra.mxu0 0.0
        %2815 = vmatprep.subr.mxu0 0.0
        %2816 = vmatpush1.msra.mxu0 0.0
        %2817 = vmatprep.subr.mxu0 0.0
        %2818 = vmatpush1.msra.mxu0 0.0
        %2819 = vmatprep.subr.mxu0 0.0
        %2820 = vmatpush1.msra.mxu0 0.0
        %2821 = vmatprep.subr.mxu0 %v2754
        %2822 = vmatpush1.msra.mxu0 %v2753
        %2823 = vmatprep.subr.mxu0 %v2750
        %2824 = vmatpush1.msra.mxu0 %v2749
        %2825 = vmatprep.subr.mxu0 %v2746
        %2826 = vmatpush1.msra.mxu0 %v2745
        %2827 = vmatprep.subr.mxu0 %v2742
        %2828 = vmatpush1.msra.mxu0 %v2741
        %2829 = vmatprep.subr.mxu0 0.0
        %2830 = vmatpush2.msra.mxu0 0.0
        %2831 = vmatprep.subr.mxu0 0.0
        %2832 = vmatpush2.msra.mxu0 0.0
        %2833 = vmatprep.subr.mxu0 0.0
        %2834 = vmatpush2.msra.mxu0 0.0
        %2835 = vmatprep.subr.mxu0 0.0
        %2836 = vmatpush2.msra.mxu0 0.0
        %2837 = vmatprep.subr.mxu0 0.0
        %2838 = vmatpush2.msra.mxu0 0.0
        %2839 = vmatprep.subr.mxu0 0.0
        %2840 = vmatpush2.msra.mxu0 0.0
        %2841 = vmatprep.subr.mxu0 0.0
        %2842 = vmatpush2.msra.mxu0 0.0
        %2843 = vmatprep.subr.mxu0 0.0
        %2844 = vmatpush2.msra.mxu0 0.0
        %2845 = vmatprep.subr.mxu0 0.0
        %2846 = vmatpush2.msra.mxu0 0.0
        %2847 = vmatprep.subr.mxu0 0.0
        %2848 = vmatpush2.msra.mxu0 0.0
        %2849 = vmatprep.subr.mxu0 0.0
        %2850 = vmatpush2.msra.mxu0 0.0
        %2851 = vmatprep.subr.mxu0 0.0
        %2852 = vmatpush2.msra.mxu0 0.0
        %2853 = vmatprep.subr.mxu0 0.0
        %2854 = vmatpush2.msra.mxu0 0.0
        %2855 = vmatprep.subr.mxu0 0.0
        %2856 = vmatpush2.msra.mxu0 0.0
        %2857 = vmatprep.subr.mxu0 0.0
        %2858 = vmatpush2.msra.mxu0 0.0
        %2859 = vmatprep.subr.mxu0 0.0
        %2860 = vmatpush2.msra.mxu0 0.0
        %2861 = vmatprep.mubr.f32.mxu0 0.0
        %2862 = vmatmul.mubr.f32.gmra.mxu0 %v2786
        %v2863 = vpop.f32.mrf.mxu0
        %v2864 = vadd.f32 %v2768, %v2863
        %v2865 = vpop.f32.mrf.mxu0
        %v2866 = vadd.f32 %v2768, %v2865
        %2867 = vmatprep.mubr.f32.mxu0 0.0
        %2868 = vmatmul.mubr.f32.gmra.mxu0 %v2789
        %v2869 = vpop.f32.mrf.mxu0
        %v2870 = vadd.f32 %v2773, %v2869
        %v2871 = vpop.f32.mrf.mxu0
        %v2872 = vadd.f32 %v2773, %v2871
        %2873 = vmatprep.mubr.f32.mxu0 0.0
        %2874 = vmatmul.mubr.f32.gmra.mxu0 %v2792
        %v2875 = vpop.f32.mrf.mxu0
        %v2876 = vadd.f32 %v2778, %v2875
        %v2877 = vpop.f32.mrf.mxu0
        %v2878 = vadd.f32 %v2778, %v2877
        %2879 = vmatprep.mubr.f32.mxu0 0.0
        %2880 = vmatmul.mubr.f32.gmra.mxu0 %v2795
        %v2881 = vpop.f32.mrf.mxu0
        %v2882 = vadd.f32 %v2783, %v2881
        %v2883 = vpop.f32.mrf.mxu0
        %v2884 = vadd.f32 %v2783, %v2883
        %2885 = vdwg.mxu0
        %2886 = vmatprep.subr.mxu0 0.0
        %2887 = vmatpush1.msra.mxu0 0.0
        %2888 = vmatprep.subr.mxu0 0.0
        %2889 = vmatpush1.msra.mxu0 0.0
        %2890 = vmatprep.subr.mxu0 0.0
        %2891 = vmatpush1.msra.mxu0 0.0
        %2892 = vmatprep.subr.mxu0 0.0
        %2893 = vmatpush1.msra.mxu0 0.0
        %2894 = vmatprep.subr.mxu0 0.0
        %2895 = vmatpush1.msra.mxu0 0.0
        %2896 = vmatprep.subr.mxu0 0.0
        %2897 = vmatpush1.msra.mxu0 0.0
        %2898 = vmatprep.subr.mxu0 0.0
        %2899 = vmatpush1.msra.mxu0 0.0
        %2900 = vmatprep.subr.mxu0 0.0
        %2901 = vmatpush1.msra.mxu0 0.0
        %2902 = vmatprep.subr.mxu0 0.0
        %2903 = vmatpush1.msra.mxu0 0.0
        %2904 = vmatprep.subr.mxu0 0.0
        %2905 = vmatpush1.msra.mxu0 0.0
        %2906 = vmatprep.subr.mxu0 0.0
        %2907 = vmatpush1.msra.mxu0 0.0
        %2908 = vmatprep.subr.mxu0 0.0
        %2909 = vmatpush1.msra.mxu0 0.0
        %2910 = vmatprep.subr.mxu0 %v2756
        %2911 = vmatpush1.msra.mxu0 %v2755
        %2912 = vmatprep.subr.mxu0 %v2752
        %2913 = vmatpush1.msra.mxu0 %v2751
        %2914 = vmatprep.subr.mxu0 %v2748
        %2915 = vmatpush1.msra.mxu0 %v2747
        %2916 = vmatprep.subr.mxu0 %v2744
        %2917 = vmatpush1.msra.mxu0 %v2743
        %2918 = vmatprep.subr.mxu0 0.0
        %2919 = vmatpush2.msra.mxu0 0.0
        %2920 = vmatprep.subr.mxu0 0.0
        %2921 = vmatpush2.msra.mxu0 0.0
        %2922 = vmatprep.subr.mxu0 0.0
        %2923 = vmatpush2.msra.mxu0 0.0
        %2924 = vmatprep.subr.mxu0 0.0
        %2925 = vmatpush2.msra.mxu0 0.0
        %2926 = vmatprep.subr.mxu0 0.0
        %2927 = vmatpush2.msra.mxu0 0.0
        %2928 = vmatprep.subr.mxu0 0.0
        %2929 = vmatpush2.msra.mxu0 0.0
        %2930 = vmatprep.subr.mxu0 0.0
        %2931 = vmatpush2.msra.mxu0 0.0
        %2932 = vmatprep.subr.mxu0 0.0
        %2933 = vmatpush2.msra.mxu0 0.0
        %2934 = vmatprep.subr.mxu0 0.0
        %2935 = vmatpush2.msra.mxu0 0.0
        %2936 = vmatprep.subr.mxu0 0.0
        %2937 = vmatpush2.msra.mxu0 0.0
        %2938 = vmatprep.subr.mxu0 0.0
        %2939 = vmatpush2.msra.mxu0 0.0
        %2940 = vmatprep.subr.mxu0 0.0
        %2941 = vmatpush2.msra.mxu0 0.0
        %2942 = vmatprep.subr.mxu0 0.0
        %2943 = vmatpush2.msra.mxu0 0.0
        %2944 = vmatprep.subr.mxu0 0.0
        %2945 = vmatpush2.msra.mxu0 0.0
        %2946 = vmatprep.subr.mxu0 0.0
        %2947 = vmatpush2.msra.mxu0 0.0
        %2948 = vmatprep.subr.mxu0 0.0
        %2949 = vmatpush2.msra.mxu0 0.0
        %2950 = vmatprep.mubr.f32.mxu0 0.0
        %2951 = vmatmul.mubr.f32.gmra.mxu0 %v2786
        %v2952 = vpop.f32.mrf.mxu0
        %v2953 = vadd.f32 %v2768, %v2952
        %v2954 = vpop.f32.mrf.mxu0
        %v2955 = vadd.f32 %v2768, %v2954
        %2956 = vmatprep.mubr.f32.mxu0 0.0
        %2957 = vmatmul.mubr.f32.gmra.mxu0 %v2789
        %v2958 = vpop.f32.mrf.mxu0
        %v2959 = vadd.f32 %v2773, %v2958
        %v2960 = vpop.f32.mrf.mxu0
        %v2961 = vadd.f32 %v2773, %v2960
        %2962 = vmatprep.mubr.f32.mxu0 0.0
        %2963 = vmatmul.mubr.f32.gmra.mxu0 %v2792
        %v2964 = vpop.f32.mrf.mxu0
        %v2965 = vadd.f32 %v2778, %v2964
        %v2966 = vpop.f32.mrf.mxu0
        %v2967 = vadd.f32 %v2778, %v2966
        %2968 = vmatprep.mubr.f32.mxu0 0.0
        %2969 = vmatmul.mubr.f32.gmra.mxu0 %v2795
        %v2970 = vpop.f32.mrf.mxu0
        %v2971 = vadd.f32 %v2783, %v2970
        %v2972 = vpop.f32.mrf.mxu0
        %v2973 = vadd.f32 %v2783, %v2972
        %2974 = vdwg.mxu0
        %v2975 = vmax.f32 %v2864, 0.0
        %v2976 = vmax.f32 %v2866, 0.0
        %v2977 = vmax.f32 %v2953, 0.0
        %v2978 = vmax.f32 %v2955, 0.0
        %v2979 = vmax.f32 %v2870, 0.0
        %v2980 = vmax.f32 %v2872, 0.0
        %v2981 = vmax.f32 %v2959, 0.0
        %v2982 = vmax.f32 %v2961, 0.0
        %v2983 = vmax.f32 %v2876, 0.0
        %v2984 = vmax.f32 %v2878, 0.0
        %v2985 = vmax.f32 %v2965, 0.0
        %v2986 = vmax.f32 %v2967, 0.0
        %v2987 = vmax.f32 %v2882, 0.0
        %v2988 = vmax.f32 %v2884, 0.0
        %v2989 = vmax.f32 %v2971, 0.0
        %v2990 = vmax.f32 %v2973, 0.0
        %v2991 = vld [vmem:[%s734] sm:$0xff]
        %v2992 = vld [vmem:[%s734 + $0x8] sm:$0xff]
        %v2993 = vld [vmem:[%s734 + $0x10] sm:$0xff]
        %v2994 = vld [vmem:[%s734 + $0x18] sm:$0xff]
        %v2995 = vld [vmem:[%s739] sm:$0xff]
        %v2996 = vld [vmem:[%s739 + $0x8] sm:$0xff]
        %v2997 = vld [vmem:[%s739 + $0x10] sm:$0xff]
        %v2998 = vld [vmem:[%s739 + $0x18] sm:$0xff]
        %3000 = vset.pattern.permute.xlu0 0
        %3001 = vperm.xlu0 %3000, %v2995
        %v3002 = vpop.permute.xlu0 %3001
        %3005 = vset.pattern.permute.xlu0 0
        %3006 = vperm.xlu0 %3005, %v2996
        %v3007 = vpop.permute.xlu0 %3006
        %3010 = vset.pattern.permute.xlu0 0
        %3011 = vperm.xlu0 %3010, %v2997
        %v3012 = vpop.permute.xlu0 %3011
        %3015 = vset.pattern.permute.xlu0 0
        %3016 = vperm.xlu0 %3015, %v2998
        %v3017 = vpop.permute.xlu0 %3016
        %v3020 = vsel %vm291, %v2991, 0
        %v3023 = vsel %vm291, %v2992, 0
        %v3026 = vsel %vm291, %v2993, 0
        %v3029 = vsel %vm291, %v2994, 0
        %3031 = vmatprep.subr.mxu0 0.0
        %3032 = vmatpush1.msra.mxu0 0.0
        %3033 = vmatprep.subr.mxu0 0.0
        %3034 = vmatpush1.msra.mxu0 0.0
        %3035 = vmatprep.subr.mxu0 0.0
        %3036 = vmatpush1.msra.mxu0 0.0
        %3037 = vmatprep.subr.mxu0 0.0
        %3038 = vmatpush1.msra.mxu0 0.0
        %3039 = vmatprep.subr.mxu0 0.0
        %3040 = vmatpush1.msra.mxu0 0.0
        %3041 = vmatprep.subr.mxu0 0.0
        %3042 = vmatpush1.msra.mxu0 0.0
        %3043 = vmatprep.subr.mxu0 0.0
        %3044 = vmatpush1.msra.mxu0 0.0
        %3045 = vmatprep.subr.mxu0 0.0
        %3046 = vmatpush1.msra.mxu0 0.0
        %3047 = vmatprep.subr.mxu0 0.0
        %3048 = vmatpush1.msra.mxu0 0.0
        %3049 = vmatprep.subr.mxu0 0.0
        %3050 = vmatpush1.msra.mxu0 0.0
        %3051 = vmatprep.subr.mxu0 0.0
        %3052 = vmatpush1.msra.mxu0 0.0
        %3053 = vmatprep.subr.mxu0 0.0
        %3054 = vmatpush1.msra.mxu0 0.0
        %3055 = vmatprep.subr.mxu0 %v2988
        %3056 = vmatpush1.msra.mxu0 %v2987
        %3057 = vmatprep.subr.mxu0 %v2984
        %3058 = vmatpush1.msra.mxu0 %v2983
        %3059 = vmatprep.subr.mxu0 %v2980
        %3060 = vmatpush1.msra.mxu0 %v2979
        %3061 = vmatprep.subr.mxu0 %v2976
        %3062 = vmatpush1.msra.mxu0 %v2975
        %3063 = vmatprep.subr.mxu0 0.0
        %3064 = vmatpush2.msra.mxu0 0.0
        %3065 = vmatprep.subr.mxu0 0.0
        %3066 = vmatpush2.msra.mxu0 0.0
        %3067 = vmatprep.subr.mxu0 0.0
        %3068 = vmatpush2.msra.mxu0 0.0
        %3069 = vmatprep.subr.mxu0 0.0
        %3070 = vmatpush2.msra.mxu0 0.0
        %3071 = vmatprep.subr.mxu0 0.0
        %3072 = vmatpush2.msra.mxu0 0.0
        %3073 = vmatprep.subr.mxu0 0.0
        %3074 = vmatpush2.msra.mxu0 0.0
        %3075 = vmatprep.subr.mxu0 0.0
        %3076 = vmatpush2.msra.mxu0 0.0
        %3077 = vmatprep.subr.mxu0 0.0
        %3078 = vmatpush2.msra.mxu0 0.0
        %3079 = vmatprep.subr.mxu0 0.0
        %3080 = vmatpush2.msra.mxu0 0.0
        %3081 = vmatprep.subr.mxu0 0.0
        %3082 = vmatpush2.msra.mxu0 0.0
        %3083 = vmatprep.subr.mxu0 0.0
        %3084 = vmatpush2.msra.mxu0 0.0
        %3085 = vmatprep.subr.mxu0 0.0
        %3086 = vmatpush2.msra.mxu0 0.0
        %3087 = vmatprep.subr.mxu0 0.0
        %3088 = vmatpush2.msra.mxu0 0.0
        %3089 = vmatprep.subr.mxu0 0.0
        %3090 = vmatpush2.msra.mxu0 0.0
        %3091 = vmatprep.subr.mxu0 0.0
        %3092 = vmatpush2.msra.mxu0 0.0
        %3093 = vmatprep.subr.mxu0 0.0
        %3094 = vmatpush2.msra.mxu0 0.0
        %3095 = vmatprep.mubr.f32.mxu0 0.0
        %3096 = vmatmul.mubr.f32.gmra.mxu0 %v3020
        %v3097 = vpop.f32.mrf.mxu0
        %v3098 = vadd.f32 %v3002, %v3097
        %v3099 = vpop.f32.mrf.mxu0
        %v3100 = vadd.f32 %v3002, %v3099
        %3101 = vmatprep.mubr.f32.mxu0 0.0
        %3102 = vmatmul.mubr.f32.gmra.mxu0 %v3023
        %v3103 = vpop.f32.mrf.mxu0
        %v3104 = vadd.f32 %v3007, %v3103
        %v3105 = vpop.f32.mrf.mxu0
        %v3106 = vadd.f32 %v3007, %v3105
        %3107 = vmatprep.mubr.f32.mxu0 0.0
        %3108 = vmatmul.mubr.f32.gmra.mxu0 %v3026
        %v3109 = vpop.f32.mrf.mxu0
        %v3110 = vadd.f32 %v3012, %v3109
        %v3111 = vpop.f32.mrf.mxu0
        %v3112 = vadd.f32 %v3012, %v3111
        %3113 = vmatprep.mubr.f32.mxu0 0.0
        %3114 = vmatmul.mubr.f32.gmra.mxu0 %v3029
        %v3115 = vpop.f32.mrf.mxu0
        %v3116 = vadd.f32 %v3017, %v3115
        %v3117 = vpop.f32.mrf.mxu0
        %v3118 = vadd.f32 %v3017, %v3117
        %3119 = vdwg.mxu0
        %3120 = vmatprep.subr.mxu0 0.0
        %3121 = vmatpush1.msra.mxu0 0.0
        %3122 = vmatprep.subr.mxu0 0.0
        %3123 = vmatpush1.msra.mxu0 0.0
        %3124 = vmatprep.subr.mxu0 0.0
        %3125 = vmatpush1.msra.mxu0 0.0
        %3126 = vmatprep.subr.mxu0 0.0
        %3127 = vmatpush1.msra.mxu0 0.0
        %3128 = vmatprep.subr.mxu0 0.0
        %3129 = vmatpush1.msra.mxu0 0.0
        %3130 = vmatprep.subr.mxu0 0.0
        %3131 = vmatpush1.msra.mxu0 0.0
        %3132 = vmatprep.subr.mxu0 0.0
        %3133 = vmatpush1.msra.mxu0 0.0
        %3134 = vmatprep.subr.mxu0 0.0
        %3135 = vmatpush1.msra.mxu0 0.0
        %3136 = vmatprep.subr.mxu0 0.0
        %3137 = vmatpush1.msra.mxu0 0.0
        %3138 = vmatprep.subr.mxu0 0.0
        %3139 = vmatpush1.msra.mxu0 0.0
        %3140 = vmatprep.subr.mxu0 0.0
        %3141 = vmatpush1.msra.mxu0 0.0
        %3142 = vmatprep.subr.mxu0 0.0
        %3143 = vmatpush1.msra.mxu0 0.0
        %3144 = vmatprep.subr.mxu0 %v2990
        %3145 = vmatpush1.msra.mxu0 %v2989
        %3146 = vmatprep.subr.mxu0 %v2986
        %3147 = vmatpush1.msra.mxu0 %v2985
        %3148 = vmatprep.subr.mxu0 %v2982
        %3149 = vmatpush1.msra.mxu0 %v2981
        %3150 = vmatprep.subr.mxu0 %v2978
        %3151 = vmatpush1.msra.mxu0 %v2977
        %3152 = vmatprep.subr.mxu0 0.0
        %3153 = vmatpush2.msra.mxu0 0.0
        %3154 = vmatprep.subr.mxu0 0.0
        %3155 = vmatpush2.msra.mxu0 0.0
        %3156 = vmatprep.subr.mxu0 0.0
        %3157 = vmatpush2.msra.mxu0 0.0
        %3158 = vmatprep.subr.mxu0 0.0
        %3159 = vmatpush2.msra.mxu0 0.0
        %3160 = vmatprep.subr.mxu0 0.0
        %3161 = vmatpush2.msra.mxu0 0.0
        %3162 = vmatprep.subr.mxu0 0.0
        %3163 = vmatpush2.msra.mxu0 0.0
        %3164 = vmatprep.subr.mxu0 0.0
        %3165 = vmatpush2.msra.mxu0 0.0
        %3166 = vmatprep.subr.mxu0 0.0
        %3167 = vmatpush2.msra.mxu0 0.0
        %3168 = vmatprep.subr.mxu0 0.0
        %3169 = vmatpush2.msra.mxu0 0.0
        %3170 = vmatprep.subr.mxu0 0.0
        %3171 = vmatpush2.msra.mxu0 0.0
        %3172 = vmatprep.subr.mxu0 0.0
        %3173 = vmatpush2.msra.mxu0 0.0
        %3174 = vmatprep.subr.mxu0 0.0
        %3175 = vmatpush2.msra.mxu0 0.0
        %3176 = vmatprep.subr.mxu0 0.0
        %3177 = vmatpush2.msra.mxu0 0.0
        %3178 = vmatprep.subr.mxu0 0.0
        %3179 = vmatpush2.msra.mxu0 0.0
        %3180 = vmatprep.subr.mxu0 0.0
        %3181 = vmatpush2.msra.mxu0 0.0
        %3182 = vmatprep.subr.mxu0 0.0
        %3183 = vmatpush2.msra.mxu0 0.0
        %3184 = vmatprep.mubr.f32.mxu0 0.0
        %3185 = vmatmul.mubr.f32.gmra.mxu0 %v3020
        %v3186 = vpop.f32.mrf.mxu0
        %v3187 = vadd.f32 %v3002, %v3186
        %v3188 = vpop.f32.mrf.mxu0
        %v3189 = vadd.f32 %v3002, %v3188
        %3190 = vmatprep.mubr.f32.mxu0 0.0
        %3191 = vmatmul.mubr.f32.gmra.mxu0 %v3023
        %v3192 = vpop.f32.mrf.mxu0
        %v3193 = vadd.f32 %v3007, %v3192
        %v3194 = vpop.f32.mrf.mxu0
        %v3195 = vadd.f32 %v3007, %v3194
        %3196 = vmatprep.mubr.f32.mxu0 0.0
        %3197 = vmatmul.mubr.f32.gmra.mxu0 %v3026
        %v3198 = vpop.f32.mrf.mxu0
        %v3199 = vadd.f32 %v3012, %v3198
        %v3200 = vpop.f32.mrf.mxu0
        %v3201 = vadd.f32 %v3012, %v3200
        %3202 = vmatprep.mubr.f32.mxu0 0.0
        %3203 = vmatmul.mubr.f32.gmra.mxu0 %v3029
        %v3204 = vpop.f32.mrf.mxu0
        %v3205 = vadd.f32 %v3017, %v3204
        %v3206 = vpop.f32.mrf.mxu0
        %v3207 = vadd.f32 %v3017, %v3206
        %3208 = vdwg.mxu0
        %v3209 = vmax.f32 %v3098, 0.0
        %v3210 = vmax.f32 %v3100, 0.0
        %v3211 = vmax.f32 %v3187, 0.0
        %v3212 = vmax.f32 %v3189, 0.0
        %v3213 = vmax.f32 %v3104, 0.0
        %v3214 = vmax.f32 %v3106, 0.0
        %v3215 = vmax.f32 %v3193, 0.0
        %v3216 = vmax.f32 %v3195, 0.0
        %v3217 = vmax.f32 %v3110, 0.0
        %v3218 = vmax.f32 %v3112, 0.0
        %v3219 = vmax.f32 %v3199, 0.0
        %v3220 = vmax.f32 %v3201, 0.0
        %v3221 = vmax.f32 %v3116, 0.0
        %v3222 = vmax.f32 %v3118, 0.0
        %v3223 = vmax.f32 %v3205, 0.0
        %v3224 = vmax.f32 %v3207, 0.0
        %v3225 = vadd.f32 %v2507, %v3209
        %v3226 = vadd.f32 %v2508, %v3210
        %v3227 = vadd.f32 %v2509, %v3211
        %v3228 = vadd.f32 %v2510, %v3212
        %v3229 = vadd.f32 %v2511, %v3213
        %v3230 = vadd.f32 %v2512, %v3214
        %v3231 = vadd.f32 %v2513, %v3215
        %v3232 = vadd.f32 %v2514, %v3216
        %v3233 = vadd.f32 %v2515, %v3217
        %v3234 = vadd.f32 %v2516, %v3218
        %v3235 = vadd.f32 %v2517, %v3219
        %v3236 = vadd.f32 %v2518, %v3220
        %v3237 = vadd.f32 %v2519, %v3221
        %v3238 = vadd.f32 %v2520, %v3222
        %v3239 = vadd.f32 %v2521, %v3223
        %v3240 = vadd.f32 %v2522, %v3224
        %v3241 = vld [vmem:[%s986] sm:$0xff]
        %v3242 = vld [vmem:[%s986 + $0x8] sm:$0xff]
        %v3243 = vld [vmem:[%s986 + $0x10] sm:$0xff]
        %v3244 = vld [vmem:[%s986 + $0x18] sm:$0xff]
        %v3245 = vld [vmem:[%s991] sm:$0xff]
        %v3246 = vld [vmem:[%s991 + $0x8] sm:$0xff]
        %v3247 = vld [vmem:[%s991 + $0x10] sm:$0xff]
        %v3248 = vld [vmem:[%s991 + $0x18] sm:$0xff]
        %3250 = vset.pattern.permute.xlu0 0
        %3251 = vperm.xlu0 %3250, %v3245
        %v3252 = vpop.permute.xlu0 %3251
        %3255 = vset.pattern.permute.xlu0 0
        %3256 = vperm.xlu0 %3255, %v3246
        %v3257 = vpop.permute.xlu0 %3256
        %3260 = vset.pattern.permute.xlu0 0
        %3261 = vperm.xlu0 %3260, %v3247
        %v3262 = vpop.permute.xlu0 %3261
        %3265 = vset.pattern.permute.xlu0 0
        %3266 = vperm.xlu0 %3265, %v3248
        %v3267 = vpop.permute.xlu0 %3266
        %v3270 = vsel %vm291, %v3241, 0
        %v3273 = vsel %vm291, %v3242, 0
        %v3276 = vsel %vm291, %v3243, 0
        %v3279 = vsel %vm291, %v3244, 0
        %3281 = vmatprep.subr.mxu0 0.0
        %3282 = vmatpush1.msra.mxu0 0.0
        %3283 = vmatprep.subr.mxu0 0.0
        %3284 = vmatpush1.msra.mxu0 0.0
        %3285 = vmatprep.subr.mxu0 0.0
        %3286 = vmatpush1.msra.mxu0 0.0
        %3287 = vmatprep.subr.mxu0 0.0
        %3288 = vmatpush1.msra.mxu0 0.0
        %3289 = vmatprep.subr.mxu0 0.0
        %3290 = vmatpush1.msra.mxu0 0.0
        %3291 = vmatprep.subr.mxu0 0.0
        %3292 = vmatpush1.msra.mxu0 0.0
        %3293 = vmatprep.subr.mxu0 0.0
        %3294 = vmatpush1.msra.mxu0 0.0
        %3295 = vmatprep.subr.mxu0 0.0
        %3296 = vmatpush1.msra.mxu0 0.0
        %3297 = vmatprep.subr.mxu0 0.0
        %3298 = vmatpush1.msra.mxu0 0.0
        %3299 = vmatprep.subr.mxu0 0.0
        %3300 = vmatpush1.msra.mxu0 0.0
        %3301 = vmatprep.subr.mxu0 0.0
        %3302 = vmatpush1.msra.mxu0 0.0
        %3303 = vmatprep.subr.mxu0 0.0
        %3304 = vmatpush1.msra.mxu0 0.0
        %3305 = vmatprep.subr.mxu0 %v3238
        %3306 = vmatpush1.msra.mxu0 %v3237
        %3307 = vmatprep.subr.mxu0 %v3234
        %3308 = vmatpush1.msra.mxu0 %v3233
        %3309 = vmatprep.subr.mxu0 %v3230
        %3310 = vmatpush1.msra.mxu0 %v3229
        %3311 = vmatprep.subr.mxu0 %v3226
        %3312 = vmatpush1.msra.mxu0 %v3225
        %3313 = vmatprep.subr.mxu0 0.0
        %3314 = vmatpush2.msra.mxu0 0.0
        %3315 = vmatprep.subr.mxu0 0.0
        %3316 = vmatpush2.msra.mxu0 0.0
        %3317 = vmatprep.subr.mxu0 0.0
        %3318 = vmatpush2.msra.mxu0 0.0
        %3319 = vmatprep.subr.mxu0 0.0
        %3320 = vmatpush2.msra.mxu0 0.0
        %3321 = vmatprep.subr.mxu0 0.0
        %3322 = vmatpush2.msra.mxu0 0.0
        %3323 = vmatprep.subr.mxu0 0.0
        %3324 = vmatpush2.msra.mxu0 0.0
        %3325 = vmatprep.subr.mxu0 0.0
        %3326 = vmatpush2.msra.mxu0 0.0
        %3327 = vmatprep.subr.mxu0 0.0
        %3328 = vmatpush2.msra.mxu0 0.0
        %3329 = vmatprep.subr.mxu0 0.0
        %3330 = vmatpush2.msra.mxu0 0.0
        %3331 = vmatprep.subr.mxu0 0.0
        %3332 = vmatpush2.msra.mxu0 0.0
        %3333 = vmatprep.subr.mxu0 0.0
        %3334 = vmatpush2.msra.mxu0 0.0
        %3335 = vmatprep.subr.mxu0 0.0
        %3336 = vmatpush2.msra.mxu0 0.0
        %3337 = vmatprep.subr.mxu0 0.0
        %3338 = vmatpush2.msra.mxu0 0.0
        %3339 = vmatprep.subr.mxu0 0.0
        %3340 = vmatpush2.msra.mxu0 0.0
        %3341 = vmatprep.subr.mxu0 0.0
        %3342 = vmatpush2.msra.mxu0 0.0
        %3343 = vmatprep.subr.mxu0 0.0
        %3344 = vmatpush2.msra.mxu0 0.0
        %3345 = vmatprep.mubr.f32.mxu0 0.0
        %3346 = vmatmul.mubr.f32.gmra.mxu0 %v3270
        %v3347 = vpop.f32.mrf.mxu0
        %v3348 = vadd.f32 %v3252, %v3347
        %v3349 = vpop.f32.mrf.mxu0
        %v3350 = vadd.f32 %v3252, %v3349
        %3351 = vmatprep.mubr.f32.mxu0 0.0
        %3352 = vmatmul.mubr.f32.gmra.mxu0 %v3273
        %v3353 = vpop.f32.mrf.mxu0
        %v3354 = vadd.f32 %v3257, %v3353
        %v3355 = vpop.f32.mrf.mxu0
        %v3356 = vadd.f32 %v3257, %v3355
        %3357 = vmatprep.mubr.f32.mxu0 0.0
        %3358 = vmatmul.mubr.f32.gmra.mxu0 %v3276
        %v3359 = vpop.f32.mrf.mxu0
        %v3360 = vadd.f32 %v3262, %v3359
        %v3361 = vpop.f32.mrf.mxu0
        %v3362 = vadd.f32 %v3262, %v3361
        %3363 = vmatprep.mubr.f32.mxu0 0.0
        %3364 = vmatmul.mubr.f32.gmra.mxu0 %v3279
        %v3365 = vpop.f32.mrf.mxu0
        %v3366 = vadd.f32 %v3267, %v3365
        %v3367 = vpop.f32.mrf.mxu0
        %v3368 = vadd.f32 %v3267, %v3367
        %3369 = vdwg.mxu0
        %3370 = vmatprep.subr.mxu0 0.0
        %3371 = vmatpush1.msra.mxu0 0.0
        %3372 = vmatprep.subr.mxu0 0.0
        %3373 = vmatpush1.msra.mxu0 0.0
        %3374 = vmatprep.subr.mxu0 0.0
        %3375 = vmatpush1.msra.mxu0 0.0
        %3376 = vmatprep.subr.mxu0 0.0
        %3377 = vmatpush1.msra.mxu0 0.0
        %3378 = vmatprep.subr.mxu0 0.0
        %3379 = vmatpush1.msra.mxu0 0.0
        %3380 = vmatprep.subr.mxu0 0.0
        %3381 = vmatpush1.msra.mxu0 0.0
        %3382 = vmatprep.subr.mxu0 0.0
        %3383 = vmatpush1.msra.mxu0 0.0
        %3384 = vmatprep.subr.mxu0 0.0
        %3385 = vmatpush1.msra.mxu0 0.0
        %3386 = vmatprep.subr.mxu0 0.0
        %3387 = vmatpush1.msra.mxu0 0.0
        %3388 = vmatprep.subr.mxu0 0.0
        %3389 = vmatpush1.msra.mxu0 0.0
        %3390 = vmatprep.subr.mxu0 0.0
        %3391 = vmatpush1.msra.mxu0 0.0
        %3392 = vmatprep.subr.mxu0 0.0
        %3393 = vmatpush1.msra.mxu0 0.0
        %3394 = vmatprep.subr.mxu0 %v3240
        %3395 = vmatpush1.msra.mxu0 %v3239
        %3396 = vmatprep.subr.mxu0 %v3236
        %3397 = vmatpush1.msra.mxu0 %v3235
        %3398 = vmatprep.subr.mxu0 %v3232
        %3399 = vmatpush1.msra.mxu0 %v3231
        %3400 = vmatprep.subr.mxu0 %v3228
        %3401 = vmatpush1.msra.mxu0 %v3227
        %3402 = vmatprep.subr.mxu0 0.0
        %3403 = vmatpush2.msra.mxu0 0.0
        %3404 = vmatprep.subr.mxu0 0.0
        %3405 = vmatpush2.msra.mxu0 0.0
        %3406 = vmatprep.subr.mxu0 0.0
        %3407 = vmatpush2.msra.mxu0 0.0
        %3408 = vmatprep.subr.mxu0 0.0
        %3409 = vmatpush2.msra.mxu0 0.0
        %3410 = vmatprep.subr.mxu0 0.0
        %3411 = vmatpush2.msra.mxu0 0.0
        %3412 = vmatprep.subr.mxu0 0.0
        %3413 = vmatpush2.msra.mxu0 0.0
        %3414 = vmatprep.subr.mxu0 0.0
        %3415 = vmatpush2.msra.mxu0 0.0
        %3416 = vmatprep.subr.mxu0 0.0
        %3417 = vmatpush2.msra.mxu0 0.0
        %3418 = vmatprep.subr.mxu0 0.0
        %3419 = vmatpush2.msra.mxu0 0.0
        %3420 = vmatprep.subr.mxu0 0.0
        %3421 = vmatpush2.msra.mxu0 0.0
        %3422 = vmatprep.subr.mxu0 0.0
        %3423 = vmatpush2.msra.mxu0 0.0
        %3424 = vmatprep.subr.mxu0 0.0
        %3425 = vmatpush2.msra.mxu0 0.0
        %3426 = vmatprep.subr.mxu0 0.0
        %3427 = vmatpush2.msra.mxu0 0.0
        %3428 = vmatprep.subr.mxu0 0.0
        %3429 = vmatpush2.msra.mxu0 0.0
        %3430 = vmatprep.subr.mxu0 0.0
        %3431 = vmatpush2.msra.mxu0 0.0
        %3432 = vmatprep.subr.mxu0 0.0
        %3433 = vmatpush2.msra.mxu0 0.0
        %3434 = vmatprep.mubr.f32.mxu0 0.0
        %3435 = vmatmul.mubr.f32.gmra.mxu0 %v3270
        %v3436 = vpop.f32.mrf.mxu0
        %v3437 = vadd.f32 %v3252, %v3436
        %v3438 = vpop.f32.mrf.mxu0
        %v3439 = vadd.f32 %v3252, %v3438
        %3440 = vmatprep.mubr.f32.mxu0 0.0
        %3441 = vmatmul.mubr.f32.gmra.mxu0 %v3273
        %v3442 = vpop.f32.mrf.mxu0
        %v3443 = vadd.f32 %v3257, %v3442
        %v3444 = vpop.f32.mrf.mxu0
        %v3445 = vadd.f32 %v3257, %v3444
        %3446 = vmatprep.mubr.f32.mxu0 0.0
        %3447 = vmatmul.mubr.f32.gmra.mxu0 %v3276
        %v3448 = vpop.f32.mrf.mxu0
        %v3449 = vadd.f32 %v3262, %v3448
        %v3450 = vpop.f32.mrf.mxu0
        %v3451 = vadd.f32 %v3262, %v3450
        %3452 = vmatprep.mubr.f32.mxu0 0.0
        %3453 = vmatmul.mubr.f32.gmra.mxu0 %v3279
        %v3454 = vpop.f32.mrf.mxu0
        %v3455 = vadd.f32 %v3267, %v3454
        %v3456 = vpop.f32.mrf.mxu0
        %v3457 = vadd.f32 %v3267, %v3456
        %3458 = vdwg.mxu0
        %v3459 = vmax.f32 %v3348, 0.0
        %v3460 = vmax.f32 %v3350, 0.0
        %v3461 = vmax.f32 %v3437, 0.0
        %v3462 = vmax.f32 %v3439, 0.0
        %v3463 = vmax.f32 %v3354, 0.0
        %v3464 = vmax.f32 %v3356, 0.0
        %v3465 = vmax.f32 %v3443, 0.0
        %v3466 = vmax.f32 %v3445, 0.0
        %v3467 = vmax.f32 %v3360, 0.0
        %v3468 = vmax.f32 %v3362, 0.0
        %v3469 = vmax.f32 %v3449, 0.0
        %v3470 = vmax.f32 %v3451, 0.0
        %v3471 = vmax.f32 %v3366, 0.0
        %v3472 = vmax.f32 %v3368, 0.0
        %v3473 = vmax.f32 %v3455, 0.0
        %v3474 = vmax.f32 %v3457, 0.0
        %v3475 = vld [vmem:[%s1222] sm:$0xff]
        %v3476 = vld [vmem:[%s1222 + $0x8] sm:$0xff]
        %v3477 = vld [vmem:[%s1222 + $0x10] sm:$0xff]
        %v3478 = vld [vmem:[%s1222 + $0x18] sm:$0xff]
        %v3479 = vld [vmem:[%s1227] sm:$0xff]
        %v3480 = vld [vmem:[%s1227 + $0x8] sm:$0xff]
        %v3481 = vld [vmem:[%s1227 + $0x10] sm:$0xff]
        %v3482 = vld [vmem:[%s1227 + $0x18] sm:$0xff]
        %3484 = vset.pattern.permute.xlu0 0
        %3485 = vperm.xlu0 %3484, %v3479
        %v3486 = vpop.permute.xlu0 %3485
        %3489 = vset.pattern.permute.xlu0 0
        %3490 = vperm.xlu0 %3489, %v3480
        %v3491 = vpop.permute.xlu0 %3490
        %3494 = vset.pattern.permute.xlu0 0
        %3495 = vperm.xlu0 %3494, %v3481
        %v3496 = vpop.permute.xlu0 %3495
        %3499 = vset.pattern.permute.xlu0 0
        %3500 = vperm.xlu0 %3499, %v3482
        %v3501 = vpop.permute.xlu0 %3500
        %v3504 = vsel %vm291, %v3475, 0
        %v3507 = vsel %vm291, %v3476, 0
        %v3510 = vsel %vm291, %v3477, 0
        %v3513 = vsel %vm291, %v3478, 0
        %3515 = vmatprep.subr.mxu0 0.0
        %3516 = vmatpush1.msra.mxu0 0.0
        %3517 = vmatprep.subr.mxu0 0.0
        %3518 = vmatpush1.msra.mxu0 0.0
        %3519 = vmatprep.subr.mxu0 0.0
        %3520 = vmatpush1.msra.mxu0 0.0
        %3521 = vmatprep.subr.mxu0 0.0
        %3522 = vmatpush1.msra.mxu0 0.0
        %3523 = vmatprep.subr.mxu0 0.0
        %3524 = vmatpush1.msra.mxu0 0.0
        %3525 = vmatprep.subr.mxu0 0.0
        %3526 = vmatpush1.msra.mxu0 0.0
        %3527 = vmatprep.subr.mxu0 0.0
        %3528 = vmatpush1.msra.mxu0 0.0
        %3529 = vmatprep.subr.mxu0 0.0
        %3530 = vmatpush1.msra.mxu0 0.0
        %3531 = vmatprep.subr.mxu0 0.0
        %3532 = vmatpush1.msra.mxu0 0.0
        %3533 = vmatprep.subr.mxu0 0.0
        %3534 = vmatpush1.msra.mxu0 0.0
        %3535 = vmatprep.subr.mxu0 0.0
        %3536 = vmatpush1.msra.mxu0 0.0
        %3537 = vmatprep.subr.mxu0 0.0
        %3538 = vmatpush1.msra.mxu0 0.0
        %3539 = vmatprep.subr.mxu0 %v3472
        %3540 = vmatpush1.msra.mxu0 %v3471
        %3541 = vmatprep.subr.mxu0 %v3468
        %3542 = vmatpush1.msra.mxu0 %v3467
        %3543 = vmatprep.subr.mxu0 %v3464
        %3544 = vmatpush1.msra.mxu0 %v3463
        %3545 = vmatprep.subr.mxu0 %v3460
        %3546 = vmatpush1.msra.mxu0 %v3459
        %3547 = vmatprep.subr.mxu0 0.0
        %3548 = vmatpush2.msra.mxu0 0.0
        %3549 = vmatprep.subr.mxu0 0.0
        %3550 = vmatpush2.msra.mxu0 0.0
        %3551 = vmatprep.subr.mxu0 0.0
        %3552 = vmatpush2.msra.mxu0 0.0
        %3553 = vmatprep.subr.mxu0 0.0
        %3554 = vmatpush2.msra.mxu0 0.0
        %3555 = vmatprep.subr.mxu0 0.0
        %3556 = vmatpush2.msra.mxu0 0.0
        %3557 = vmatprep.subr.mxu0 0.0
        %3558 = vmatpush2.msra.mxu0 0.0
        %3559 = vmatprep.subr.mxu0 0.0
        %3560 = vmatpush2.msra.mxu0 0.0
        %3561 = vmatprep.subr.mxu0 0.0
        %3562 = vmatpush2.msra.mxu0 0.0
        %3563 = vmatprep.subr.mxu0 0.0
        %3564 = vmatpush2.msra.mxu0 0.0
        %3565 = vmatprep.subr.mxu0 0.0
        %3566 = vmatpush2.msra.mxu0 0.0
        %3567 = vmatprep.subr.mxu0 0.0
        %3568 = vmatpush2.msra.mxu0 0.0
        %3569 = vmatprep.subr.mxu0 0.0
        %3570 = vmatpush2.msra.mxu0 0.0
        %3571 = vmatprep.subr.mxu0 0.0
        %3572 = vmatpush2.msra.mxu0 0.0
        %3573 = vmatprep.subr.mxu0 0.0
        %3574 = vmatpush2.msra.mxu0 0.0
        %3575 = vmatprep.subr.mxu0 0.0
        %3576 = vmatpush2.msra.mxu0 0.0
        %3577 = vmatprep.subr.mxu0 0.0
        %3578 = vmatpush2.msra.mxu0 0.0
        %3579 = vmatprep.mubr.f32.mxu0 0.0
        %3580 = vmatmul.mubr.f32.gmra.mxu0 %v3504
        %v3581 = vpop.f32.mrf.mxu0
        %v3582 = vadd.f32 %v3486, %v3581
        %v3583 = vpop.f32.mrf.mxu0
        %v3584 = vadd.f32 %v3486, %v3583
        %3585 = vmatprep.mubr.f32.mxu0 0.0
        %3586 = vmatmul.mubr.f32.gmra.mxu0 %v3507
        %v3587 = vpop.f32.mrf.mxu0
        %v3588 = vadd.f32 %v3491, %v3587
        %v3589 = vpop.f32.mrf.mxu0
        %v3590 = vadd.f32 %v3491, %v3589
        %3591 = vmatprep.mubr.f32.mxu0 0.0
        %3592 = vmatmul.mubr.f32.gmra.mxu0 %v3510
        %v3593 = vpop.f32.mrf.mxu0
        %v3594 = vadd.f32 %v3496, %v3593
        %v3595 = vpop.f32.mrf.mxu0
        %v3596 = vadd.f32 %v3496, %v3595
        %3597 = vmatprep.mubr.f32.mxu0 0.0
        %3598 = vmatmul.mubr.f32.gmra.mxu0 %v3513
        %v3599 = vpop.f32.mrf.mxu0
        %v3600 = vadd.f32 %v3501, %v3599
        %v3601 = vpop.f32.mrf.mxu0
        %v3602 = vadd.f32 %v3501, %v3601
        %3603 = vdwg.mxu0
        %3604 = vmatprep.subr.mxu0 0.0
        %3605 = vmatpush1.msra.mxu0 0.0
        %3606 = vmatprep.subr.mxu0 0.0
        %3607 = vmatpush1.msra.mxu0 0.0
        %3608 = vmatprep.subr.mxu0 0.0
        %3609 = vmatpush1.msra.mxu0 0.0
        %3610 = vmatprep.subr.mxu0 0.0
        %3611 = vmatpush1.msra.mxu0 0.0
        %3612 = vmatprep.subr.mxu0 0.0
        %3613 = vmatpush1.msra.mxu0 0.0
        %3614 = vmatprep.subr.mxu0 0.0
        %3615 = vmatpush1.msra.mxu0 0.0
        %3616 = vmatprep.subr.mxu0 0.0
        %3617 = vmatpush1.msra.mxu0 0.0
        %3618 = vmatprep.subr.mxu0 0.0
        %3619 = vmatpush1.msra.mxu0 0.0
        %3620 = vmatprep.subr.mxu0 0.0
        %3621 = vmatpush1.msra.mxu0 0.0
        %3622 = vmatprep.subr.mxu0 0.0
        %3623 = vmatpush1.msra.mxu0 0.0
        %3624 = vmatprep.subr.mxu0 0.0
        %3625 = vmatpush1.msra.mxu0 0.0
        %3626 = vmatprep.subr.mxu0 0.0
        %3627 = vmatpush1.msra.mxu0 0.0
        %3628 = vmatprep.subr.mxu0 %v3474
        %3629 = vmatpush1.msra.mxu0 %v3473
        %3630 = vmatprep.subr.mxu0 %v3470
        %3631 = vmatpush1.msra.mxu0 %v3469
        %3632 = vmatprep.subr.mxu0 %v3466
        %3633 = vmatpush1.msra.mxu0 %v3465
        %3634 = vmatprep.subr.mxu0 %v3462
        %3635 = vmatpush1.msra.mxu0 %v3461
        %3636 = vmatprep.subr.mxu0 0.0
        %3637 = vmatpush2.msra.mxu0 0.0
        %3638 = vmatprep.subr.mxu0 0.0
        %3639 = vmatpush2.msra.mxu0 0.0
        %3640 = vmatprep.subr.mxu0 0.0
        %3641 = vmatpush2.msra.mxu0 0.0
        %3642 = vmatprep.subr.mxu0 0.0
        %3643 = vmatpush2.msra.mxu0 0.0
        %3644 = vmatprep.subr.mxu0 0.0
        %3645 = vmatpush2.msra.mxu0 0.0
        %3646 = vmatprep.subr.mxu0 0.0
        %3647 = vmatpush2.msra.mxu0 0.0
        %3648 = vmatprep.subr.mxu0 0.0
        %3649 = vmatpush2.msra.mxu0 0.0
        %3650 = vmatprep.subr.mxu0 0.0
        %3651 = vmatpush2.msra.mxu0 0.0
        %3652 = vmatprep.subr.mxu0 0.0
        %3653 = vmatpush2.msra.mxu0 0.0
        %3654 = vmatprep.subr.mxu0 0.0
        %3655 = vmatpush2.msra.mxu0 0.0
        %3656 = vmatprep.subr.mxu0 0.0
        %3657 = vmatpush2.msra.mxu0 0.0
        %3658 = vmatprep.subr.mxu0 0.0
        %3659 = vmatpush2.msra.mxu0 0.0
        %3660 = vmatprep.subr.mxu0 0.0
        %3661 = vmatpush2.msra.mxu0 0.0
        %3662 = vmatprep.subr.mxu0 0.0
        %3663 = vmatpush2.msra.mxu0 0.0
        %3664 = vmatprep.subr.mxu0 0.0
        %3665 = vmatpush2.msra.mxu0 0.0
        %3666 = vmatprep.subr.mxu0 0.0
        %3667 = vmatpush2.msra.mxu0 0.0
        %3668 = vmatprep.mubr.f32.mxu0 0.0
        %3669 = vmatmul.mubr.f32.gmra.mxu0 %v3504
        %v3670 = vpop.f32.mrf.mxu0
        %v3671 = vadd.f32 %v3486, %v3670
        %v3672 = vpop.f32.mrf.mxu0
        %v3673 = vadd.f32 %v3486, %v3672
        %3674 = vmatprep.mubr.f32.mxu0 0.0
        %3675 = vmatmul.mubr.f32.gmra.mxu0 %v3507
        %v3676 = vpop.f32.mrf.mxu0
        %v3677 = vadd.f32 %v3491, %v3676
        %v3678 = vpop.f32.mrf.mxu0
        %v3679 = vadd.f32 %v3491, %v3678
        %3680 = vmatprep.mubr.f32.mxu0 0.0
        %3681 = vmatmul.mubr.f32.gmra.mxu0 %v3510
        %v3682 = vpop.f32.mrf.mxu0
        %v3683 = vadd.f32 %v3496, %v3682
        %v3684 = vpop.f32.mrf.mxu0
        %v3685 = vadd.f32 %v3496, %v3684
        %3686 = vmatprep.mubr.f32.mxu0 0.0
        %3687 = vmatmul.mubr.f32.gmra.mxu0 %v3513
        %v3688 = vpop.f32.mrf.mxu0
        %v3689 = vadd.f32 %v3501, %v3688
        %v3690 = vpop.f32.mrf.mxu0
        %v3691 = vadd.f32 %v3501, %v3690
        %3692 = vdwg.mxu0
        %v3693 = vmax.f32 %v3582, 0.0
        %v3694 = vmax.f32 %v3584, 0.0
        %v3695 = vmax.f32 %v3671, 0.0
        %v3696 = vmax.f32 %v3673, 0.0
        %v3697 = vmax.f32 %v3588, 0.0
        %v3698 = vmax.f32 %v3590, 0.0
        %v3699 = vmax.f32 %v3677, 0.0
        %v3700 = vmax.f32 %v3679, 0.0
        %v3701 = vmax.f32 %v3594, 0.0
        %v3702 = vmax.f32 %v3596, 0.0
        %v3703 = vmax.f32 %v3683, 0.0
        %v3704 = vmax.f32 %v3685, 0.0
        %v3705 = vmax.f32 %v3600, 0.0
        %v3706 = vmax.f32 %v3602, 0.0
        %v3707 = vmax.f32 %v3689, 0.0
        %v3708 = vmax.f32 %v3691, 0.0
        %v3709 = vld [vmem:[%s1458] sm:$0xff]
        %v3710 = vld [vmem:[%s1458 + $0x8] sm:$0xff]
        %v3711 = vld [vmem:[%s1458 + $0x10] sm:$0xff]
        %v3712 = vld [vmem:[%s1458 + $0x18] sm:$0xff]
        %v3713 = vld [vmem:[%s1463] sm:$0xff]
        %v3714 = vld [vmem:[%s1463 + $0x8] sm:$0xff]
        %v3715 = vld [vmem:[%s1463 + $0x10] sm:$0xff]
        %v3716 = vld [vmem:[%s1463 + $0x18] sm:$0xff]
        %3718 = vset.pattern.permute.xlu0 0
        %3719 = vperm.xlu0 %3718, %v3713
        %v3720 = vpop.permute.xlu0 %3719
        %3723 = vset.pattern.permute.xlu0 0
        %3724 = vperm.xlu0 %3723, %v3714
        %v3725 = vpop.permute.xlu0 %3724
        %3728 = vset.pattern.permute.xlu0 0
        %3729 = vperm.xlu0 %3728, %v3715
        %v3730 = vpop.permute.xlu0 %3729
        %3733 = vset.pattern.permute.xlu0 0
        %3734 = vperm.xlu0 %3733, %v3716
        %v3735 = vpop.permute.xlu0 %3734
        %v3738 = vsel %vm291, %v3709, 0
        %v3741 = vsel %vm291, %v3710, 0
        %v3744 = vsel %vm291, %v3711, 0
        %v3747 = vsel %vm291, %v3712, 0
        %3749 = vmatprep.subr.mxu0 0.0
        %3750 = vmatpush1.msra.mxu0 0.0
        %3751 = vmatprep.subr.mxu0 0.0
        %3752 = vmatpush1.msra.mxu0 0.0
        %3753 = vmatprep.subr.mxu0 0.0
        %3754 = vmatpush1.msra.mxu0 0.0
        %3755 = vmatprep.subr.mxu0 0.0
        %3756 = vmatpush1.msra.mxu0 0.0
        %3757 = vmatprep.subr.mxu0 0.0
        %3758 = vmatpush1.msra.mxu0 0.0
        %3759 = vmatprep.subr.mxu0 0.0
        %3760 = vmatpush1.msra.mxu0 0.0
        %3761 = vmatprep.subr.mxu0 0.0
        %3762 = vmatpush1.msra.mxu0 0.0
        %3763 = vmatprep.subr.mxu0 0.0
        %3764 = vmatpush1.msra.mxu0 0.0
        %3765 = vmatprep.subr.mxu0 0.0
        %3766 = vmatpush1.msra.mxu0 0.0
        %3767 = vmatprep.subr.mxu0 0.0
        %3768 = vmatpush1.msra.mxu0 0.0
        %3769 = vmatprep.subr.mxu0 0.0
        %3770 = vmatpush1.msra.mxu0 0.0
        %3771 = vmatprep.subr.mxu0 0.0
        %3772 = vmatpush1.msra.mxu0 0.0
        %3773 = vmatprep.subr.mxu0 %v3706
        %3774 = vmatpush1.msra.mxu0 %v3705
        %3775 = vmatprep.subr.mxu0 %v3702
        %3776 = vmatpush1.msra.mxu0 %v3701
        %3777 = vmatprep.subr.mxu0 %v3698
        %3778 = vmatpush1.msra.mxu0 %v3697
        %3779 = vmatprep.subr.mxu0 %v3694
        %3780 = vmatpush1.msra.mxu0 %v3693
        %3781 = vmatprep.subr.mxu0 0.0
        %3782 = vmatpush2.msra.mxu0 0.0
        %3783 = vmatprep.subr.mxu0 0.0
        %3784 = vmatpush2.msra.mxu0 0.0
        %3785 = vmatprep.subr.mxu0 0.0
        %3786 = vmatpush2.msra.mxu0 0.0
        %3787 = vmatprep.subr.mxu0 0.0
        %3788 = vmatpush2.msra.mxu0 0.0
        %3789 = vmatprep.subr.mxu0 0.0
        %3790 = vmatpush2.msra.mxu0 0.0
        %3791 = vmatprep.subr.mxu0 0.0
        %3792 = vmatpush2.msra.mxu0 0.0
        %3793 = vmatprep.subr.mxu0 0.0
        %3794 = vmatpush2.msra.mxu0 0.0
        %3795 = vmatprep.subr.mxu0 0.0
        %3796 = vmatpush2.msra.mxu0 0.0
        %3797 = vmatprep.subr.mxu0 0.0
        %3798 = vmatpush2.msra.mxu0 0.0
        %3799 = vmatprep.subr.mxu0 0.0
        %3800 = vmatpush2.msra.mxu0 0.0
        %3801 = vmatprep.subr.mxu0 0.0
        %3802 = vmatpush2.msra.mxu0 0.0
        %3803 = vmatprep.subr.mxu0 0.0
        %3804 = vmatpush2.msra.mxu0 0.0
        %3805 = vmatprep.subr.mxu0 0.0
        %3806 = vmatpush2.msra.mxu0 0.0
        %3807 = vmatprep.subr.mxu0 0.0
        %3808 = vmatpush2.msra.mxu0 0.0
        %3809 = vmatprep.subr.mxu0 0.0
        %3810 = vmatpush2.msra.mxu0 0.0
        %3811 = vmatprep.subr.mxu0 0.0
        %3812 = vmatpush2.msra.mxu0 0.0
        %3813 = vmatprep.mubr.f32.mxu0 0.0
        %3814 = vmatmul.mubr.f32.gmra.mxu0 %v3738
        %v3815 = vpop.f32.mrf.mxu0
        %v3816 = vadd.f32 %v3720, %v3815
        %v3817 = vpop.f32.mrf.mxu0
        %v3818 = vadd.f32 %v3720, %v3817
        %3819 = vmatprep.mubr.f32.mxu0 0.0
        %3820 = vmatmul.mubr.f32.gmra.mxu0 %v3741
        %v3821 = vpop.f32.mrf.mxu0
        %v3822 = vadd.f32 %v3725, %v3821
        %v3823 = vpop.f32.mrf.mxu0
        %v3824 = vadd.f32 %v3725, %v3823
        %3825 = vmatprep.mubr.f32.mxu0 0.0
        %3826 = vmatmul.mubr.f32.gmra.mxu0 %v3744
        %v3827 = vpop.f32.mrf.mxu0
        %v3828 = vadd.f32 %v3730, %v3827
        %v3829 = vpop.f32.mrf.mxu0
        %v3830 = vadd.f32 %v3730, %v3829
        %3831 = vmatprep.mubr.f32.mxu0 0.0
        %3832 = vmatmul.mubr.f32.gmra.mxu0 %v3747
        %v3833 = vpop.f32.mrf.mxu0
        %v3834 = vadd.f32 %v3735, %v3833
        %v3835 = vpop.f32.mrf.mxu0
        %v3836 = vadd.f32 %v3735, %v3835
        %3837 = vdwg.mxu0
        %3838 = vmatprep.subr.mxu0 0.0
        %3839 = vmatpush1.msra.mxu0 0.0
        %3840 = vmatprep.subr.mxu0 0.0
        %3841 = vmatpush1.msra.mxu0 0.0
        %3842 = vmatprep.subr.mxu0 0.0
        %3843 = vmatpush1.msra.mxu0 0.0
        %3844 = vmatprep.subr.mxu0 0.0
        %3845 = vmatpush1.msra.mxu0 0.0
        %3846 = vmatprep.subr.mxu0 0.0
        %3847 = vmatpush1.msra.mxu0 0.0
        %3848 = vmatprep.subr.mxu0 0.0
        %3849 = vmatpush1.msra.mxu0 0.0
        %3850 = vmatprep.subr.mxu0 0.0
        %3851 = vmatpush1.msra.mxu0 0.0
        %3852 = vmatprep.subr.mxu0 0.0
        %3853 = vmatpush1.msra.mxu0 0.0
        %3854 = vmatprep.subr.mxu0 0.0
        %3855 = vmatpush1.msra.mxu0 0.0
        %3856 = vmatprep.subr.mxu0 0.0
        %3857 = vmatpush1.msra.mxu0 0.0
        %3858 = vmatprep.subr.mxu0 0.0
        %3859 = vmatpush1.msra.mxu0 0.0
        %3860 = vmatprep.subr.mxu0 0.0
        %3861 = vmatpush1.msra.mxu0 0.0
        %3862 = vmatprep.subr.mxu0 %v3708
        %3863 = vmatpush1.msra.mxu0 %v3707
        %3864 = vmatprep.subr.mxu0 %v3704
        %3865 = vmatpush1.msra.mxu0 %v3703
        %3866 = vmatprep.subr.mxu0 %v3700
        %3867 = vmatpush1.msra.mxu0 %v3699
        %3868 = vmatprep.subr.mxu0 %v3696
        %3869 = vmatpush1.msra.mxu0 %v3695
        %3870 = vmatprep.subr.mxu0 0.0
        %3871 = vmatpush2.msra.mxu0 0.0
        %3872 = vmatprep.subr.mxu0 0.0
        %3873 = vmatpush2.msra.mxu0 0.0
        %3874 = vmatprep.subr.mxu0 0.0
        %3875 = vmatpush2.msra.mxu0 0.0
        %3876 = vmatprep.subr.mxu0 0.0
        %3877 = vmatpush2.msra.mxu0 0.0
        %3878 = vmatprep.subr.mxu0 0.0
        %3879 = vmatpush2.msra.mxu0 0.0
        %3880 = vmatprep.subr.mxu0 0.0
        %3881 = vmatpush2.msra.mxu0 0.0
        %3882 = vmatprep.subr.mxu0 0.0
        %3883 = vmatpush2.msra.mxu0 0.0
        %3884 = vmatprep.subr.mxu0 0.0
        %3885 = vmatpush2.msra.mxu0 0.0
        %3886 = vmatprep.subr.mxu0 0.0
        %3887 = vmatpush2.msra.mxu0 0.0
        %3888 = vmatprep.subr.mxu0 0.0
        %3889 = vmatpush2.msra.mxu0 0.0
        %3890 = vmatprep.subr.mxu0 0.0
        %3891 = vmatpush2.msra.mxu0 0.0
        %3892 = vmatprep.subr.mxu0 0.0
        %3893 = vmatpush2.msra.mxu0 0.0
        %3894 = vmatprep.subr.mxu0 0.0
        %3895 = vmatpush2.msra.mxu0 0.0
        %3896 = vmatprep.subr.mxu0 0.0
        %3897 = vmatpush2.msra.mxu0 0.0
        %3898 = vmatprep.subr.mxu0 0.0
        %3899 = vmatpush2.msra.mxu0 0.0
        %3900 = vmatprep.subr.mxu0 0.0
        %3901 = vmatpush2.msra.mxu0 0.0
        %3902 = vmatprep.mubr.f32.mxu0 0.0
        %3903 = vmatmul.mubr.f32.gmra.mxu0 %v3738
        %v3904 = vpop.f32.mrf.mxu0
        %v3905 = vadd.f32 %v3720, %v3904
        %v3906 = vpop.f32.mrf.mxu0
        %v3907 = vadd.f32 %v3720, %v3906
        %3908 = vmatprep.mubr.f32.mxu0 0.0
        %3909 = vmatmul.mubr.f32.gmra.mxu0 %v3741
        %v3910 = vpop.f32.mrf.mxu0
        %v3911 = vadd.f32 %v3725, %v3910
        %v3912 = vpop.f32.mrf.mxu0
        %v3913 = vadd.f32 %v3725, %v3912
        %3914 = vmatprep.mubr.f32.mxu0 0.0
        %3915 = vmatmul.mubr.f32.gmra.mxu0 %v3744
        %v3916 = vpop.f32.mrf.mxu0
        %v3917 = vadd.f32 %v3730, %v3916
        %v3918 = vpop.f32.mrf.mxu0
        %v3919 = vadd.f32 %v3730, %v3918
        %3920 = vmatprep.mubr.f32.mxu0 0.0
        %3921 = vmatmul.mubr.f32.gmra.mxu0 %v3747
        %v3922 = vpop.f32.mrf.mxu0
        %v3923 = vadd.f32 %v3735, %v3922
        %v3924 = vpop.f32.mrf.mxu0
        %v3925 = vadd.f32 %v3735, %v3924
        %3926 = vdwg.mxu0
        %v3927 = vmax.f32 %v3816, 0.0
        %v3928 = vmax.f32 %v3818, 0.0
        %v3929 = vmax.f32 %v3905, 0.0
        %v3930 = vmax.f32 %v3907, 0.0
        %v3931 = vmax.f32 %v3822, 0.0
        %v3932 = vmax.f32 %v3824, 0.0
        %v3933 = vmax.f32 %v3911, 0.0
        %v3934 = vmax.f32 %v3913, 0.0
        %v3935 = vmax.f32 %v3828, 0.0
        %v3936 = vmax.f32 %v3830, 0.0
        %v3937 = vmax.f32 %v3917, 0.0
        %v3938 = vmax.f32 %v3919, 0.0
        %v3939 = vmax.f32 %v3834, 0.0
        %v3940 = vmax.f32 %v3836, 0.0
        %v3941 = vmax.f32 %v3923, 0.0
        %v3942 = vmax.f32 %v3925, 0.0
        %v3943 = vadd.f32 %v3225, %v3927
        %v3944 = vadd.f32 %v3226, %v3928
        %v3945 = vadd.f32 %v3227, %v3929
        %v3946 = vadd.f32 %v3228, %v3930
        %v3947 = vadd.f32 %v3229, %v3931
        %v3948 = vadd.f32 %v3230, %v3932
        %v3949 = vadd.f32 %v3231, %v3933
        %v3950 = vadd.f32 %v3232, %v3934
        %v3951 = vadd.f32 %v3233, %v3935
        %v3952 = vadd.f32 %v3234, %v3936
        %v3953 = vadd.f32 %v3235, %v3937
        %v3954 = vadd.f32 %v3236, %v3938
        %v3955 = vadd.f32 %v3237, %v3939
        %v3956 = vadd.f32 %v3238, %v3940
        %v3957 = vadd.f32 %v3239, %v3941
        %v3958 = vadd.f32 %v3240, %v3942
        %v3959 = vld [vmem:[%s1710] sm:$0xff]
        %v3960 = vld [vmem:[%s1710 + $0x8] sm:$0xff]
        %v3961 = vld [vmem:[%s1710 + $0x10] sm:$0xff]
        %v3962 = vld [vmem:[%s1710 + $0x18] sm:$0xff]
        %v3963 = vld [vmem:[%s1715] sm:$0xff]
        %v3964 = vld [vmem:[%s1715 + $0x8] sm:$0xff]
        %v3965 = vld [vmem:[%s1715 + $0x10] sm:$0xff]
        %v3966 = vld [vmem:[%s1715 + $0x18] sm:$0xff]
        %3968 = vset.pattern.permute.xlu0 0
        %3969 = vperm.xlu0 %3968, %v3963
        %v3970 = vpop.permute.xlu0 %3969
        %3973 = vset.pattern.permute.xlu0 0
        %3974 = vperm.xlu0 %3973, %v3964
        %v3975 = vpop.permute.xlu0 %3974
        %3978 = vset.pattern.permute.xlu0 0
        %3979 = vperm.xlu0 %3978, %v3965
        %v3980 = vpop.permute.xlu0 %3979
        %3983 = vset.pattern.permute.xlu0 0
        %3984 = vperm.xlu0 %3983, %v3966
        %v3985 = vpop.permute.xlu0 %3984
        %v3988 = vsel %vm291, %v3959, 0
        %v3991 = vsel %vm291, %v3960, 0
        %v3994 = vsel %vm291, %v3961, 0
        %v3997 = vsel %vm291, %v3962, 0
        %3999 = vmatprep.subr.mxu0 0.0
        %4000 = vmatpush1.msra.mxu0 0.0
        %4001 = vmatprep.subr.mxu0 0.0
        %4002 = vmatpush1.msra.mxu0 0.0
        %4003 = vmatprep.subr.mxu0 0.0
        %4004 = vmatpush1.msra.mxu0 0.0
        %4005 = vmatprep.subr.mxu0 0.0
        %4006 = vmatpush1.msra.mxu0 0.0
        %4007 = vmatprep.subr.mxu0 0.0
        %4008 = vmatpush1.msra.mxu0 0.0
        %4009 = vmatprep.subr.mxu0 0.0
        %4010 = vmatpush1.msra.mxu0 0.0
        %4011 = vmatprep.subr.mxu0 0.0
        %4012 = vmatpush1.msra.mxu0 0.0
        %4013 = vmatprep.subr.mxu0 0.0
        %4014 = vmatpush1.msra.mxu0 0.0
        %4015 = vmatprep.subr.mxu0 0.0
        %4016 = vmatpush1.msra.mxu0 0.0
        %4017 = vmatprep.subr.mxu0 0.0
        %4018 = vmatpush1.msra.mxu0 0.0
        %4019 = vmatprep.subr.mxu0 0.0
        %4020 = vmatpush1.msra.mxu0 0.0
        %4021 = vmatprep.subr.mxu0 0.0
        %4022 = vmatpush1.msra.mxu0 0.0
        %4023 = vmatprep.subr.mxu0 %v3956
        %4024 = vmatpush1.msra.mxu0 %v3955
        %4025 = vmatprep.subr.mxu0 %v3952
        %4026 = vmatpush1.msra.mxu0 %v3951
        %4027 = vmatprep.subr.mxu0 %v3948
        %4028 = vmatpush1.msra.mxu0 %v3947
        %4029 = vmatprep.subr.mxu0 %v3944
        %4030 = vmatpush1.msra.mxu0 %v3943
        %4031 = vmatprep.subr.mxu0 0.0
        %4032 = vmatpush2.msra.mxu0 0.0
        %4033 = vmatprep.subr.mxu0 0.0
        %4034 = vmatpush2.msra.mxu0 0.0
        %4035 = vmatprep.subr.mxu0 0.0
        %4036 = vmatpush2.msra.mxu0 0.0
        %4037 = vmatprep.subr.mxu0 0.0
        %4038 = vmatpush2.msra.mxu0 0.0
        %4039 = vmatprep.subr.mxu0 0.0
        %4040 = vmatpush2.msra.mxu0 0.0
        %4041 = vmatprep.subr.mxu0 0.0
        %4042 = vmatpush2.msra.mxu0 0.0
        %4043 = vmatprep.subr.mxu0 0.0
        %4044 = vmatpush2.msra.mxu0 0.0
        %4045 = vmatprep.subr.mxu0 0.0
        %4046 = vmatpush2.msra.mxu0 0.0
        %4047 = vmatprep.subr.mxu0 0.0
        %4048 = vmatpush2.msra.mxu0 0.0
        %4049 = vmatprep.subr.mxu0 0.0
        %4050 = vmatpush2.msra.mxu0 0.0
        %4051 = vmatprep.subr.mxu0 0.0
        %4052 = vmatpush2.msra.mxu0 0.0
        %4053 = vmatprep.subr.mxu0 0.0
        %4054 = vmatpush2.msra.mxu0 0.0
        %4055 = vmatprep.subr.mxu0 0.0
        %4056 = vmatpush2.msra.mxu0 0.0
        %4057 = vmatprep.subr.mxu0 0.0
        %4058 = vmatpush2.msra.mxu0 0.0
        %4059 = vmatprep.subr.mxu0 0.0
        %4060 = vmatpush2.msra.mxu0 0.0
        %4061 = vmatprep.subr.mxu0 0.0
        %4062 = vmatpush2.msra.mxu0 0.0
        %4063 = vmatprep.mubr.f32.mxu0 0.0
        %4064 = vmatmul.mubr.f32.gmra.mxu0 %v3988
        %v4065 = vpop.f32.mrf.mxu0
        %v4066 = vadd.f32 %v3970, %v4065
        %v4067 = vpop.f32.mrf.mxu0
        %v4068 = vadd.f32 %v3970, %v4067
        %4069 = vmatprep.mubr.f32.mxu0 0.0
        %4070 = vmatmul.mubr.f32.gmra.mxu0 %v3991
        %v4071 = vpop.f32.mrf.mxu0
        %v4072 = vadd.f32 %v3975, %v4071
        %v4073 = vpop.f32.mrf.mxu0
        %v4074 = vadd.f32 %v3975, %v4073
        %4075 = vmatprep.mubr.f32.mxu0 0.0
        %4076 = vmatmul.mubr.f32.gmra.mxu0 %v3994
        %v4077 = vpop.f32.mrf.mxu0
        %v4078 = vadd.f32 %v3980, %v4077
        %v4079 = vpop.f32.mrf.mxu0
        %v4080 = vadd.f32 %v3980, %v4079
        %4081 = vmatprep.mubr.f32.mxu0 0.0
        %4082 = vmatmul.mubr.f32.gmra.mxu0 %v3997
        %v4083 = vpop.f32.mrf.mxu0
        %v4084 = vadd.f32 %v3985, %v4083
        %v4085 = vpop.f32.mrf.mxu0
        %v4086 = vadd.f32 %v3985, %v4085
        %4087 = vdwg.mxu0
        %4088 = vmatprep.subr.mxu0 0.0
        %4089 = vmatpush1.msra.mxu0 0.0
        %4090 = vmatprep.subr.mxu0 0.0
        %4091 = vmatpush1.msra.mxu0 0.0
        %4092 = vmatprep.subr.mxu0 0.0
        %4093 = vmatpush1.msra.mxu0 0.0
        %4094 = vmatprep.subr.mxu0 0.0
        %4095 = vmatpush1.msra.mxu0 0.0
        %4096 = vmatprep.subr.mxu0 0.0
        %4097 = vmatpush1.msra.mxu0 0.0
        %4098 = vmatprep.subr.mxu0 0.0
        %4099 = vmatpush1.msra.mxu0 0.0
        %4100 = vmatprep.subr.mxu0 0.0
        %4101 = vmatpush1.msra.mxu0 0.0
        %4102 = vmatprep.subr.mxu0 0.0
        %4103 = vmatpush1.msra.mxu0 0.0
        %4104 = vmatprep.subr.mxu0 0.0
        %4105 = vmatpush1.msra.mxu0 0.0
        %4106 = vmatprep.subr.mxu0 0.0
        %4107 = vmatpush1.msra.mxu0 0.0
        %4108 = vmatprep.subr.mxu0 0.0
        %4109 = vmatpush1.msra.mxu0 0.0
        %4110 = vmatprep.subr.mxu0 0.0
        %4111 = vmatpush1.msra.mxu0 0.0
        %4112 = vmatprep.subr.mxu0 %v3958
        %4113 = vmatpush1.msra.mxu0 %v3957
        %4114 = vmatprep.subr.mxu0 %v3954
        %4115 = vmatpush1.msra.mxu0 %v3953
        %4116 = vmatprep.subr.mxu0 %v3950
        %4117 = vmatpush1.msra.mxu0 %v3949
        %4118 = vmatprep.subr.mxu0 %v3946
        %4119 = vmatpush1.msra.mxu0 %v3945
        %4120 = vmatprep.subr.mxu0 0.0
        %4121 = vmatpush2.msra.mxu0 0.0
        %4122 = vmatprep.subr.mxu0 0.0
        %4123 = vmatpush2.msra.mxu0 0.0
        %4124 = vmatprep.subr.mxu0 0.0
        %4125 = vmatpush2.msra.mxu0 0.0
        %4126 = vmatprep.subr.mxu0 0.0
        %4127 = vmatpush2.msra.mxu0 0.0
        %4128 = vmatprep.subr.mxu0 0.0
        %4129 = vmatpush2.msra.mxu0 0.0
        %4130 = vmatprep.subr.mxu0 0.0
        %4131 = vmatpush2.msra.mxu0 0.0
        %4132 = vmatprep.subr.mxu0 0.0
        %4133 = vmatpush2.msra.mxu0 0.0
        %4134 = vmatprep.subr.mxu0 0.0
        %4135 = vmatpush2.msra.mxu0 0.0
        %4136 = vmatprep.subr.mxu0 0.0
        %4137 = vmatpush2.msra.mxu0 0.0
        %4138 = vmatprep.subr.mxu0 0.0
        %4139 = vmatpush2.msra.mxu0 0.0
        %4140 = vmatprep.subr.mxu0 0.0
        %4141 = vmatpush2.msra.mxu0 0.0
        %4142 = vmatprep.subr.mxu0 0.0
        %4143 = vmatpush2.msra.mxu0 0.0
        %4144 = vmatprep.subr.mxu0 0.0
        %4145 = vmatpush2.msra.mxu0 0.0
        %4146 = vmatprep.subr.mxu0 0.0
        %4147 = vmatpush2.msra.mxu0 0.0
        %4148 = vmatprep.subr.mxu0 0.0
        %4149 = vmatpush2.msra.mxu0 0.0
        %4150 = vmatprep.subr.mxu0 0.0
        %4151 = vmatpush2.msra.mxu0 0.0
        %4152 = vmatprep.mubr.f32.mxu0 0.0
        %4153 = vmatmul.mubr.f32.gmra.mxu0 %v3988
        %v4154 = vpop.f32.mrf.mxu0
        %v4155 = vadd.f32 %v3970, %v4154
        %v4156 = vpop.f32.mrf.mxu0
        %v4157 = vadd.f32 %v3970, %v4156
        %4158 = vmatprep.mubr.f32.mxu0 0.0
        %4159 = vmatmul.mubr.f32.gmra.mxu0 %v3991
        %v4160 = vpop.f32.mrf.mxu0
        %v4161 = vadd.f32 %v3975, %v4160
        %v4162 = vpop.f32.mrf.mxu0
        %v4163 = vadd.f32 %v3975, %v4162
        %4164 = vmatprep.mubr.f32.mxu0 0.0
        %4165 = vmatmul.mubr.f32.gmra.mxu0 %v3994
        %v4166 = vpop.f32.mrf.mxu0
        %v4167 = vadd.f32 %v3980, %v4166
        %v4168 = vpop.f32.mrf.mxu0
        %v4169 = vadd.f32 %v3980, %v4168
        %4170 = vmatprep.mubr.f32.mxu0 0.0
        %4171 = vmatmul.mubr.f32.gmra.mxu0 %v3997
        %v4172 = vpop.f32.mrf.mxu0
        %v4173 = vadd.f32 %v3985, %v4172
        %v4174 = vpop.f32.mrf.mxu0
        %v4175 = vadd.f32 %v3985, %v4174
        %4176 = vdwg.mxu0
        %v4177 = vmax.f32 %v4066, 0.0
        %v4178 = vmax.f32 %v4068, 0.0
        %v4179 = vmax.f32 %v4155, 0.0
        %v4180 = vmax.f32 %v4157, 0.0
        %v4181 = vmax.f32 %v4072, 0.0
        %v4182 = vmax.f32 %v4074, 0.0
        %v4183 = vmax.f32 %v4161, 0.0
        %v4184 = vmax.f32 %v4163, 0.0
        %v4185 = vmax.f32 %v4078, 0.0
        %v4186 = vmax.f32 %v4080, 0.0
        %v4187 = vmax.f32 %v4167, 0.0
        %v4188 = vmax.f32 %v4169, 0.0
        %v4189 = vmax.f32 %v4084, 0.0
        %v4190 = vmax.f32 %v4086, 0.0
        %v4191 = vmax.f32 %v4173, 0.0
        %v4192 = vmax.f32 %v4175, 0.0
        %v4193 = vld [vmem:[%s1946] sm:$0xff]
        %v4194 = vld [vmem:[%s1946 + $0x8] sm:$0xff]
        %v4195 = vld [vmem:[%s1946 + $0x10] sm:$0xff]
        %v4196 = vld [vmem:[%s1946 + $0x18] sm:$0xff]
        %v4197 = vld [vmem:[%s1951] sm:$0xff]
        %v4198 = vld [vmem:[%s1951 + $0x8] sm:$0xff]
        %v4199 = vld [vmem:[%s1951 + $0x10] sm:$0xff]
        %v4200 = vld [vmem:[%s1951 + $0x18] sm:$0xff]
        %4202 = vset.pattern.permute.xlu0 0
        %4203 = vperm.xlu0 %4202, %v4197
        %v4204 = vpop.permute.xlu0 %4203
        %4207 = vset.pattern.permute.xlu0 0
        %4208 = vperm.xlu0 %4207, %v4198
        %v4209 = vpop.permute.xlu0 %4208
        %4212 = vset.pattern.permute.xlu0 0
        %4213 = vperm.xlu0 %4212, %v4199
        %v4214 = vpop.permute.xlu0 %4213
        %4217 = vset.pattern.permute.xlu0 0
        %4218 = vperm.xlu0 %4217, %v4200
        %v4219 = vpop.permute.xlu0 %4218
        %v4222 = vsel %vm291, %v4193, 0
        %v4225 = vsel %vm291, %v4194, 0
        %v4228 = vsel %vm291, %v4195, 0
        %v4231 = vsel %vm291, %v4196, 0
        %4233 = vmatprep.subr.mxu0 0.0
        %4234 = vmatpush1.msra.mxu0 0.0
        %4235 = vmatprep.subr.mxu0 0.0
        %4236 = vmatpush1.msra.mxu0 0.0
        %4237 = vmatprep.subr.mxu0 0.0
        %4238 = vmatpush1.msra.mxu0 0.0
        %4239 = vmatprep.subr.mxu0 0.0
        %4240 = vmatpush1.msra.mxu0 0.0
        %4241 = vmatprep.subr.mxu0 0.0
        %4242 = vmatpush1.msra.mxu0 0.0
        %4243 = vmatprep.subr.mxu0 0.0
        %4244 = vmatpush1.msra.mxu0 0.0
        %4245 = vmatprep.subr.mxu0 0.0
        %4246 = vmatpush1.msra.mxu0 0.0
        %4247 = vmatprep.subr.mxu0 0.0
        %4248 = vmatpush1.msra.mxu0 0.0
        %4249 = vmatprep.subr.mxu0 0.0
        %4250 = vmatpush1.msra.mxu0 0.0
        %4251 = vmatprep.subr.mxu0 0.0
        %4252 = vmatpush1.msra.mxu0 0.0
        %4253 = vmatprep.subr.mxu0 0.0
        %4254 = vmatpush1.msra.mxu0 0.0
        %4255 = vmatprep.subr.mxu0 0.0
        %4256 = vmatpush1.msra.mxu0 0.0
        %4257 = vmatprep.subr.mxu0 %v4190
        %4258 = vmatpush1.msra.mxu0 %v4189
        %4259 = vmatprep.subr.mxu0 %v4186
        %4260 = vmatpush1.msra.mxu0 %v4185
        %4261 = vmatprep.subr.mxu0 %v4182
        %4262 = vmatpush1.msra.mxu0 %v4181
        %4263 = vmatprep.subr.mxu0 %v4178
        %4264 = vmatpush1.msra.mxu0 %v4177
        %4265 = vmatprep.subr.mxu0 0.0
        %4266 = vmatpush2.msra.mxu0 0.0
        %4267 = vmatprep.subr.mxu0 0.0
        %4268 = vmatpush2.msra.mxu0 0.0
        %4269 = vmatprep.subr.mxu0 0.0
        %4270 = vmatpush2.msra.mxu0 0.0
        %4271 = vmatprep.subr.mxu0 0.0
        %4272 = vmatpush2.msra.mxu0 0.0
        %4273 = vmatprep.subr.mxu0 0.0
        %4274 = vmatpush2.msra.mxu0 0.0
        %4275 = vmatprep.subr.mxu0 0.0
        %4276 = vmatpush2.msra.mxu0 0.0
        %4277 = vmatprep.subr.mxu0 0.0
        %4278 = vmatpush2.msra.mxu0 0.0
        %4279 = vmatprep.subr.mxu0 0.0
        %4280 = vmatpush2.msra.mxu0 0.0
        %4281 = vmatprep.subr.mxu0 0.0
        %4282 = vmatpush2.msra.mxu0 0.0
        %4283 = vmatprep.subr.mxu0 0.0
        %4284 = vmatpush2.msra.mxu0 0.0
        %4285 = vmatprep.subr.mxu0 0.0
        %4286 = vmatpush2.msra.mxu0 0.0
        %4287 = vmatprep.subr.mxu0 0.0
        %4288 = vmatpush2.msra.mxu0 0.0
        %4289 = vmatprep.subr.mxu0 0.0
        %4290 = vmatpush2.msra.mxu0 0.0
        %4291 = vmatprep.subr.mxu0 0.0
        %4292 = vmatpush2.msra.mxu0 0.0
        %4293 = vmatprep.subr.mxu0 0.0
        %4294 = vmatpush2.msra.mxu0 0.0
        %4295 = vmatprep.subr.mxu0 0.0
        %4296 = vmatpush2.msra.mxu0 0.0
        %4297 = vmatprep.mubr.f32.mxu0 0.0
        %4298 = vmatmul.mubr.f32.gmra.mxu0 %v4222
        %v4299 = vpop.f32.mrf.mxu0
        %v4300 = vadd.f32 %v4204, %v4299
        %v4301 = vpop.f32.mrf.mxu0
        %v4302 = vadd.f32 %v4204, %v4301
        %4303 = vmatprep.mubr.f32.mxu0 0.0
        %4304 = vmatmul.mubr.f32.gmra.mxu0 %v4225
        %v4305 = vpop.f32.mrf.mxu0
        %v4306 = vadd.f32 %v4209, %v4305
        %v4307 = vpop.f32.mrf.mxu0
        %v4308 = vadd.f32 %v4209, %v4307
        %4309 = vmatprep.mubr.f32.mxu0 0.0
        %4310 = vmatmul.mubr.f32.gmra.mxu0 %v4228
        %v4311 = vpop.f32.mrf.mxu0
        %v4312 = vadd.f32 %v4214, %v4311
        %v4313 = vpop.f32.mrf.mxu0
        %v4314 = vadd.f32 %v4214, %v4313
        %4315 = vmatprep.mubr.f32.mxu0 0.0
        %4316 = vmatmul.mubr.f32.gmra.mxu0 %v4231
        %v4317 = vpop.f32.mrf.mxu0
        %v4318 = vadd.f32 %v4219, %v4317
        %v4319 = vpop.f32.mrf.mxu0
        %v4320 = vadd.f32 %v4219, %v4319
        %4321 = vdwg.mxu0
        %4322 = vmatprep.subr.mxu0 0.0
        %4323 = vmatpush1.msra.mxu0 0.0
        %4324 = vmatprep.subr.mxu0 0.0
        %4325 = vmatpush1.msra.mxu0 0.0
        %4326 = vmatprep.subr.mxu0 0.0
        %4327 = vmatpush1.msra.mxu0 0.0
        %4328 = vmatprep.subr.mxu0 0.0
        %4329 = vmatpush1.msra.mxu0 0.0
        %4330 = vmatprep.subr.mxu0 0.0
        %4331 = vmatpush1.msra.mxu0 0.0
        %4332 = vmatprep.subr.mxu0 0.0
        %4333 = vmatpush1.msra.mxu0 0.0
        %4334 = vmatprep.subr.mxu0 0.0
        %4335 = vmatpush1.msra.mxu0 0.0
        %4336 = vmatprep.subr.mxu0 0.0
        %4337 = vmatpush1.msra.mxu0 0.0
        %4338 = vmatprep.subr.mxu0 0.0
        %4339 = vmatpush1.msra.mxu0 0.0
        %4340 = vmatprep.subr.mxu0 0.0
        %4341 = vmatpush1.msra.mxu0 0.0
        %4342 = vmatprep.subr.mxu0 0.0
        %4343 = vmatpush1.msra.mxu0 0.0
        %4344 = vmatprep.subr.mxu0 0.0
        %4345 = vmatpush1.msra.mxu0 0.0
        %4346 = vmatprep.subr.mxu0 %v4192
        %4347 = vmatpush1.msra.mxu0 %v4191
        %4348 = vmatprep.subr.mxu0 %v4188
        %4349 = vmatpush1.msra.mxu0 %v4187
        %4350 = vmatprep.subr.mxu0 %v4184
        %4351 = vmatpush1.msra.mxu0 %v4183
        %4352 = vmatprep.subr.mxu0 %v4180
        %4353 = vmatpush1.msra.mxu0 %v4179
        %4354 = vmatprep.subr.mxu0 0.0
        %4355 = vmatpush2.msra.mxu0 0.0
        %4356 = vmatprep.subr.mxu0 0.0
        %4357 = vmatpush2.msra.mxu0 0.0
        %4358 = vmatprep.subr.mxu0 0.0
        %4359 = vmatpush2.msra.mxu0 0.0
        %4360 = vmatprep.subr.mxu0 0.0
        %4361 = vmatpush2.msra.mxu0 0.0
        %4362 = vmatprep.subr.mxu0 0.0
        %4363 = vmatpush2.msra.mxu0 0.0
        %4364 = vmatprep.subr.mxu0 0.0
        %4365 = vmatpush2.msra.mxu0 0.0
        %4366 = vmatprep.subr.mxu0 0.0
        %4367 = vmatpush2.msra.mxu0 0.0
        %4368 = vmatprep.subr.mxu0 0.0
        %4369 = vmatpush2.msra.mxu0 0.0
        %4370 = vmatprep.subr.mxu0 0.0
        %4371 = vmatpush2.msra.mxu0 0.0
        %4372 = vmatprep.subr.mxu0 0.0
        %4373 = vmatpush2.msra.mxu0 0.0
        %4374 = vmatprep.subr.mxu0 0.0
        %4375 = vmatpush2.msra.mxu0 0.0
        %4376 = vmatprep.subr.mxu0 0.0
        %4377 = vmatpush2.msra.mxu0 0.0
        %4378 = vmatprep.subr.mxu0 0.0
        %4379 = vmatpush2.msra.mxu0 0.0
        %4380 = vmatprep.subr.mxu0 0.0
        %4381 = vmatpush2.msra.mxu0 0.0
        %4382 = vmatprep.subr.mxu0 0.0
        %4383 = vmatpush2.msra.mxu0 0.0
        %4384 = vmatprep.subr.mxu0 0.0
        %4385 = vmatpush2.msra.mxu0 0.0
        %4386 = vmatprep.mubr.f32.mxu0 0.0
        %4387 = vmatmul.mubr.f32.gmra.mxu0 %v4222
        %v4388 = vpop.f32.mrf.mxu0
        %v4389 = vadd.f32 %v4204, %v4388
        %v4390 = vpop.f32.mrf.mxu0
        %v4391 = vadd.f32 %v4204, %v4390
        %4392 = vmatprep.mubr.f32.mxu0 0.0
        %4393 = vmatmul.mubr.f32.gmra.mxu0 %v4225
        %v4394 = vpop.f32.mrf.mxu0
        %v4395 = vadd.f32 %v4209, %v4394
        %v4396 = vpop.f32.mrf.mxu0
        %v4397 = vadd.f32 %v4209, %v4396
        %4398 = vmatprep.mubr.f32.mxu0 0.0
        %4399 = vmatmul.mubr.f32.gmra.mxu0 %v4228
        %v4400 = vpop.f32.mrf.mxu0
        %v4401 = vadd.f32 %v4214, %v4400
        %v4402 = vpop.f32.mrf.mxu0
        %v4403 = vadd.f32 %v4214, %v4402
        %4404 = vmatprep.mubr.f32.mxu0 0.0
        %4405 = vmatmul.mubr.f32.gmra.mxu0 %v4231
        %v4406 = vpop.f32.mrf.mxu0
        %v4407 = vadd.f32 %v4219, %v4406
        %v4408 = vpop.f32.mrf.mxu0
        %v4409 = vadd.f32 %v4219, %v4408
        %4410 = vdwg.mxu0
        %v4411 = vmax.f32 %v4300, 0.0
        %v4412 = vmax.f32 %v4302, 0.0
        %v4413 = vmax.f32 %v4389, 0.0
        %v4414 = vmax.f32 %v4391, 0.0
        %v4415 = vmax.f32 %v4306, 0.0
        %v4416 = vmax.f32 %v4308, 0.0
        %v4417 = vmax.f32 %v4395, 0.0
        %v4418 = vmax.f32 %v4397, 0.0
        %v4419 = vmax.f32 %v4312, 0.0
        %v4420 = vmax.f32 %v4314, 0.0
        %v4421 = vmax.f32 %v4401, 0.0
        %v4422 = vmax.f32 %v4403, 0.0
        %v4423 = vmax.f32 %v4318, 0.0
        %v4424 = vmax.f32 %v4320, 0.0
        %v4425 = vmax.f32 %v4407, 0.0
        %v4426 = vmax.f32 %v4409, 0.0
        %v4427 = vld [vmem:[%s2182] sm:$0xff]
        %v4428 = vld [vmem:[%s2182 + $0x8] sm:$0xff]
        %v4429 = vld [vmem:[%s2182 + $0x10] sm:$0xff]
        %v4430 = vld [vmem:[%s2182 + $0x18] sm:$0xff]
        %v4431 = vld [vmem:[%s2187] sm:$0xff]
        %v4432 = vld [vmem:[%s2187 + $0x8] sm:$0xff]
        %v4433 = vld [vmem:[%s2187 + $0x10] sm:$0xff]
        %v4434 = vld [vmem:[%s2187 + $0x18] sm:$0xff]
        %4436 = vset.pattern.permute.xlu0 0
        %4437 = vperm.xlu0 %4436, %v4431
        %v4438 = vpop.permute.xlu0 %4437
        %4441 = vset.pattern.permute.xlu0 0
        %4442 = vperm.xlu0 %4441, %v4432
        %v4443 = vpop.permute.xlu0 %4442
        %4445 = vset.pattern.permute.xlu0 0
        %4446 = vperm.xlu0 %4445, %v4433
        %v4447 = vpop.permute.xlu0 %4446
        %4449 = vset.pattern.permute.xlu0 0
        %4450 = vperm.xlu0 %4449, %v4434
        %v4451 = vpop.permute.xlu0 %4450
        %v4453 = vsel %vm291, %v4427, 0
        %v4456 = vsel %vm291, %v4428, 0
        %v4459 = vsel %vm291, %v4429, 0
        %v4462 = vsel %vm291, %v4430, 0
        %4464 = vmatprep.subr.mxu0 0.0
        %4465 = vmatpush1.msra.mxu0 0.0
        %4466 = vmatprep.subr.mxu0 0.0
        %4467 = vmatpush1.msra.mxu0 0.0
        %4468 = vmatprep.subr.mxu0 0.0
        %4469 = vmatpush1.msra.mxu0 0.0
        %4470 = vmatprep.subr.mxu0 0.0
        %4471 = vmatpush1.msra.mxu0 0.0
        %4472 = vmatprep.subr.mxu0 0.0
        %4473 = vmatpush1.msra.mxu0 0.0
        %4474 = vmatprep.subr.mxu0 0.0
        %4475 = vmatpush1.msra.mxu0 0.0
        %4476 = vmatprep.subr.mxu0 0.0
        %4477 = vmatpush1.msra.mxu0 0.0
        %4478 = vmatprep.subr.mxu0 0.0
        %4479 = vmatpush1.msra.mxu0 0.0
        %4480 = vmatprep.subr.mxu0 0.0
        %4481 = vmatpush1.msra.mxu0 0.0
        %4482 = vmatprep.subr.mxu0 0.0
        %4483 = vmatpush1.msra.mxu0 0.0
        %4484 = vmatprep.subr.mxu0 0.0
        %4485 = vmatpush1.msra.mxu0 0.0
        %4486 = vmatprep.subr.mxu0 0.0
        %4487 = vmatpush1.msra.mxu0 0.0
        %4488 = vmatprep.subr.mxu0 %v4424
        %4489 = vmatpush1.msra.mxu0 %v4423
        %4490 = vmatprep.subr.mxu0 %v4420
        %4491 = vmatpush1.msra.mxu0 %v4419
        %4492 = vmatprep.subr.mxu0 %v4416
        %4493 = vmatpush1.msra.mxu0 %v4415
        %4494 = vmatprep.subr.mxu0 %v4412
        %4495 = vmatpush1.msra.mxu0 %v4411
        %4496 = vmatprep.subr.mxu0 0.0
        %4497 = vmatpush2.msra.mxu0 0.0
        %4498 = vmatprep.subr.mxu0 0.0
        %4499 = vmatpush2.msra.mxu0 0.0
        %4500 = vmatprep.subr.mxu0 0.0
        %4501 = vmatpush2.msra.mxu0 0.0
        %4502 = vmatprep.subr.mxu0 0.0
        %4503 = vmatpush2.msra.mxu0 0.0
        %4504 = vmatprep.subr.mxu0 0.0
        %4505 = vmatpush2.msra.mxu0 0.0
        %4506 = vmatprep.subr.mxu0 0.0
        %4507 = vmatpush2.msra.mxu0 0.0
        %4508 = vmatprep.subr.mxu0 0.0
        %4509 = vmatpush2.msra.mxu0 0.0
        %4510 = vmatprep.subr.mxu0 0.0
        %4511 = vmatpush2.msra.mxu0 0.0
        %4512 = vmatprep.subr.mxu0 0.0
        %4513 = vmatpush2.msra.mxu0 0.0
        %4514 = vmatprep.subr.mxu0 0.0
        %4515 = vmatpush2.msra.mxu0 0.0
        %4516 = vmatprep.subr.mxu0 0.0
        %4517 = vmatpush2.msra.mxu0 0.0
        %4518 = vmatprep.subr.mxu0 0.0
        %4519 = vmatpush2.msra.mxu0 0.0
        %4520 = vmatprep.subr.mxu0 0.0
        %4521 = vmatpush2.msra.mxu0 0.0
        %4522 = vmatprep.subr.mxu0 0.0
        %4523 = vmatpush2.msra.mxu0 0.0
        %4524 = vmatprep.subr.mxu0 0.0
        %4525 = vmatpush2.msra.mxu0 0.0
        %4526 = vmatprep.subr.mxu0 0.0
        %4527 = vmatpush2.msra.mxu0 0.0
        %4528 = vmatprep.mubr.f32.mxu0 0.0
        %4529 = vmatmul.mubr.f32.gmra.mxu0 %v4453
        %v4530 = vpop.f32.mrf.mxu0
        %v4531 = vadd.f32 %v4438, %v4530
        %v4532 = vpop.f32.mrf.mxu0
        %v4533 = vadd.f32 %v4438, %v4532
        %4534 = vmatprep.mubr.f32.mxu0 0.0
        %4535 = vmatmul.mubr.f32.gmra.mxu0 %v4456
        %v4536 = vpop.f32.mrf.mxu0
        %v4537 = vpop.f32.mrf.mxu0
        %4538 = vmatprep.mubr.f32.mxu0 0.0
        %4539 = vmatmul.mubr.f32.gmra.mxu0 %v4459
        %v4540 = vpop.f32.mrf.mxu0
        %v4541 = vpop.f32.mrf.mxu0
        %4542 = vmatprep.mubr.f32.mxu0 0.0
        %4543 = vmatmul.mubr.f32.gmra.mxu0 %v4462
        %v4544 = vpop.f32.mrf.mxu0
        %v4545 = vpop.f32.mrf.mxu0
        %4546 = vdwg.mxu0
        %4547 = vmatprep.subr.mxu0 0.0
        %4548 = vmatpush1.msra.mxu0 0.0
        %4549 = vmatprep.subr.mxu0 0.0
        %4550 = vmatpush1.msra.mxu0 0.0
        %4551 = vmatprep.subr.mxu0 0.0
        %4552 = vmatpush1.msra.mxu0 0.0
        %4553 = vmatprep.subr.mxu0 0.0
        %4554 = vmatpush1.msra.mxu0 0.0
        %4555 = vmatprep.subr.mxu0 0.0
        %4556 = vmatpush1.msra.mxu0 0.0
        %4557 = vmatprep.subr.mxu0 0.0
        %4558 = vmatpush1.msra.mxu0 0.0
        %4559 = vmatprep.subr.mxu0 0.0
        %4560 = vmatpush1.msra.mxu0 0.0
        %4561 = vmatprep.subr.mxu0 0.0
        %4562 = vmatpush1.msra.mxu0 0.0
        %4563 = vmatprep.subr.mxu0 0.0
        %4564 = vmatpush1.msra.mxu0 0.0
        %4565 = vmatprep.subr.mxu0 0.0
        %4566 = vmatpush1.msra.mxu0 0.0
        %4567 = vmatprep.subr.mxu0 0.0
        %4568 = vmatpush1.msra.mxu0 0.0
        %4569 = vmatprep.subr.mxu0 0.0
        %4570 = vmatpush1.msra.mxu0 0.0
        %4571 = vmatprep.subr.mxu0 %v4426
        %4572 = vmatpush1.msra.mxu0 %v4425
        %4573 = vmatprep.subr.mxu0 %v4422
        %4574 = vmatpush1.msra.mxu0 %v4421
        %4575 = vmatprep.subr.mxu0 %v4418
        %4576 = vmatpush1.msra.mxu0 %v4417
        %4577 = vmatprep.subr.mxu0 %v4414
        %4578 = vmatpush1.msra.mxu0 %v4413
        %4579 = vmatprep.subr.mxu0 0.0
        %4580 = vmatpush2.msra.mxu0 0.0
        %4581 = vmatprep.subr.mxu0 0.0
        %4582 = vmatpush2.msra.mxu0 0.0
        %4583 = vmatprep.subr.mxu0 0.0
        %4584 = vmatpush2.msra.mxu0 0.0
        %4585 = vmatprep.subr.mxu0 0.0
        %4586 = vmatpush2.msra.mxu0 0.0
        %4587 = vmatprep.subr.mxu0 0.0
        %4588 = vmatpush2.msra.mxu0 0.0
        %4589 = vmatprep.subr.mxu0 0.0
        %4590 = vmatpush2.msra.mxu0 0.0
        %4591 = vmatprep.subr.mxu0 0.0
        %4592 = vmatpush2.msra.mxu0 0.0
        %4593 = vmatprep.subr.mxu0 0.0
        %4594 = vmatpush2.msra.mxu0 0.0
        %4595 = vmatprep.subr.mxu0 0.0
        %4596 = vmatpush2.msra.mxu0 0.0
        %4597 = vmatprep.subr.mxu0 0.0
        %4598 = vmatpush2.msra.mxu0 0.0
        %4599 = vmatprep.subr.mxu0 0.0
        %4600 = vmatpush2.msra.mxu0 0.0
        %4601 = vmatprep.subr.mxu0 0.0
        %4602 = vmatpush2.msra.mxu0 0.0
        %4603 = vmatprep.subr.mxu0 0.0
        %4604 = vmatpush2.msra.mxu0 0.0
        %4605 = vmatprep.subr.mxu0 0.0
        %4606 = vmatpush2.msra.mxu0 0.0
        %4607 = vmatprep.subr.mxu0 0.0
        %4608 = vmatpush2.msra.mxu0 0.0
        %4609 = vmatprep.subr.mxu0 0.0
        %4610 = vmatpush2.msra.mxu0 0.0
        %4611 = vmatprep.mubr.f32.mxu0 0.0
        %4612 = vmatmul.mubr.f32.gmra.mxu0 %v4453
        %v4613 = vpop.f32.mrf.mxu0
        %v4614 = vadd.f32 %v4438, %v4613
        %v4615 = vpop.f32.mrf.mxu0
        %v4616 = vadd.f32 %v4438, %v4615
        %4617 = vmatprep.mubr.f32.mxu0 0.0
        %4618 = vmatmul.mubr.f32.gmra.mxu0 %v4456
        %v4619 = vpop.f32.mrf.mxu0
        %v4620 = vpop.f32.mrf.mxu0
        %4621 = vmatprep.mubr.f32.mxu0 0.0
        %4622 = vmatmul.mubr.f32.gmra.mxu0 %v4459
        %v4623 = vpop.f32.mrf.mxu0
        %v4624 = vpop.f32.mrf.mxu0
        %4625 = vmatprep.mubr.f32.mxu0 0.0
        %4626 = vmatmul.mubr.f32.gmra.mxu0 %v4462
        %v4627 = vpop.f32.mrf.mxu0
        %v4628 = vpop.f32.mrf.mxu0
        %4629 = vdwg.mxu0
        %v4630 = vmul.f32 %v4531, 0.92419624
        %v4631 = vmul.f32 %v4533, 0.92419624
        %v4632 = vmul.f32 %v4614, 0.92419624
        %v4633 = vmul.f32 %v4616, 0.92419624
        %vm4634 = vcmp.gt.f32.partialorder %v4630, 20.0
        %vm4635 = vcmp.gt.f32.partialorder %v4631, 20.0
        %vm4636 = vcmp.gt.f32.partialorder %v4632, 20.0
        %vm4637 = vcmp.gt.f32.partialorder %v4633, 20.0
        %v4638 = vmin.f32 %v4630, 20.0
        %v4639 = vmin.f32 %v4631, 20.0
        %v4640 = vmin.f32 %v4632, 20.0
        %v4641 = vmin.f32 %v4633, 20.0
        %v4642 = vmul.f32 %v4638, 1.442695
        %v4643 = vpow.pop %v4642
        %v4644 = vmul.f32 %v4639, 1.442695
        %v4645 = vpow.pop %v4644
        %v4646 = vmul.f32 %v4640, 1.442695
        %v4647 = vpow.pop %v4646
        %v4648 = vmul.f32 %v4641, 1.442695
        %v4649 = vpow.pop %v4648
        %v4650 = vadd.f32 %v4643, 1.0
        %v4651 = vlog2.pop %v4650
        %v4652 = vmul.f32 %v4651, 0.6931472
        %v4653 = vmul.f32 -0.5, %v4643
        %v4654 = vadd.f32 %v4653, 1.0
        %v4655 = vmul.f32 %v4654, %v4643
        %v4656 = vand.u32 2147483647, %v4643
        %vm4657 = vcmp.lt.f32.partialorder %v4656, 0.0004427343
        %v4658 = vsel %vm4657, %v4655, %v4652
        %v4659 = vadd.f32 %v4645, 1.0
        %v4660 = vlog2.pop %v4659
        %v4661 = vmul.f32 %v4660, 0.6931472
        %v4662 = vmul.f32 -0.5, %v4645
        %v4663 = vadd.f32 %v4662, 1.0
        %v4664 = vmul.f32 %v4663, %v4645
        %v4665 = vand.u32 2147483647, %v4645
        %vm4666 = vcmp.lt.f32.partialorder %v4665, 0.0004427343
        %v4667 = vsel %vm4666, %v4664, %v4661
        %v4668 = vadd.f32 %v4647, 1.0
        %v4669 = vlog2.pop %v4668
        %v4670 = vmul.f32 %v4669, 0.6931472
        %v4671 = vmul.f32 -0.5, %v4647
        %v4672 = vadd.f32 %v4671, 1.0
        %v4673 = vmul.f32 %v4672, %v4647
        %v4674 = vand.u32 2147483647, %v4647
        %vm4675 = vcmp.lt.f32.partialorder %v4674, 0.0004427343
        %v4676 = vsel %vm4675, %v4673, %v4670
        %v4677 = vadd.f32 %v4649, 1.0
        %v4678 = vlog2.pop %v4677
        %v4679 = vmul.f32 %v4678, 0.6931472
        %v4680 = vmul.f32 -0.5, %v4649
        %v4681 = vadd.f32 %v4680, 1.0
        %v4682 = vmul.f32 %v4681, %v4649
        %v4683 = vand.u32 2147483647, %v4649
        %vm4684 = vcmp.lt.f32.partialorder %v4683, 0.0004427343
        %v4685 = vsel %vm4684, %v4682, %v4679
        %v4686 = vmul.f32 %v4658, 1.0820212
        %v4687 = vmul.f32 %v4667, 1.0820212
        %v4688 = vmul.f32 %v4676, 1.0820212
        %v4689 = vmul.f32 %v4685, 1.0820212
        %v4690 = vsel %vm4634, %v4531, %v4686
        %v4691 = vsel %vm4635, %v4533, %v4687
        %v4692 = vsel %vm4636, %v4614, %v4688
        %v4693 = vsel %vm4637, %v4616, %v4689
        %v4694 = vadd.f32 %v4690, 0.25
        %v4695 = vadd.f32 %v4691, 0.25
        %v4696 = vadd.f32 %v4692, 0.25
        %v4697 = vadd.f32 %v4693, 0.25
        %v4698 = vmin.f32 %v4694, 100.0
        %v4699 = vmin.f32 %v4695, 100.0
        %v4700 = vmin.f32 %v4696, 100.0
        %v4701 = vmin.f32 %v4697, 100.0
        %v4702 = vrcp.pop %v4698
        %v4703 = vmul.f32 1.0, %v4702
        %v4704 = vrcp.pop %v4699
        %v4705 = vmul.f32 1.0, %v4704
        %v4706 = vrcp.pop %v4700
        %v4707 = vmul.f32 1.0, %v4706
        %v4708 = vrcp.pop %v4701
        %v4709 = vmul.f32 1.0, %v4708
        %v4710 = vlaneseq
        %v4711 = vshrl.u32 %v4710, 7
        %v4712 = vsub.s32 3, %v4711
        %v4713 = vrot.slane %v4703, %v4712
        %v4714 = vlaneseq
        %v4715 = vshrl.u32 %v4714, 7
        %v4716 = vsub.s32 3, %v4715
        %v4717 = vrot.slane %v4705, %v4716
        %v4718 = vlaneseq
        %v4719 = vshrl.u32 %v4718, 7
        %v4720 = vsub.s32 3, %v4719
        %v4721 = vrot.slane %v4707, %v4720
        %v4722 = vlaneseq
        %v4723 = vshrl.u32 %v4722, 7
        %v4724 = vsub.s32 3, %v4723
        %v4725 = vrot.slane %v4709, %v4724
        %v4726 = vmul.f32 %v4531, %v4713
        %v4727 = vmul.f32 %v4533, %v4717
        %v4728 = vmul.f32 %v4614, %v4721
        %v4729 = vmul.f32 %v4616, %v4725
        %v4730 = vadd.f32 %v4726, %v2490
        %v4731 = vadd.f32 %v4727, %v2490
        %v4732 = vadd.f32 %v4728, %v2490
        %v4733 = vadd.f32 %v4729, %v2490
        %v4738 = vcombine.low %v4730, %v4731
        %v4739 = vcombine.low %v4732, %v4733
        %s4742 = scalar_lea.vmem %s244, 16
        %4743 = vst [vmem:[%s4742] sm:$0x77] %v4738
        %4744 = vst [vmem:[%s4742 + $0x8] sm:$0x77] %v4739
        %s4745 = scalar_lea.vmem %s206, 64 [#allocation2]
        %v4746 = vld [vmem:[%s4745] sm:$0xff]
        %v4747 = vld [vmem:[%s4745 + $0x8] sm:$0xff]
        %v4748 = vld [vmem:[%s4745 + $0x10] sm:$0xff]
        %v4749 = vld [vmem:[%s4745 + $0x18] sm:$0xff]
        %v4750 = vld [vmem:[%s4745 + $0x80] sm:$0xff]
        %v4751 = vld [vmem:[%s4745 + $0x88] sm:$0xff]
        %v4752 = vld [vmem:[%s4745 + $0x90] sm:$0xff]
        %v4753 = vld [vmem:[%s4745 + $0x98] sm:$0xff]
        %v4754 = vld [vmem:[%s4745 + $0x100] sm:$0xff]
        %v4755 = vld [vmem:[%s4745 + $0x108] sm:$0xff]
        %v4756 = vld [vmem:[%s4745 + $0x110] sm:$0xff]
        %v4757 = vld [vmem:[%s4745 + $0x118] sm:$0xff]
        %v4758 = vld [vmem:[%s4745 + $0x180] sm:$0xff]
        %v4759 = vld [vmem:[%s4745 + $0x188] sm:$0xff]
        %v4760 = vld [vmem:[%s4745 + $0x190] sm:$0xff]
        %v4761 = vld [vmem:[%s4745 + $0x198] sm:$0xff]
        %v4762 = vld [vmem:[%s1] sm:$0xff]
        %v4763 = vld [vmem:[%s1 + $0x8] sm:$0xff]
        %v4764 = vld [vmem:[%s1 + $0x10] sm:$0xff]
        %v4765 = vld [vmem:[%s1 + $0x18] sm:$0xff]
        %v4766 = vld [vmem:[%s2] sm:$0xff]
        %v4767 = vld [vmem:[%s2 + $0x8] sm:$0xff]
        %v4768 = vld [vmem:[%s2 + $0x10] sm:$0xff]
        %v4769 = vld [vmem:[%s2 + $0x18] sm:$0xff]
        %4771 = vset.pattern.permute.xlu0 0
        %4772 = vperm.xlu0 %4771, %v4766
        %v4773 = vpop.permute.xlu0 %4772
        %4776 = vset.pattern.permute.xlu0 0
        %4777 = vperm.xlu0 %4776, %v4767
        %v4778 = vpop.permute.xlu0 %4777
        %4781 = vset.pattern.permute.xlu0 0
        %4782 = vperm.xlu0 %4781, %v4768
        %v4783 = vpop.permute.xlu0 %4782
        %4786 = vset.pattern.permute.xlu0 0
        %4787 = vperm.xlu0 %4786, %v4769
        %v4788 = vpop.permute.xlu0 %4787
        %v4791 = vsel %vm291, %v4762, 0
        %v4794 = vsel %vm291, %v4763, 0
        %v4797 = vsel %vm291, %v4764, 0
        %v4800 = vsel %vm291, %v4765, 0
        %4802 = vmatprep.subr.mxu0 0.0
        %4803 = vmatpush1.msra.mxu0 0.0
        %4804 = vmatprep.subr.mxu0 0.0
        %4805 = vmatpush1.msra.mxu0 0.0
        %4806 = vmatprep.subr.mxu0 0.0
        %4807 = vmatpush1.msra.mxu0 0.0
        %4808 = vmatprep.subr.mxu0 0.0
        %4809 = vmatpush1.msra.mxu0 0.0
        %4810 = vmatprep.subr.mxu0 0.0
        %4811 = vmatpush1.msra.mxu0 0.0
        %4812 = vmatprep.subr.mxu0 0.0
        %4813 = vmatpush1.msra.mxu0 0.0
        %4814 = vmatprep.subr.mxu0 0.0
        %4815 = vmatpush1.msra.mxu0 0.0
        %4816 = vmatprep.subr.mxu0 0.0
        %4817 = vmatpush1.msra.mxu0 0.0
        %4818 = vmatprep.subr.mxu0 0.0
        %4819 = vmatpush1.msra.mxu0 0.0
        %4820 = vmatprep.subr.mxu0 0.0
        %4821 = vmatpush1.msra.mxu0 0.0
        %4822 = vmatprep.subr.mxu0 0.0
        %4823 = vmatpush1.msra.mxu0 0.0
        %4824 = vmatprep.subr.mxu0 0.0
        %4825 = vmatpush1.msra.mxu0 0.0
        %4826 = vmatprep.subr.mxu0 %v4759
        %4827 = vmatpush1.msra.mxu0 %v4758
        %4828 = vmatprep.subr.mxu0 %v4755
        %4829 = vmatpush1.msra.mxu0 %v4754
        %4830 = vmatprep.subr.mxu0 %v4751
        %4831 = vmatpush1.msra.mxu0 %v4750
        %4832 = vmatprep.subr.mxu0 %v4747
        %4833 = vmatpush1.msra.mxu0 %v4746
        %4834 = vmatprep.subr.mxu0 0.0
        %4835 = vmatpush2.msra.mxu0 0.0
        %4836 = vmatprep.subr.mxu0 0.0
        %4837 = vmatpush2.msra.mxu0 0.0
        %4838 = vmatprep.subr.mxu0 0.0
        %4839 = vmatpush2.msra.mxu0 0.0
        %4840 = vmatprep.subr.mxu0 0.0
        %4841 = vmatpush2.msra.mxu0 0.0
        %4842 = vmatprep.subr.mxu0 0.0
        %4843 = vmatpush2.msra.mxu0 0.0
        %4844 = vmatprep.subr.mxu0 0.0
        %4845 = vmatpush2.msra.mxu0 0.0
        %4846 = vmatprep.subr.mxu0 0.0
        %4847 = vmatpush2.msra.mxu0 0.0
        %4848 = vmatprep.subr.mxu0 0.0
        %4849 = vmatpush2.msra.mxu0 0.0
        %4850 = vmatprep.subr.mxu0 0.0
        %4851 = vmatpush2.msra.mxu0 0.0
        %4852 = vmatprep.subr.mxu0 0.0
        %4853 = vmatpush2.msra.mxu0 0.0
        %4854 = vmatprep.subr.mxu0 0.0
        %4855 = vmatpush2.msra.mxu0 0.0
        %4856 = vmatprep.subr.mxu0 0.0
        %4857 = vmatpush2.msra.mxu0 0.0
        %4858 = vmatprep.subr.mxu0 0.0
        %4859 = vmatpush2.msra.mxu0 0.0
        %4860 = vmatprep.subr.mxu0 0.0
        %4861 = vmatpush2.msra.mxu0 0.0
        %4862 = vmatprep.subr.mxu0 0.0
        %4863 = vmatpush2.msra.mxu0 0.0
        %4864 = vmatprep.subr.mxu0 0.0
        %4865 = vmatpush2.msra.mxu0 0.0
        %4866 = vmatprep.mubr.f32.mxu0 0.0
        %4867 = vmatmul.mubr.f32.gmra.mxu0 %v4791
        %v4868 = vpop.f32.mrf.mxu0
        %v4869 = vadd.f32 %v4773, %v4868
        %v4870 = vpop.f32.mrf.mxu0
        %v4871 = vadd.f32 %v4773, %v4870
        %4872 = vmatprep.mubr.f32.mxu0 0.0
        %4873 = vmatmul.mubr.f32.gmra.mxu0 %v4794
        %v4874 = vpop.f32.mrf.mxu0
        %v4875 = vadd.f32 %v4778, %v4874
        %v4876 = vpop.f32.mrf.mxu0
        %v4877 = vadd.f32 %v4778, %v4876
        %4878 = vmatprep.mubr.f32.mxu0 0.0
        %4879 = vmatmul.mubr.f32.gmra.mxu0 %v4797
        %v4880 = vpop.f32.mrf.mxu0
        %v4881 = vadd.f32 %v4783, %v4880
        %v4882 = vpop.f32.mrf.mxu0
        %v4883 = vadd.f32 %v4783, %v4882
        %4884 = vmatprep.mubr.f32.mxu0 0.0
        %4885 = vmatmul.mubr.f32.gmra.mxu0 %v4800
        %v4886 = vpop.f32.mrf.mxu0
        %v4887 = vadd.f32 %v4788, %v4886
        %v4888 = vpop.f32.mrf.mxu0
        %v4889 = vadd.f32 %v4788, %v4888
        %4890 = vdwg.mxu0
        %4891 = vmatprep.subr.mxu0 0.0
        %4892 = vmatpush1.msra.mxu0 0.0
        %4893 = vmatprep.subr.mxu0 0.0
        %4894 = vmatpush1.msra.mxu0 0.0
        %4895 = vmatprep.subr.mxu0 0.0
        %4896 = vmatpush1.msra.mxu0 0.0
        %4897 = vmatprep.subr.mxu0 0.0
        %4898 = vmatpush1.msra.mxu0 0.0
        %4899 = vmatprep.subr.mxu0 0.0
        %4900 = vmatpush1.msra.mxu0 0.0
        %4901 = vmatprep.subr.mxu0 0.0
        %4902 = vmatpush1.msra.mxu0 0.0
        %4903 = vmatprep.subr.mxu0 0.0
        %4904 = vmatpush1.msra.mxu0 0.0
        %4905 = vmatprep.subr.mxu0 0.0
        %4906 = vmatpush1.msra.mxu0 0.0
        %4907 = vmatprep.subr.mxu0 0.0
        %4908 = vmatpush1.msra.mxu0 0.0
        %4909 = vmatprep.subr.mxu0 0.0
        %4910 = vmatpush1.msra.mxu0 0.0
        %4911 = vmatprep.subr.mxu0 0.0
        %4912 = vmatpush1.msra.mxu0 0.0
        %4913 = vmatprep.subr.mxu0 0.0
        %4914 = vmatpush1.msra.mxu0 0.0
        %4915 = vmatprep.subr.mxu0 %v4761
        %4916 = vmatpush1.msra.mxu0 %v4760
        %4917 = vmatprep.subr.mxu0 %v4757
        %4918 = vmatpush1.msra.mxu0 %v4756
        %4919 = vmatprep.subr.mxu0 %v4753
        %4920 = vmatpush1.msra.mxu0 %v4752
        %4921 = vmatprep.subr.mxu0 %v4749
        %4922 = vmatpush1.msra.mxu0 %v4748
        %4923 = vmatprep.subr.mxu0 0.0
        %4924 = vmatpush2.msra.mxu0 0.0
        %4925 = vmatprep.subr.mxu0 0.0
        %4926 = vmatpush2.msra.mxu0 0.0
        %4927 = vmatprep.subr.mxu0 0.0
        %4928 = vmatpush2.msra.mxu0 0.0
        %4929 = vmatprep.subr.mxu0 0.0
        %4930 = vmatpush2.msra.mxu0 0.0
        %4931 = vmatprep.subr.mxu0 0.0
        %4932 = vmatpush2.msra.mxu0 0.0
        %4933 = vmatprep.subr.mxu0 0.0
        %4934 = vmatpush2.msra.mxu0 0.0
        %4935 = vmatprep.subr.mxu0 0.0
        %4936 = vmatpush2.msra.mxu0 0.0
        %4937 = vmatprep.subr.mxu0 0.0
        %4938 = vmatpush2.msra.mxu0 0.0
        %4939 = vmatprep.subr.mxu0 0.0
        %4940 = vmatpush2.msra.mxu0 0.0
        %4941 = vmatprep.subr.mxu0 0.0
        %4942 = vmatpush2.msra.mxu0 0.0
        %4943 = vmatprep.subr.mxu0 0.0
        %4944 = vmatpush2.msra.mxu0 0.0
        %4945 = vmatprep.subr.mxu0 0.0
        %4946 = vmatpush2.msra.mxu0 0.0
        %4947 = vmatprep.subr.mxu0 0.0
        %4948 = vmatpush2.msra.mxu0 0.0
        %4949 = vmatprep.subr.mxu0 0.0
        %4950 = vmatpush2.msra.mxu0 0.0
        %4951 = vmatprep.subr.mxu0 0.0
        %4952 = vmatpush2.msra.mxu0 0.0
        %4953 = vmatprep.subr.mxu0 0.0
        %4954 = vmatpush2.msra.mxu0 0.0
        %4955 = vmatprep.mubr.f32.mxu0 0.0
        %4956 = vmatmul.mubr.f32.gmra.mxu0 %v4791
        %v4957 = vpop.f32.mrf.mxu0
        %v4958 = vadd.f32 %v4773, %v4957
        %v4959 = vpop.f32.mrf.mxu0
        %v4960 = vadd.f32 %v4773, %v4959
        %4961 = vmatprep.mubr.f32.mxu0 0.0
        %4962 = vmatmul.mubr.f32.gmra.mxu0 %v4794
        %v4963 = vpop.f32.mrf.mxu0
        %v4964 = vadd.f32 %v4778, %v4963
        %v4965 = vpop.f32.mrf.mxu0
        %v4966 = vadd.f32 %v4778, %v4965
        %4967 = vmatprep.mubr.f32.mxu0 0.0
        %4968 = vmatmul.mubr.f32.gmra.mxu0 %v4797
        %v4969 = vpop.f32.mrf.mxu0
        %v4970 = vadd.f32 %v4783, %v4969
        %v4971 = vpop.f32.mrf.mxu0
        %v4972 = vadd.f32 %v4783, %v4971
        %4973 = vmatprep.mubr.f32.mxu0 0.0
        %4974 = vmatmul.mubr.f32.gmra.mxu0 %v4800
        %v4975 = vpop.f32.mrf.mxu0
        %v4976 = vadd.f32 %v4788, %v4975
        %v4977 = vpop.f32.mrf.mxu0
        %v4978 = vadd.f32 %v4788, %v4977
        %4979 = vdwg.mxu0
        %v4980 = vmax.f32 %v4869, 0.0
        %v4981 = vmax.f32 %v4871, 0.0
        %v4982 = vmax.f32 %v4958, 0.0
        %v4983 = vmax.f32 %v4960, 0.0
        %v4984 = vmax.f32 %v4875, 0.0
        %v4985 = vmax.f32 %v4877, 0.0
        %v4986 = vmax.f32 %v4964, 0.0
        %v4987 = vmax.f32 %v4966, 0.0
        %v4988 = vmax.f32 %v4881, 0.0
        %v4989 = vmax.f32 %v4883, 0.0
        %v4990 = vmax.f32 %v4970, 0.0
        %v4991 = vmax.f32 %v4972, 0.0
        %v4992 = vmax.f32 %v4887, 0.0
        %v4993 = vmax.f32 %v4889, 0.0
        %v4994 = vmax.f32 %v4976, 0.0
        %v4995 = vmax.f32 %v4978, 0.0
        %v4996 = vld [vmem:[%s498] sm:$0xff]
        %v4997 = vld [vmem:[%s498 + $0x8] sm:$0xff]
        %v4998 = vld [vmem:[%s498 + $0x10] sm:$0xff]
        %v4999 = vld [vmem:[%s498 + $0x18] sm:$0xff]
        %v5000 = vld [vmem:[%s503] sm:$0xff]
        %v5001 = vld [vmem:[%s503 + $0x8] sm:$0xff]
        %v5002 = vld [vmem:[%s503 + $0x10] sm:$0xff]
        %v5003 = vld [vmem:[%s503 + $0x18] sm:$0xff]
        %5005 = vset.pattern.permute.xlu0 0
        %5006 = vperm.xlu0 %5005, %v5000
        %v5007 = vpop.permute.xlu0 %5006
        %5010 = vset.pattern.permute.xlu0 0
        %5011 = vperm.xlu0 %5010, %v5001
        %v5012 = vpop.permute.xlu0 %5011
        %5015 = vset.pattern.permute.xlu0 0
        %5016 = vperm.xlu0 %5015, %v5002
        %v5017 = vpop.permute.xlu0 %5016
        %5020 = vset.pattern.permute.xlu0 0
        %5021 = vperm.xlu0 %5020, %v5003
        %v5022 = vpop.permute.xlu0 %5021
        %v5025 = vsel %vm291, %v4996, 0
        %v5028 = vsel %vm291, %v4997, 0
        %v5031 = vsel %vm291, %v4998, 0
        %v5034 = vsel %vm291, %v4999, 0
        %5036 = vmatprep.subr.mxu0 0.0
        %5037 = vmatpush1.msra.mxu0 0.0
        %5038 = vmatprep.subr.mxu0 0.0
        %5039 = vmatpush1.msra.mxu0 0.0
        %5040 = vmatprep.subr.mxu0 0.0
        %5041 = vmatpush1.msra.mxu0 0.0
        %5042 = vmatprep.subr.mxu0 0.0
        %5043 = vmatpush1.msra.mxu0 0.0
        %5044 = vmatprep.subr.mxu0 0.0
        %5045 = vmatpush1.msra.mxu0 0.0
        %5046 = vmatprep.subr.mxu0 0.0
        %5047 = vmatpush1.msra.mxu0 0.0
        %5048 = vmatprep.subr.mxu0 0.0
        %5049 = vmatpush1.msra.mxu0 0.0
        %5050 = vmatprep.subr.mxu0 0.0
        %5051 = vmatpush1.msra.mxu0 0.0
        %5052 = vmatprep.subr.mxu0 0.0
        %5053 = vmatpush1.msra.mxu0 0.0
        %5054 = vmatprep.subr.mxu0 0.0
        %5055 = vmatpush1.msra.mxu0 0.0
        %5056 = vmatprep.subr.mxu0 0.0
        %5057 = vmatpush1.msra.mxu0 0.0
        %5058 = vmatprep.subr.mxu0 0.0
        %5059 = vmatpush1.msra.mxu0 0.0
        %5060 = vmatprep.subr.mxu0 %v4993
        %5061 = vmatpush1.msra.mxu0 %v4992
        %5062 = vmatprep.subr.mxu0 %v4989
        %5063 = vmatpush1.msra.mxu0 %v4988
        %5064 = vmatprep.subr.mxu0 %v4985
        %5065 = vmatpush1.msra.mxu0 %v4984
        %5066 = vmatprep.subr.mxu0 %v4981
        %5067 = vmatpush1.msra.mxu0 %v4980
        %5068 = vmatprep.subr.mxu0 0.0
        %5069 = vmatpush2.msra.mxu0 0.0
        %5070 = vmatprep.subr.mxu0 0.0
        %5071 = vmatpush2.msra.mxu0 0.0
        %5072 = vmatprep.subr.mxu0 0.0
        %5073 = vmatpush2.msra.mxu0 0.0
        %5074 = vmatprep.subr.mxu0 0.0
        %5075 = vmatpush2.msra.mxu0 0.0
        %5076 = vmatprep.subr.mxu0 0.0
        %5077 = vmatpush2.msra.mxu0 0.0
        %5078 = vmatprep.subr.mxu0 0.0
        %5079 = vmatpush2.msra.mxu0 0.0
        %5080 = vmatprep.subr.mxu0 0.0
        %5081 = vmatpush2.msra.mxu0 0.0
        %5082 = vmatprep.subr.mxu0 0.0
        %5083 = vmatpush2.msra.mxu0 0.0
        %5084 = vmatprep.subr.mxu0 0.0
        %5085 = vmatpush2.msra.mxu0 0.0
        %5086 = vmatprep.subr.mxu0 0.0
        %5087 = vmatpush2.msra.mxu0 0.0
        %5088 = vmatprep.subr.mxu0 0.0
        %5089 = vmatpush2.msra.mxu0 0.0
        %5090 = vmatprep.subr.mxu0 0.0
        %5091 = vmatpush2.msra.mxu0 0.0
        %5092 = vmatprep.subr.mxu0 0.0
        %5093 = vmatpush2.msra.mxu0 0.0
        %5094 = vmatprep.subr.mxu0 0.0
        %5095 = vmatpush2.msra.mxu0 0.0
        %5096 = vmatprep.subr.mxu0 0.0
        %5097 = vmatpush2.msra.mxu0 0.0
        %5098 = vmatprep.subr.mxu0 0.0
        %5099 = vmatpush2.msra.mxu0 0.0
        %5100 = vmatprep.mubr.f32.mxu0 0.0
        %5101 = vmatmul.mubr.f32.gmra.mxu0 %v5025
        %v5102 = vpop.f32.mrf.mxu0
        %v5103 = vadd.f32 %v5007, %v5102
        %v5104 = vpop.f32.mrf.mxu0
        %v5105 = vadd.f32 %v5007, %v5104
        %5106 = vmatprep.mubr.f32.mxu0 0.0
        %5107 = vmatmul.mubr.f32.gmra.mxu0 %v5028
        %v5108 = vpop.f32.mrf.mxu0
        %v5109 = vadd.f32 %v5012, %v5108
        %v5110 = vpop.f32.mrf.mxu0
        %v5111 = vadd.f32 %v5012, %v5110
        %5112 = vmatprep.mubr.f32.mxu0 0.0
        %5113 = vmatmul.mubr.f32.gmra.mxu0 %v5031
        %v5114 = vpop.f32.mrf.mxu0
        %v5115 = vadd.f32 %v5017, %v5114
        %v5116 = vpop.f32.mrf.mxu0
        %v5117 = vadd.f32 %v5017, %v5116
        %5118 = vmatprep.mubr.f32.mxu0 0.0
        %5119 = vmatmul.mubr.f32.gmra.mxu0 %v5034
        %v5120 = vpop.f32.mrf.mxu0
        %v5121 = vadd.f32 %v5022, %v5120
        %v5122 = vpop.f32.mrf.mxu0
        %v5123 = vadd.f32 %v5022, %v5122
        %5124 = vdwg.mxu0
        %5125 = vmatprep.subr.mxu0 0.0
        %5126 = vmatpush1.msra.mxu0 0.0
        %5127 = vmatprep.subr.mxu0 0.0
        %5128 = vmatpush1.msra.mxu0 0.0
        %5129 = vmatprep.subr.mxu0 0.0
        %5130 = vmatpush1.msra.mxu0 0.0
        %5131 = vmatprep.subr.mxu0 0.0
        %5132 = vmatpush1.msra.mxu0 0.0
        %5133 = vmatprep.subr.mxu0 0.0
        %5134 = vmatpush1.msra.mxu0 0.0
        %5135 = vmatprep.subr.mxu0 0.0
        %5136 = vmatpush1.msra.mxu0 0.0
        %5137 = vmatprep.subr.mxu0 0.0
        %5138 = vmatpush1.msra.mxu0 0.0
        %5139 = vmatprep.subr.mxu0 0.0
        %5140 = vmatpush1.msra.mxu0 0.0
        %5141 = vmatprep.subr.mxu0 0.0
        %5142 = vmatpush1.msra.mxu0 0.0
        %5143 = vmatprep.subr.mxu0 0.0
        %5144 = vmatpush1.msra.mxu0 0.0
        %5145 = vmatprep.subr.mxu0 0.0
        %5146 = vmatpush1.msra.mxu0 0.0
        %5147 = vmatprep.subr.mxu0 0.0
        %5148 = vmatpush1.msra.mxu0 0.0
        %5149 = vmatprep.subr.mxu0 %v4995
        %5150 = vmatpush1.msra.mxu0 %v4994
        %5151 = vmatprep.subr.mxu0 %v4991
        %5152 = vmatpush1.msra.mxu0 %v4990
        %5153 = vmatprep.subr.mxu0 %v4987
        %5154 = vmatpush1.msra.mxu0 %v4986
        %5155 = vmatprep.subr.mxu0 %v4983
        %5156 = vmatpush1.msra.mxu0 %v4982
        %5157 = vmatprep.subr.mxu0 0.0
        %5158 = vmatpush2.msra.mxu0 0.0
        %5159 = vmatprep.subr.mxu0 0.0
        %5160 = vmatpush2.msra.mxu0 0.0
        %5161 = vmatprep.subr.mxu0 0.0
        %5162 = vmatpush2.msra.mxu0 0.0
        %5163 = vmatprep.subr.mxu0 0.0
        %5164 = vmatpush2.msra.mxu0 0.0
        %5165 = vmatprep.subr.mxu0 0.0
        %5166 = vmatpush2.msra.mxu0 0.0
        %5167 = vmatprep.subr.mxu0 0.0
        %5168 = vmatpush2.msra.mxu0 0.0
        %5169 = vmatprep.subr.mxu0 0.0
        %5170 = vmatpush2.msra.mxu0 0.0
        %5171 = vmatprep.subr.mxu0 0.0
        %5172 = vmatpush2.msra.mxu0 0.0
        %5173 = vmatprep.subr.mxu0 0.0
        %5174 = vmatpush2.msra.mxu0 0.0
        %5175 = vmatprep.subr.mxu0 0.0
        %5176 = vmatpush2.msra.mxu0 0.0
        %5177 = vmatprep.subr.mxu0 0.0
        %5178 = vmatpush2.msra.mxu0 0.0
        %5179 = vmatprep.subr.mxu0 0.0
        %5180 = vmatpush2.msra.mxu0 0.0
        %5181 = vmatprep.subr.mxu0 0.0
        %5182 = vmatpush2.msra.mxu0 0.0
        %5183 = vmatprep.subr.mxu0 0.0
        %5184 = vmatpush2.msra.mxu0 0.0
        %5185 = vmatprep.subr.mxu0 0.0
        %5186 = vmatpush2.msra.mxu0 0.0
        %5187 = vmatprep.subr.mxu0 0.0
        %5188 = vmatpush2.msra.mxu0 0.0
        %5189 = vmatprep.mubr.f32.mxu0 0.0
        %5190 = vmatmul.mubr.f32.gmra.mxu0 %v5025
        %v5191 = vpop.f32.mrf.mxu0
        %v5192 = vadd.f32 %v5007, %v5191
        %v5193 = vpop.f32.mrf.mxu0
        %v5194 = vadd.f32 %v5007, %v5193
        %5195 = vmatprep.mubr.f32.mxu0 0.0
        %5196 = vmatmul.mubr.f32.gmra.mxu0 %v5028
        %v5197 = vpop.f32.mrf.mxu0
        %v5198 = vadd.f32 %v5012, %v5197
        %v5199 = vpop.f32.mrf.mxu0
        %v5200 = vadd.f32 %v5012, %v5199
        %5201 = vmatprep.mubr.f32.mxu0 0.0
        %5202 = vmatmul.mubr.f32.gmra.mxu0 %v5031
        %v5203 = vpop.f32.mrf.mxu0
        %v5204 = vadd.f32 %v5017, %v5203
        %v5205 = vpop.f32.mrf.mxu0
        %v5206 = vadd.f32 %v5017, %v5205
        %5207 = vmatprep.mubr.f32.mxu0 0.0
        %5208 = vmatmul.mubr.f32.gmra.mxu0 %v5034
        %v5209 = vpop.f32.mrf.mxu0
        %v5210 = vadd.f32 %v5022, %v5209
        %v5211 = vpop.f32.mrf.mxu0
        %v5212 = vadd.f32 %v5022, %v5211
        %5213 = vdwg.mxu0
        %v5214 = vmax.f32 %v5103, 0.0
        %v5215 = vmax.f32 %v5105, 0.0
        %v5216 = vmax.f32 %v5192, 0.0
        %v5217 = vmax.f32 %v5194, 0.0
        %v5218 = vmax.f32 %v5109, 0.0
        %v5219 = vmax.f32 %v5111, 0.0
        %v5220 = vmax.f32 %v5198, 0.0
        %v5221 = vmax.f32 %v5200, 0.0
        %v5222 = vmax.f32 %v5115, 0.0
        %v5223 = vmax.f32 %v5117, 0.0
        %v5224 = vmax.f32 %v5204, 0.0
        %v5225 = vmax.f32 %v5206, 0.0
        %v5226 = vmax.f32 %v5121, 0.0
        %v5227 = vmax.f32 %v5123, 0.0
        %v5228 = vmax.f32 %v5210, 0.0
        %v5229 = vmax.f32 %v5212, 0.0
        %v5230 = vld [vmem:[%s734] sm:$0xff]
        %v5231 = vld [vmem:[%s734 + $0x8] sm:$0xff]
        %v5232 = vld [vmem:[%s734 + $0x10] sm:$0xff]
        %v5233 = vld [vmem:[%s734 + $0x18] sm:$0xff]
        %v5234 = vld [vmem:[%s739] sm:$0xff]
        %v5235 = vld [vmem:[%s739 + $0x8] sm:$0xff]
        %v5236 = vld [vmem:[%s739 + $0x10] sm:$0xff]
        %v5237 = vld [vmem:[%s739 + $0x18] sm:$0xff]
        %5239 = vset.pattern.permute.xlu0 0
        %5240 = vperm.xlu0 %5239, %v5234
        %v5241 = vpop.permute.xlu0 %5240
        %5244 = vset.pattern.permute.xlu0 0
        %5245 = vperm.xlu0 %5244, %v5235
        %v5246 = vpop.permute.xlu0 %5245
        %5249 = vset.pattern.permute.xlu0 0
        %5250 = vperm.xlu0 %5249, %v5236
        %v5251 = vpop.permute.xlu0 %5250
        %5254 = vset.pattern.permute.xlu0 0
        %5255 = vperm.xlu0 %5254, %v5237
        %v5256 = vpop.permute.xlu0 %5255
        %v5259 = vsel %vm291, %v5230, 0
        %v5262 = vsel %vm291, %v5231, 0
        %v5265 = vsel %vm291, %v5232, 0
        %v5268 = vsel %vm291, %v5233, 0
        %5270 = vmatprep.subr.mxu0 0.0
        %5271 = vmatpush1.msra.mxu0 0.0
        %5272 = vmatprep.subr.mxu0 0.0
        %5273 = vmatpush1.msra.mxu0 0.0
        %5274 = vmatprep.subr.mxu0 0.0
        %5275 = vmatpush1.msra.mxu0 0.0
        %5276 = vmatprep.subr.mxu0 0.0
        %5277 = vmatpush1.msra.mxu0 0.0
        %5278 = vmatprep.subr.mxu0 0.0
        %5279 = vmatpush1.msra.mxu0 0.0
        %5280 = vmatprep.subr.mxu0 0.0
        %5281 = vmatpush1.msra.mxu0 0.0
        %5282 = vmatprep.subr.mxu0 0.0
        %5283 = vmatpush1.msra.mxu0 0.0
        %5284 = vmatprep.subr.mxu0 0.0
        %5285 = vmatpush1.msra.mxu0 0.0
        %5286 = vmatprep.subr.mxu0 0.0
        %5287 = vmatpush1.msra.mxu0 0.0
        %5288 = vmatprep.subr.mxu0 0.0
        %5289 = vmatpush1.msra.mxu0 0.0
        %5290 = vmatprep.subr.mxu0 0.0
        %5291 = vmatpush1.msra.mxu0 0.0
        %5292 = vmatprep.subr.mxu0 0.0
        %5293 = vmatpush1.msra.mxu0 0.0
        %5294 = vmatprep.subr.mxu0 %v5227
        %5295 = vmatpush1.msra.mxu0 %v5226
        %5296 = vmatprep.subr.mxu0 %v5223
        %5297 = vmatpush1.msra.mxu0 %v5222
        %5298 = vmatprep.subr.mxu0 %v5219
        %5299 = vmatpush1.msra.mxu0 %v5218
        %5300 = vmatprep.subr.mxu0 %v5215
        %5301 = vmatpush1.msra.mxu0 %v5214
        %5302 = vmatprep.subr.mxu0 0.0
        %5303 = vmatpush2.msra.mxu0 0.0
        %5304 = vmatprep.subr.mxu0 0.0
        %5305 = vmatpush2.msra.mxu0 0.0
        %5306 = vmatprep.subr.mxu0 0.0
        %5307 = vmatpush2.msra.mxu0 0.0
        %5308 = vmatprep.subr.mxu0 0.0
        %5309 = vmatpush2.msra.mxu0 0.0
        %5310 = vmatprep.subr.mxu0 0.0
        %5311 = vmatpush2.msra.mxu0 0.0
        %5312 = vmatprep.subr.mxu0 0.0
        %5313 = vmatpush2.msra.mxu0 0.0
        %5314 = vmatprep.subr.mxu0 0.0
        %5315 = vmatpush2.msra.mxu0 0.0
        %5316 = vmatprep.subr.mxu0 0.0
        %5317 = vmatpush2.msra.mxu0 0.0
        %5318 = vmatprep.subr.mxu0 0.0
        %5319 = vmatpush2.msra.mxu0 0.0
        %5320 = vmatprep.subr.mxu0 0.0
        %5321 = vmatpush2.msra.mxu0 0.0
        %5322 = vmatprep.subr.mxu0 0.0
        %5323 = vmatpush2.msra.mxu0 0.0
        %5324 = vmatprep.subr.mxu0 0.0
        %5325 = vmatpush2.msra.mxu0 0.0
        %5326 = vmatprep.subr.mxu0 0.0
        %5327 = vmatpush2.msra.mxu0 0.0
        %5328 = vmatprep.subr.mxu0 0.0
        %5329 = vmatpush2.msra.mxu0 0.0
        %5330 = vmatprep.subr.mxu0 0.0
        %5331 = vmatpush2.msra.mxu0 0.0
        %5332 = vmatprep.subr.mxu0 0.0
        %5333 = vmatpush2.msra.mxu0 0.0
        %5334 = vmatprep.mubr.f32.mxu0 0.0
        %5335 = vmatmul.mubr.f32.gmra.mxu0 %v5259
        %v5336 = vpop.f32.mrf.mxu0
        %v5337 = vadd.f32 %v5241, %v5336
        %v5338 = vpop.f32.mrf.mxu0
        %v5339 = vadd.f32 %v5241, %v5338
        %5340 = vmatprep.mubr.f32.mxu0 0.0
        %5341 = vmatmul.mubr.f32.gmra.mxu0 %v5262
        %v5342 = vpop.f32.mrf.mxu0
        %v5343 = vadd.f32 %v5246, %v5342
        %v5344 = vpop.f32.mrf.mxu0
        %v5345 = vadd.f32 %v5246, %v5344
        %5346 = vmatprep.mubr.f32.mxu0 0.0
        %5347 = vmatmul.mubr.f32.gmra.mxu0 %v5265
        %v5348 = vpop.f32.mrf.mxu0
        %v5349 = vadd.f32 %v5251, %v5348
        %v5350 = vpop.f32.mrf.mxu0
        %v5351 = vadd.f32 %v5251, %v5350
        %5352 = vmatprep.mubr.f32.mxu0 0.0
        %5353 = vmatmul.mubr.f32.gmra.mxu0 %v5268
        %v5354 = vpop.f32.mrf.mxu0
        %v5355 = vadd.f32 %v5256, %v5354
        %v5356 = vpop.f32.mrf.mxu0
        %v5357 = vadd.f32 %v5256, %v5356
        %5358 = vdwg.mxu0
        %5359 = vmatprep.subr.mxu0 0.0
        %5360 = vmatpush1.msra.mxu0 0.0
        %5361 = vmatprep.subr.mxu0 0.0
        %5362 = vmatpush1.msra.mxu0 0.0
        %5363 = vmatprep.subr.mxu0 0.0
        %5364 = vmatpush1.msra.mxu0 0.0
        %5365 = vmatprep.subr.mxu0 0.0
        %5366 = vmatpush1.msra.mxu0 0.0
        %5367 = vmatprep.subr.mxu0 0.0
        %5368 = vmatpush1.msra.mxu0 0.0
        %5369 = vmatprep.subr.mxu0 0.0
        %5370 = vmatpush1.msra.mxu0 0.0
        %5371 = vmatprep.subr.mxu0 0.0
        %5372 = vmatpush1.msra.mxu0 0.0
        %5373 = vmatprep.subr.mxu0 0.0
        %5374 = vmatpush1.msra.mxu0 0.0
        %5375 = vmatprep.subr.mxu0 0.0
        %5376 = vmatpush1.msra.mxu0 0.0
        %5377 = vmatprep.subr.mxu0 0.0
        %5378 = vmatpush1.msra.mxu0 0.0
        %5379 = vmatprep.subr.mxu0 0.0
        %5380 = vmatpush1.msra.mxu0 0.0
        %5381 = vmatprep.subr.mxu0 0.0
        %5382 = vmatpush1.msra.mxu0 0.0
        %5383 = vmatprep.subr.mxu0 %v5229
        %5384 = vmatpush1.msra.mxu0 %v5228
        %5385 = vmatprep.subr.mxu0 %v5225
        %5386 = vmatpush1.msra.mxu0 %v5224
        %5387 = vmatprep.subr.mxu0 %v5221
        %5388 = vmatpush1.msra.mxu0 %v5220
        %5389 = vmatprep.subr.mxu0 %v5217
        %5390 = vmatpush1.msra.mxu0 %v5216
        %5391 = vmatprep.subr.mxu0 0.0
        %5392 = vmatpush2.msra.mxu0 0.0
        %5393 = vmatprep.subr.mxu0 0.0
        %5394 = vmatpush2.msra.mxu0 0.0
        %5395 = vmatprep.subr.mxu0 0.0
        %5396 = vmatpush2.msra.mxu0 0.0
        %5397 = vmatprep.subr.mxu0 0.0
        %5398 = vmatpush2.msra.mxu0 0.0
        %5399 = vmatprep.subr.mxu0 0.0
        %5400 = vmatpush2.msra.mxu0 0.0
        %5401 = vmatprep.subr.mxu0 0.0
        %5402 = vmatpush2.msra.mxu0 0.0
        %5403 = vmatprep.subr.mxu0 0.0
        %5404 = vmatpush2.msra.mxu0 0.0
        %5405 = vmatprep.subr.mxu0 0.0
        %5406 = vmatpush2.msra.mxu0 0.0
        %5407 = vmatprep.subr.mxu0 0.0
        %5408 = vmatpush2.msra.mxu0 0.0
        %5409 = vmatprep.subr.mxu0 0.0
        %5410 = vmatpush2.msra.mxu0 0.0
        %5411 = vmatprep.subr.mxu0 0.0
        %5412 = vmatpush2.msra.mxu0 0.0
        %5413 = vmatprep.subr.mxu0 0.0
        %5414 = vmatpush2.msra.mxu0 0.0
        %5415 = vmatprep.subr.mxu0 0.0
        %5416 = vmatpush2.msra.mxu0 0.0
        %5417 = vmatprep.subr.mxu0 0.0
        %5418 = vmatpush2.msra.mxu0 0.0
        %5419 = vmatprep.subr.mxu0 0.0
        %5420 = vmatpush2.msra.mxu0 0.0
        %5421 = vmatprep.subr.mxu0 0.0
        %5422 = vmatpush2.msra.mxu0 0.0
        %5423 = vmatprep.mubr.f32.mxu0 0.0
        %5424 = vmatmul.mubr.f32.gmra.mxu0 %v5259
        %v5425 = vpop.f32.mrf.mxu0
        %v5426 = vadd.f32 %v5241, %v5425
        %v5427 = vpop.f32.mrf.mxu0
        %v5428 = vadd.f32 %v5241, %v5427
        %5429 = vmatprep.mubr.f32.mxu0 0.0
        %5430 = vmatmul.mubr.f32.gmra.mxu0 %v5262
        %v5431 = vpop.f32.mrf.mxu0
        %v5432 = vadd.f32 %v5246, %v5431
        %v5433 = vpop.f32.mrf.mxu0
        %v5434 = vadd.f32 %v5246, %v5433
        %5435 = vmatprep.mubr.f32.mxu0 0.0
        %5436 = vmatmul.mubr.f32.gmra.mxu0 %v5265
        %v5437 = vpop.f32.mrf.mxu0
        %v5438 = vadd.f32 %v5251, %v5437
        %v5439 = vpop.f32.mrf.mxu0
        %v5440 = vadd.f32 %v5251, %v5439
        %5441 = vmatprep.mubr.f32.mxu0 0.0
        %5442 = vmatmul.mubr.f32.gmra.mxu0 %v5268
        %v5443 = vpop.f32.mrf.mxu0
        %v5444 = vadd.f32 %v5256, %v5443
        %v5445 = vpop.f32.mrf.mxu0
        %v5446 = vadd.f32 %v5256, %v5445
        %5447 = vdwg.mxu0
        %v5448 = vmax.f32 %v5337, 0.0
        %v5449 = vmax.f32 %v5339, 0.0
        %v5450 = vmax.f32 %v5426, 0.0
        %v5451 = vmax.f32 %v5428, 0.0
        %v5452 = vmax.f32 %v5343, 0.0
        %v5453 = vmax.f32 %v5345, 0.0
        %v5454 = vmax.f32 %v5432, 0.0
        %v5455 = vmax.f32 %v5434, 0.0
        %v5456 = vmax.f32 %v5349, 0.0
        %v5457 = vmax.f32 %v5351, 0.0
        %v5458 = vmax.f32 %v5438, 0.0
        %v5459 = vmax.f32 %v5440, 0.0
        %v5460 = vmax.f32 %v5355, 0.0
        %v5461 = vmax.f32 %v5357, 0.0
        %v5462 = vmax.f32 %v5444, 0.0
        %v5463 = vmax.f32 %v5446, 0.0
        %v5464 = vadd.f32 %v4746, %v5448
        %v5465 = vadd.f32 %v4747, %v5449
        %v5466 = vadd.f32 %v4748, %v5450
        %v5467 = vadd.f32 %v4749, %v5451
        %v5468 = vadd.f32 %v4750, %v5452
        %v5469 = vadd.f32 %v4751, %v5453
        %v5470 = vadd.f32 %v4752, %v5454
        %v5471 = vadd.f32 %v4753, %v5455
        %v5472 = vadd.f32 %v4754, %v5456
        %v5473 = vadd.f32 %v4755, %v5457
        %v5474 = vadd.f32 %v4756, %v5458
        %v5475 = vadd.f32 %v4757, %v5459
        %v5476 = vadd.f32 %v4758, %v5460
        %v5477 = vadd.f32 %v4759, %v5461
        %v5478 = vadd.f32 %v4760, %v5462
        %v5479 = vadd.f32 %v4761, %v5463
        %v5480 = vld [vmem:[%s986] sm:$0xff]
        %v5481 = vld [vmem:[%s986 + $0x8] sm:$0xff]
        %v5482 = vld [vmem:[%s986 + $0x10] sm:$0xff]
        %v5483 = vld [vmem:[%s986 + $0x18] sm:$0xff]
        %v5484 = vld [vmem:[%s991] sm:$0xff]
        %v5485 = vld [vmem:[%s991 + $0x8] sm:$0xff]
        %v5486 = vld [vmem:[%s991 + $0x10] sm:$0xff]
        %v5487 = vld [vmem:[%s991 + $0x18] sm:$0xff]
        %5489 = vset.pattern.permute.xlu0 0
        %5490 = vperm.xlu0 %5489, %v5484
        %v5491 = vpop.permute.xlu0 %5490
        %5494 = vset.pattern.permute.xlu0 0
        %5495 = vperm.xlu0 %5494, %v5485
        %v5496 = vpop.permute.xlu0 %5495
        %5499 = vset.pattern.permute.xlu0 0
        %5500 = vperm.xlu0 %5499, %v5486
        %v5501 = vpop.permute.xlu0 %5500
        %5504 = vset.pattern.permute.xlu0 0
        %5505 = vperm.xlu0 %5504, %v5487
        %v5506 = vpop.permute.xlu0 %5505
        %v5509 = vsel %vm291, %v5480, 0
        %v5512 = vsel %vm291, %v5481, 0
        %v5515 = vsel %vm291, %v5482, 0
        %v5518 = vsel %vm291, %v5483, 0
        %5520 = vmatprep.subr.mxu0 0.0
        %5521 = vmatpush1.msra.mxu0 0.0
        %5522 = vmatprep.subr.mxu0 0.0
        %5523 = vmatpush1.msra.mxu0 0.0
        %5524 = vmatprep.subr.mxu0 0.0
        %5525 = vmatpush1.msra.mxu0 0.0
        %5526 = vmatprep.subr.mxu0 0.0
        %5527 = vmatpush1.msra.mxu0 0.0
        %5528 = vmatprep.subr.mxu0 0.0
        %5529 = vmatpush1.msra.mxu0 0.0
        %5530 = vmatprep.subr.mxu0 0.0
        %5531 = vmatpush1.msra.mxu0 0.0
        %5532 = vmatprep.subr.mxu0 0.0
        %5533 = vmatpush1.msra.mxu0 0.0
        %5534 = vmatprep.subr.mxu0 0.0
        %5535 = vmatpush1.msra.mxu0 0.0
        %5536 = vmatprep.subr.mxu0 0.0
        %5537 = vmatpush1.msra.mxu0 0.0
        %5538 = vmatprep.subr.mxu0 0.0
        %5539 = vmatpush1.msra.mxu0 0.0
        %5540 = vmatprep.subr.mxu0 0.0
        %5541 = vmatpush1.msra.mxu0 0.0
        %5542 = vmatprep.subr.mxu0 0.0
        %5543 = vmatpush1.msra.mxu0 0.0
        %5544 = vmatprep.subr.mxu0 %v5477
        %5545 = vmatpush1.msra.mxu0 %v5476
        %5546 = vmatprep.subr.mxu0 %v5473
        %5547 = vmatpush1.msra.mxu0 %v5472
        %5548 = vmatprep.subr.mxu0 %v5469
        %5549 = vmatpush1.msra.mxu0 %v5468
        %5550 = vmatprep.subr.mxu0 %v5465
        %5551 = vmatpush1.msra.mxu0 %v5464
        %5552 = vmatprep.subr.mxu0 0.0
        %5553 = vmatpush2.msra.mxu0 0.0
        %5554 = vmatprep.subr.mxu0 0.0
        %5555 = vmatpush2.msra.mxu0 0.0
        %5556 = vmatprep.subr.mxu0 0.0
        %5557 = vmatpush2.msra.mxu0 0.0
        %5558 = vmatprep.subr.mxu0 0.0
        %5559 = vmatpush2.msra.mxu0 0.0
        %5560 = vmatprep.subr.mxu0 0.0
        %5561 = vmatpush2.msra.mxu0 0.0
        %5562 = vmatprep.subr.mxu0 0.0
        %5563 = vmatpush2.msra.mxu0 0.0
        %5564 = vmatprep.subr.mxu0 0.0
        %5565 = vmatpush2.msra.mxu0 0.0
        %5566 = vmatprep.subr.mxu0 0.0
        %5567 = vmatpush2.msra.mxu0 0.0
        %5568 = vmatprep.subr.mxu0 0.0
        %5569 = vmatpush2.msra.mxu0 0.0
        %5570 = vmatprep.subr.mxu0 0.0
        %5571 = vmatpush2.msra.mxu0 0.0
        %5572 = vmatprep.subr.mxu0 0.0
        %5573 = vmatpush2.msra.mxu0 0.0
        %5574 = vmatprep.subr.mxu0 0.0
        %5575 = vmatpush2.msra.mxu0 0.0
        %5576 = vmatprep.subr.mxu0 0.0
        %5577 = vmatpush2.msra.mxu0 0.0
        %5578 = vmatprep.subr.mxu0 0.0
        %5579 = vmatpush2.msra.mxu0 0.0
        %5580 = vmatprep.subr.mxu0 0.0
        %5581 = vmatpush2.msra.mxu0 0.0
        %5582 = vmatprep.subr.mxu0 0.0
        %5583 = vmatpush2.msra.mxu0 0.0
        %5584 = vmatprep.mubr.f32.mxu0 0.0
        %5585 = vmatmul.mubr.f32.gmra.mxu0 %v5509
        %v5586 = vpop.f32.mrf.mxu0
        %v5587 = vadd.f32 %v5491, %v5586
        %v5588 = vpop.f32.mrf.mxu0
        %v5589 = vadd.f32 %v5491, %v5588
        %5590 = vmatprep.mubr.f32.mxu0 0.0
        %5591 = vmatmul.mubr.f32.gmra.mxu0 %v5512
        %v5592 = vpop.f32.mrf.mxu0
        %v5593 = vadd.f32 %v5496, %v5592
        %v5594 = vpop.f32.mrf.mxu0
        %v5595 = vadd.f32 %v5496, %v5594
        %5596 = vmatprep.mubr.f32.mxu0 0.0
        %5597 = vmatmul.mubr.f32.gmra.mxu0 %v5515
        %v5598 = vpop.f32.mrf.mxu0
        %v5599 = vadd.f32 %v5501, %v5598
        %v5600 = vpop.f32.mrf.mxu0
        %v5601 = vadd.f32 %v5501, %v5600
        %5602 = vmatprep.mubr.f32.mxu0 0.0
        %5603 = vmatmul.mubr.f32.gmra.mxu0 %v5518
        %v5604 = vpop.f32.mrf.mxu0
        %v5605 = vadd.f32 %v5506, %v5604
        %v5606 = vpop.f32.mrf.mxu0
        %v5607 = vadd.f32 %v5506, %v5606
        %5608 = vdwg.mxu0
        %5609 = vmatprep.subr.mxu0 0.0
        %5610 = vmatpush1.msra.mxu0 0.0
        %5611 = vmatprep.subr.mxu0 0.0
        %5612 = vmatpush1.msra.mxu0 0.0
        %5613 = vmatprep.subr.mxu0 0.0
        %5614 = vmatpush1.msra.mxu0 0.0
        %5615 = vmatprep.subr.mxu0 0.0
        %5616 = vmatpush1.msra.mxu0 0.0
        %5617 = vmatprep.subr.mxu0 0.0
        %5618 = vmatpush1.msra.mxu0 0.0
        %5619 = vmatprep.subr.mxu0 0.0
        %5620 = vmatpush1.msra.mxu0 0.0
        %5621 = vmatprep.subr.mxu0 0.0
        %5622 = vmatpush1.msra.mxu0 0.0
        %5623 = vmatprep.subr.mxu0 0.0
        %5624 = vmatpush1.msra.mxu0 0.0
        %5625 = vmatprep.subr.mxu0 0.0
        %5626 = vmatpush1.msra.mxu0 0.0
        %5627 = vmatprep.subr.mxu0 0.0
        %5628 = vmatpush1.msra.mxu0 0.0
        %5629 = vmatprep.subr.mxu0 0.0
        %5630 = vmatpush1.msra.mxu0 0.0
        %5631 = vmatprep.subr.mxu0 0.0
        %5632 = vmatpush1.msra.mxu0 0.0
        %5633 = vmatprep.subr.mxu0 %v5479
        %5634 = vmatpush1.msra.mxu0 %v5478
        %5635 = vmatprep.subr.mxu0 %v5475
        %5636 = vmatpush1.msra.mxu0 %v5474
        %5637 = vmatprep.subr.mxu0 %v5471
        %5638 = vmatpush1.msra.mxu0 %v5470
        %5639 = vmatprep.subr.mxu0 %v5467
        %5640 = vmatpush1.msra.mxu0 %v5466
        %5641 = vmatprep.subr.mxu0 0.0
        %5642 = vmatpush2.msra.mxu0 0.0
        %5643 = vmatprep.subr.mxu0 0.0
        %5644 = vmatpush2.msra.mxu0 0.0
        %5645 = vmatprep.subr.mxu0 0.0
        %5646 = vmatpush2.msra.mxu0 0.0
        %5647 = vmatprep.subr.mxu0 0.0
        %5648 = vmatpush2.msra.mxu0 0.0
        %5649 = vmatprep.subr.mxu0 0.0
        %5650 = vmatpush2.msra.mxu0 0.0
        %5651 = vmatprep.subr.mxu0 0.0
        %5652 = vmatpush2.msra.mxu0 0.0
        %5653 = vmatprep.subr.mxu0 0.0
        %5654 = vmatpush2.msra.mxu0 0.0
        %5655 = vmatprep.subr.mxu0 0.0
        %5656 = vmatpush2.msra.mxu0 0.0
        %5657 = vmatprep.subr.mxu0 0.0
        %5658 = vmatpush2.msra.mxu0 0.0
        %5659 = vmatprep.subr.mxu0 0.0
        %5660 = vmatpush2.msra.mxu0 0.0
        %5661 = vmatprep.subr.mxu0 0.0
        %5662 = vmatpush2.msra.mxu0 0.0
        %5663 = vmatprep.subr.mxu0 0.0
        %5664 = vmatpush2.msra.mxu0 0.0
        %5665 = vmatprep.subr.mxu0 0.0
        %5666 = vmatpush2.msra.mxu0 0.0
        %5667 = vmatprep.subr.mxu0 0.0
        %5668 = vmatpush2.msra.mxu0 0.0
        %5669 = vmatprep.subr.mxu0 0.0
        %5670 = vmatpush2.msra.mxu0 0.0
        %5671 = vmatprep.subr.mxu0 0.0
        %5672 = vmatpush2.msra.mxu0 0.0
        %5673 = vmatprep.mubr.f32.mxu0 0.0
        %5674 = vmatmul.mubr.f32.gmra.mxu0 %v5509
        %v5675 = vpop.f32.mrf.mxu0
        %v5676 = vadd.f32 %v5491, %v5675
        %v5677 = vpop.f32.mrf.mxu0
        %v5678 = vadd.f32 %v5491, %v5677
        %5679 = vmatprep.mubr.f32.mxu0 0.0
        %5680 = vmatmul.mubr.f32.gmra.mxu0 %v5512
        %v5681 = vpop.f32.mrf.mxu0
        %v5682 = vadd.f32 %v5496, %v5681
        %v5683 = vpop.f32.mrf.mxu0
        %v5684 = vadd.f32 %v5496, %v5683
        %5685 = vmatprep.mubr.f32.mxu0 0.0
        %5686 = vmatmul.mubr.f32.gmra.mxu0 %v5515
        %v5687 = vpop.f32.mrf.mxu0
        %v5688 = vadd.f32 %v5501, %v5687
        %v5689 = vpop.f32.mrf.mxu0
        %v5690 = vadd.f32 %v5501, %v5689
        %5691 = vmatprep.mubr.f32.mxu0 0.0
        %5692 = vmatmul.mubr.f32.gmra.mxu0 %v5518
        %v5693 = vpop.f32.mrf.mxu0
        %v5694 = vadd.f32 %v5506, %v5693
        %v5695 = vpop.f32.mrf.mxu0
        %v5696 = vadd.f32 %v5506, %v5695
        %5697 = vdwg.mxu0
        %v5698 = vmax.f32 %v5587, 0.0
        %v5699 = vmax.f32 %v5589, 0.0
        %v5700 = vmax.f32 %v5676, 0.0
        %v5701 = vmax.f32 %v5678, 0.0
        %v5702 = vmax.f32 %v5593, 0.0
        %v5703 = vmax.f32 %v5595, 0.0
        %v5704 = vmax.f32 %v5682, 0.0
        %v5705 = vmax.f32 %v5684, 0.0
        %v5706 = vmax.f32 %v5599, 0.0
        %v5707 = vmax.f32 %v5601, 0.0
        %v5708 = vmax.f32 %v5688, 0.0
        %v5709 = vmax.f32 %v5690, 0.0
        %v5710 = vmax.f32 %v5605, 0.0
        %v5711 = vmax.f32 %v5607, 0.0
        %v5712 = vmax.f32 %v5694, 0.0
        %v5713 = vmax.f32 %v5696, 0.0
        %v5714 = vld [vmem:[%s1222] sm:$0xff]
        %v5715 = vld [vmem:[%s1222 + $0x8] sm:$0xff]
        %v5716 = vld [vmem:[%s1222 + $0x10] sm:$0xff]
        %v5717 = vld [vmem:[%s1222 + $0x18] sm:$0xff]
        %v5718 = vld [vmem:[%s1227] sm:$0xff]
        %v5719 = vld [vmem:[%s1227 + $0x8] sm:$0xff]
        %v5720 = vld [vmem:[%s1227 + $0x10] sm:$0xff]
        %v5721 = vld [vmem:[%s1227 + $0x18] sm:$0xff]
        %5723 = vset.pattern.permute.xlu0 0
        %5724 = vperm.xlu0 %5723, %v5718
        %v5725 = vpop.permute.xlu0 %5724
        %5728 = vset.pattern.permute.xlu0 0
        %5729 = vperm.xlu0 %5728, %v5719
        %v5730 = vpop.permute.xlu0 %5729
        %5733 = vset.pattern.permute.xlu0 0
        %5734 = vperm.xlu0 %5733, %v5720
        %v5735 = vpop.permute.xlu0 %5734
        %5738 = vset.pattern.permute.xlu0 0
        %5739 = vperm.xlu0 %5738, %v5721
        %v5740 = vpop.permute.xlu0 %5739
        %v5743 = vsel %vm291, %v5714, 0
        %v5746 = vsel %vm291, %v5715, 0
        %v5749 = vsel %vm291, %v5716, 0
        %v5752 = vsel %vm291, %v5717, 0
        %5754 = vmatprep.subr.mxu0 0.0
        %5755 = vmatpush1.msra.mxu0 0.0
        %5756 = vmatprep.subr.mxu0 0.0
        %5757 = vmatpush1.msra.mxu0 0.0
        %5758 = vmatprep.subr.mxu0 0.0
        %5759 = vmatpush1.msra.mxu0 0.0
        %5760 = vmatprep.subr.mxu0 0.0
        %5761 = vmatpush1.msra.mxu0 0.0
        %5762 = vmatprep.subr.mxu0 0.0
        %5763 = vmatpush1.msra.mxu0 0.0
        %5764 = vmatprep.subr.mxu0 0.0
        %5765 = vmatpush1.msra.mxu0 0.0
        %5766 = vmatprep.subr.mxu0 0.0
        %5767 = vmatpush1.msra.mxu0 0.0
        %5768 = vmatprep.subr.mxu0 0.0
        %5769 = vmatpush1.msra.mxu0 0.0
        %5770 = vmatprep.subr.mxu0 0.0
        %5771 = vmatpush1.msra.mxu0 0.0
        %5772 = vmatprep.subr.mxu0 0.0
        %5773 = vmatpush1.msra.mxu0 0.0
        %5774 = vmatprep.subr.mxu0 0.0
        %5775 = vmatpush1.msra.mxu0 0.0
        %5776 = vmatprep.subr.mxu0 0.0
        %5777 = vmatpush1.msra.mxu0 0.0
        %5778 = vmatprep.subr.mxu0 %v5711
        %5779 = vmatpush1.msra.mxu0 %v5710
        %5780 = vmatprep.subr.mxu0 %v5707
        %5781 = vmatpush1.msra.mxu0 %v5706
        %5782 = vmatprep.subr.mxu0 %v5703
        %5783 = vmatpush1.msra.mxu0 %v5702
        %5784 = vmatprep.subr.mxu0 %v5699
        %5785 = vmatpush1.msra.mxu0 %v5698
        %5786 = vmatprep.subr.mxu0 0.0
        %5787 = vmatpush2.msra.mxu0 0.0
        %5788 = vmatprep.subr.mxu0 0.0
        %5789 = vmatpush2.msra.mxu0 0.0
        %5790 = vmatprep.subr.mxu0 0.0
        %5791 = vmatpush2.msra.mxu0 0.0
        %5792 = vmatprep.subr.mxu0 0.0
        %5793 = vmatpush2.msra.mxu0 0.0
        %5794 = vmatprep.subr.mxu0 0.0
        %5795 = vmatpush2.msra.mxu0 0.0
        %5796 = vmatprep.subr.mxu0 0.0
        %5797 = vmatpush2.msra.mxu0 0.0
        %5798 = vmatprep.subr.mxu0 0.0
        %5799 = vmatpush2.msra.mxu0 0.0
        %5800 = vmatprep.subr.mxu0 0.0
        %5801 = vmatpush2.msra.mxu0 0.0
        %5802 = vmatprep.subr.mxu0 0.0
        %5803 = vmatpush2.msra.mxu0 0.0
        %5804 = vmatprep.subr.mxu0 0.0
        %5805 = vmatpush2.msra.mxu0 0.0
        %5806 = vmatprep.subr.mxu0 0.0
        %5807 = vmatpush2.msra.mxu0 0.0
        %5808 = vmatprep.subr.mxu0 0.0
        %5809 = vmatpush2.msra.mxu0 0.0
        %5810 = vmatprep.subr.mxu0 0.0
        %5811 = vmatpush2.msra.mxu0 0.0
        %5812 = vmatprep.subr.mxu0 0.0
        %5813 = vmatpush2.msra.mxu0 0.0
        %5814 = vmatprep.subr.mxu0 0.0
        %5815 = vmatpush2.msra.mxu0 0.0
        %5816 = vmatprep.subr.mxu0 0.0
        %5817 = vmatpush2.msra.mxu0 0.0
        %5818 = vmatprep.mubr.f32.mxu0 0.0
        %5819 = vmatmul.mubr.f32.gmra.mxu0 %v5743
        %v5820 = vpop.f32.mrf.mxu0
        %v5821 = vadd.f32 %v5725, %v5820
        %v5822 = vpop.f32.mrf.mxu0
        %v5823 = vadd.f32 %v5725, %v5822
        %5824 = vmatprep.mubr.f32.mxu0 0.0
        %5825 = vmatmul.mubr.f32.gmra.mxu0 %v5746
        %v5826 = vpop.f32.mrf.mxu0
        %v5827 = vadd.f32 %v5730, %v5826
        %v5828 = vpop.f32.mrf.mxu0
        %v5829 = vadd.f32 %v5730, %v5828
        %5830 = vmatprep.mubr.f32.mxu0 0.0
        %5831 = vmatmul.mubr.f32.gmra.mxu0 %v5749
        %v5832 = vpop.f32.mrf.mxu0
        %v5833 = vadd.f32 %v5735, %v5832
        %v5834 = vpop.f32.mrf.mxu0
        %v5835 = vadd.f32 %v5735, %v5834
        %5836 = vmatprep.mubr.f32.mxu0 0.0
        %5837 = vmatmul.mubr.f32.gmra.mxu0 %v5752
        %v5838 = vpop.f32.mrf.mxu0
        %v5839 = vadd.f32 %v5740, %v5838
        %v5840 = vpop.f32.mrf.mxu0
        %v5841 = vadd.f32 %v5740, %v5840
        %5842 = vdwg.mxu0
        %5843 = vmatprep.subr.mxu0 0.0
        %5844 = vmatpush1.msra.mxu0 0.0
        %5845 = vmatprep.subr.mxu0 0.0
        %5846 = vmatpush1.msra.mxu0 0.0
        %5847 = vmatprep.subr.mxu0 0.0
        %5848 = vmatpush1.msra.mxu0 0.0
        %5849 = vmatprep.subr.mxu0 0.0
        %5850 = vmatpush1.msra.mxu0 0.0
        %5851 = vmatprep.subr.mxu0 0.0
        %5852 = vmatpush1.msra.mxu0 0.0
        %5853 = vmatprep.subr.mxu0 0.0
        %5854 = vmatpush1.msra.mxu0 0.0
        %5855 = vmatprep.subr.mxu0 0.0
        %5856 = vmatpush1.msra.mxu0 0.0
        %5857 = vmatprep.subr.mxu0 0.0
        %5858 = vmatpush1.msra.mxu0 0.0
        %5859 = vmatprep.subr.mxu0 0.0
        %5860 = vmatpush1.msra.mxu0 0.0
        %5861 = vmatprep.subr.mxu0 0.0
        %5862 = vmatpush1.msra.mxu0 0.0
        %5863 = vmatprep.subr.mxu0 0.0
        %5864 = vmatpush1.msra.mxu0 0.0
        %5865 = vmatprep.subr.mxu0 0.0
        %5866 = vmatpush1.msra.mxu0 0.0
        %5867 = vmatprep.subr.mxu0 %v5713
        %5868 = vmatpush1.msra.mxu0 %v5712
        %5869 = vmatprep.subr.mxu0 %v5709
        %5870 = vmatpush1.msra.mxu0 %v5708
        %5871 = vmatprep.subr.mxu0 %v5705
        %5872 = vmatpush1.msra.mxu0 %v5704
        %5873 = vmatprep.subr.mxu0 %v5701
        %5874 = vmatpush1.msra.mxu0 %v5700
        %5875 = vmatprep.subr.mxu0 0.0
        %5876 = vmatpush2.msra.mxu0 0.0
        %5877 = vmatprep.subr.mxu0 0.0
        %5878 = vmatpush2.msra.mxu0 0.0
        %5879 = vmatprep.subr.mxu0 0.0
        %5880 = vmatpush2.msra.mxu0 0.0
        %5881 = vmatprep.subr.mxu0 0.0
        %5882 = vmatpush2.msra.mxu0 0.0
        %5883 = vmatprep.subr.mxu0 0.0
        %5884 = vmatpush2.msra.mxu0 0.0
        %5885 = vmatprep.subr.mxu0 0.0
        %5886 = vmatpush2.msra.mxu0 0.0
        %5887 = vmatprep.subr.mxu0 0.0
        %5888 = vmatpush2.msra.mxu0 0.0
        %5889 = vmatprep.subr.mxu0 0.0
        %5890 = vmatpush2.msra.mxu0 0.0
        %5891 = vmatprep.subr.mxu0 0.0
        %5892 = vmatpush2.msra.mxu0 0.0
        %5893 = vmatprep.subr.mxu0 0.0
        %5894 = vmatpush2.msra.mxu0 0.0
        %5895 = vmatprep.subr.mxu0 0.0
        %5896 = vmatpush2.msra.mxu0 0.0
        %5897 = vmatprep.subr.mxu0 0.0
        %5898 = vmatpush2.msra.mxu0 0.0
        %5899 = vmatprep.subr.mxu0 0.0
        %5900 = vmatpush2.msra.mxu0 0.0
        %5901 = vmatprep.subr.mxu0 0.0
        %5902 = vmatpush2.msra.mxu0 0.0
        %5903 = vmatprep.subr.mxu0 0.0
        %5904 = vmatpush2.msra.mxu0 0.0
        %5905 = vmatprep.subr.mxu0 0.0
        %5906 = vmatpush2.msra.mxu0 0.0
        %5907 = vmatprep.mubr.f32.mxu0 0.0
        %5908 = vmatmul.mubr.f32.gmra.mxu0 %v5743
        %v5909 = vpop.f32.mrf.mxu0
        %v5910 = vadd.f32 %v5725, %v5909
        %v5911 = vpop.f32.mrf.mxu0
        %v5912 = vadd.f32 %v5725, %v5911
        %5913 = vmatprep.mubr.f32.mxu0 0.0
        %5914 = vmatmul.mubr.f32.gmra.mxu0 %v5746
        %v5915 = vpop.f32.mrf.mxu0
        %v5916 = vadd.f32 %v5730, %v5915
        %v5917 = vpop.f32.mrf.mxu0
        %v5918 = vadd.f32 %v5730, %v5917
        %5919 = vmatprep.mubr.f32.mxu0 0.0
        %5920 = vmatmul.mubr.f32.gmra.mxu0 %v5749
        %v5921 = vpop.f32.mrf.mxu0
        %v5922 = vadd.f32 %v5735, %v5921
        %v5923 = vpop.f32.mrf.mxu0
        %v5924 = vadd.f32 %v5735, %v5923
        %5925 = vmatprep.mubr.f32.mxu0 0.0
        %5926 = vmatmul.mubr.f32.gmra.mxu0 %v5752
        %v5927 = vpop.f32.mrf.mxu0
        %v5928 = vadd.f32 %v5740, %v5927
        %v5929 = vpop.f32.mrf.mxu0
        %v5930 = vadd.f32 %v5740, %v5929
        %5931 = vdwg.mxu0
        %v5932 = vmax.f32 %v5821, 0.0
        %v5933 = vmax.f32 %v5823, 0.0
        %v5934 = vmax.f32 %v5910, 0.0
        %v5935 = vmax.f32 %v5912, 0.0
        %v5936 = vmax.f32 %v5827, 0.0
        %v5937 = vmax.f32 %v5829, 0.0
        %v5938 = vmax.f32 %v5916, 0.0
        %v5939 = vmax.f32 %v5918, 0.0
        %v5940 = vmax.f32 %v5833, 0.0
        %v5941 = vmax.f32 %v5835, 0.0
        %v5942 = vmax.f32 %v5922, 0.0
        %v5943 = vmax.f32 %v5924, 0.0
        %v5944 = vmax.f32 %v5839, 0.0
        %v5945 = vmax.f32 %v5841, 0.0
        %v5946 = vmax.f32 %v5928, 0.0
        %v5947 = vmax.f32 %v5930, 0.0
        %v5948 = vld [vmem:[%s1458] sm:$0xff]
        %v5949 = vld [vmem:[%s1458 + $0x8] sm:$0xff]
        %v5950 = vld [vmem:[%s1458 + $0x10] sm:$0xff]
        %v5951 = vld [vmem:[%s1458 + $0x18] sm:$0xff]
        %v5952 = vld [vmem:[%s1463] sm:$0xff]
        %v5953 = vld [vmem:[%s1463 + $0x8] sm:$0xff]
        %v5954 = vld [vmem:[%s1463 + $0x10] sm:$0xff]
        %v5955 = vld [vmem:[%s1463 + $0x18] sm:$0xff]
        %5957 = vset.pattern.permute.xlu0 0
        %5958 = vperm.xlu0 %5957, %v5952
        %v5959 = vpop.permute.xlu0 %5958
        %5962 = vset.pattern.permute.xlu0 0
        %5963 = vperm.xlu0 %5962, %v5953
        %v5964 = vpop.permute.xlu0 %5963
        %5967 = vset.pattern.permute.xlu0 0
        %5968 = vperm.xlu0 %5967, %v5954
        %v5969 = vpop.permute.xlu0 %5968
        %5972 = vset.pattern.permute.xlu0 0
        %5973 = vperm.xlu0 %5972, %v5955
        %v5974 = vpop.permute.xlu0 %5973
        %v5977 = vsel %vm291, %v5948, 0
        %v5980 = vsel %vm291, %v5949, 0
        %v5983 = vsel %vm291, %v5950, 0
        %v5986 = vsel %vm291, %v5951, 0
        %5988 = vmatprep.subr.mxu0 0.0
        %5989 = vmatpush1.msra.mxu0 0.0
        %5990 = vmatprep.subr.mxu0 0.0
        %5991 = vmatpush1.msra.mxu0 0.0
        %5992 = vmatprep.subr.mxu0 0.0
        %5993 = vmatpush1.msra.mxu0 0.0
        %5994 = vmatprep.subr.mxu0 0.0
        %5995 = vmatpush1.msra.mxu0 0.0
        %5996 = vmatprep.subr.mxu0 0.0
        %5997 = vmatpush1.msra.mxu0 0.0
        %5998 = vmatprep.subr.mxu0 0.0
        %5999 = vmatpush1.msra.mxu0 0.0
        %6000 = vmatprep.subr.mxu0 0.0
        %6001 = vmatpush1.msra.mxu0 0.0
        %6002 = vmatprep.subr.mxu0 0.0
        %6003 = vmatpush1.msra.mxu0 0.0
        %6004 = vmatprep.subr.mxu0 0.0
        %6005 = vmatpush1.msra.mxu0 0.0
        %6006 = vmatprep.subr.mxu0 0.0
        %6007 = vmatpush1.msra.mxu0 0.0
        %6008 = vmatprep.subr.mxu0 0.0
        %6009 = vmatpush1.msra.mxu0 0.0
        %6010 = vmatprep.subr.mxu0 0.0
        %6011 = vmatpush1.msra.mxu0 0.0
        %6012 = vmatprep.subr.mxu0 %v5945
        %6013 = vmatpush1.msra.mxu0 %v5944
        %6014 = vmatprep.subr.mxu0 %v5941
        %6015 = vmatpush1.msra.mxu0 %v5940
        %6016 = vmatprep.subr.mxu0 %v5937
        %6017 = vmatpush1.msra.mxu0 %v5936
        %6018 = vmatprep.subr.mxu0 %v5933
        %6019 = vmatpush1.msra.mxu0 %v5932
        %6020 = vmatprep.subr.mxu0 0.0
        %6021 = vmatpush2.msra.mxu0 0.0
        %6022 = vmatprep.subr.mxu0 0.0
        %6023 = vmatpush2.msra.mxu0 0.0
        %6024 = vmatprep.subr.mxu0 0.0
        %6025 = vmatpush2.msra.mxu0 0.0
        %6026 = vmatprep.subr.mxu0 0.0
        %6027 = vmatpush2.msra.mxu0 0.0
        %6028 = vmatprep.subr.mxu0 0.0
        %6029 = vmatpush2.msra.mxu0 0.0
        %6030 = vmatprep.subr.mxu0 0.0
        %6031 = vmatpush2.msra.mxu0 0.0
        %6032 = vmatprep.subr.mxu0 0.0
        %6033 = vmatpush2.msra.mxu0 0.0
        %6034 = vmatprep.subr.mxu0 0.0
        %6035 = vmatpush2.msra.mxu0 0.0
        %6036 = vmatprep.subr.mxu0 0.0
        %6037 = vmatpush2.msra.mxu0 0.0
        %6038 = vmatprep.subr.mxu0 0.0
        %6039 = vmatpush2.msra.mxu0 0.0
        %6040 = vmatprep.subr.mxu0 0.0
        %6041 = vmatpush2.msra.mxu0 0.0
        %6042 = vmatprep.subr.mxu0 0.0
        %6043 = vmatpush2.msra.mxu0 0.0
        %6044 = vmatprep.subr.mxu0 0.0
        %6045 = vmatpush2.msra.mxu0 0.0
        %6046 = vmatprep.subr.mxu0 0.0
        %6047 = vmatpush2.msra.mxu0 0.0
        %6048 = vmatprep.subr.mxu0 0.0
        %6049 = vmatpush2.msra.mxu0 0.0
        %6050 = vmatprep.subr.mxu0 0.0
        %6051 = vmatpush2.msra.mxu0 0.0
        %6052 = vmatprep.mubr.f32.mxu0 0.0
        %6053 = vmatmul.mubr.f32.gmra.mxu0 %v5977
        %v6054 = vpop.f32.mrf.mxu0
        %v6055 = vadd.f32 %v5959, %v6054
        %v6056 = vpop.f32.mrf.mxu0
        %v6057 = vadd.f32 %v5959, %v6056
        %6058 = vmatprep.mubr.f32.mxu0 0.0
        %6059 = vmatmul.mubr.f32.gmra.mxu0 %v5980
        %v6060 = vpop.f32.mrf.mxu0
        %v6061 = vadd.f32 %v5964, %v6060
        %v6062 = vpop.f32.mrf.mxu0
        %v6063 = vadd.f32 %v5964, %v6062
        %6064 = vmatprep.mubr.f32.mxu0 0.0
        %6065 = vmatmul.mubr.f32.gmra.mxu0 %v5983
        %v6066 = vpop.f32.mrf.mxu0
        %v6067 = vadd.f32 %v5969, %v6066
        %v6068 = vpop.f32.mrf.mxu0
        %v6069 = vadd.f32 %v5969, %v6068
        %6070 = vmatprep.mubr.f32.mxu0 0.0
        %6071 = vmatmul.mubr.f32.gmra.mxu0 %v5986
        %v6072 = vpop.f32.mrf.mxu0
        %v6073 = vadd.f32 %v5974, %v6072
        %v6074 = vpop.f32.mrf.mxu0
        %v6075 = vadd.f32 %v5974, %v6074
        %6076 = vdwg.mxu0
        %6077 = vmatprep.subr.mxu0 0.0
        %6078 = vmatpush1.msra.mxu0 0.0
        %6079 = vmatprep.subr.mxu0 0.0
        %6080 = vmatpush1.msra.mxu0 0.0
        %6081 = vmatprep.subr.mxu0 0.0
        %6082 = vmatpush1.msra.mxu0 0.0
        %6083 = vmatprep.subr.mxu0 0.0
        %6084 = vmatpush1.msra.mxu0 0.0
        %6085 = vmatprep.subr.mxu0 0.0
        %6086 = vmatpush1.msra.mxu0 0.0
        %6087 = vmatprep.subr.mxu0 0.0
        %6088 = vmatpush1.msra.mxu0 0.0
        %6089 = vmatprep.subr.mxu0 0.0
        %6090 = vmatpush1.msra.mxu0 0.0
        %6091 = vmatprep.subr.mxu0 0.0
        %6092 = vmatpush1.msra.mxu0 0.0
        %6093 = vmatprep.subr.mxu0 0.0
        %6094 = vmatpush1.msra.mxu0 0.0
        %6095 = vmatprep.subr.mxu0 0.0
        %6096 = vmatpush1.msra.mxu0 0.0
        %6097 = vmatprep.subr.mxu0 0.0
        %6098 = vmatpush1.msra.mxu0 0.0
        %6099 = vmatprep.subr.mxu0 0.0
        %6100 = vmatpush1.msra.mxu0 0.0
        %6101 = vmatprep.subr.mxu0 %v5947
        %6102 = vmatpush1.msra.mxu0 %v5946
        %6103 = vmatprep.subr.mxu0 %v5943
        %6104 = vmatpush1.msra.mxu0 %v5942
        %6105 = vmatprep.subr.mxu0 %v5939
        %6106 = vmatpush1.msra.mxu0 %v5938
        %6107 = vmatprep.subr.mxu0 %v5935
        %6108 = vmatpush1.msra.mxu0 %v5934
        %6109 = vmatprep.subr.mxu0 0.0
        %6110 = vmatpush2.msra.mxu0 0.0
        %6111 = vmatprep.subr.mxu0 0.0
        %6112 = vmatpush2.msra.mxu0 0.0
        %6113 = vmatprep.subr.mxu0 0.0
        %6114 = vmatpush2.msra.mxu0 0.0
        %6115 = vmatprep.subr.mxu0 0.0
        %6116 = vmatpush2.msra.mxu0 0.0
        %6117 = vmatprep.subr.mxu0 0.0
        %6118 = vmatpush2.msra.mxu0 0.0
        %6119 = vmatprep.subr.mxu0 0.0
        %6120 = vmatpush2.msra.mxu0 0.0
        %6121 = vmatprep.subr.mxu0 0.0
        %6122 = vmatpush2.msra.mxu0 0.0
        %6123 = vmatprep.subr.mxu0 0.0
        %6124 = vmatpush2.msra.mxu0 0.0
        %6125 = vmatprep.subr.mxu0 0.0
        %6126 = vmatpush2.msra.mxu0 0.0
        %6127 = vmatprep.subr.mxu0 0.0
        %6128 = vmatpush2.msra.mxu0 0.0
        %6129 = vmatprep.subr.mxu0 0.0
        %6130 = vmatpush2.msra.mxu0 0.0
        %6131 = vmatprep.subr.mxu0 0.0
        %6132 = vmatpush2.msra.mxu0 0.0
        %6133 = vmatprep.subr.mxu0 0.0
        %6134 = vmatpush2.msra.mxu0 0.0
        %6135 = vmatprep.subr.mxu0 0.0
        %6136 = vmatpush2.msra.mxu0 0.0
        %6137 = vmatprep.subr.mxu0 0.0
        %6138 = vmatpush2.msra.mxu0 0.0
        %6139 = vmatprep.subr.mxu0 0.0
        %6140 = vmatpush2.msra.mxu0 0.0
        %6141 = vmatprep.mubr.f32.mxu0 0.0
        %6142 = vmatmul.mubr.f32.gmra.mxu0 %v5977
        %v6143 = vpop.f32.mrf.mxu0
        %v6144 = vadd.f32 %v5959, %v6143
        %v6145 = vpop.f32.mrf.mxu0
        %v6146 = vadd.f32 %v5959, %v6145
        %6147 = vmatprep.mubr.f32.mxu0 0.0
        %6148 = vmatmul.mubr.f32.gmra.mxu0 %v5980
        %v6149 = vpop.f32.mrf.mxu0
        %v6150 = vadd.f32 %v5964, %v6149
        %v6151 = vpop.f32.mrf.mxu0
        %v6152 = vadd.f32 %v5964, %v6151
        %6153 = vmatprep.mubr.f32.mxu0 0.0
        %6154 = vmatmul.mubr.f32.gmra.mxu0 %v5983
        %v6155 = vpop.f32.mrf.mxu0
        %v6156 = vadd.f32 %v5969, %v6155
        %v6157 = vpop.f32.mrf.mxu0
        %v6158 = vadd.f32 %v5969, %v6157
        %6159 = vmatprep.mubr.f32.mxu0 0.0
        %6160 = vmatmul.mubr.f32.gmra.mxu0 %v5986
        %v6161 = vpop.f32.mrf.mxu0
        %v6162 = vadd.f32 %v5974, %v6161
        %v6163 = vpop.f32.mrf.mxu0
        %v6164 = vadd.f32 %v5974, %v6163
        %6165 = vdwg.mxu0
        %v6166 = vmax.f32 %v6055, 0.0
        %v6167 = vmax.f32 %v6057, 0.0
        %v6168 = vmax.f32 %v6144, 0.0
        %v6169 = vmax.f32 %v6146, 0.0
        %v6170 = vmax.f32 %v6061, 0.0
        %v6171 = vmax.f32 %v6063, 0.0
        %v6172 = vmax.f32 %v6150, 0.0
        %v6173 = vmax.f32 %v6152, 0.0
        %v6174 = vmax.f32 %v6067, 0.0
        %v6175 = vmax.f32 %v6069, 0.0
        %v6176 = vmax.f32 %v6156, 0.0
        %v6177 = vmax.f32 %v6158, 0.0
        %v6178 = vmax.f32 %v6073, 0.0
        %v6179 = vmax.f32 %v6075, 0.0
        %v6180 = vmax.f32 %v6162, 0.0
        %v6181 = vmax.f32 %v6164, 0.0
        %v6182 = vadd.f32 %v5464, %v6166
        %v6183 = vadd.f32 %v5465, %v6167
        %v6184 = vadd.f32 %v5466, %v6168
        %v6185 = vadd.f32 %v5467, %v6169
        %v6186 = vadd.f32 %v5468, %v6170
        %v6187 = vadd.f32 %v5469, %v6171
        %v6188 = vadd.f32 %v5470, %v6172
        %v6189 = vadd.f32 %v5471, %v6173
        %v6190 = vadd.f32 %v5472, %v6174
        %v6191 = vadd.f32 %v5473, %v6175
        %v6192 = vadd.f32 %v5474, %v6176
        %v6193 = vadd.f32 %v5475, %v6177
        %v6194 = vadd.f32 %v5476, %v6178
        %v6195 = vadd.f32 %v5477, %v6179
        %v6196 = vadd.f32 %v5478, %v6180
        %v6197 = vadd.f32 %v5479, %v6181
        %v6198 = vld [vmem:[%s1710] sm:$0xff]
        %v6199 = vld [vmem:[%s1710 + $0x8] sm:$0xff]
        %v6200 = vld [vmem:[%s1710 + $0x10] sm:$0xff]
        %v6201 = vld [vmem:[%s1710 + $0x18] sm:$0xff]
        %v6202 = vld [vmem:[%s1715] sm:$0xff]
        %v6203 = vld [vmem:[%s1715 + $0x8] sm:$0xff]
        %v6204 = vld [vmem:[%s1715 + $0x10] sm:$0xff]
        %v6205 = vld [vmem:[%s1715 + $0x18] sm:$0xff]
        %6207 = vset.pattern.permute.xlu0 0
        %6208 = vperm.xlu0 %6207, %v6202
        %v6209 = vpop.permute.xlu0 %6208
        %6212 = vset.pattern.permute.xlu0 0
        %6213 = vperm.xlu0 %6212, %v6203
        %v6214 = vpop.permute.xlu0 %6213
        %6217 = vset.pattern.permute.xlu0 0
        %6218 = vperm.xlu0 %6217, %v6204
        %v6219 = vpop.permute.xlu0 %6218
        %6222 = vset.pattern.permute.xlu0 0
        %6223 = vperm.xlu0 %6222, %v6205
        %v6224 = vpop.permute.xlu0 %6223
        %v6227 = vsel %vm291, %v6198, 0
        %v6230 = vsel %vm291, %v6199, 0
        %v6233 = vsel %vm291, %v6200, 0
        %v6236 = vsel %vm291, %v6201, 0
        %6238 = vmatprep.subr.mxu0 0.0
        %6239 = vmatpush1.msra.mxu0 0.0
        %6240 = vmatprep.subr.mxu0 0.0
        %6241 = vmatpush1.msra.mxu0 0.0
        %6242 = vmatprep.subr.mxu0 0.0
        %6243 = vmatpush1.msra.mxu0 0.0
        %6244 = vmatprep.subr.mxu0 0.0
        %6245 = vmatpush1.msra.mxu0 0.0
        %6246 = vmatprep.subr.mxu0 0.0
        %6247 = vmatpush1.msra.mxu0 0.0
        %6248 = vmatprep.subr.mxu0 0.0
        %6249 = vmatpush1.msra.mxu0 0.0
        %6250 = vmatprep.subr.mxu0 0.0
        %6251 = vmatpush1.msra.mxu0 0.0
        %6252 = vmatprep.subr.mxu0 0.0
        %6253 = vmatpush1.msra.mxu0 0.0
        %6254 = vmatprep.subr.mxu0 0.0
        %6255 = vmatpush1.msra.mxu0 0.0
        %6256 = vmatprep.subr.mxu0 0.0
        %6257 = vmatpush1.msra.mxu0 0.0
        %6258 = vmatprep.subr.mxu0 0.0
        %6259 = vmatpush1.msra.mxu0 0.0
        %6260 = vmatprep.subr.mxu0 0.0
        %6261 = vmatpush1.msra.mxu0 0.0
        %6262 = vmatprep.subr.mxu0 %v6195
        %6263 = vmatpush1.msra.mxu0 %v6194
        %6264 = vmatprep.subr.mxu0 %v6191
        %6265 = vmatpush1.msra.mxu0 %v6190
        %6266 = vmatprep.subr.mxu0 %v6187
        %6267 = vmatpush1.msra.mxu0 %v6186
        %6268 = vmatprep.subr.mxu0 %v6183
        %6269 = vmatpush1.msra.mxu0 %v6182
        %6270 = vmatprep.subr.mxu0 0.0
        %6271 = vmatpush2.msra.mxu0 0.0
        %6272 = vmatprep.subr.mxu0 0.0
        %6273 = vmatpush2.msra.mxu0 0.0
        %6274 = vmatprep.subr.mxu0 0.0
        %6275 = vmatpush2.msra.mxu0 0.0
        %6276 = vmatprep.subr.mxu0 0.0
        %6277 = vmatpush2.msra.mxu0 0.0
        %6278 = vmatprep.subr.mxu0 0.0
        %6279 = vmatpush2.msra.mxu0 0.0
        %6280 = vmatprep.subr.mxu0 0.0
        %6281 = vmatpush2.msra.mxu0 0.0
        %6282 = vmatprep.subr.mxu0 0.0
        %6283 = vmatpush2.msra.mxu0 0.0
        %6284 = vmatprep.subr.mxu0 0.0
        %6285 = vmatpush2.msra.mxu0 0.0
        %6286 = vmatprep.subr.mxu0 0.0
        %6287 = vmatpush2.msra.mxu0 0.0
        %6288 = vmatprep.subr.mxu0 0.0
        %6289 = vmatpush2.msra.mxu0 0.0
        %6290 = vmatprep.subr.mxu0 0.0
        %6291 = vmatpush2.msra.mxu0 0.0
        %6292 = vmatprep.subr.mxu0 0.0
        %6293 = vmatpush2.msra.mxu0 0.0
        %6294 = vmatprep.subr.mxu0 0.0
        %6295 = vmatpush2.msra.mxu0 0.0
        %6296 = vmatprep.subr.mxu0 0.0
        %6297 = vmatpush2.msra.mxu0 0.0
        %6298 = vmatprep.subr.mxu0 0.0
        %6299 = vmatpush2.msra.mxu0 0.0
        %6300 = vmatprep.subr.mxu0 0.0
        %6301 = vmatpush2.msra.mxu0 0.0
        %6302 = vmatprep.mubr.f32.mxu0 0.0
        %6303 = vmatmul.mubr.f32.gmra.mxu0 %v6227
        %v6304 = vpop.f32.mrf.mxu0
        %v6305 = vadd.f32 %v6209, %v6304
        %v6306 = vpop.f32.mrf.mxu0
        %v6307 = vadd.f32 %v6209, %v6306
        %6308 = vmatprep.mubr.f32.mxu0 0.0
        %6309 = vmatmul.mubr.f32.gmra.mxu0 %v6230
        %v6310 = vpop.f32.mrf.mxu0
        %v6311 = vadd.f32 %v6214, %v6310
        %v6312 = vpop.f32.mrf.mxu0
        %v6313 = vadd.f32 %v6214, %v6312
        %6314 = vmatprep.mubr.f32.mxu0 0.0
        %6315 = vmatmul.mubr.f32.gmra.mxu0 %v6233
        %v6316 = vpop.f32.mrf.mxu0
        %v6317 = vadd.f32 %v6219, %v6316
        %v6318 = vpop.f32.mrf.mxu0
        %v6319 = vadd.f32 %v6219, %v6318
        %6320 = vmatprep.mubr.f32.mxu0 0.0
        %6321 = vmatmul.mubr.f32.gmra.mxu0 %v6236
        %v6322 = vpop.f32.mrf.mxu0
        %v6323 = vadd.f32 %v6224, %v6322
        %v6324 = vpop.f32.mrf.mxu0
        %v6325 = vadd.f32 %v6224, %v6324
        %6326 = vdwg.mxu0
        %6327 = vmatprep.subr.mxu0 0.0
        %6328 = vmatpush1.msra.mxu0 0.0
        %6329 = vmatprep.subr.mxu0 0.0
        %6330 = vmatpush1.msra.mxu0 0.0
        %6331 = vmatprep.subr.mxu0 0.0
        %6332 = vmatpush1.msra.mxu0 0.0
        %6333 = vmatprep.subr.mxu0 0.0
        %6334 = vmatpush1.msra.mxu0 0.0
        %6335 = vmatprep.subr.mxu0 0.0
        %6336 = vmatpush1.msra.mxu0 0.0
        %6337 = vmatprep.subr.mxu0 0.0
        %6338 = vmatpush1.msra.mxu0 0.0
        %6339 = vmatprep.subr.mxu0 0.0
        %6340 = vmatpush1.msra.mxu0 0.0
        %6341 = vmatprep.subr.mxu0 0.0
        %6342 = vmatpush1.msra.mxu0 0.0
        %6343 = vmatprep.subr.mxu0 0.0
        %6344 = vmatpush1.msra.mxu0 0.0
        %6345 = vmatprep.subr.mxu0 0.0
        %6346 = vmatpush1.msra.mxu0 0.0
        %6347 = vmatprep.subr.mxu0 0.0
        %6348 = vmatpush1.msra.mxu0 0.0
        %6349 = vmatprep.subr.mxu0 0.0
        %6350 = vmatpush1.msra.mxu0 0.0
        %6351 = vmatprep.subr.mxu0 %v6197
        %6352 = vmatpush1.msra.mxu0 %v6196
        %6353 = vmatprep.subr.mxu0 %v6193
        %6354 = vmatpush1.msra.mxu0 %v6192
        %6355 = vmatprep.subr.mxu0 %v6189
        %6356 = vmatpush1.msra.mxu0 %v6188
        %6357 = vmatprep.subr.mxu0 %v6185
        %6358 = vmatpush1.msra.mxu0 %v6184
        %6359 = vmatprep.subr.mxu0 0.0
        %6360 = vmatpush2.msra.mxu0 0.0
        %6361 = vmatprep.subr.mxu0 0.0
        %6362 = vmatpush2.msra.mxu0 0.0
        %6363 = vmatprep.subr.mxu0 0.0
        %6364 = vmatpush2.msra.mxu0 0.0
        %6365 = vmatprep.subr.mxu0 0.0
        %6366 = vmatpush2.msra.mxu0 0.0
        %6367 = vmatprep.subr.mxu0 0.0
        %6368 = vmatpush2.msra.mxu0 0.0
        %6369 = vmatprep.subr.mxu0 0.0
        %6370 = vmatpush2.msra.mxu0 0.0
        %6371 = vmatprep.subr.mxu0 0.0
        %6372 = vmatpush2.msra.mxu0 0.0
        %6373 = vmatprep.subr.mxu0 0.0
        %6374 = vmatpush2.msra.mxu0 0.0
        %6375 = vmatprep.subr.mxu0 0.0
        %6376 = vmatpush2.msra.mxu0 0.0
        %6377 = vmatprep.subr.mxu0 0.0
        %6378 = vmatpush2.msra.mxu0 0.0
        %6379 = vmatprep.subr.mxu0 0.0
        %6380 = vmatpush2.msra.mxu0 0.0
        %6381 = vmatprep.subr.mxu0 0.0
        %6382 = vmatpush2.msra.mxu0 0.0
        %6383 = vmatprep.subr.mxu0 0.0
        %6384 = vmatpush2.msra.mxu0 0.0
        %6385 = vmatprep.subr.mxu0 0.0
        %6386 = vmatpush2.msra.mxu0 0.0
        %6387 = vmatprep.subr.mxu0 0.0
        %6388 = vmatpush2.msra.mxu0 0.0
        %6389 = vmatprep.subr.mxu0 0.0
        %6390 = vmatpush2.msra.mxu0 0.0
        %6391 = vmatprep.mubr.f32.mxu0 0.0
        %6392 = vmatmul.mubr.f32.gmra.mxu0 %v6227
        %v6393 = vpop.f32.mrf.mxu0
        %v6394 = vadd.f32 %v6209, %v6393
        %v6395 = vpop.f32.mrf.mxu0
        %v6396 = vadd.f32 %v6209, %v6395
        %6397 = vmatprep.mubr.f32.mxu0 0.0
        %6398 = vmatmul.mubr.f32.gmra.mxu0 %v6230
        %v6399 = vpop.f32.mrf.mxu0
        %v6400 = vadd.f32 %v6214, %v6399
        %v6401 = vpop.f32.mrf.mxu0
        %v6402 = vadd.f32 %v6214, %v6401
        %6403 = vmatprep.mubr.f32.mxu0 0.0
        %6404 = vmatmul.mubr.f32.gmra.mxu0 %v6233
        %v6405 = vpop.f32.mrf.mxu0
        %v6406 = vadd.f32 %v6219, %v6405
        %v6407 = vpop.f32.mrf.mxu0
        %v6408 = vadd.f32 %v6219, %v6407
        %6409 = vmatprep.mubr.f32.mxu0 0.0
        %6410 = vmatmul.mubr.f32.gmra.mxu0 %v6236
        %v6411 = vpop.f32.mrf.mxu0
        %v6412 = vadd.f32 %v6224, %v6411
        %v6413 = vpop.f32.mrf.mxu0
        %v6414 = vadd.f32 %v6224, %v6413
        %6415 = vdwg.mxu0
        %v6416 = vmax.f32 %v6305, 0.0
        %v6417 = vmax.f32 %v6307, 0.0
        %v6418 = vmax.f32 %v6394, 0.0
        %v6419 = vmax.f32 %v6396, 0.0
        %v6420 = vmax.f32 %v6311, 0.0
        %v6421 = vmax.f32 %v6313, 0.0
        %v6422 = vmax.f32 %v6400, 0.0
        %v6423 = vmax.f32 %v6402, 0.0
        %v6424 = vmax.f32 %v6317, 0.0
        %v6425 = vmax.f32 %v6319, 0.0
        %v6426 = vmax.f32 %v6406, 0.0
        %v6427 = vmax.f32 %v6408, 0.0
        %v6428 = vmax.f32 %v6323, 0.0
        %v6429 = vmax.f32 %v6325, 0.0
        %v6430 = vmax.f32 %v6412, 0.0
        %v6431 = vmax.f32 %v6414, 0.0
        %v6432 = vld [vmem:[%s1946] sm:$0xff]
        %v6433 = vld [vmem:[%s1946 + $0x8] sm:$0xff]
        %v6434 = vld [vmem:[%s1946 + $0x10] sm:$0xff]
        %v6435 = vld [vmem:[%s1946 + $0x18] sm:$0xff]
        %v6436 = vld [vmem:[%s1951] sm:$0xff]
        %v6437 = vld [vmem:[%s1951 + $0x8] sm:$0xff]
        %v6438 = vld [vmem:[%s1951 + $0x10] sm:$0xff]
        %v6439 = vld [vmem:[%s1951 + $0x18] sm:$0xff]
        %6441 = vset.pattern.permute.xlu0 0
        %6442 = vperm.xlu0 %6441, %v6436
        %v6443 = vpop.permute.xlu0 %6442
        %6446 = vset.pattern.permute.xlu0 0
        %6447 = vperm.xlu0 %6446, %v6437
        %v6448 = vpop.permute.xlu0 %6447
        %6451 = vset.pattern.permute.xlu0 0
        %6452 = vperm.xlu0 %6451, %v6438
        %v6453 = vpop.permute.xlu0 %6452
        %6456 = vset.pattern.permute.xlu0 0
        %6457 = vperm.xlu0 %6456, %v6439
        %v6458 = vpop.permute.xlu0 %6457
        %v6461 = vsel %vm291, %v6432, 0
        %v6464 = vsel %vm291, %v6433, 0
        %v6467 = vsel %vm291, %v6434, 0
        %v6470 = vsel %vm291, %v6435, 0
        %6472 = vmatprep.subr.mxu0 0.0
        %6473 = vmatpush1.msra.mxu0 0.0
        %6474 = vmatprep.subr.mxu0 0.0
        %6475 = vmatpush1.msra.mxu0 0.0
        %6476 = vmatprep.subr.mxu0 0.0
        %6477 = vmatpush1.msra.mxu0 0.0
        %6478 = vmatprep.subr.mxu0 0.0
        %6479 = vmatpush1.msra.mxu0 0.0
        %6480 = vmatprep.subr.mxu0 0.0
        %6481 = vmatpush1.msra.mxu0 0.0
        %6482 = vmatprep.subr.mxu0 0.0
        %6483 = vmatpush1.msra.mxu0 0.0
        %6484 = vmatprep.subr.mxu0 0.0
        %6485 = vmatpush1.msra.mxu0 0.0
        %6486 = vmatprep.subr.mxu0 0.0
        %6487 = vmatpush1.msra.mxu0 0.0
        %6488 = vmatprep.subr.mxu0 0.0
        %6489 = vmatpush1.msra.mxu0 0.0
        %6490 = vmatprep.subr.mxu0 0.0
        %6491 = vmatpush1.msra.mxu0 0.0
        %6492 = vmatprep.subr.mxu0 0.0
        %6493 = vmatpush1.msra.mxu0 0.0
        %6494 = vmatprep.subr.mxu0 0.0
        %6495 = vmatpush1.msra.mxu0 0.0
        %6496 = vmatprep.subr.mxu0 %v6429
        %6497 = vmatpush1.msra.mxu0 %v6428
        %6498 = vmatprep.subr.mxu0 %v6425
        %6499 = vmatpush1.msra.mxu0 %v6424
        %6500 = vmatprep.subr.mxu0 %v6421
        %6501 = vmatpush1.msra.mxu0 %v6420
        %6502 = vmatprep.subr.mxu0 %v6417
        %6503 = vmatpush1.msra.mxu0 %v6416
        %6504 = vmatprep.subr.mxu0 0.0
        %6505 = vmatpush2.msra.mxu0 0.0
        %6506 = vmatprep.subr.mxu0 0.0
        %6507 = vmatpush2.msra.mxu0 0.0
        %6508 = vmatprep.subr.mxu0 0.0
        %6509 = vmatpush2.msra.mxu0 0.0
        %6510 = vmatprep.subr.mxu0 0.0
        %6511 = vmatpush2.msra.mxu0 0.0
        %6512 = vmatprep.subr.mxu0 0.0
        %6513 = vmatpush2.msra.mxu0 0.0
        %6514 = vmatprep.subr.mxu0 0.0
        %6515 = vmatpush2.msra.mxu0 0.0
        %6516 = vmatprep.subr.mxu0 0.0
        %6517 = vmatpush2.msra.mxu0 0.0
        %6518 = vmatprep.subr.mxu0 0.0
        %6519 = vmatpush2.msra.mxu0 0.0
        %6520 = vmatprep.subr.mxu0 0.0
        %6521 = vmatpush2.msra.mxu0 0.0
        %6522 = vmatprep.subr.mxu0 0.0
        %6523 = vmatpush2.msra.mxu0 0.0
        %6524 = vmatprep.subr.mxu0 0.0
        %6525 = vmatpush2.msra.mxu0 0.0
        %6526 = vmatprep.subr.mxu0 0.0
        %6527 = vmatpush2.msra.mxu0 0.0
        %6528 = vmatprep.subr.mxu0 0.0
        %6529 = vmatpush2.msra.mxu0 0.0
        %6530 = vmatprep.subr.mxu0 0.0
        %6531 = vmatpush2.msra.mxu0 0.0
        %6532 = vmatprep.subr.mxu0 0.0
        %6533 = vmatpush2.msra.mxu0 0.0
        %6534 = vmatprep.subr.mxu0 0.0
        %6535 = vmatpush2.msra.mxu0 0.0
        %6536 = vmatprep.mubr.f32.mxu0 0.0
        %6537 = vmatmul.mubr.f32.gmra.mxu0 %v6461
        %v6538 = vpop.f32.mrf.mxu0
        %v6539 = vadd.f32 %v6443, %v6538
        %v6540 = vpop.f32.mrf.mxu0
        %v6541 = vadd.f32 %v6443, %v6540
        %6542 = vmatprep.mubr.f32.mxu0 0.0
        %6543 = vmatmul.mubr.f32.gmra.mxu0 %v6464
        %v6544 = vpop.f32.mrf.mxu0
        %v6545 = vadd.f32 %v6448, %v6544
        %v6546 = vpop.f32.mrf.mxu0
        %v6547 = vadd.f32 %v6448, %v6546
        %6548 = vmatprep.mubr.f32.mxu0 0.0
        %6549 = vmatmul.mubr.f32.gmra.mxu0 %v6467
        %v6550 = vpop.f32.mrf.mxu0
        %v6551 = vadd.f32 %v6453, %v6550
        %v6552 = vpop.f32.mrf.mxu0
        %v6553 = vadd.f32 %v6453, %v6552
        %6554 = vmatprep.mubr.f32.mxu0 0.0
        %6555 = vmatmul.mubr.f32.gmra.mxu0 %v6470
        %v6556 = vpop.f32.mrf.mxu0
        %v6557 = vadd.f32 %v6458, %v6556
        %v6558 = vpop.f32.mrf.mxu0
        %v6559 = vadd.f32 %v6458, %v6558
        %6560 = vdwg.mxu0
        %6561 = vmatprep.subr.mxu0 0.0
        %6562 = vmatpush1.msra.mxu0 0.0
        %6563 = vmatprep.subr.mxu0 0.0
        %6564 = vmatpush1.msra.mxu0 0.0
        %6565 = vmatprep.subr.mxu0 0.0
        %6566 = vmatpush1.msra.mxu0 0.0
        %6567 = vmatprep.subr.mxu0 0.0
        %6568 = vmatpush1.msra.mxu0 0.0
        %6569 = vmatprep.subr.mxu0 0.0
        %6570 = vmatpush1.msra.mxu0 0.0
        %6571 = vmatprep.subr.mxu0 0.0
        %6572 = vmatpush1.msra.mxu0 0.0
        %6573 = vmatprep.subr.mxu0 0.0
        %6574 = vmatpush1.msra.mxu0 0.0
        %6575 = vmatprep.subr.mxu0 0.0
        %6576 = vmatpush1.msra.mxu0 0.0
        %6577 = vmatprep.subr.mxu0 0.0
        %6578 = vmatpush1.msra.mxu0 0.0
        %6579 = vmatprep.subr.mxu0 0.0
        %6580 = vmatpush1.msra.mxu0 0.0
        %6581 = vmatprep.subr.mxu0 0.0
        %6582 = vmatpush1.msra.mxu0 0.0
        %6583 = vmatprep.subr.mxu0 0.0
        %6584 = vmatpush1.msra.mxu0 0.0
        %6585 = vmatprep.subr.mxu0 %v6431
        %6586 = vmatpush1.msra.mxu0 %v6430
        %6587 = vmatprep.subr.mxu0 %v6427
        %6588 = vmatpush1.msra.mxu0 %v6426
        %6589 = vmatprep.subr.mxu0 %v6423
        %6590 = vmatpush1.msra.mxu0 %v6422
        %6591 = vmatprep.subr.mxu0 %v6419
        %6592 = vmatpush1.msra.mxu0 %v6418
        %6593 = vmatprep.subr.mxu0 0.0
        %6594 = vmatpush2.msra.mxu0 0.0
        %6595 = vmatprep.subr.mxu0 0.0
        %6596 = vmatpush2.msra.mxu0 0.0
        %6597 = vmatprep.subr.mxu0 0.0
        %6598 = vmatpush2.msra.mxu0 0.0
        %6599 = vmatprep.subr.mxu0 0.0
        %6600 = vmatpush2.msra.mxu0 0.0
        %6601 = vmatprep.subr.mxu0 0.0
        %6602 = vmatpush2.msra.mxu0 0.0
        %6603 = vmatprep.subr.mxu0 0.0
        %6604 = vmatpush2.msra.mxu0 0.0
        %6605 = vmatprep.subr.mxu0 0.0
        %6606 = vmatpush2.msra.mxu0 0.0
        %6607 = vmatprep.subr.mxu0 0.0
        %6608 = vmatpush2.msra.mxu0 0.0
        %6609 = vmatprep.subr.mxu0 0.0
        %6610 = vmatpush2.msra.mxu0 0.0
        %6611 = vmatprep.subr.mxu0 0.0
        %6612 = vmatpush2.msra.mxu0 0.0
        %6613 = vmatprep.subr.mxu0 0.0
        %6614 = vmatpush2.msra.mxu0 0.0
        %6615 = vmatprep.subr.mxu0 0.0
        %6616 = vmatpush2.msra.mxu0 0.0
        %6617 = vmatprep.subr.mxu0 0.0
        %6618 = vmatpush2.msra.mxu0 0.0
        %6619 = vmatprep.subr.mxu0 0.0
        %6620 = vmatpush2.msra.mxu0 0.0
        %6621 = vmatprep.subr.mxu0 0.0
        %6622 = vmatpush2.msra.mxu0 0.0
        %6623 = vmatprep.subr.mxu0 0.0
        %6624 = vmatpush2.msra.mxu0 0.0
        %6625 = vmatprep.mubr.f32.mxu0 0.0
        %6626 = vmatmul.mubr.f32.gmra.mxu0 %v6461
        %v6627 = vpop.f32.mrf.mxu0
        %v6628 = vadd.f32 %v6443, %v6627
        %v6629 = vpop.f32.mrf.mxu0
        %v6630 = vadd.f32 %v6443, %v6629
        %6631 = vmatprep.mubr.f32.mxu0 0.0
        %6632 = vmatmul.mubr.f32.gmra.mxu0 %v6464
        %v6633 = vpop.f32.mrf.mxu0
        %v6634 = vadd.f32 %v6448, %v6633
        %v6635 = vpop.f32.mrf.mxu0
        %v6636 = vadd.f32 %v6448, %v6635
        %6637 = vmatprep.mubr.f32.mxu0 0.0
        %6638 = vmatmul.mubr.f32.gmra.mxu0 %v6467
        %v6639 = vpop.f32.mrf.mxu0
        %v6640 = vadd.f32 %v6453, %v6639
        %v6641 = vpop.f32.mrf.mxu0
        %v6642 = vadd.f32 %v6453, %v6641
        %6643 = vmatprep.mubr.f32.mxu0 0.0
        %6644 = vmatmul.mubr.f32.gmra.mxu0 %v6470
        %v6645 = vpop.f32.mrf.mxu0
        %v6646 = vadd.f32 %v6458, %v6645
        %v6647 = vpop.f32.mrf.mxu0
        %v6648 = vadd.f32 %v6458, %v6647
        %6649 = vdwg.mxu0
        %v6650 = vmax.f32 %v6539, 0.0
        %v6651 = vmax.f32 %v6541, 0.0
        %v6652 = vmax.f32 %v6628, 0.0
        %v6653 = vmax.f32 %v6630, 0.0
        %v6654 = vmax.f32 %v6545, 0.0
        %v6655 = vmax.f32 %v6547, 0.0
        %v6656 = vmax.f32 %v6634, 0.0
        %v6657 = vmax.f32 %v6636, 0.0
        %v6658 = vmax.f32 %v6551, 0.0
        %v6659 = vmax.f32 %v6553, 0.0
        %v6660 = vmax.f32 %v6640, 0.0
        %v6661 = vmax.f32 %v6642, 0.0
        %v6662 = vmax.f32 %v6557, 0.0
        %v6663 = vmax.f32 %v6559, 0.0
        %v6664 = vmax.f32 %v6646, 0.0
        %v6665 = vmax.f32 %v6648, 0.0
        %v6666 = vld [vmem:[%s2182] sm:$0xff]
        %v6667 = vld [vmem:[%s2182 + $0x8] sm:$0xff]
        %v6668 = vld [vmem:[%s2182 + $0x10] sm:$0xff]
        %v6669 = vld [vmem:[%s2182 + $0x18] sm:$0xff]
        %v6670 = vld [vmem:[%s2187] sm:$0xff]
        %v6671 = vld [vmem:[%s2187 + $0x8] sm:$0xff]
        %v6672 = vld [vmem:[%s2187 + $0x10] sm:$0xff]
        %v6673 = vld [vmem:[%s2187 + $0x18] sm:$0xff]
        %6675 = vset.pattern.permute.xlu0 0
        %6676 = vperm.xlu0 %6675, %v6670
        %v6677 = vpop.permute.xlu0 %6676
        %6680 = vset.pattern.permute.xlu0 0
        %6681 = vperm.xlu0 %6680, %v6671
        %v6682 = vpop.permute.xlu0 %6681
        %6684 = vset.pattern.permute.xlu0 0
        %6685 = vperm.xlu0 %6684, %v6672
        %v6686 = vpop.permute.xlu0 %6685
        %6688 = vset.pattern.permute.xlu0 0
        %6689 = vperm.xlu0 %6688, %v6673
        %v6690 = vpop.permute.xlu0 %6689
        %v6692 = vsel %vm291, %v6666, 0
        %v6695 = vsel %vm291, %v6667, 0
        %v6698 = vsel %vm291, %v6668, 0
        %v6701 = vsel %vm291, %v6669, 0
        %6703 = vmatprep.subr.mxu0 0.0
        %6704 = vmatpush1.msra.mxu0 0.0
        %6705 = vmatprep.subr.mxu0 0.0
        %6706 = vmatpush1.msra.mxu0 0.0
        %6707 = vmatprep.subr.mxu0 0.0
        %6708 = vmatpush1.msra.mxu0 0.0
        %6709 = vmatprep.subr.mxu0 0.0
        %6710 = vmatpush1.msra.mxu0 0.0
        %6711 = vmatprep.subr.mxu0 0.0
        %6712 = vmatpush1.msra.mxu0 0.0
        %6713 = vmatprep.subr.mxu0 0.0
        %6714 = vmatpush1.msra.mxu0 0.0
        %6715 = vmatprep.subr.mxu0 0.0
        %6716 = vmatpush1.msra.mxu0 0.0
        %6717 = vmatprep.subr.mxu0 0.0
        %6718 = vmatpush1.msra.mxu0 0.0
        %6719 = vmatprep.subr.mxu0 0.0
        %6720 = vmatpush1.msra.mxu0 0.0
        %6721 = vmatprep.subr.mxu0 0.0
        %6722 = vmatpush1.msra.mxu0 0.0
        %6723 = vmatprep.subr.mxu0 0.0
        %6724 = vmatpush1.msra.mxu0 0.0
        %6725 = vmatprep.subr.mxu0 0.0
        %6726 = vmatpush1.msra.mxu0 0.0
        %6727 = vmatprep.subr.mxu0 %v6663
        %6728 = vmatpush1.msra.mxu0 %v6662
        %6729 = vmatprep.subr.mxu0 %v6659
        %6730 = vmatpush1.msra.mxu0 %v6658
        %6731 = vmatprep.subr.mxu0 %v6655
        %6732 = vmatpush1.msra.mxu0 %v6654
        %6733 = vmatprep.subr.mxu0 %v6651
        %6734 = vmatpush1.msra.mxu0 %v6650
        %6735 = vmatprep.subr.mxu0 0.0
        %6736 = vmatpush2.msra.mxu0 0.0
        %6737 = vmatprep.subr.mxu0 0.0
        %6738 = vmatpush2.msra.mxu0 0.0
        %6739 = vmatprep.subr.mxu0 0.0
        %6740 = vmatpush2.msra.mxu0 0.0
        %6741 = vmatprep.subr.mxu0 0.0
        %6742 = vmatpush2.msra.mxu0 0.0
        %6743 = vmatprep.subr.mxu0 0.0
        %6744 = vmatpush2.msra.mxu0 0.0
        %6745 = vmatprep.subr.mxu0 0.0
        %6746 = vmatpush2.msra.mxu0 0.0
        %6747 = vmatprep.subr.mxu0 0.0
        %6748 = vmatpush2.msra.mxu0 0.0
        %6749 = vmatprep.subr.mxu0 0.0
        %6750 = vmatpush2.msra.mxu0 0.0
        %6751 = vmatprep.subr.mxu0 0.0
        %6752 = vmatpush2.msra.mxu0 0.0
        %6753 = vmatprep.subr.mxu0 0.0
        %6754 = vmatpush2.msra.mxu0 0.0
        %6755 = vmatprep.subr.mxu0 0.0
        %6756 = vmatpush2.msra.mxu0 0.0
        %6757 = vmatprep.subr.mxu0 0.0
        %6758 = vmatpush2.msra.mxu0 0.0
        %6759 = vmatprep.subr.mxu0 0.0
        %6760 = vmatpush2.msra.mxu0 0.0
        %6761 = vmatprep.subr.mxu0 0.0
        %6762 = vmatpush2.msra.mxu0 0.0
        %6763 = vmatprep.subr.mxu0 0.0
        %6764 = vmatpush2.msra.mxu0 0.0
        %6765 = vmatprep.subr.mxu0 0.0
        %6766 = vmatpush2.msra.mxu0 0.0
        %6767 = vmatprep.mubr.f32.mxu0 0.0
        %6768 = vmatmul.mubr.f32.gmra.mxu0 %v6692
        %v6769 = vpop.f32.mrf.mxu0
        %v6770 = vadd.f32 %v6677, %v6769
        %v6771 = vpop.f32.mrf.mxu0
        %v6772 = vadd.f32 %v6677, %v6771
        %6773 = vmatprep.mubr.f32.mxu0 0.0
        %6774 = vmatmul.mubr.f32.gmra.mxu0 %v6695
        %v6775 = vpop.f32.mrf.mxu0
        %v6776 = vpop.f32.mrf.mxu0
        %6777 = vmatprep.mubr.f32.mxu0 0.0
        %6778 = vmatmul.mubr.f32.gmra.mxu0 %v6698
        %v6779 = vpop.f32.mrf.mxu0
        %v6780 = vpop.f32.mrf.mxu0
        %6781 = vmatprep.mubr.f32.mxu0 0.0
        %6782 = vmatmul.mubr.f32.gmra.mxu0 %v6701
        %v6783 = vpop.f32.mrf.mxu0
        %v6784 = vpop.f32.mrf.mxu0
        %6785 = vdwg.mxu0
        %6786 = vmatprep.subr.mxu0 0.0
        %6787 = vmatpush1.msra.mxu0 0.0
        %6788 = vmatprep.subr.mxu0 0.0
        %6789 = vmatpush1.msra.mxu0 0.0
        %6790 = vmatprep.subr.mxu0 0.0
        %6791 = vmatpush1.msra.mxu0 0.0
        %6792 = vmatprep.subr.mxu0 0.0
        %6793 = vmatpush1.msra.mxu0 0.0
        %6794 = vmatprep.subr.mxu0 0.0
        %6795 = vmatpush1.msra.mxu0 0.0
        %6796 = vmatprep.subr.mxu0 0.0
        %6797 = vmatpush1.msra.mxu0 0.0
        %6798 = vmatprep.subr.mxu0 0.0
        %6799 = vmatpush1.msra.mxu0 0.0
        %6800 = vmatprep.subr.mxu0 0.0
        %6801 = vmatpush1.msra.mxu0 0.0
        %6802 = vmatprep.subr.mxu0 0.0
        %6803 = vmatpush1.msra.mxu0 0.0
        %6804 = vmatprep.subr.mxu0 0.0
        %6805 = vmatpush1.msra.mxu0 0.0
        %6806 = vmatprep.subr.mxu0 0.0
        %6807 = vmatpush1.msra.mxu0 0.0
        %6808 = vmatprep.subr.mxu0 0.0
        %6809 = vmatpush1.msra.mxu0 0.0
        %6810 = vmatprep.subr.mxu0 %v6665
        %6811 = vmatpush1.msra.mxu0 %v6664
        %6812 = vmatprep.subr.mxu0 %v6661
        %6813 = vmatpush1.msra.mxu0 %v6660
        %6814 = vmatprep.subr.mxu0 %v6657
        %6815 = vmatpush1.msra.mxu0 %v6656
        %6816 = vmatprep.subr.mxu0 %v6653
        %6817 = vmatpush1.msra.mxu0 %v6652
        %6818 = vmatprep.subr.mxu0 0.0
        %6819 = vmatpush2.msra.mxu0 0.0
        %6820 = vmatprep.subr.mxu0 0.0
        %6821 = vmatpush2.msra.mxu0 0.0
        %6822 = vmatprep.subr.mxu0 0.0
        %6823 = vmatpush2.msra.mxu0 0.0
        %6824 = vmatprep.subr.mxu0 0.0
        %6825 = vmatpush2.msra.mxu0 0.0
        %6826 = vmatprep.subr.mxu0 0.0
        %6827 = vmatpush2.msra.mxu0 0.0
        %6828 = vmatprep.subr.mxu0 0.0
        %6829 = vmatpush2.msra.mxu0 0.0
        %6830 = vmatprep.subr.mxu0 0.0
        %6831 = vmatpush2.msra.mxu0 0.0
        %6832 = vmatprep.subr.mxu0 0.0
        %6833 = vmatpush2.msra.mxu0 0.0
        %6834 = vmatprep.subr.mxu0 0.0
        %6835 = vmatpush2.msra.mxu0 0.0
        %6836 = vmatprep.subr.mxu0 0.0
        %6837 = vmatpush2.msra.mxu0 0.0
        %6838 = vmatprep.subr.mxu0 0.0
        %6839 = vmatpush2.msra.mxu0 0.0
        %6840 = vmatprep.subr.mxu0 0.0
        %6841 = vmatpush2.msra.mxu0 0.0
        %6842 = vmatprep.subr.mxu0 0.0
        %6843 = vmatpush2.msra.mxu0 0.0
        %6844 = vmatprep.subr.mxu0 0.0
        %6845 = vmatpush2.msra.mxu0 0.0
        %6846 = vmatprep.subr.mxu0 0.0
        %6847 = vmatpush2.msra.mxu0 0.0
        %6848 = vmatprep.subr.mxu0 0.0
        %6849 = vmatpush2.msra.mxu0 0.0
        %6850 = vmatprep.mubr.f32.mxu0 0.0
        %6851 = vmatmul.mubr.f32.gmra.mxu0 %v6692
        %v6852 = vpop.f32.mrf.mxu0
        %v6853 = vadd.f32 %v6677, %v6852
        %v6854 = vpop.f32.mrf.mxu0
        %v6855 = vadd.f32 %v6677, %v6854
        %6856 = vmatprep.mubr.f32.mxu0 0.0
        %6857 = vmatmul.mubr.f32.gmra.mxu0 %v6695
        %v6858 = vpop.f32.mrf.mxu0
        %v6859 = vpop.f32.mrf.mxu0
        %6860 = vmatprep.mubr.f32.mxu0 0.0
        %6861 = vmatmul.mubr.f32.gmra.mxu0 %v6698
        %v6862 = vpop.f32.mrf.mxu0
        %v6863 = vpop.f32.mrf.mxu0
        %6864 = vmatprep.mubr.f32.mxu0 0.0
        %6865 = vmatmul.mubr.f32.gmra.mxu0 %v6701
        %v6866 = vpop.f32.mrf.mxu0
        %v6867 = vpop.f32.mrf.mxu0
        %6868 = vdwg.mxu0
        %v6869 = vmul.f32 %v6770, 0.92419624
        %v6870 = vmul.f32 %v6772, 0.92419624
        %v6871 = vmul.f32 %v6853, 0.92419624
        %v6872 = vmul.f32 %v6855, 0.92419624
        %vm6873 = vcmp.gt.f32.partialorder %v6869, 20.0
        %vm6874 = vcmp.gt.f32.partialorder %v6870, 20.0
        %vm6875 = vcmp.gt.f32.partialorder %v6871, 20.0
        %vm6876 = vcmp.gt.f32.partialorder %v6872, 20.0
        %v6877 = vmin.f32 %v6869, 20.0
        %v6878 = vmin.f32 %v6870, 20.0
        %v6879 = vmin.f32 %v6871, 20.0
        %v6880 = vmin.f32 %v6872, 20.0
        %v6881 = vmul.f32 %v6877, 1.442695
        %v6882 = vpow.pop %v6881
        %v6883 = vmul.f32 %v6878, 1.442695
        %v6884 = vpow.pop %v6883
        %v6885 = vmul.f32 %v6879, 1.442695
        %v6886 = vpow.pop %v6885
        %v6887 = vmul.f32 %v6880, 1.442695
        %v6888 = vpow.pop %v6887
        %v6889 = vadd.f32 %v6882, 1.0
        %v6890 = vlog2.pop %v6889
        %v6891 = vmul.f32 %v6890, 0.6931472
        %v6892 = vmul.f32 -0.5, %v6882
        %v6893 = vadd.f32 %v6892, 1.0
        %v6894 = vmul.f32 %v6893, %v6882
        %v6895 = vand.u32 2147483647, %v6882
        %vm6896 = vcmp.lt.f32.partialorder %v6895, 0.0004427343
        %v6897 = vsel %vm6896, %v6894, %v6891
        %v6898 = vadd.f32 %v6884, 1.0
        %v6899 = vlog2.pop %v6898
        %v6900 = vmul.f32 %v6899, 0.6931472
        %v6901 = vmul.f32 -0.5, %v6884
        %v6902 = vadd.f32 %v6901, 1.0
        %v6903 = vmul.f32 %v6902, %v6884
        %v6904 = vand.u32 2147483647, %v6884
        %vm6905 = vcmp.lt.f32.partialorder %v6904, 0.0004427343
        %v6906 = vsel %vm6905, %v6903, %v6900
        %v6907 = vadd.f32 %v6886, 1.0
        %v6908 = vlog2.pop %v6907
        %v6909 = vmul.f32 %v6908, 0.6931472
        %v6910 = vmul.f32 -0.5, %v6886
        %v6911 = vadd.f32 %v6910, 1.0
        %v6912 = vmul.f32 %v6911, %v6886
        %v6913 = vand.u32 2147483647, %v6886
        %vm6914 = vcmp.lt.f32.partialorder %v6913, 0.0004427343
        %v6915 = vsel %vm6914, %v6912, %v6909
        %v6916 = vadd.f32 %v6888, 1.0
        %v6917 = vlog2.pop %v6916
        %v6918 = vmul.f32 %v6917, 0.6931472
        %v6919 = vmul.f32 -0.5, %v6888
        %v6920 = vadd.f32 %v6919, 1.0
        %v6921 = vmul.f32 %v6920, %v6888
        %v6922 = vand.u32 2147483647, %v6888
        %vm6923 = vcmp.lt.f32.partialorder %v6922, 0.0004427343
        %v6924 = vsel %vm6923, %v6921, %v6918
        %v6925 = vmul.f32 %v6897, 1.0820212
        %v6926 = vmul.f32 %v6906, 1.0820212
        %v6927 = vmul.f32 %v6915, 1.0820212
        %v6928 = vmul.f32 %v6924, 1.0820212
        %v6929 = vsel %vm6873, %v6770, %v6925
        %v6930 = vsel %vm6874, %v6772, %v6926
        %v6931 = vsel %vm6875, %v6853, %v6927
        %v6932 = vsel %vm6876, %v6855, %v6928
        %v6933 = vadd.f32 %v6929, 0.25
        %v6934 = vadd.f32 %v6930, 0.25
        %v6935 = vadd.f32 %v6931, 0.25
        %v6936 = vadd.f32 %v6932, 0.25
        %v6937 = vmin.f32 %v6933, 100.0
        %v6938 = vmin.f32 %v6934, 100.0
        %v6939 = vmin.f32 %v6935, 100.0
        %v6940 = vmin.f32 %v6936, 100.0
        %v6941 = vrcp.pop %v6937
        %v6942 = vmul.f32 1.0, %v6941
        %v6943 = vrcp.pop %v6938
        %v6944 = vmul.f32 1.0, %v6943
        %v6945 = vrcp.pop %v6939
        %v6946 = vmul.f32 1.0, %v6945
        %v6947 = vrcp.pop %v6940
        %v6948 = vmul.f32 1.0, %v6947
        %v6949 = vlaneseq
        %v6950 = vshrl.u32 %v6949, 7
        %v6951 = vsub.s32 3, %v6950
        %v6952 = vrot.slane %v6942, %v6951
        %v6953 = vlaneseq
        %v6954 = vshrl.u32 %v6953, 7
        %v6955 = vsub.s32 3, %v6954
        %v6956 = vrot.slane %v6944, %v6955
        %v6957 = vlaneseq
        %v6958 = vshrl.u32 %v6957, 7
        %v6959 = vsub.s32 3, %v6958
        %v6960 = vrot.slane %v6946, %v6959
        %v6961 = vlaneseq
        %v6962 = vshrl.u32 %v6961, 7
        %v6963 = vsub.s32 3, %v6962
        %v6964 = vrot.slane %v6948, %v6963
        %v6965 = vmul.f32 %v6770, %v6952
        %v6966 = vmul.f32 %v6772, %v6956
        %v6967 = vmul.f32 %v6853, %v6960
        %v6968 = vmul.f32 %v6855, %v6964
        %v6969 = vadd.f32 %v6965, %v2490
        %v6970 = vadd.f32 %v6966, %v2490
        %v6971 = vadd.f32 %v6967, %v2490
        %v6972 = vadd.f32 %v6968, %v2490
        %v6977 = vcombine.low %v6969, %v6970
        %v6978 = vcombine.low %v6971, %v6972
        %s6981 = scalar_lea.vmem %s244, 32
        %6982 = vst [vmem:[%s6981] sm:$0x77] %v6977
        %6983 = vst [vmem:[%s6981 + $0x8] sm:$0x77] %v6978
        %s6984 = scalar_lea.vmem %s206, 96 [#allocation2]
        %v6985 = vld [vmem:[%s6984] sm:$0xff]
        %v6986 = vld [vmem:[%s6984 + $0x8] sm:$0xff]
        %v6987 = vld [vmem:[%s6984 + $0x10] sm:$0xff]
        %v6988 = vld [vmem:[%s6984 + $0x18] sm:$0xff]
        %v6989 = vld [vmem:[%s6984 + $0x80] sm:$0xff]
        %v6990 = vld [vmem:[%s6984 + $0x88] sm:$0xff]
        %v6991 = vld [vmem:[%s6984 + $0x90] sm:$0xff]
        %v6992 = vld [vmem:[%s6984 + $0x98] sm:$0xff]
        %v6993 = vld [vmem:[%s6984 + $0x100] sm:$0xff]
        %v6994 = vld [vmem:[%s6984 + $0x108] sm:$0xff]
        %v6995 = vld [vmem:[%s6984 + $0x110] sm:$0xff]
        %v6996 = vld [vmem:[%s6984 + $0x118] sm:$0xff]
        %v6997 = vld [vmem:[%s6984 + $0x180] sm:$0xff]
        %v6998 = vld [vmem:[%s6984 + $0x188] sm:$0xff]
        %v6999 = vld [vmem:[%s6984 + $0x190] sm:$0xff]
        %v7000 = vld [vmem:[%s6984 + $0x198] sm:$0xff]
        %v7001 = vld [vmem:[%s1] sm:$0xff]
        %v7002 = vld [vmem:[%s1 + $0x8] sm:$0xff]
        %v7003 = vld [vmem:[%s1 + $0x10] sm:$0xff]
        %v7004 = vld [vmem:[%s1 + $0x18] sm:$0xff]
        %v7005 = vld [vmem:[%s2] sm:$0xff]
        %v7006 = vld [vmem:[%s2 + $0x8] sm:$0xff]
        %v7007 = vld [vmem:[%s2 + $0x10] sm:$0xff]
        %v7008 = vld [vmem:[%s2 + $0x18] sm:$0xff]
        %7010 = vset.pattern.permute.xlu0 0
        %7011 = vperm.xlu0 %7010, %v7005
        %v7012 = vpop.permute.xlu0 %7011
        %7015 = vset.pattern.permute.xlu0 0
        %7016 = vperm.xlu0 %7015, %v7006
        %v7017 = vpop.permute.xlu0 %7016
        %7020 = vset.pattern.permute.xlu0 0
        %7021 = vperm.xlu0 %7020, %v7007
        %v7022 = vpop.permute.xlu0 %7021
        %7025 = vset.pattern.permute.xlu0 0
        %7026 = vperm.xlu0 %7025, %v7008
        %v7027 = vpop.permute.xlu0 %7026
        %v7030 = vsel %vm291, %v7001, 0
        %v7033 = vsel %vm291, %v7002, 0
        %v7036 = vsel %vm291, %v7003, 0
        %v7039 = vsel %vm291, %v7004, 0
        %7041 = vmatprep.subr.mxu0 0.0
        %7042 = vmatpush1.msra.mxu0 0.0
        %7043 = vmatprep.subr.mxu0 0.0
        %7044 = vmatpush1.msra.mxu0 0.0
        %7045 = vmatprep.subr.mxu0 0.0
        %7046 = vmatpush1.msra.mxu0 0.0
        %7047 = vmatprep.subr.mxu0 0.0
        %7048 = vmatpush1.msra.mxu0 0.0
        %7049 = vmatprep.subr.mxu0 0.0
        %7050 = vmatpush1.msra.mxu0 0.0
        %7051 = vmatprep.subr.mxu0 0.0
        %7052 = vmatpush1.msra.mxu0 0.0
        %7053 = vmatprep.subr.mxu0 0.0
        %7054 = vmatpush1.msra.mxu0 0.0
        %7055 = vmatprep.subr.mxu0 0.0
        %7056 = vmatpush1.msra.mxu0 0.0
        %7057 = vmatprep.subr.mxu0 0.0
        %7058 = vmatpush1.msra.mxu0 0.0
        %7059 = vmatprep.subr.mxu0 0.0
        %7060 = vmatpush1.msra.mxu0 0.0
        %7061 = vmatprep.subr.mxu0 0.0
        %7062 = vmatpush1.msra.mxu0 0.0
        %7063 = vmatprep.subr.mxu0 0.0
        %7064 = vmatpush1.msra.mxu0 0.0
        %7065 = vmatprep.subr.mxu0 %v6998
        %7066 = vmatpush1.msra.mxu0 %v6997
        %7067 = vmatprep.subr.mxu0 %v6994
        %7068 = vmatpush1.msra.mxu0 %v6993
        %7069 = vmatprep.subr.mxu0 %v6990
        %7070 = vmatpush1.msra.mxu0 %v6989
        %7071 = vmatprep.subr.mxu0 %v6986
        %7072 = vmatpush1.msra.mxu0 %v6985
        %7073 = vmatprep.subr.mxu0 0.0
        %7074 = vmatpush2.msra.mxu0 0.0
        %7075 = vmatprep.subr.mxu0 0.0
        %7076 = vmatpush2.msra.mxu0 0.0
        %7077 = vmatprep.subr.mxu0 0.0
        %7078 = vmatpush2.msra.mxu0 0.0
        %7079 = vmatprep.subr.mxu0 0.0
        %7080 = vmatpush2.msra.mxu0 0.0
        %7081 = vmatprep.subr.mxu0 0.0
        %7082 = vmatpush2.msra.mxu0 0.0
        %7083 = vmatprep.subr.mxu0 0.0
        %7084 = vmatpush2.msra.mxu0 0.0
        %7085 = vmatprep.subr.mxu0 0.0
        %7086 = vmatpush2.msra.mxu0 0.0
        %7087 = vmatprep.subr.mxu0 0.0
        %7088 = vmatpush2.msra.mxu0 0.0
        %7089 = vmatprep.subr.mxu0 0.0
        %7090 = vmatpush2.msra.mxu0 0.0
        %7091 = vmatprep.subr.mxu0 0.0
        %7092 = vmatpush2.msra.mxu0 0.0
        %7093 = vmatprep.subr.mxu0 0.0
        %7094 = vmatpush2.msra.mxu0 0.0
        %7095 = vmatprep.subr.mxu0 0.0
        %7096 = vmatpush2.msra.mxu0 0.0
        %7097 = vmatprep.subr.mxu0 0.0
        %7098 = vmatpush2.msra.mxu0 0.0
        %7099 = vmatprep.subr.mxu0 0.0
        %7100 = vmatpush2.msra.mxu0 0.0
        %7101 = vmatprep.subr.mxu0 0.0
        %7102 = vmatpush2.msra.mxu0 0.0
        %7103 = vmatprep.subr.mxu0 0.0
        %7104 = vmatpush2.msra.mxu0 0.0
        %7105 = vmatprep.mubr.f32.mxu0 0.0
        %7106 = vmatmul.mubr.f32.gmra.mxu0 %v7030
        %v7107 = vpop.f32.mrf.mxu0
        %v7108 = vadd.f32 %v7012, %v7107
        %v7109 = vpop.f32.mrf.mxu0
        %v7110 = vadd.f32 %v7012, %v7109
        %7111 = vmatprep.mubr.f32.mxu0 0.0
        %7112 = vmatmul.mubr.f32.gmra.mxu0 %v7033
        %v7113 = vpop.f32.mrf.mxu0
        %v7114 = vadd.f32 %v7017, %v7113
        %v7115 = vpop.f32.mrf.mxu0
        %v7116 = vadd.f32 %v7017, %v7115
        %7117 = vmatprep.mubr.f32.mxu0 0.0
        %7118 = vmatmul.mubr.f32.gmra.mxu0 %v7036
        %v7119 = vpop.f32.mrf.mxu0
        %v7120 = vadd.f32 %v7022, %v7119
        %v7121 = vpop.f32.mrf.mxu0
        %v7122 = vadd.f32 %v7022, %v7121
        %7123 = vmatprep.mubr.f32.mxu0 0.0
        %7124 = vmatmul.mubr.f32.gmra.mxu0 %v7039
        %v7125 = vpop.f32.mrf.mxu0
        %v7126 = vadd.f32 %v7027, %v7125
        %v7127 = vpop.f32.mrf.mxu0
        %v7128 = vadd.f32 %v7027, %v7127
        %7129 = vdwg.mxu0
        %7130 = vmatprep.subr.mxu0 0.0
        %7131 = vmatpush1.msra.mxu0 0.0
        %7132 = vmatprep.subr.mxu0 0.0
        %7133 = vmatpush1.msra.mxu0 0.0
        %7134 = vmatprep.subr.mxu0 0.0
        %7135 = vmatpush1.msra.mxu0 0.0
        %7136 = vmatprep.subr.mxu0 0.0
        %7137 = vmatpush1.msra.mxu0 0.0
        %7138 = vmatprep.subr.mxu0 0.0
        %7139 = vmatpush1.msra.mxu0 0.0
        %7140 = vmatprep.subr.mxu0 0.0
        %7141 = vmatpush1.msra.mxu0 0.0
        %7142 = vmatprep.subr.mxu0 0.0
        %7143 = vmatpush1.msra.mxu0 0.0
        %7144 = vmatprep.subr.mxu0 0.0
        %7145 = vmatpush1.msra.mxu0 0.0
        %7146 = vmatprep.subr.mxu0 0.0
        %7147 = vmatpush1.msra.mxu0 0.0
        %7148 = vmatprep.subr.mxu0 0.0
        %7149 = vmatpush1.msra.mxu0 0.0
        %7150 = vmatprep.subr.mxu0 0.0
        %7151 = vmatpush1.msra.mxu0 0.0
        %7152 = vmatprep.subr.mxu0 0.0
        %7153 = vmatpush1.msra.mxu0 0.0
        %7154 = vmatprep.subr.mxu0 %v7000
        %7155 = vmatpush1.msra.mxu0 %v6999
        %7156 = vmatprep.subr.mxu0 %v6996
        %7157 = vmatpush1.msra.mxu0 %v6995
        %7158 = vmatprep.subr.mxu0 %v6992
        %7159 = vmatpush1.msra.mxu0 %v6991
        %7160 = vmatprep.subr.mxu0 %v6988
        %7161 = vmatpush1.msra.mxu0 %v6987
        %7162 = vmatprep.subr.mxu0 0.0
        %7163 = vmatpush2.msra.mxu0 0.0
        %7164 = vmatprep.subr.mxu0 0.0
        %7165 = vmatpush2.msra.mxu0 0.0
        %7166 = vmatprep.subr.mxu0 0.0
        %7167 = vmatpush2.msra.mxu0 0.0
        %7168 = vmatprep.subr.mxu0 0.0
        %7169 = vmatpush2.msra.mxu0 0.0
        %7170 = vmatprep.subr.mxu0 0.0
        %7171 = vmatpush2.msra.mxu0 0.0
        %7172 = vmatprep.subr.mxu0 0.0
        %7173 = vmatpush2.msra.mxu0 0.0
        %7174 = vmatprep.subr.mxu0 0.0
        %7175 = vmatpush2.msra.mxu0 0.0
        %7176 = vmatprep.subr.mxu0 0.0
        %7177 = vmatpush2.msra.mxu0 0.0
        %7178 = vmatprep.subr.mxu0 0.0
        %7179 = vmatpush2.msra.mxu0 0.0
        %7180 = vmatprep.subr.mxu0 0.0
        %7181 = vmatpush2.msra.mxu0 0.0
        %7182 = vmatprep.subr.mxu0 0.0
        %7183 = vmatpush2.msra.mxu0 0.0
        %7184 = vmatprep.subr.mxu0 0.0
        %7185 = vmatpush2.msra.mxu0 0.0
        %7186 = vmatprep.subr.mxu0 0.0
        %7187 = vmatpush2.msra.mxu0 0.0
        %7188 = vmatprep.subr.mxu0 0.0
        %7189 = vmatpush2.msra.mxu0 0.0
        %7190 = vmatprep.subr.mxu0 0.0
        %7191 = vmatpush2.msra.mxu0 0.0
        %7192 = vmatprep.subr.mxu0 0.0
        %7193 = vmatpush2.msra.mxu0 0.0
        %7194 = vmatprep.mubr.f32.mxu0 0.0
        %7195 = vmatmul.mubr.f32.gmra.mxu0 %v7030
        %v7196 = vpop.f32.mrf.mxu0
        %v7197 = vadd.f32 %v7012, %v7196
        %v7198 = vpop.f32.mrf.mxu0
        %v7199 = vadd.f32 %v7012, %v7198
        %7200 = vmatprep.mubr.f32.mxu0 0.0
        %7201 = vmatmul.mubr.f32.gmra.mxu0 %v7033
        %v7202 = vpop.f32.mrf.mxu0
        %v7203 = vadd.f32 %v7017, %v7202
        %v7204 = vpop.f32.mrf.mxu0
        %v7205 = vadd.f32 %v7017, %v7204
        %7206 = vmatprep.mubr.f32.mxu0 0.0
        %7207 = vmatmul.mubr.f32.gmra.mxu0 %v7036
        %v7208 = vpop.f32.mrf.mxu0
        %v7209 = vadd.f32 %v7022, %v7208
        %v7210 = vpop.f32.mrf.mxu0
        %v7211 = vadd.f32 %v7022, %v7210
        %7212 = vmatprep.mubr.f32.mxu0 0.0
        %7213 = vmatmul.mubr.f32.gmra.mxu0 %v7039
        %v7214 = vpop.f32.mrf.mxu0
        %v7215 = vadd.f32 %v7027, %v7214
        %v7216 = vpop.f32.mrf.mxu0
        %v7217 = vadd.f32 %v7027, %v7216
        %7218 = vdwg.mxu0
        %v7219 = vmax.f32 %v7108, 0.0
        %v7220 = vmax.f32 %v7110, 0.0
        %v7221 = vmax.f32 %v7197, 0.0
        %v7222 = vmax.f32 %v7199, 0.0
        %v7223 = vmax.f32 %v7114, 0.0
        %v7224 = vmax.f32 %v7116, 0.0
        %v7225 = vmax.f32 %v7203, 0.0
        %v7226 = vmax.f32 %v7205, 0.0
        %v7227 = vmax.f32 %v7120, 0.0
        %v7228 = vmax.f32 %v7122, 0.0
        %v7229 = vmax.f32 %v7209, 0.0
        %v7230 = vmax.f32 %v7211, 0.0
        %v7231 = vmax.f32 %v7126, 0.0
        %v7232 = vmax.f32 %v7128, 0.0
        %v7233 = vmax.f32 %v7215, 0.0
        %v7234 = vmax.f32 %v7217, 0.0
        %v7235 = vld [vmem:[%s498] sm:$0xff]
        %v7236 = vld [vmem:[%s498 + $0x8] sm:$0xff]
        %v7237 = vld [vmem:[%s498 + $0x10] sm:$0xff]
        %v7238 = vld [vmem:[%s498 + $0x18] sm:$0xff]
        %v7239 = vld [vmem:[%s503] sm:$0xff]
        %v7240 = vld [vmem:[%s503 + $0x8] sm:$0xff]
        %v7241 = vld [vmem:[%s503 + $0x10] sm:$0xff]
        %v7242 = vld [vmem:[%s503 + $0x18] sm:$0xff]
        %7244 = vset.pattern.permute.xlu0 0
        %7245 = vperm.xlu0 %7244, %v7239
        %v7246 = vpop.permute.xlu0 %7245
        %7249 = vset.pattern.permute.xlu0 0
        %7250 = vperm.xlu0 %7249, %v7240
        %v7251 = vpop.permute.xlu0 %7250
        %7254 = vset.pattern.permute.xlu0 0
        %7255 = vperm.xlu0 %7254, %v7241
        %v7256 = vpop.permute.xlu0 %7255
        %7259 = vset.pattern.permute.xlu0 0
        %7260 = vperm.xlu0 %7259, %v7242
        %v7261 = vpop.permute.xlu0 %7260
        %v7264 = vsel %vm291, %v7235, 0
        %v7267 = vsel %vm291, %v7236, 0
        %v7270 = vsel %vm291, %v7237, 0
        %v7273 = vsel %vm291, %v7238, 0
        %7275 = vmatprep.subr.mxu0 0.0
        %7276 = vmatpush1.msra.mxu0 0.0
        %7277 = vmatprep.subr.mxu0 0.0
        %7278 = vmatpush1.msra.mxu0 0.0
        %7279 = vmatprep.subr.mxu0 0.0
        %7280 = vmatpush1.msra.mxu0 0.0
        %7281 = vmatprep.subr.mxu0 0.0
        %7282 = vmatpush1.msra.mxu0 0.0
        %7283 = vmatprep.subr.mxu0 0.0
        %7284 = vmatpush1.msra.mxu0 0.0
        %7285 = vmatprep.subr.mxu0 0.0
        %7286 = vmatpush1.msra.mxu0 0.0
        %7287 = vmatprep.subr.mxu0 0.0
        %7288 = vmatpush1.msra.mxu0 0.0
        %7289 = vmatprep.subr.mxu0 0.0
        %7290 = vmatpush1.msra.mxu0 0.0
        %7291 = vmatprep.subr.mxu0 0.0
        %7292 = vmatpush1.msra.mxu0 0.0
        %7293 = vmatprep.subr.mxu0 0.0
        %7294 = vmatpush1.msra.mxu0 0.0
        %7295 = vmatprep.subr.mxu0 0.0
        %7296 = vmatpush1.msra.mxu0 0.0
        %7297 = vmatprep.subr.mxu0 0.0
        %7298 = vmatpush1.msra.mxu0 0.0
        %7299 = vmatprep.subr.mxu0 %v7232
        %7300 = vmatpush1.msra.mxu0 %v7231
        %7301 = vmatprep.subr.mxu0 %v7228
        %7302 = vmatpush1.msra.mxu0 %v7227
        %7303 = vmatprep.subr.mxu0 %v7224
        %7304 = vmatpush1.msra.mxu0 %v7223
        %7305 = vmatprep.subr.mxu0 %v7220
        %7306 = vmatpush1.msra.mxu0 %v7219
        %7307 = vmatprep.subr.mxu0 0.0
        %7308 = vmatpush2.msra.mxu0 0.0
        %7309 = vmatprep.subr.mxu0 0.0
        %7310 = vmatpush2.msra.mxu0 0.0
        %7311 = vmatprep.subr.mxu0 0.0
        %7312 = vmatpush2.msra.mxu0 0.0
        %7313 = vmatprep.subr.mxu0 0.0
        %7314 = vmatpush2.msra.mxu0 0.0
        %7315 = vmatprep.subr.mxu0 0.0
        %7316 = vmatpush2.msra.mxu0 0.0
        %7317 = vmatprep.subr.mxu0 0.0
        %7318 = vmatpush2.msra.mxu0 0.0
        %7319 = vmatprep.subr.mxu0 0.0
        %7320 = vmatpush2.msra.mxu0 0.0
        %7321 = vmatprep.subr.mxu0 0.0
        %7322 = vmatpush2.msra.mxu0 0.0
        %7323 = vmatprep.subr.mxu0 0.0
        %7324 = vmatpush2.msra.mxu0 0.0
        %7325 = vmatprep.subr.mxu0 0.0
        %7326 = vmatpush2.msra.mxu0 0.0
        %7327 = vmatprep.subr.mxu0 0.0
        %7328 = vmatpush2.msra.mxu0 0.0
        %7329 = vmatprep.subr.mxu0 0.0
        %7330 = vmatpush2.msra.mxu0 0.0
        %7331 = vmatprep.subr.mxu0 0.0
        %7332 = vmatpush2.msra.mxu0 0.0
        %7333 = vmatprep.subr.mxu0 0.0
        %7334 = vmatpush2.msra.mxu0 0.0
        %7335 = vmatprep.subr.mxu0 0.0
        %7336 = vmatpush2.msra.mxu0 0.0
        %7337 = vmatprep.subr.mxu0 0.0
        %7338 = vmatpush2.msra.mxu0 0.0
        %7339 = vmatprep.mubr.f32.mxu0 0.0
        %7340 = vmatmul.mubr.f32.gmra.mxu0 %v7264
        %v7341 = vpop.f32.mrf.mxu0
        %v7342 = vadd.f32 %v7246, %v7341
        %v7343 = vpop.f32.mrf.mxu0
        %v7344 = vadd.f32 %v7246, %v7343
        %7345 = vmatprep.mubr.f32.mxu0 0.0
        %7346 = vmatmul.mubr.f32.gmra.mxu0 %v7267
        %v7347 = vpop.f32.mrf.mxu0
        %v7348 = vadd.f32 %v7251, %v7347
        %v7349 = vpop.f32.mrf.mxu0
        %v7350 = vadd.f32 %v7251, %v7349
        %7351 = vmatprep.mubr.f32.mxu0 0.0
        %7352 = vmatmul.mubr.f32.gmra.mxu0 %v7270
        %v7353 = vpop.f32.mrf.mxu0
        %v7354 = vadd.f32 %v7256, %v7353
        %v7355 = vpop.f32.mrf.mxu0
        %v7356 = vadd.f32 %v7256, %v7355
        %7357 = vmatprep.mubr.f32.mxu0 0.0
        %7358 = vmatmul.mubr.f32.gmra.mxu0 %v7273
        %v7359 = vpop.f32.mrf.mxu0
        %v7360 = vadd.f32 %v7261, %v7359
        %v7361 = vpop.f32.mrf.mxu0
        %v7362 = vadd.f32 %v7261, %v7361
        %7363 = vdwg.mxu0
        %7364 = vmatprep.subr.mxu0 0.0
        %7365 = vmatpush1.msra.mxu0 0.0
        %7366 = vmatprep.subr.mxu0 0.0
        %7367 = vmatpush1.msra.mxu0 0.0
        %7368 = vmatprep.subr.mxu0 0.0
        %7369 = vmatpush1.msra.mxu0 0.0
        %7370 = vmatprep.subr.mxu0 0.0
        %7371 = vmatpush1.msra.mxu0 0.0
        %7372 = vmatprep.subr.mxu0 0.0
        %7373 = vmatpush1.msra.mxu0 0.0
        %7374 = vmatprep.subr.mxu0 0.0
        %7375 = vmatpush1.msra.mxu0 0.0
        %7376 = vmatprep.subr.mxu0 0.0
        %7377 = vmatpush1.msra.mxu0 0.0
        %7378 = vmatprep.subr.mxu0 0.0
        %7379 = vmatpush1.msra.mxu0 0.0
        %7380 = vmatprep.subr.mxu0 0.0
        %7381 = vmatpush1.msra.mxu0 0.0
        %7382 = vmatprep.subr.mxu0 0.0
        %7383 = vmatpush1.msra.mxu0 0.0
        %7384 = vmatprep.subr.mxu0 0.0
        %7385 = vmatpush1.msra.mxu0 0.0
        %7386 = vmatprep.subr.mxu0 0.0
        %7387 = vmatpush1.msra.mxu0 0.0
        %7388 = vmatprep.subr.mxu0 %v7234
        %7389 = vmatpush1.msra.mxu0 %v7233
        %7390 = vmatprep.subr.mxu0 %v7230
        %7391 = vmatpush1.msra.mxu0 %v7229
        %7392 = vmatprep.subr.mxu0 %v7226
        %7393 = vmatpush1.msra.mxu0 %v7225
        %7394 = vmatprep.subr.mxu0 %v7222
        %7395 = vmatpush1.msra.mxu0 %v7221
        %7396 = vmatprep.subr.mxu0 0.0
        %7397 = vmatpush2.msra.mxu0 0.0
        %7398 = vmatprep.subr.mxu0 0.0
        %7399 = vmatpush2.msra.mxu0 0.0
        %7400 = vmatprep.subr.mxu0 0.0
        %7401 = vmatpush2.msra.mxu0 0.0
        %7402 = vmatprep.subr.mxu0 0.0
        %7403 = vmatpush2.msra.mxu0 0.0
        %7404 = vmatprep.subr.mxu0 0.0
        %7405 = vmatpush2.msra.mxu0 0.0
        %7406 = vmatprep.subr.mxu0 0.0
        %7407 = vmatpush2.msra.mxu0 0.0
        %7408 = vmatprep.subr.mxu0 0.0
        %7409 = vmatpush2.msra.mxu0 0.0
        %7410 = vmatprep.subr.mxu0 0.0
        %7411 = vmatpush2.msra.mxu0 0.0
        %7412 = vmatprep.subr.mxu0 0.0
        %7413 = vmatpush2.msra.mxu0 0.0
        %7414 = vmatprep.subr.mxu0 0.0
        %7415 = vmatpush2.msra.mxu0 0.0
        %7416 = vmatprep.subr.mxu0 0.0
        %7417 = vmatpush2.msra.mxu0 0.0
        %7418 = vmatprep.subr.mxu0 0.0
        %7419 = vmatpush2.msra.mxu0 0.0
        %7420 = vmatprep.subr.mxu0 0.0
        %7421 = vmatpush2.msra.mxu0 0.0
        %7422 = vmatprep.subr.mxu0 0.0
        %7423 = vmatpush2.msra.mxu0 0.0
        %7424 = vmatprep.subr.mxu0 0.0
        %7425 = vmatpush2.msra.mxu0 0.0
        %7426 = vmatprep.subr.mxu0 0.0
        %7427 = vmatpush2.msra.mxu0 0.0
        %7428 = vmatprep.mubr.f32.mxu0 0.0
        %7429 = vmatmul.mubr.f32.gmra.mxu0 %v7264
        %v7430 = vpop.f32.mrf.mxu0
        %v7431 = vadd.f32 %v7246, %v7430
        %v7432 = vpop.f32.mrf.mxu0
        %v7433 = vadd.f32 %v7246, %v7432
        %7434 = vmatprep.mubr.f32.mxu0 0.0
        %7435 = vmatmul.mubr.f32.gmra.mxu0 %v7267
        %v7436 = vpop.f32.mrf.mxu0
        %v7437 = vadd.f32 %v7251, %v7436
        %v7438 = vpop.f32.mrf.mxu0
        %v7439 = vadd.f32 %v7251, %v7438
        %7440 = vmatprep.mubr.f32.mxu0 0.0
        %7441 = vmatmul.mubr.f32.gmra.mxu0 %v7270
        %v7442 = vpop.f32.mrf.mxu0
        %v7443 = vadd.f32 %v7256, %v7442
        %v7444 = vpop.f32.mrf.mxu0
        %v7445 = vadd.f32 %v7256, %v7444
        %7446 = vmatprep.mubr.f32.mxu0 0.0
        %7447 = vmatmul.mubr.f32.gmra.mxu0 %v7273
        %v7448 = vpop.f32.mrf.mxu0
        %v7449 = vadd.f32 %v7261, %v7448
        %v7450 = vpop.f32.mrf.mxu0
        %v7451 = vadd.f32 %v7261, %v7450
        %7452 = vdwg.mxu0
        %v7453 = vmax.f32 %v7342, 0.0
        %v7454 = vmax.f32 %v7344, 0.0
        %v7455 = vmax.f32 %v7431, 0.0
        %v7456 = vmax.f32 %v7433, 0.0
        %v7457 = vmax.f32 %v7348, 0.0
        %v7458 = vmax.f32 %v7350, 0.0
        %v7459 = vmax.f32 %v7437, 0.0
        %v7460 = vmax.f32 %v7439, 0.0
        %v7461 = vmax.f32 %v7354, 0.0
        %v7462 = vmax.f32 %v7356, 0.0
        %v7463 = vmax.f32 %v7443, 0.0
        %v7464 = vmax.f32 %v7445, 0.0
        %v7465 = vmax.f32 %v7360, 0.0
        %v7466 = vmax.f32 %v7362, 0.0
        %v7467 = vmax.f32 %v7449, 0.0
        %v7468 = vmax.f32 %v7451, 0.0
        %v7469 = vld [vmem:[%s734] sm:$0xff]
        %v7470 = vld [vmem:[%s734 + $0x8] sm:$0xff]
        %v7471 = vld [vmem:[%s734 + $0x10] sm:$0xff]
        %v7472 = vld [vmem:[%s734 + $0x18] sm:$0xff]
        %v7473 = vld [vmem:[%s739] sm:$0xff]
        %v7474 = vld [vmem:[%s739 + $0x8] sm:$0xff]
        %v7475 = vld [vmem:[%s739 + $0x10] sm:$0xff]
        %v7476 = vld [vmem:[%s739 + $0x18] sm:$0xff]
        %7478 = vset.pattern.permute.xlu0 0
        %7479 = vperm.xlu0 %7478, %v7473
        %v7480 = vpop.permute.xlu0 %7479
        %7483 = vset.pattern.permute.xlu0 0
        %7484 = vperm.xlu0 %7483, %v7474
        %v7485 = vpop.permute.xlu0 %7484
        %7488 = vset.pattern.permute.xlu0 0
        %7489 = vperm.xlu0 %7488, %v7475
        %v7490 = vpop.permute.xlu0 %7489
        %7493 = vset.pattern.permute.xlu0 0
        %7494 = vperm.xlu0 %7493, %v7476
        %v7495 = vpop.permute.xlu0 %7494
        %v7498 = vsel %vm291, %v7469, 0
        %v7501 = vsel %vm291, %v7470, 0
        %v7504 = vsel %vm291, %v7471, 0
        %v7507 = vsel %vm291, %v7472, 0
        %7509 = vmatprep.subr.mxu0 0.0
        %7510 = vmatpush1.msra.mxu0 0.0
        %7511 = vmatprep.subr.mxu0 0.0
        %7512 = vmatpush1.msra.mxu0 0.0
        %7513 = vmatprep.subr.mxu0 0.0
        %7514 = vmatpush1.msra.mxu0 0.0
        %7515 = vmatprep.subr.mxu0 0.0
        %7516 = vmatpush1.msra.mxu0 0.0
        %7517 = vmatprep.subr.mxu0 0.0
        %7518 = vmatpush1.msra.mxu0 0.0
        %7519 = vmatprep.subr.mxu0 0.0
        %7520 = vmatpush1.msra.mxu0 0.0
        %7521 = vmatprep.subr.mxu0 0.0
        %7522 = vmatpush1.msra.mxu0 0.0
        %7523 = vmatprep.subr.mxu0 0.0
        %7524 = vmatpush1.msra.mxu0 0.0
        %7525 = vmatprep.subr.mxu0 0.0
        %7526 = vmatpush1.msra.mxu0 0.0
        %7527 = vmatprep.subr.mxu0 0.0
        %7528 = vmatpush1.msra.mxu0 0.0
        %7529 = vmatprep.subr.mxu0 0.0
        %7530 = vmatpush1.msra.mxu0 0.0
        %7531 = vmatprep.subr.mxu0 0.0
        %7532 = vmatpush1.msra.mxu0 0.0
        %7533 = vmatprep.subr.mxu0 %v7466
        %7534 = vmatpush1.msra.mxu0 %v7465
        %7535 = vmatprep.subr.mxu0 %v7462
        %7536 = vmatpush1.msra.mxu0 %v7461
        %7537 = vmatprep.subr.mxu0 %v7458
        %7538 = vmatpush1.msra.mxu0 %v7457
        %7539 = vmatprep.subr.mxu0 %v7454
        %7540 = vmatpush1.msra.mxu0 %v7453
        %7541 = vmatprep.subr.mxu0 0.0
        %7542 = vmatpush2.msra.mxu0 0.0
        %7543 = vmatprep.subr.mxu0 0.0
        %7544 = vmatpush2.msra.mxu0 0.0
        %7545 = vmatprep.subr.mxu0 0.0
        %7546 = vmatpush2.msra.mxu0 0.0
        %7547 = vmatprep.subr.mxu0 0.0
        %7548 = vmatpush2.msra.mxu0 0.0
        %7549 = vmatprep.subr.mxu0 0.0
        %7550 = vmatpush2.msra.mxu0 0.0
        %7551 = vmatprep.subr.mxu0 0.0
        %7552 = vmatpush2.msra.mxu0 0.0
        %7553 = vmatprep.subr.mxu0 0.0
        %7554 = vmatpush2.msra.mxu0 0.0
        %7555 = vmatprep.subr.mxu0 0.0
        %7556 = vmatpush2.msra.mxu0 0.0
        %7557 = vmatprep.subr.mxu0 0.0
        %7558 = vmatpush2.msra.mxu0 0.0
        %7559 = vmatprep.subr.mxu0 0.0
        %7560 = vmatpush2.msra.mxu0 0.0
        %7561 = vmatprep.subr.mxu0 0.0
        %7562 = vmatpush2.msra.mxu0 0.0
        %7563 = vmatprep.subr.mxu0 0.0
        %7564 = vmatpush2.msra.mxu0 0.0
        %7565 = vmatprep.subr.mxu0 0.0
        %7566 = vmatpush2.msra.mxu0 0.0
        %7567 = vmatprep.subr.mxu0 0.0
        %7568 = vmatpush2.msra.mxu0 0.0
        %7569 = vmatprep.subr.mxu0 0.0
        %7570 = vmatpush2.msra.mxu0 0.0
        %7571 = vmatprep.subr.mxu0 0.0
        %7572 = vmatpush2.msra.mxu0 0.0
        %7573 = vmatprep.mubr.f32.mxu0 0.0
        %7574 = vmatmul.mubr.f32.gmra.mxu0 %v7498
        %v7575 = vpop.f32.mrf.mxu0
        %v7576 = vadd.f32 %v7480, %v7575
        %v7577 = vpop.f32.mrf.mxu0
        %v7578 = vadd.f32 %v7480, %v7577
        %7579 = vmatprep.mubr.f32.mxu0 0.0
        %7580 = vmatmul.mubr.f32.gmra.mxu0 %v7501
        %v7581 = vpop.f32.mrf.mxu0
        %v7582 = vadd.f32 %v7485, %v7581
        %v7583 = vpop.f32.mrf.mxu0
        %v7584 = vadd.f32 %v7485, %v7583
        %7585 = vmatprep.mubr.f32.mxu0 0.0
        %7586 = vmatmul.mubr.f32.gmra.mxu0 %v7504
        %v7587 = vpop.f32.mrf.mxu0
        %v7588 = vadd.f32 %v7490, %v7587
        %v7589 = vpop.f32.mrf.mxu0
        %v7590 = vadd.f32 %v7490, %v7589
        %7591 = vmatprep.mubr.f32.mxu0 0.0
        %7592 = vmatmul.mubr.f32.gmra.mxu0 %v7507
        %v7593 = vpop.f32.mrf.mxu0
        %v7594 = vadd.f32 %v7495, %v7593
        %v7595 = vpop.f32.mrf.mxu0
        %v7596 = vadd.f32 %v7495, %v7595
        %7597 = vdwg.mxu0
        %7598 = vmatprep.subr.mxu0 0.0
        %7599 = vmatpush1.msra.mxu0 0.0
        %7600 = vmatprep.subr.mxu0 0.0
        %7601 = vmatpush1.msra.mxu0 0.0
        %7602 = vmatprep.subr.mxu0 0.0
        %7603 = vmatpush1.msra.mxu0 0.0
        %7604 = vmatprep.subr.mxu0 0.0
        %7605 = vmatpush1.msra.mxu0 0.0
        %7606 = vmatprep.subr.mxu0 0.0
        %7607 = vmatpush1.msra.mxu0 0.0
        %7608 = vmatprep.subr.mxu0 0.0
        %7609 = vmatpush1.msra.mxu0 0.0
        %7610 = vmatprep.subr.mxu0 0.0
        %7611 = vmatpush1.msra.mxu0 0.0
        %7612 = vmatprep.subr.mxu0 0.0
        %7613 = vmatpush1.msra.mxu0 0.0
        %7614 = vmatprep.subr.mxu0 0.0
        %7615 = vmatpush1.msra.mxu0 0.0
        %7616 = vmatprep.subr.mxu0 0.0
        %7617 = vmatpush1.msra.mxu0 0.0
        %7618 = vmatprep.subr.mxu0 0.0
        %7619 = vmatpush1.msra.mxu0 0.0
        %7620 = vmatprep.subr.mxu0 0.0
        %7621 = vmatpush1.msra.mxu0 0.0
        %7622 = vmatprep.subr.mxu0 %v7468
        %7623 = vmatpush1.msra.mxu0 %v7467
        %7624 = vmatprep.subr.mxu0 %v7464
        %7625 = vmatpush1.msra.mxu0 %v7463
        %7626 = vmatprep.subr.mxu0 %v7460
        %7627 = vmatpush1.msra.mxu0 %v7459
        %7628 = vmatprep.subr.mxu0 %v7456
        %7629 = vmatpush1.msra.mxu0 %v7455
        %7630 = vmatprep.subr.mxu0 0.0
        %7631 = vmatpush2.msra.mxu0 0.0
        %7632 = vmatprep.subr.mxu0 0.0
        %7633 = vmatpush2.msra.mxu0 0.0
        %7634 = vmatprep.subr.mxu0 0.0
        %7635 = vmatpush2.msra.mxu0 0.0
        %7636 = vmatprep.subr.mxu0 0.0
        %7637 = vmatpush2.msra.mxu0 0.0
        %7638 = vmatprep.subr.mxu0 0.0
        %7639 = vmatpush2.msra.mxu0 0.0
        %7640 = vmatprep.subr.mxu0 0.0
        %7641 = vmatpush2.msra.mxu0 0.0
        %7642 = vmatprep.subr.mxu0 0.0
        %7643 = vmatpush2.msra.mxu0 0.0
        %7644 = vmatprep.subr.mxu0 0.0
        %7645 = vmatpush2.msra.mxu0 0.0
        %7646 = vmatprep.subr.mxu0 0.0
        %7647 = vmatpush2.msra.mxu0 0.0
        %7648 = vmatprep.subr.mxu0 0.0
        %7649 = vmatpush2.msra.mxu0 0.0
        %7650 = vmatprep.subr.mxu0 0.0
        %7651 = vmatpush2.msra.mxu0 0.0
        %7652 = vmatprep.subr.mxu0 0.0
        %7653 = vmatpush2.msra.mxu0 0.0
        %7654 = vmatprep.subr.mxu0 0.0
        %7655 = vmatpush2.msra.mxu0 0.0
        %7656 = vmatprep.subr.mxu0 0.0
        %7657 = vmatpush2.msra.mxu0 0.0
        %7658 = vmatprep.subr.mxu0 0.0
        %7659 = vmatpush2.msra.mxu0 0.0
        %7660 = vmatprep.subr.mxu0 0.0
        %7661 = vmatpush2.msra.mxu0 0.0
        %7662 = vmatprep.mubr.f32.mxu0 0.0
        %7663 = vmatmul.mubr.f32.gmra.mxu0 %v7498
        %v7664 = vpop.f32.mrf.mxu0
        %v7665 = vadd.f32 %v7480, %v7664
        %v7666 = vpop.f32.mrf.mxu0
        %v7667 = vadd.f32 %v7480, %v7666
        %7668 = vmatprep.mubr.f32.mxu0 0.0
        %7669 = vmatmul.mubr.f32.gmra.mxu0 %v7501
        %v7670 = vpop.f32.mrf.mxu0
        %v7671 = vadd.f32 %v7485, %v7670
        %v7672 = vpop.f32.mrf.mxu0
        %v7673 = vadd.f32 %v7485, %v7672
        %7674 = vmatprep.mubr.f32.mxu0 0.0
        %7675 = vmatmul.mubr.f32.gmra.mxu0 %v7504
        %v7676 = vpop.f32.mrf.mxu0
        %v7677 = vadd.f32 %v7490, %v7676
        %v7678 = vpop.f32.mrf.mxu0
        %v7679 = vadd.f32 %v7490, %v7678
        %7680 = vmatprep.mubr.f32.mxu0 0.0
        %7681 = vmatmul.mubr.f32.gmra.mxu0 %v7507
        %v7682 = vpop.f32.mrf.mxu0
        %v7683 = vadd.f32 %v7495, %v7682
        %v7684 = vpop.f32.mrf.mxu0
        %v7685 = vadd.f32 %v7495, %v7684
        %7686 = vdwg.mxu0
        %v7687 = vmax.f32 %v7576, 0.0
        %v7688 = vmax.f32 %v7578, 0.0
        %v7689 = vmax.f32 %v7665, 0.0
        %v7690 = vmax.f32 %v7667, 0.0
        %v7691 = vmax.f32 %v7582, 0.0
        %v7692 = vmax.f32 %v7584, 0.0
        %v7693 = vmax.f32 %v7671, 0.0
        %v7694 = vmax.f32 %v7673, 0.0
        %v7695 = vmax.f32 %v7588, 0.0
        %v7696 = vmax.f32 %v7590, 0.0
        %v7697 = vmax.f32 %v7677, 0.0
        %v7698 = vmax.f32 %v7679, 0.0
        %v7699 = vmax.f32 %v7594, 0.0
        %v7700 = vmax.f32 %v7596, 0.0
        %v7701 = vmax.f32 %v7683, 0.0
        %v7702 = vmax.f32 %v7685, 0.0
        %v7703 = vadd.f32 %v6985, %v7687
        %v7704 = vadd.f32 %v6986, %v7688
        %v7705 = vadd.f32 %v6987, %v7689
        %v7706 = vadd.f32 %v6988, %v7690
        %v7707 = vadd.f32 %v6989, %v7691
        %v7708 = vadd.f32 %v6990, %v7692
        %v7709 = vadd.f32 %v6991, %v7693
        %v7710 = vadd.f32 %v6992, %v7694
        %v7711 = vadd.f32 %v6993, %v7695
        %v7712 = vadd.f32 %v6994, %v7696
        %v7713 = vadd.f32 %v6995, %v7697
        %v7714 = vadd.f32 %v6996, %v7698
        %v7715 = vadd.f32 %v6997, %v7699
        %v7716 = vadd.f32 %v6998, %v7700
        %v7717 = vadd.f32 %v6999, %v7701
        %v7718 = vadd.f32 %v7000, %v7702
        %v7719 = vld [vmem:[%s986] sm:$0xff]
        %v7720 = vld [vmem:[%s986 + $0x8] sm:$0xff]
        %v7721 = vld [vmem:[%s986 + $0x10] sm:$0xff]
        %v7722 = vld [vmem:[%s986 + $0x18] sm:$0xff]
        %v7723 = vld [vmem:[%s991] sm:$0xff]
        %v7724 = vld [vmem:[%s991 + $0x8] sm:$0xff]
        %v7725 = vld [vmem:[%s991 + $0x10] sm:$0xff]
        %v7726 = vld [vmem:[%s991 + $0x18] sm:$0xff]
        %7728 = vset.pattern.permute.xlu0 0
        %7729 = vperm.xlu0 %7728, %v7723
        %v7730 = vpop.permute.xlu0 %7729
        %7733 = vset.pattern.permute.xlu0 0
        %7734 = vperm.xlu0 %7733, %v7724
        %v7735 = vpop.permute.xlu0 %7734
        %7738 = vset.pattern.permute.xlu0 0
        %7739 = vperm.xlu0 %7738, %v7725
        %v7740 = vpop.permute.xlu0 %7739
        %7743 = vset.pattern.permute.xlu0 0
        %7744 = vperm.xlu0 %7743, %v7726
        %v7745 = vpop.permute.xlu0 %7744
        %v7748 = vsel %vm291, %v7719, 0
        %v7751 = vsel %vm291, %v7720, 0
        %v7754 = vsel %vm291, %v7721, 0
        %v7757 = vsel %vm291, %v7722, 0
        %7759 = vmatprep.subr.mxu0 0.0
        %7760 = vmatpush1.msra.mxu0 0.0
        %7761 = vmatprep.subr.mxu0 0.0
        %7762 = vmatpush1.msra.mxu0 0.0
        %7763 = vmatprep.subr.mxu0 0.0
        %7764 = vmatpush1.msra.mxu0 0.0
        %7765 = vmatprep.subr.mxu0 0.0
        %7766 = vmatpush1.msra.mxu0 0.0
        %7767 = vmatprep.subr.mxu0 0.0
        %7768 = vmatpush1.msra.mxu0 0.0
        %7769 = vmatprep.subr.mxu0 0.0
        %7770 = vmatpush1.msra.mxu0 0.0
        %7771 = vmatprep.subr.mxu0 0.0
        %7772 = vmatpush1.msra.mxu0 0.0
        %7773 = vmatprep.subr.mxu0 0.0
        %7774 = vmatpush1.msra.mxu0 0.0
        %7775 = vmatprep.subr.mxu0 0.0
        %7776 = vmatpush1.msra.mxu0 0.0
        %7777 = vmatprep.subr.mxu0 0.0
        %7778 = vmatpush1.msra.mxu0 0.0
        %7779 = vmatprep.subr.mxu0 0.0
        %7780 = vmatpush1.msra.mxu0 0.0
        %7781 = vmatprep.subr.mxu0 0.0
        %7782 = vmatpush1.msra.mxu0 0.0
        %7783 = vmatprep.subr.mxu0 %v7716
        %7784 = vmatpush1.msra.mxu0 %v7715
        %7785 = vmatprep.subr.mxu0 %v7712
        %7786 = vmatpush1.msra.mxu0 %v7711
        %7787 = vmatprep.subr.mxu0 %v7708
        %7788 = vmatpush1.msra.mxu0 %v7707
        %7789 = vmatprep.subr.mxu0 %v7704
        %7790 = vmatpush1.msra.mxu0 %v7703
        %7791 = vmatprep.subr.mxu0 0.0
        %7792 = vmatpush2.msra.mxu0 0.0
        %7793 = vmatprep.subr.mxu0 0.0
        %7794 = vmatpush2.msra.mxu0 0.0
        %7795 = vmatprep.subr.mxu0 0.0
        %7796 = vmatpush2.msra.mxu0 0.0
        %7797 = vmatprep.subr.mxu0 0.0
        %7798 = vmatpush2.msra.mxu0 0.0
        %7799 = vmatprep.subr.mxu0 0.0
        %7800 = vmatpush2.msra.mxu0 0.0
        %7801 = vmatprep.subr.mxu0 0.0
        %7802 = vmatpush2.msra.mxu0 0.0
        %7803 = vmatprep.subr.mxu0 0.0
        %7804 = vmatpush2.msra.mxu0 0.0
        %7805 = vmatprep.subr.mxu0 0.0
        %7806 = vmatpush2.msra.mxu0 0.0
        %7807 = vmatprep.subr.mxu0 0.0
        %7808 = vmatpush2.msra.mxu0 0.0
        %7809 = vmatprep.subr.mxu0 0.0
        %7810 = vmatpush2.msra.mxu0 0.0
        %7811 = vmatprep.subr.mxu0 0.0
        %7812 = vmatpush2.msra.mxu0 0.0
        %7813 = vmatprep.subr.mxu0 0.0
        %7814 = vmatpush2.msra.mxu0 0.0
        %7815 = vmatprep.subr.mxu0 0.0
        %7816 = vmatpush2.msra.mxu0 0.0
        %7817 = vmatprep.subr.mxu0 0.0
        %7818 = vmatpush2.msra.mxu0 0.0
        %7819 = vmatprep.subr.mxu0 0.0
        %7820 = vmatpush2.msra.mxu0 0.0
        %7821 = vmatprep.subr.mxu0 0.0
        %7822 = vmatpush2.msra.mxu0 0.0
        %7823 = vmatprep.mubr.f32.mxu0 0.0
        %7824 = vmatmul.mubr.f32.gmra.mxu0 %v7748
        %v7825 = vpop.f32.mrf.mxu0
        %v7826 = vadd.f32 %v7730, %v7825
        %v7827 = vpop.f32.mrf.mxu0
        %v7828 = vadd.f32 %v7730, %v7827
        %7829 = vmatprep.mubr.f32.mxu0 0.0
        %7830 = vmatmul.mubr.f32.gmra.mxu0 %v7751
        %v7831 = vpop.f32.mrf.mxu0
        %v7832 = vadd.f32 %v7735, %v7831
        %v7833 = vpop.f32.mrf.mxu0
        %v7834 = vadd.f32 %v7735, %v7833
        %7835 = vmatprep.mubr.f32.mxu0 0.0
        %7836 = vmatmul.mubr.f32.gmra.mxu0 %v7754
        %v7837 = vpop.f32.mrf.mxu0
        %v7838 = vadd.f32 %v7740, %v7837
        %v7839 = vpop.f32.mrf.mxu0
        %v7840 = vadd.f32 %v7740, %v7839
        %7841 = vmatprep.mubr.f32.mxu0 0.0
        %7842 = vmatmul.mubr.f32.gmra.mxu0 %v7757
        %v7843 = vpop.f32.mrf.mxu0
        %v7844 = vadd.f32 %v7745, %v7843
        %v7845 = vpop.f32.mrf.mxu0
        %v7846 = vadd.f32 %v7745, %v7845
        %7847 = vdwg.mxu0
        %7848 = vmatprep.subr.mxu0 0.0
        %7849 = vmatpush1.msra.mxu0 0.0
        %7850 = vmatprep.subr.mxu0 0.0
        %7851 = vmatpush1.msra.mxu0 0.0
        %7852 = vmatprep.subr.mxu0 0.0
        %7853 = vmatpush1.msra.mxu0 0.0
        %7854 = vmatprep.subr.mxu0 0.0
        %7855 = vmatpush1.msra.mxu0 0.0
        %7856 = vmatprep.subr.mxu0 0.0
        %7857 = vmatpush1.msra.mxu0 0.0
        %7858 = vmatprep.subr.mxu0 0.0
        %7859 = vmatpush1.msra.mxu0 0.0
        %7860 = vmatprep.subr.mxu0 0.0
        %7861 = vmatpush1.msra.mxu0 0.0
        %7862 = vmatprep.subr.mxu0 0.0
        %7863 = vmatpush1.msra.mxu0 0.0
        %7864 = vmatprep.subr.mxu0 0.0
        %7865 = vmatpush1.msra.mxu0 0.0
        %7866 = vmatprep.subr.mxu0 0.0
        %7867 = vmatpush1.msra.mxu0 0.0
        %7868 = vmatprep.subr.mxu0 0.0
        %7869 = vmatpush1.msra.mxu0 0.0
        %7870 = vmatprep.subr.mxu0 0.0
        %7871 = vmatpush1.msra.mxu0 0.0
        %7872 = vmatprep.subr.mxu0 %v7718
        %7873 = vmatpush1.msra.mxu0 %v7717
        %7874 = vmatprep.subr.mxu0 %v7714
        %7875 = vmatpush1.msra.mxu0 %v7713
        %7876 = vmatprep.subr.mxu0 %v7710
        %7877 = vmatpush1.msra.mxu0 %v7709
        %7878 = vmatprep.subr.mxu0 %v7706
        %7879 = vmatpush1.msra.mxu0 %v7705
        %7880 = vmatprep.subr.mxu0 0.0
        %7881 = vmatpush2.msra.mxu0 0.0
        %7882 = vmatprep.subr.mxu0 0.0
        %7883 = vmatpush2.msra.mxu0 0.0
        %7884 = vmatprep.subr.mxu0 0.0
        %7885 = vmatpush2.msra.mxu0 0.0
        %7886 = vmatprep.subr.mxu0 0.0
        %7887 = vmatpush2.msra.mxu0 0.0
        %7888 = vmatprep.subr.mxu0 0.0
        %7889 = vmatpush2.msra.mxu0 0.0
        %7890 = vmatprep.subr.mxu0 0.0
        %7891 = vmatpush2.msra.mxu0 0.0
        %7892 = vmatprep.subr.mxu0 0.0
        %7893 = vmatpush2.msra.mxu0 0.0
        %7894 = vmatprep.subr.mxu0 0.0
        %7895 = vmatpush2.msra.mxu0 0.0
        %7896 = vmatprep.subr.mxu0 0.0
        %7897 = vmatpush2.msra.mxu0 0.0
        %7898 = vmatprep.subr.mxu0 0.0
        %7899 = vmatpush2.msra.mxu0 0.0
        %7900 = vmatprep.subr.mxu0 0.0
        %7901 = vmatpush2.msra.mxu0 0.0
        %7902 = vmatprep.subr.mxu0 0.0
        %7903 = vmatpush2.msra.mxu0 0.0
        %7904 = vmatprep.subr.mxu0 0.0
        %7905 = vmatpush2.msra.mxu0 0.0
        %7906 = vmatprep.subr.mxu0 0.0
        %7907 = vmatpush2.msra.mxu0 0.0
        %7908 = vmatprep.subr.mxu0 0.0
        %7909 = vmatpush2.msra.mxu0 0.0
        %7910 = vmatprep.subr.mxu0 0.0
        %7911 = vmatpush2.msra.mxu0 0.0
        %7912 = vmatprep.mubr.f32.mxu0 0.0
        %7913 = vmatmul.mubr.f32.gmra.mxu0 %v7748
        %v7914 = vpop.f32.mrf.mxu0
        %v7915 = vadd.f32 %v7730, %v7914
        %v7916 = vpop.f32.mrf.mxu0
        %v7917 = vadd.f32 %v7730, %v7916
        %7918 = vmatprep.mubr.f32.mxu0 0.0
        %7919 = vmatmul.mubr.f32.gmra.mxu0 %v7751
        %v7920 = vpop.f32.mrf.mxu0
        %v7921 = vadd.f32 %v7735, %v7920
        %v7922 = vpop.f32.mrf.mxu0
        %v7923 = vadd.f32 %v7735, %v7922
        %7924 = vmatprep.mubr.f32.mxu0 0.0
        %7925 = vmatmul.mubr.f32.gmra.mxu0 %v7754
        %v7926 = vpop.f32.mrf.mxu0
        %v7927 = vadd.f32 %v7740, %v7926
        %v7928 = vpop.f32.mrf.mxu0
        %v7929 = vadd.f32 %v7740, %v7928
        %7930 = vmatprep.mubr.f32.mxu0 0.0
        %7931 = vmatmul.mubr.f32.gmra.mxu0 %v7757
        %v7932 = vpop.f32.mrf.mxu0
        %v7933 = vadd.f32 %v7745, %v7932
        %v7934 = vpop.f32.mrf.mxu0
        %v7935 = vadd.f32 %v7745, %v7934
        %7936 = vdwg.mxu0
        %v7937 = vmax.f32 %v7826, 0.0
        %v7938 = vmax.f32 %v7828, 0.0
        %v7939 = vmax.f32 %v7915, 0.0
        %v7940 = vmax.f32 %v7917, 0.0
        %v7941 = vmax.f32 %v7832, 0.0
        %v7942 = vmax.f32 %v7834, 0.0
        %v7943 = vmax.f32 %v7921, 0.0
        %v7944 = vmax.f32 %v7923, 0.0
        %v7945 = vmax.f32 %v7838, 0.0
        %v7946 = vmax.f32 %v7840, 0.0
        %v7947 = vmax.f32 %v7927, 0.0
        %v7948 = vmax.f32 %v7929, 0.0
        %v7949 = vmax.f32 %v7844, 0.0
        %v7950 = vmax.f32 %v7846, 0.0
        %v7951 = vmax.f32 %v7933, 0.0
        %v7952 = vmax.f32 %v7935, 0.0
        %v7953 = vld [vmem:[%s1222] sm:$0xff]
        %v7954 = vld [vmem:[%s1222 + $0x8] sm:$0xff]
        %v7955 = vld [vmem:[%s1222 + $0x10] sm:$0xff]
        %v7956 = vld [vmem:[%s1222 + $0x18] sm:$0xff]
        %v7957 = vld [vmem:[%s1227] sm:$0xff]
        %v7958 = vld [vmem:[%s1227 + $0x8] sm:$0xff]
        %v7959 = vld [vmem:[%s1227 + $0x10] sm:$0xff]
        %v7960 = vld [vmem:[%s1227 + $0x18] sm:$0xff]
        %7962 = vset.pattern.permute.xlu0 0
        %7963 = vperm.xlu0 %7962, %v7957
        %v7964 = vpop.permute.xlu0 %7963
        %7967 = vset.pattern.permute.xlu0 0
        %7968 = vperm.xlu0 %7967, %v7958
        %v7969 = vpop.permute.xlu0 %7968
        %7972 = vset.pattern.permute.xlu0 0
        %7973 = vperm.xlu0 %7972, %v7959
        %v7974 = vpop.permute.xlu0 %7973
        %7977 = vset.pattern.permute.xlu0 0
        %7978 = vperm.xlu0 %7977, %v7960
        %v7979 = vpop.permute.xlu0 %7978
        %v7982 = vsel %vm291, %v7953, 0
        %v7985 = vsel %vm291, %v7954, 0
        %v7988 = vsel %vm291, %v7955, 0
        %v7991 = vsel %vm291, %v7956, 0
        %7993 = vmatprep.subr.mxu0 0.0
        %7994 = vmatpush1.msra.mxu0 0.0
        %7995 = vmatprep.subr.mxu0 0.0
        %7996 = vmatpush1.msra.mxu0 0.0
        %7997 = vmatprep.subr.mxu0 0.0
        %7998 = vmatpush1.msra.mxu0 0.0
        %7999 = vmatprep.subr.mxu0 0.0
        %8000 = vmatpush1.msra.mxu0 0.0
        %8001 = vmatprep.subr.mxu0 0.0
        %8002 = vmatpush1.msra.mxu0 0.0
        %8003 = vmatprep.subr.mxu0 0.0
        %8004 = vmatpush1.msra.mxu0 0.0
        %8005 = vmatprep.subr.mxu0 0.0
        %8006 = vmatpush1.msra.mxu0 0.0
        %8007 = vmatprep.subr.mxu0 0.0
        %8008 = vmatpush1.msra.mxu0 0.0
        %8009 = vmatprep.subr.mxu0 0.0
        %8010 = vmatpush1.msra.mxu0 0.0
        %8011 = vmatprep.subr.mxu0 0.0
        %8012 = vmatpush1.msra.mxu0 0.0
        %8013 = vmatprep.subr.mxu0 0.0
        %8014 = vmatpush1.msra.mxu0 0.0
        %8015 = vmatprep.subr.mxu0 0.0
        %8016 = vmatpush1.msra.mxu0 0.0
        %8017 = vmatprep.subr.mxu0 %v7950
        %8018 = vmatpush1.msra.mxu0 %v7949
        %8019 = vmatprep.subr.mxu0 %v7946
        %8020 = vmatpush1.msra.mxu0 %v7945
        %8021 = vmatprep.subr.mxu0 %v7942
        %8022 = vmatpush1.msra.mxu0 %v7941
        %8023 = vmatprep.subr.mxu0 %v7938
        %8024 = vmatpush1.msra.mxu0 %v7937
        %8025 = vmatprep.subr.mxu0 0.0
        %8026 = vmatpush2.msra.mxu0 0.0
        %8027 = vmatprep.subr.mxu0 0.0
        %8028 = vmatpush2.msra.mxu0 0.0
        %8029 = vmatprep.subr.mxu0 0.0
        %8030 = vmatpush2.msra.mxu0 0.0
        %8031 = vmatprep.subr.mxu0 0.0
        %8032 = vmatpush2.msra.mxu0 0.0
        %8033 = vmatprep.subr.mxu0 0.0
        %8034 = vmatpush2.msra.mxu0 0.0
        %8035 = vmatprep.subr.mxu0 0.0
        %8036 = vmatpush2.msra.mxu0 0.0
        %8037 = vmatprep.subr.mxu0 0.0
        %8038 = vmatpush2.msra.mxu0 0.0
        %8039 = vmatprep.subr.mxu0 0.0
        %8040 = vmatpush2.msra.mxu0 0.0
        %8041 = vmatprep.subr.mxu0 0.0
        %8042 = vmatpush2.msra.mxu0 0.0
        %8043 = vmatprep.subr.mxu0 0.0
        %8044 = vmatpush2.msra.mxu0 0.0
        %8045 = vmatprep.subr.mxu0 0.0
        %8046 = vmatpush2.msra.mxu0 0.0
        %8047 = vmatprep.subr.mxu0 0.0
        %8048 = vmatpush2.msra.mxu0 0.0
        %8049 = vmatprep.subr.mxu0 0.0
        %8050 = vmatpush2.msra.mxu0 0.0
        %8051 = vmatprep.subr.mxu0 0.0
        %8052 = vmatpush2.msra.mxu0 0.0
        %8053 = vmatprep.subr.mxu0 0.0
        %8054 = vmatpush2.msra.mxu0 0.0
        %8055 = vmatprep.subr.mxu0 0.0
        %8056 = vmatpush2.msra.mxu0 0.0
        %8057 = vmatprep.mubr.f32.mxu0 0.0
        %8058 = vmatmul.mubr.f32.gmra.mxu0 %v7982
        %v8059 = vpop.f32.mrf.mxu0
        %v8060 = vadd.f32 %v7964, %v8059
        %v8061 = vpop.f32.mrf.mxu0
        %v8062 = vadd.f32 %v7964, %v8061
        %8063 = vmatprep.mubr.f32.mxu0 0.0
        %8064 = vmatmul.mubr.f32.gmra.mxu0 %v7985
        %v8065 = vpop.f32.mrf.mxu0
        %v8066 = vadd.f32 %v7969, %v8065
        %v8067 = vpop.f32.mrf.mxu0
        %v8068 = vadd.f32 %v7969, %v8067
        %8069 = vmatprep.mubr.f32.mxu0 0.0
        %8070 = vmatmul.mubr.f32.gmra.mxu0 %v7988
        %v8071 = vpop.f32.mrf.mxu0
        %v8072 = vadd.f32 %v7974, %v8071
        %v8073 = vpop.f32.mrf.mxu0
        %v8074 = vadd.f32 %v7974, %v8073
        %8075 = vmatprep.mubr.f32.mxu0 0.0
        %8076 = vmatmul.mubr.f32.gmra.mxu0 %v7991
        %v8077 = vpop.f32.mrf.mxu0
        %v8078 = vadd.f32 %v7979, %v8077
        %v8079 = vpop.f32.mrf.mxu0
        %v8080 = vadd.f32 %v7979, %v8079
        %8081 = vdwg.mxu0
        %8082 = vmatprep.subr.mxu0 0.0
        %8083 = vmatpush1.msra.mxu0 0.0
        %8084 = vmatprep.subr.mxu0 0.0
        %8085 = vmatpush1.msra.mxu0 0.0
        %8086 = vmatprep.subr.mxu0 0.0
        %8087 = vmatpush1.msra.mxu0 0.0
        %8088 = vmatprep.subr.mxu0 0.0
        %8089 = vmatpush1.msra.mxu0 0.0
        %8090 = vmatprep.subr.mxu0 0.0
        %8091 = vmatpush1.msra.mxu0 0.0
        %8092 = vmatprep.subr.mxu0 0.0
        %8093 = vmatpush1.msra.mxu0 0.0
        %8094 = vmatprep.subr.mxu0 0.0
        %8095 = vmatpush1.msra.mxu0 0.0
        %8096 = vmatprep.subr.mxu0 0.0
        %8097 = vmatpush1.msra.mxu0 0.0
        %8098 = vmatprep.subr.mxu0 0.0
        %8099 = vmatpush1.msra.mxu0 0.0
        %8100 = vmatprep.subr.mxu0 0.0
        %8101 = vmatpush1.msra.mxu0 0.0
        %8102 = vmatprep.subr.mxu0 0.0
        %8103 = vmatpush1.msra.mxu0 0.0
        %8104 = vmatprep.subr.mxu0 0.0
        %8105 = vmatpush1.msra.mxu0 0.0
        %8106 = vmatprep.subr.mxu0 %v7952
        %8107 = vmatpush1.msra.mxu0 %v7951
        %8108 = vmatprep.subr.mxu0 %v7948
        %8109 = vmatpush1.msra.mxu0 %v7947
        %8110 = vmatprep.subr.mxu0 %v7944
        %8111 = vmatpush1.msra.mxu0 %v7943
        %8112 = vmatprep.subr.mxu0 %v7940
        %8113 = vmatpush1.msra.mxu0 %v7939
        %8114 = vmatprep.subr.mxu0 0.0
        %8115 = vmatpush2.msra.mxu0 0.0
        %8116 = vmatprep.subr.mxu0 0.0
        %8117 = vmatpush2.msra.mxu0 0.0
        %8118 = vmatprep.subr.mxu0 0.0
        %8119 = vmatpush2.msra.mxu0 0.0
        %8120 = vmatprep.subr.mxu0 0.0
        %8121 = vmatpush2.msra.mxu0 0.0
        %8122 = vmatprep.subr.mxu0 0.0
        %8123 = vmatpush2.msra.mxu0 0.0
        %8124 = vmatprep.subr.mxu0 0.0
        %8125 = vmatpush2.msra.mxu0 0.0
        %8126 = vmatprep.subr.mxu0 0.0
        %8127 = vmatpush2.msra.mxu0 0.0
        %8128 = vmatprep.subr.mxu0 0.0
        %8129 = vmatpush2.msra.mxu0 0.0
        %8130 = vmatprep.subr.mxu0 0.0
        %8131 = vmatpush2.msra.mxu0 0.0
        %8132 = vmatprep.subr.mxu0 0.0
        %8133 = vmatpush2.msra.mxu0 0.0
        %8134 = vmatprep.subr.mxu0 0.0
        %8135 = vmatpush2.msra.mxu0 0.0
        %8136 = vmatprep.subr.mxu0 0.0
        %8137 = vmatpush2.msra.mxu0 0.0
        %8138 = vmatprep.subr.mxu0 0.0
        %8139 = vmatpush2.msra.mxu0 0.0
        %8140 = vmatprep.subr.mxu0 0.0
        %8141 = vmatpush2.msra.mxu0 0.0
        %8142 = vmatprep.subr.mxu0 0.0
        %8143 = vmatpush2.msra.mxu0 0.0
        %8144 = vmatprep.subr.mxu0 0.0
        %8145 = vmatpush2.msra.mxu0 0.0
        %8146 = vmatprep.mubr.f32.mxu0 0.0
        %8147 = vmatmul.mubr.f32.gmra.mxu0 %v7982
        %v8148 = vpop.f32.mrf.mxu0
        %v8149 = vadd.f32 %v7964, %v8148
        %v8150 = vpop.f32.mrf.mxu0
        %v8151 = vadd.f32 %v7964, %v8150
        %8152 = vmatprep.mubr.f32.mxu0 0.0
        %8153 = vmatmul.mubr.f32.gmra.mxu0 %v7985
        %v8154 = vpop.f32.mrf.mxu0
        %v8155 = vadd.f32 %v7969, %v8154
        %v8156 = vpop.f32.mrf.mxu0
        %v8157 = vadd.f32 %v7969, %v8156
        %8158 = vmatprep.mubr.f32.mxu0 0.0
        %8159 = vmatmul.mubr.f32.gmra.mxu0 %v7988
        %v8160 = vpop.f32.mrf.mxu0
        %v8161 = vadd.f32 %v7974, %v8160
        %v8162 = vpop.f32.mrf.mxu0
        %v8163 = vadd.f32 %v7974, %v8162
        %8164 = vmatprep.mubr.f32.mxu0 0.0
        %8165 = vmatmul.mubr.f32.gmra.mxu0 %v7991
        %v8166 = vpop.f32.mrf.mxu0
        %v8167 = vadd.f32 %v7979, %v8166
        %v8168 = vpop.f32.mrf.mxu0
        %v8169 = vadd.f32 %v7979, %v8168
        %8170 = vdwg.mxu0
        %v8171 = vmax.f32 %v8060, 0.0
        %v8172 = vmax.f32 %v8062, 0.0
        %v8173 = vmax.f32 %v8149, 0.0
        %v8174 = vmax.f32 %v8151, 0.0
        %v8175 = vmax.f32 %v8066, 0.0
        %v8176 = vmax.f32 %v8068, 0.0
        %v8177 = vmax.f32 %v8155, 0.0
        %v8178 = vmax.f32 %v8157, 0.0
        %v8179 = vmax.f32 %v8072, 0.0
        %v8180 = vmax.f32 %v8074, 0.0
        %v8181 = vmax.f32 %v8161, 0.0
        %v8182 = vmax.f32 %v8163, 0.0
        %v8183 = vmax.f32 %v8078, 0.0
        %v8184 = vmax.f32 %v8080, 0.0
        %v8185 = vmax.f32 %v8167, 0.0
        %v8186 = vmax.f32 %v8169, 0.0
        %v8187 = vld [vmem:[%s1458] sm:$0xff]
        %v8188 = vld [vmem:[%s1458 + $0x8] sm:$0xff]
        %v8189 = vld [vmem:[%s1458 + $0x10] sm:$0xff]
        %v8190 = vld [vmem:[%s1458 + $0x18] sm:$0xff]
        %v8191 = vld [vmem:[%s1463] sm:$0xff]
        %v8192 = vld [vmem:[%s1463 + $0x8] sm:$0xff]
        %v8193 = vld [vmem:[%s1463 + $0x10] sm:$0xff]
        %v8194 = vld [vmem:[%s1463 + $0x18] sm:$0xff]
        %8196 = vset.pattern.permute.xlu0 0
        %8197 = vperm.xlu0 %8196, %v8191
        %v8198 = vpop.permute.xlu0 %8197
        %8201 = vset.pattern.permute.xlu0 0
        %8202 = vperm.xlu0 %8201, %v8192
        %v8203 = vpop.permute.xlu0 %8202
        %8206 = vset.pattern.permute.xlu0 0
        %8207 = vperm.xlu0 %8206, %v8193
        %v8208 = vpop.permute.xlu0 %8207
        %8211 = vset.pattern.permute.xlu0 0
        %8212 = vperm.xlu0 %8211, %v8194
        %v8213 = vpop.permute.xlu0 %8212
        %v8216 = vsel %vm291, %v8187, 0
        %v8219 = vsel %vm291, %v8188, 0
        %v8222 = vsel %vm291, %v8189, 0
        %v8225 = vsel %vm291, %v8190, 0
        %8227 = vmatprep.subr.mxu0 0.0
        %8228 = vmatpush1.msra.mxu0 0.0
        %8229 = vmatprep.subr.mxu0 0.0
        %8230 = vmatpush1.msra.mxu0 0.0
        %8231 = vmatprep.subr.mxu0 0.0
        %8232 = vmatpush1.msra.mxu0 0.0
        %8233 = vmatprep.subr.mxu0 0.0
        %8234 = vmatpush1.msra.mxu0 0.0
        %8235 = vmatprep.subr.mxu0 0.0
        %8236 = vmatpush1.msra.mxu0 0.0
        %8237 = vmatprep.subr.mxu0 0.0
        %8238 = vmatpush1.msra.mxu0 0.0
        %8239 = vmatprep.subr.mxu0 0.0
        %8240 = vmatpush1.msra.mxu0 0.0
        %8241 = vmatprep.subr.mxu0 0.0
        %8242 = vmatpush1.msra.mxu0 0.0
        %8243 = vmatprep.subr.mxu0 0.0
        %8244 = vmatpush1.msra.mxu0 0.0
        %8245 = vmatprep.subr.mxu0 0.0
        %8246 = vmatpush1.msra.mxu0 0.0
        %8247 = vmatprep.subr.mxu0 0.0
        %8248 = vmatpush1.msra.mxu0 0.0
        %8249 = vmatprep.subr.mxu0 0.0
        %8250 = vmatpush1.msra.mxu0 0.0
        %8251 = vmatprep.subr.mxu0 %v8184
        %8252 = vmatpush1.msra.mxu0 %v8183
        %8253 = vmatprep.subr.mxu0 %v8180
        %8254 = vmatpush1.msra.mxu0 %v8179
        %8255 = vmatprep.subr.mxu0 %v8176
        %8256 = vmatpush1.msra.mxu0 %v8175
        %8257 = vmatprep.subr.mxu0 %v8172
        %8258 = vmatpush1.msra.mxu0 %v8171
        %8259 = vmatprep.subr.mxu0 0.0
        %8260 = vmatpush2.msra.mxu0 0.0
        %8261 = vmatprep.subr.mxu0 0.0
        %8262 = vmatpush2.msra.mxu0 0.0
        %8263 = vmatprep.subr.mxu0 0.0
        %8264 = vmatpush2.msra.mxu0 0.0
        %8265 = vmatprep.subr.mxu0 0.0
        %8266 = vmatpush2.msra.mxu0 0.0
        %8267 = vmatprep.subr.mxu0 0.0
        %8268 = vmatpush2.msra.mxu0 0.0
        %8269 = vmatprep.subr.mxu0 0.0
        %8270 = vmatpush2.msra.mxu0 0.0
        %8271 = vmatprep.subr.mxu0 0.0
        %8272 = vmatpush2.msra.mxu0 0.0
        %8273 = vmatprep.subr.mxu0 0.0
        %8274 = vmatpush2.msra.mxu0 0.0
        %8275 = vmatprep.subr.mxu0 0.0
        %8276 = vmatpush2.msra.mxu0 0.0
        %8277 = vmatprep.subr.mxu0 0.0
        %8278 = vmatpush2.msra.mxu0 0.0
        %8279 = vmatprep.subr.mxu0 0.0
        %8280 = vmatpush2.msra.mxu0 0.0
        %8281 = vmatprep.subr.mxu0 0.0
        %8282 = vmatpush2.msra.mxu0 0.0
        %8283 = vmatprep.subr.mxu0 0.0
        %8284 = vmatpush2.msra.mxu0 0.0
        %8285 = vmatprep.subr.mxu0 0.0
        %8286 = vmatpush2.msra.mxu0 0.0
        %8287 = vmatprep.subr.mxu0 0.0
        %8288 = vmatpush2.msra.mxu0 0.0
        %8289 = vmatprep.subr.mxu0 0.0
        %8290 = vmatpush2.msra.mxu0 0.0
        %8291 = vmatprep.mubr.f32.mxu0 0.0
        %8292 = vmatmul.mubr.f32.gmra.mxu0 %v8216
        %v8293 = vpop.f32.mrf.mxu0
        %v8294 = vadd.f32 %v8198, %v8293
        %v8295 = vpop.f32.mrf.mxu0
        %v8296 = vadd.f32 %v8198, %v8295
        %8297 = vmatprep.mubr.f32.mxu0 0.0
        %8298 = vmatmul.mubr.f32.gmra.mxu0 %v8219
        %v8299 = vpop.f32.mrf.mxu0
        %v8300 = vadd.f32 %v8203, %v8299
        %v8301 = vpop.f32.mrf.mxu0
        %v8302 = vadd.f32 %v8203, %v8301
        %8303 = vmatprep.mubr.f32.mxu0 0.0
        %8304 = vmatmul.mubr.f32.gmra.mxu0 %v8222
        %v8305 = vpop.f32.mrf.mxu0
        %v8306 = vadd.f32 %v8208, %v8305
        %v8307 = vpop.f32.mrf.mxu0
        %v8308 = vadd.f32 %v8208, %v8307
        %8309 = vmatprep.mubr.f32.mxu0 0.0
        %8310 = vmatmul.mubr.f32.gmra.mxu0 %v8225
        %v8311 = vpop.f32.mrf.mxu0
        %v8312 = vadd.f32 %v8213, %v8311
        %v8313 = vpop.f32.mrf.mxu0
        %v8314 = vadd.f32 %v8213, %v8313
        %8315 = vdwg.mxu0
        %8316 = vmatprep.subr.mxu0 0.0
        %8317 = vmatpush1.msra.mxu0 0.0
        %8318 = vmatprep.subr.mxu0 0.0
        %8319 = vmatpush1.msra.mxu0 0.0
        %8320 = vmatprep.subr.mxu0 0.0
        %8321 = vmatpush1.msra.mxu0 0.0
        %8322 = vmatprep.subr.mxu0 0.0
        %8323 = vmatpush1.msra.mxu0 0.0
        %8324 = vmatprep.subr.mxu0 0.0
        %8325 = vmatpush1.msra.mxu0 0.0
        %8326 = vmatprep.subr.mxu0 0.0
        %8327 = vmatpush1.msra.mxu0 0.0
        %8328 = vmatprep.subr.mxu0 0.0
        %8329 = vmatpush1.msra.mxu0 0.0
        %8330 = vmatprep.subr.mxu0 0.0
        %8331 = vmatpush1.msra.mxu0 0.0
        %8332 = vmatprep.subr.mxu0 0.0
        %8333 = vmatpush1.msra.mxu0 0.0
        %8334 = vmatprep.subr.mxu0 0.0
        %8335 = vmatpush1.msra.mxu0 0.0
        %8336 = vmatprep.subr.mxu0 0.0
        %8337 = vmatpush1.msra.mxu0 0.0
        %8338 = vmatprep.subr.mxu0 0.0
        %8339 = vmatpush1.msra.mxu0 0.0
        %8340 = vmatprep.subr.mxu0 %v8186
        %8341 = vmatpush1.msra.mxu0 %v8185
        %8342 = vmatprep.subr.mxu0 %v8182
        %8343 = vmatpush1.msra.mxu0 %v8181
        %8344 = vmatprep.subr.mxu0 %v8178
        %8345 = vmatpush1.msra.mxu0 %v8177
        %8346 = vmatprep.subr.mxu0 %v8174
        %8347 = vmatpush1.msra.mxu0 %v8173
        %8348 = vmatprep.subr.mxu0 0.0
        %8349 = vmatpush2.msra.mxu0 0.0
        %8350 = vmatprep.subr.mxu0 0.0
        %8351 = vmatpush2.msra.mxu0 0.0
        %8352 = vmatprep.subr.mxu0 0.0
        %8353 = vmatpush2.msra.mxu0 0.0
        %8354 = vmatprep.subr.mxu0 0.0
        %8355 = vmatpush2.msra.mxu0 0.0
        %8356 = vmatprep.subr.mxu0 0.0
        %8357 = vmatpush2.msra.mxu0 0.0
        %8358 = vmatprep.subr.mxu0 0.0
        %8359 = vmatpush2.msra.mxu0 0.0
        %8360 = vmatprep.subr.mxu0 0.0
        %8361 = vmatpush2.msra.mxu0 0.0
        %8362 = vmatprep.subr.mxu0 0.0
        %8363 = vmatpush2.msra.mxu0 0.0
        %8364 = vmatprep.subr.mxu0 0.0
        %8365 = vmatpush2.msra.mxu0 0.0
        %8366 = vmatprep.subr.mxu0 0.0
        %8367 = vmatpush2.msra.mxu0 0.0
        %8368 = vmatprep.subr.mxu0 0.0
        %8369 = vmatpush2.msra.mxu0 0.0
        %8370 = vmatprep.subr.mxu0 0.0
        %8371 = vmatpush2.msra.mxu0 0.0
        %8372 = vmatprep.subr.mxu0 0.0
        %8373 = vmatpush2.msra.mxu0 0.0
        %8374 = vmatprep.subr.mxu0 0.0
        %8375 = vmatpush2.msra.mxu0 0.0
        %8376 = vmatprep.subr.mxu0 0.0
        %8377 = vmatpush2.msra.mxu0 0.0
        %8378 = vmatprep.subr.mxu0 0.0
        %8379 = vmatpush2.msra.mxu0 0.0
        %8380 = vmatprep.mubr.f32.mxu0 0.0
        %8381 = vmatmul.mubr.f32.gmra.mxu0 %v8216
        %v8382 = vpop.f32.mrf.mxu0
        %v8383 = vadd.f32 %v8198, %v8382
        %v8384 = vpop.f32.mrf.mxu0
        %v8385 = vadd.f32 %v8198, %v8384
        %8386 = vmatprep.mubr.f32.mxu0 0.0
        %8387 = vmatmul.mubr.f32.gmra.mxu0 %v8219
        %v8388 = vpop.f32.mrf.mxu0
        %v8389 = vadd.f32 %v8203, %v8388
        %v8390 = vpop.f32.mrf.mxu0
        %v8391 = vadd.f32 %v8203, %v8390
        %8392 = vmatprep.mubr.f32.mxu0 0.0
        %8393 = vmatmul.mubr.f32.gmra.mxu0 %v8222
        %v8394 = vpop.f32.mrf.mxu0
        %v8395 = vadd.f32 %v8208, %v8394
        %v8396 = vpop.f32.mrf.mxu0
        %v8397 = vadd.f32 %v8208, %v8396
        %8398 = vmatprep.mubr.f32.mxu0 0.0
        %8399 = vmatmul.mubr.f32.gmra.mxu0 %v8225
        %v8400 = vpop.f32.mrf.mxu0
        %v8401 = vadd.f32 %v8213, %v8400
        %v8402 = vpop.f32.mrf.mxu0
        %v8403 = vadd.f32 %v8213, %v8402
        %8404 = vdwg.mxu0
        %v8405 = vmax.f32 %v8294, 0.0
        %v8406 = vmax.f32 %v8296, 0.0
        %v8407 = vmax.f32 %v8383, 0.0
        %v8408 = vmax.f32 %v8385, 0.0
        %v8409 = vmax.f32 %v8300, 0.0
        %v8410 = vmax.f32 %v8302, 0.0
        %v8411 = vmax.f32 %v8389, 0.0
        %v8412 = vmax.f32 %v8391, 0.0
        %v8413 = vmax.f32 %v8306, 0.0
        %v8414 = vmax.f32 %v8308, 0.0
        %v8415 = vmax.f32 %v8395, 0.0
        %v8416 = vmax.f32 %v8397, 0.0
        %v8417 = vmax.f32 %v8312, 0.0
        %v8418 = vmax.f32 %v8314, 0.0
        %v8419 = vmax.f32 %v8401, 0.0
        %v8420 = vmax.f32 %v8403, 0.0
        %v8421 = vadd.f32 %v7703, %v8405
        %v8422 = vadd.f32 %v7704, %v8406
        %v8423 = vadd.f32 %v7705, %v8407
        %v8424 = vadd.f32 %v7706, %v8408
        %v8425 = vadd.f32 %v7707, %v8409
        %v8426 = vadd.f32 %v7708, %v8410
        %v8427 = vadd.f32 %v7709, %v8411
        %v8428 = vadd.f32 %v7710, %v8412
        %v8429 = vadd.f32 %v7711, %v8413
        %v8430 = vadd.f32 %v7712, %v8414
        %v8431 = vadd.f32 %v7713, %v8415
        %v8432 = vadd.f32 %v7714, %v8416
        %v8433 = vadd.f32 %v7715, %v8417
        %v8434 = vadd.f32 %v7716, %v8418
        %v8435 = vadd.f32 %v7717, %v8419
        %v8436 = vadd.f32 %v7718, %v8420
        %v8437 = vld [vmem:[%s1710] sm:$0xff]
        %v8438 = vld [vmem:[%s1710 + $0x8] sm:$0xff]
        %v8439 = vld [vmem:[%s1710 + $0x10] sm:$0xff]
        %v8440 = vld [vmem:[%s1710 + $0x18] sm:$0xff]
        %v8441 = vld [vmem:[%s1715] sm:$0xff]
        %v8442 = vld [vmem:[%s1715 + $0x8] sm:$0xff]
        %v8443 = vld [vmem:[%s1715 + $0x10] sm:$0xff]
        %v8444 = vld [vmem:[%s1715 + $0x18] sm:$0xff]
        %8446 = vset.pattern.permute.xlu0 0
        %8447 = vperm.xlu0 %8446, %v8441
        %v8448 = vpop.permute.xlu0 %8447
        %8451 = vset.pattern.permute.xlu0 0
        %8452 = vperm.xlu0 %8451, %v8442
        %v8453 = vpop.permute.xlu0 %8452
        %8456 = vset.pattern.permute.xlu0 0
        %8457 = vperm.xlu0 %8456, %v8443
        %v8458 = vpop.permute.xlu0 %8457
        %8461 = vset.pattern.permute.xlu0 0
        %8462 = vperm.xlu0 %8461, %v8444
        %v8463 = vpop.permute.xlu0 %8462
        %v8466 = vsel %vm291, %v8437, 0
        %v8469 = vsel %vm291, %v8438, 0
        %v8472 = vsel %vm291, %v8439, 0
        %v8475 = vsel %vm291, %v8440, 0
        %8477 = vmatprep.subr.mxu0 0.0
        %8478 = vmatpush1.msra.mxu0 0.0
        %8479 = vmatprep.subr.mxu0 0.0
        %8480 = vmatpush1.msra.mxu0 0.0
        %8481 = vmatprep.subr.mxu0 0.0
        %8482 = vmatpush1.msra.mxu0 0.0
        %8483 = vmatprep.subr.mxu0 0.0
        %8484 = vmatpush1.msra.mxu0 0.0
        %8485 = vmatprep.subr.mxu0 0.0
        %8486 = vmatpush1.msra.mxu0 0.0
        %8487 = vmatprep.subr.mxu0 0.0
        %8488 = vmatpush1.msra.mxu0 0.0
        %8489 = vmatprep.subr.mxu0 0.0
        %8490 = vmatpush1.msra.mxu0 0.0
        %8491 = vmatprep.subr.mxu0 0.0
        %8492 = vmatpush1.msra.mxu0 0.0
        %8493 = vmatprep.subr.mxu0 0.0
        %8494 = vmatpush1.msra.mxu0 0.0
        %8495 = vmatprep.subr.mxu0 0.0
        %8496 = vmatpush1.msra.mxu0 0.0
        %8497 = vmatprep.subr.mxu0 0.0
        %8498 = vmatpush1.msra.mxu0 0.0
        %8499 = vmatprep.subr.mxu0 0.0
        %8500 = vmatpush1.msra.mxu0 0.0
        %8501 = vmatprep.subr.mxu0 %v8434
        %8502 = vmatpush1.msra.mxu0 %v8433
        %8503 = vmatprep.subr.mxu0 %v8430
        %8504 = vmatpush1.msra.mxu0 %v8429
        %8505 = vmatprep.subr.mxu0 %v8426
        %8506 = vmatpush1.msra.mxu0 %v8425
        %8507 = vmatprep.subr.mxu0 %v8422
        %8508 = vmatpush1.msra.mxu0 %v8421
        %8509 = vmatprep.subr.mxu0 0.0
        %8510 = vmatpush2.msra.mxu0 0.0
        %8511 = vmatprep.subr.mxu0 0.0
        %8512 = vmatpush2.msra.mxu0 0.0
        %8513 = vmatprep.subr.mxu0 0.0
        %8514 = vmatpush2.msra.mxu0 0.0
        %8515 = vmatprep.subr.mxu0 0.0
        %8516 = vmatpush2.msra.mxu0 0.0
        %8517 = vmatprep.subr.mxu0 0.0
        %8518 = vmatpush2.msra.mxu0 0.0
        %8519 = vmatprep.subr.mxu0 0.0
        %8520 = vmatpush2.msra.mxu0 0.0
        %8521 = vmatprep.subr.mxu0 0.0
        %8522 = vmatpush2.msra.mxu0 0.0
        %8523 = vmatprep.subr.mxu0 0.0
        %8524 = vmatpush2.msra.mxu0 0.0
        %8525 = vmatprep.subr.mxu0 0.0
        %8526 = vmatpush2.msra.mxu0 0.0
        %8527 = vmatprep.subr.mxu0 0.0
        %8528 = vmatpush2.msra.mxu0 0.0
        %8529 = vmatprep.subr.mxu0 0.0
        %8530 = vmatpush2.msra.mxu0 0.0
        %8531 = vmatprep.subr.mxu0 0.0
        %8532 = vmatpush2.msra.mxu0 0.0
        %8533 = vmatprep.subr.mxu0 0.0
        %8534 = vmatpush2.msra.mxu0 0.0
        %8535 = vmatprep.subr.mxu0 0.0
        %8536 = vmatpush2.msra.mxu0 0.0
        %8537 = vmatprep.subr.mxu0 0.0
        %8538 = vmatpush2.msra.mxu0 0.0
        %8539 = vmatprep.subr.mxu0 0.0
        %8540 = vmatpush2.msra.mxu0 0.0
        %8541 = vmatprep.mubr.f32.mxu0 0.0
        %8542 = vmatmul.mubr.f32.gmra.mxu0 %v8466
        %v8543 = vpop.f32.mrf.mxu0
        %v8544 = vadd.f32 %v8448, %v8543
        %v8545 = vpop.f32.mrf.mxu0
        %v8546 = vadd.f32 %v8448, %v8545
        %8547 = vmatprep.mubr.f32.mxu0 0.0
        %8548 = vmatmul.mubr.f32.gmra.mxu0 %v8469
        %v8549 = vpop.f32.mrf.mxu0
        %v8550 = vadd.f32 %v8453, %v8549
        %v8551 = vpop.f32.mrf.mxu0
        %v8552 = vadd.f32 %v8453, %v8551
        %8553 = vmatprep.mubr.f32.mxu0 0.0
        %8554 = vmatmul.mubr.f32.gmra.mxu0 %v8472
        %v8555 = vpop.f32.mrf.mxu0
        %v8556 = vadd.f32 %v8458, %v8555
        %v8557 = vpop.f32.mrf.mxu0
        %v8558 = vadd.f32 %v8458, %v8557
        %8559 = vmatprep.mubr.f32.mxu0 0.0
        %8560 = vmatmul.mubr.f32.gmra.mxu0 %v8475
        %v8561 = vpop.f32.mrf.mxu0
        %v8562 = vadd.f32 %v8463, %v8561
        %v8563 = vpop.f32.mrf.mxu0
        %v8564 = vadd.f32 %v8463, %v8563
        %8565 = vdwg.mxu0
        %8566 = vmatprep.subr.mxu0 0.0
        %8567 = vmatpush1.msra.mxu0 0.0
        %8568 = vmatprep.subr.mxu0 0.0
        %8569 = vmatpush1.msra.mxu0 0.0
        %8570 = vmatprep.subr.mxu0 0.0
        %8571 = vmatpush1.msra.mxu0 0.0
        %8572 = vmatprep.subr.mxu0 0.0
        %8573 = vmatpush1.msra.mxu0 0.0
        %8574 = vmatprep.subr.mxu0 0.0
        %8575 = vmatpush1.msra.mxu0 0.0
        %8576 = vmatprep.subr.mxu0 0.0
        %8577 = vmatpush1.msra.mxu0 0.0
        %8578 = vmatprep.subr.mxu0 0.0
        %8579 = vmatpush1.msra.mxu0 0.0
        %8580 = vmatprep.subr.mxu0 0.0
        %8581 = vmatpush1.msra.mxu0 0.0
        %8582 = vmatprep.subr.mxu0 0.0
        %8583 = vmatpush1.msra.mxu0 0.0
        %8584 = vmatprep.subr.mxu0 0.0
        %8585 = vmatpush1.msra.mxu0 0.0
        %8586 = vmatprep.subr.mxu0 0.0
        %8587 = vmatpush1.msra.mxu0 0.0
        %8588 = vmatprep.subr.mxu0 0.0
        %8589 = vmatpush1.msra.mxu0 0.0
        %8590 = vmatprep.subr.mxu0 %v8436
        %8591 = vmatpush1.msra.mxu0 %v8435
        %8592 = vmatprep.subr.mxu0 %v8432
        %8593 = vmatpush1.msra.mxu0 %v8431
        %8594 = vmatprep.subr.mxu0 %v8428
        %8595 = vmatpush1.msra.mxu0 %v8427
        %8596 = vmatprep.subr.mxu0 %v8424
        %8597 = vmatpush1.msra.mxu0 %v8423
        %8598 = vmatprep.subr.mxu0 0.0
        %8599 = vmatpush2.msra.mxu0 0.0
        %8600 = vmatprep.subr.mxu0 0.0
        %8601 = vmatpush2.msra.mxu0 0.0
        %8602 = vmatprep.subr.mxu0 0.0
        %8603 = vmatpush2.msra.mxu0 0.0
        %8604 = vmatprep.subr.mxu0 0.0
        %8605 = vmatpush2.msra.mxu0 0.0
        %8606 = vmatprep.subr.mxu0 0.0
        %8607 = vmatpush2.msra.mxu0 0.0
        %8608 = vmatprep.subr.mxu0 0.0
        %8609 = vmatpush2.msra.mxu0 0.0
        %8610 = vmatprep.subr.mxu0 0.0
        %8611 = vmatpush2.msra.mxu0 0.0
        %8612 = vmatprep.subr.mxu0 0.0
        %8613 = vmatpush2.msra.mxu0 0.0
        %8614 = vmatprep.subr.mxu0 0.0
        %8615 = vmatpush2.msra.mxu0 0.0
        %8616 = vmatprep.subr.mxu0 0.0
        %8617 = vmatpush2.msra.mxu0 0.0
        %8618 = vmatprep.subr.mxu0 0.0
        %8619 = vmatpush2.msra.mxu0 0.0
        %8620 = vmatprep.subr.mxu0 0.0
        %8621 = vmatpush2.msra.mxu0 0.0
        %8622 = vmatprep.subr.mxu0 0.0
        %8623 = vmatpush2.msra.mxu0 0.0
        %8624 = vmatprep.subr.mxu0 0.0
        %8625 = vmatpush2.msra.mxu0 0.0
        %8626 = vmatprep.subr.mxu0 0.0
        %8627 = vmatpush2.msra.mxu0 0.0
        %8628 = vmatprep.subr.mxu0 0.0
        %8629 = vmatpush2.msra.mxu0 0.0
        %8630 = vmatprep.mubr.f32.mxu0 0.0
        %8631 = vmatmul.mubr.f32.gmra.mxu0 %v8466
        %v8632 = vpop.f32.mrf.mxu0
        %v8633 = vadd.f32 %v8448, %v8632
        %v8634 = vpop.f32.mrf.mxu0
        %v8635 = vadd.f32 %v8448, %v8634
        %8636 = vmatprep.mubr.f32.mxu0 0.0
        %8637 = vmatmul.mubr.f32.gmra.mxu0 %v8469
        %v8638 = vpop.f32.mrf.mxu0
        %v8639 = vadd.f32 %v8453, %v8638
        %v8640 = vpop.f32.mrf.mxu0
        %v8641 = vadd.f32 %v8453, %v8640
        %8642 = vmatprep.mubr.f32.mxu0 0.0
        %8643 = vmatmul.mubr.f32.gmra.mxu0 %v8472
        %v8644 = vpop.f32.mrf.mxu0
        %v8645 = vadd.f32 %v8458, %v8644
        %v8646 = vpop.f32.mrf.mxu0
        %v8647 = vadd.f32 %v8458, %v8646
        %8648 = vmatprep.mubr.f32.mxu0 0.0
        %8649 = vmatmul.mubr.f32.gmra.mxu0 %v8475
        %v8650 = vpop.f32.mrf.mxu0
        %v8651 = vadd.f32 %v8463, %v8650
        %v8652 = vpop.f32.mrf.mxu0
        %v8653 = vadd.f32 %v8463, %v8652
        %8654 = vdwg.mxu0
        %v8655 = vmax.f32 %v8544, 0.0
        %v8656 = vmax.f32 %v8546, 0.0
        %v8657 = vmax.f32 %v8633, 0.0
        %v8658 = vmax.f32 %v8635, 0.0
        %v8659 = vmax.f32 %v8550, 0.0
        %v8660 = vmax.f32 %v8552, 0.0
        %v8661 = vmax.f32 %v8639, 0.0
        %v8662 = vmax.f32 %v8641, 0.0
        %v8663 = vmax.f32 %v8556, 0.0
        %v8664 = vmax.f32 %v8558, 0.0
        %v8665 = vmax.f32 %v8645, 0.0
        %v8666 = vmax.f32 %v8647, 0.0
        %v8667 = vmax.f32 %v8562, 0.0
        %v8668 = vmax.f32 %v8564, 0.0
        %v8669 = vmax.f32 %v8651, 0.0
        %v8670 = vmax.f32 %v8653, 0.0
        %v8671 = vld [vmem:[%s1946] sm:$0xff]
        %v8672 = vld [vmem:[%s1946 + $0x8] sm:$0xff]
        %v8673 = vld [vmem:[%s1946 + $0x10] sm:$0xff]
        %v8674 = vld [vmem:[%s1946 + $0x18] sm:$0xff]
        %v8675 = vld [vmem:[%s1951] sm:$0xff]
        %v8676 = vld [vmem:[%s1951 + $0x8] sm:$0xff]
        %v8677 = vld [vmem:[%s1951 + $0x10] sm:$0xff]
        %v8678 = vld [vmem:[%s1951 + $0x18] sm:$0xff]
        %8680 = vset.pattern.permute.xlu0 0
        %8681 = vperm.xlu0 %8680, %v8675
        %v8682 = vpop.permute.xlu0 %8681
        %8685 = vset.pattern.permute.xlu0 0
        %8686 = vperm.xlu0 %8685, %v8676
        %v8687 = vpop.permute.xlu0 %8686
        %8690 = vset.pattern.permute.xlu0 0
        %8691 = vperm.xlu0 %8690, %v8677
        %v8692 = vpop.permute.xlu0 %8691
        %8695 = vset.pattern.permute.xlu0 0
        %8696 = vperm.xlu0 %8695, %v8678
        %v8697 = vpop.permute.xlu0 %8696
        %v8700 = vsel %vm291, %v8671, 0
        %v8703 = vsel %vm291, %v8672, 0
        %v8706 = vsel %vm291, %v8673, 0
        %v8709 = vsel %vm291, %v8674, 0
        %8711 = vmatprep.subr.mxu0 0.0
        %8712 = vmatpush1.msra.mxu0 0.0
        %8713 = vmatprep.subr.mxu0 0.0
        %8714 = vmatpush1.msra.mxu0 0.0
        %8715 = vmatprep.subr.mxu0 0.0
        %8716 = vmatpush1.msra.mxu0 0.0
        %8717 = vmatprep.subr.mxu0 0.0
        %8718 = vmatpush1.msra.mxu0 0.0
        %8719 = vmatprep.subr.mxu0 0.0
        %8720 = vmatpush1.msra.mxu0 0.0
        %8721 = vmatprep.subr.mxu0 0.0
        %8722 = vmatpush1.msra.mxu0 0.0
        %8723 = vmatprep.subr.mxu0 0.0
        %8724 = vmatpush1.msra.mxu0 0.0
        %8725 = vmatprep.subr.mxu0 0.0
        %8726 = vmatpush1.msra.mxu0 0.0
        %8727 = vmatprep.subr.mxu0 0.0
        %8728 = vmatpush1.msra.mxu0 0.0
        %8729 = vmatprep.subr.mxu0 0.0
        %8730 = vmatpush1.msra.mxu0 0.0
        %8731 = vmatprep.subr.mxu0 0.0
        %8732 = vmatpush1.msra.mxu0 0.0
        %8733 = vmatprep.subr.mxu0 0.0
        %8734 = vmatpush1.msra.mxu0 0.0
        %8735 = vmatprep.subr.mxu0 %v8668
        %8736 = vmatpush1.msra.mxu0 %v8667
        %8737 = vmatprep.subr.mxu0 %v8664
        %8738 = vmatpush1.msra.mxu0 %v8663
        %8739 = vmatprep.subr.mxu0 %v8660
        %8740 = vmatpush1.msra.mxu0 %v8659
        %8741 = vmatprep.subr.mxu0 %v8656
        %8742 = vmatpush1.msra.mxu0 %v8655
        %8743 = vmatprep.subr.mxu0 0.0
        %8744 = vmatpush2.msra.mxu0 0.0
        %8745 = vmatprep.subr.mxu0 0.0
        %8746 = vmatpush2.msra.mxu0 0.0
        %8747 = vmatprep.subr.mxu0 0.0
        %8748 = vmatpush2.msra.mxu0 0.0
        %8749 = vmatprep.subr.mxu0 0.0
        %8750 = vmatpush2.msra.mxu0 0.0
        %8751 = vmatprep.subr.mxu0 0.0
        %8752 = vmatpush2.msra.mxu0 0.0
        %8753 = vmatprep.subr.mxu0 0.0
        %8754 = vmatpush2.msra.mxu0 0.0
        %8755 = vmatprep.subr.mxu0 0.0
        %8756 = vmatpush2.msra.mxu0 0.0
        %8757 = vmatprep.subr.mxu0 0.0
        %8758 = vmatpush2.msra.mxu0 0.0
        %8759 = vmatprep.subr.mxu0 0.0
        %8760 = vmatpush2.msra.mxu0 0.0
        %8761 = vmatprep.subr.mxu0 0.0
        %8762 = vmatpush2.msra.mxu0 0.0
        %8763 = vmatprep.subr.mxu0 0.0
        %8764 = vmatpush2.msra.mxu0 0.0
        %8765 = vmatprep.subr.mxu0 0.0
        %8766 = vmatpush2.msra.mxu0 0.0
        %8767 = vmatprep.subr.mxu0 0.0
        %8768 = vmatpush2.msra.mxu0 0.0
        %8769 = vmatprep.subr.mxu0 0.0
        %8770 = vmatpush2.msra.mxu0 0.0
        %8771 = vmatprep.subr.mxu0 0.0
        %8772 = vmatpush2.msra.mxu0 0.0
        %8773 = vmatprep.subr.mxu0 0.0
        %8774 = vmatpush2.msra.mxu0 0.0
        %8775 = vmatprep.mubr.f32.mxu0 0.0
        %8776 = vmatmul.mubr.f32.gmra.mxu0 %v8700
        %v8777 = vpop.f32.mrf.mxu0
        %v8778 = vadd.f32 %v8682, %v8777
        %v8779 = vpop.f32.mrf.mxu0
        %v8780 = vadd.f32 %v8682, %v8779
        %8781 = vmatprep.mubr.f32.mxu0 0.0
        %8782 = vmatmul.mubr.f32.gmra.mxu0 %v8703
        %v8783 = vpop.f32.mrf.mxu0
        %v8784 = vadd.f32 %v8687, %v8783
        %v8785 = vpop.f32.mrf.mxu0
        %v8786 = vadd.f32 %v8687, %v8785
        %8787 = vmatprep.mubr.f32.mxu0 0.0
        %8788 = vmatmul.mubr.f32.gmra.mxu0 %v8706
        %v8789 = vpop.f32.mrf.mxu0
        %v8790 = vadd.f32 %v8692, %v8789
        %v8791 = vpop.f32.mrf.mxu0
        %v8792 = vadd.f32 %v8692, %v8791
        %8793 = vmatprep.mubr.f32.mxu0 0.0
        %8794 = vmatmul.mubr.f32.gmra.mxu0 %v8709
        %v8795 = vpop.f32.mrf.mxu0
        %v8796 = vadd.f32 %v8697, %v8795
        %v8797 = vpop.f32.mrf.mxu0
        %v8798 = vadd.f32 %v8697, %v8797
        %8799 = vdwg.mxu0
        %8800 = vmatprep.subr.mxu0 0.0
        %8801 = vmatpush1.msra.mxu0 0.0
        %8802 = vmatprep.subr.mxu0 0.0
        %8803 = vmatpush1.msra.mxu0 0.0
        %8804 = vmatprep.subr.mxu0 0.0
        %8805 = vmatpush1.msra.mxu0 0.0
        %8806 = vmatprep.subr.mxu0 0.0
        %8807 = vmatpush1.msra.mxu0 0.0
        %8808 = vmatprep.subr.mxu0 0.0
        %8809 = vmatpush1.msra.mxu0 0.0
        %8810 = vmatprep.subr.mxu0 0.0
        %8811 = vmatpush1.msra.mxu0 0.0
        %8812 = vmatprep.subr.mxu0 0.0
        %8813 = vmatpush1.msra.mxu0 0.0
        %8814 = vmatprep.subr.mxu0 0.0
        %8815 = vmatpush1.msra.mxu0 0.0
        %8816 = vmatprep.subr.mxu0 0.0
        %8817 = vmatpush1.msra.mxu0 0.0
        %8818 = vmatprep.subr.mxu0 0.0
        %8819 = vmatpush1.msra.mxu0 0.0
        %8820 = vmatprep.subr.mxu0 0.0
        %8821 = vmatpush1.msra.mxu0 0.0
        %8822 = vmatprep.subr.mxu0 0.0
        %8823 = vmatpush1.msra.mxu0 0.0
        %8824 = vmatprep.subr.mxu0 %v8670
        %8825 = vmatpush1.msra.mxu0 %v8669
        %8826 = vmatprep.subr.mxu0 %v8666
        %8827 = vmatpush1.msra.mxu0 %v8665
        %8828 = vmatprep.subr.mxu0 %v8662
        %8829 = vmatpush1.msra.mxu0 %v8661
        %8830 = vmatprep.subr.mxu0 %v8658
        %8831 = vmatpush1.msra.mxu0 %v8657
        %8832 = vmatprep.subr.mxu0 0.0
        %8833 = vmatpush2.msra.mxu0 0.0
        %8834 = vmatprep.subr.mxu0 0.0
        %8835 = vmatpush2.msra.mxu0 0.0
        %8836 = vmatprep.subr.mxu0 0.0
        %8837 = vmatpush2.msra.mxu0 0.0
        %8838 = vmatprep.subr.mxu0 0.0
        %8839 = vmatpush2.msra.mxu0 0.0
        %8840 = vmatprep.subr.mxu0 0.0
        %8841 = vmatpush2.msra.mxu0 0.0
        %8842 = vmatprep.subr.mxu0 0.0
        %8843 = vmatpush2.msra.mxu0 0.0
        %8844 = vmatprep.subr.mxu0 0.0
        %8845 = vmatpush2.msra.mxu0 0.0
        %8846 = vmatprep.subr.mxu0 0.0
        %8847 = vmatpush2.msra.mxu0 0.0
        %8848 = vmatprep.subr.mxu0 0.0
        %8849 = vmatpush2.msra.mxu0 0.0
        %8850 = vmatprep.subr.mxu0 0.0
        %8851 = vmatpush2.msra.mxu0 0.0
        %8852 = vmatprep.subr.mxu0 0.0
        %8853 = vmatpush2.msra.mxu0 0.0
        %8854 = vmatprep.subr.mxu0 0.0
        %8855 = vmatpush2.msra.mxu0 0.0
        %8856 = vmatprep.subr.mxu0 0.0
        %8857 = vmatpush2.msra.mxu0 0.0
        %8858 = vmatprep.subr.mxu0 0.0
        %8859 = vmatpush2.msra.mxu0 0.0
        %8860 = vmatprep.subr.mxu0 0.0
        %8861 = vmatpush2.msra.mxu0 0.0
        %8862 = vmatprep.subr.mxu0 0.0
        %8863 = vmatpush2.msra.mxu0 0.0
        %8864 = vmatprep.mubr.f32.mxu0 0.0
        %8865 = vmatmul.mubr.f32.gmra.mxu0 %v8700
        %v8866 = vpop.f32.mrf.mxu0
        %v8867 = vadd.f32 %v8682, %v8866
        %v8868 = vpop.f32.mrf.mxu0
        %v8869 = vadd.f32 %v8682, %v8868
        %8870 = vmatprep.mubr.f32.mxu0 0.0
        %8871 = vmatmul.mubr.f32.gmra.mxu0 %v8703
        %v8872 = vpop.f32.mrf.mxu0
        %v8873 = vadd.f32 %v8687, %v8872
        %v8874 = vpop.f32.mrf.mxu0
        %v8875 = vadd.f32 %v8687, %v8874
        %8876 = vmatprep.mubr.f32.mxu0 0.0
        %8877 = vmatmul.mubr.f32.gmra.mxu0 %v8706
        %v8878 = vpop.f32.mrf.mxu0
        %v8879 = vadd.f32 %v8692, %v8878
        %v8880 = vpop.f32.mrf.mxu0
        %v8881 = vadd.f32 %v8692, %v8880
        %8882 = vmatprep.mubr.f32.mxu0 0.0
        %8883 = vmatmul.mubr.f32.gmra.mxu0 %v8709
        %v8884 = vpop.f32.mrf.mxu0
        %v8885 = vadd.f32 %v8697, %v8884
        %v8886 = vpop.f32.mrf.mxu0
        %v8887 = vadd.f32 %v8697, %v8886
        %8888 = vdwg.mxu0
        %v8889 = vmax.f32 %v8778, 0.0
        %v8890 = vmax.f32 %v8780, 0.0
        %v8891 = vmax.f32 %v8867, 0.0
        %v8892 = vmax.f32 %v8869, 0.0
        %v8893 = vmax.f32 %v8784, 0.0
        %v8894 = vmax.f32 %v8786, 0.0
        %v8895 = vmax.f32 %v8873, 0.0
        %v8896 = vmax.f32 %v8875, 0.0
        %v8897 = vmax.f32 %v8790, 0.0
        %v8898 = vmax.f32 %v8792, 0.0
        %v8899 = vmax.f32 %v8879, 0.0
        %v8900 = vmax.f32 %v8881, 0.0
        %v8901 = vmax.f32 %v8796, 0.0
        %v8902 = vmax.f32 %v8798, 0.0
        %v8903 = vmax.f32 %v8885, 0.0
        %v8904 = vmax.f32 %v8887, 0.0
        %v8905 = vld [vmem:[%s2182] sm:$0xff]
        %v8906 = vld [vmem:[%s2182 + $0x8] sm:$0xff]
        %v8907 = vld [vmem:[%s2182 + $0x10] sm:$0xff]
        %v8908 = vld [vmem:[%s2182 + $0x18] sm:$0xff]
        %v8909 = vld [vmem:[%s2187] sm:$0xff]
        %v8910 = vld [vmem:[%s2187 + $0x8] sm:$0xff]
        %v8911 = vld [vmem:[%s2187 + $0x10] sm:$0xff]
        %v8912 = vld [vmem:[%s2187 + $0x18] sm:$0xff]
        %8914 = vset.pattern.permute.xlu0 0
        %8915 = vperm.xlu0 %8914, %v8909
        %v8916 = vpop.permute.xlu0 %8915
        %8919 = vset.pattern.permute.xlu0 0
        %8920 = vperm.xlu0 %8919, %v8910
        %v8921 = vpop.permute.xlu0 %8920
        %8923 = vset.pattern.permute.xlu0 0
        %8924 = vperm.xlu0 %8923, %v8911
        %v8925 = vpop.permute.xlu0 %8924
        %8927 = vset.pattern.permute.xlu0 0
        %8928 = vperm.xlu0 %8927, %v8912
        %v8929 = vpop.permute.xlu0 %8928
        %v8931 = vsel %vm291, %v8905, 0
        %v8934 = vsel %vm291, %v8906, 0
        %v8937 = vsel %vm291, %v8907, 0
        %v8940 = vsel %vm291, %v8908, 0
        %8942 = vmatprep.subr.mxu0 0.0
        %8943 = vmatpush1.msra.mxu0 0.0
        %8944 = vmatprep.subr.mxu0 0.0
        %8945 = vmatpush1.msra.mxu0 0.0
        %8946 = vmatprep.subr.mxu0 0.0
        %8947 = vmatpush1.msra.mxu0 0.0
        %8948 = vmatprep.subr.mxu0 0.0
        %8949 = vmatpush1.msra.mxu0 0.0
        %8950 = vmatprep.subr.mxu0 0.0
        %8951 = vmatpush1.msra.mxu0 0.0
        %8952 = vmatprep.subr.mxu0 0.0
        %8953 = vmatpush1.msra.mxu0 0.0
        %8954 = vmatprep.subr.mxu0 0.0
        %8955 = vmatpush1.msra.mxu0 0.0
        %8956 = vmatprep.subr.mxu0 0.0
        %8957 = vmatpush1.msra.mxu0 0.0
        %8958 = vmatprep.subr.mxu0 0.0
        %8959 = vmatpush1.msra.mxu0 0.0
        %8960 = vmatprep.subr.mxu0 0.0
        %8961 = vmatpush1.msra.mxu0 0.0
        %8962 = vmatprep.subr.mxu0 0.0
        %8963 = vmatpush1.msra.mxu0 0.0
        %8964 = vmatprep.subr.mxu0 0.0
        %8965 = vmatpush1.msra.mxu0 0.0
        %8966 = vmatprep.subr.mxu0 %v8902
        %8967 = vmatpush1.msra.mxu0 %v8901
        %8968 = vmatprep.subr.mxu0 %v8898
        %8969 = vmatpush1.msra.mxu0 %v8897
        %8970 = vmatprep.subr.mxu0 %v8894
        %8971 = vmatpush1.msra.mxu0 %v8893
        %8972 = vmatprep.subr.mxu0 %v8890
        %8973 = vmatpush1.msra.mxu0 %v8889
        %8974 = vmatprep.subr.mxu0 0.0
        %8975 = vmatpush2.msra.mxu0 0.0
        %8976 = vmatprep.subr.mxu0 0.0
        %8977 = vmatpush2.msra.mxu0 0.0
        %8978 = vmatprep.subr.mxu0 0.0
        %8979 = vmatpush2.msra.mxu0 0.0
        %8980 = vmatprep.subr.mxu0 0.0
        %8981 = vmatpush2.msra.mxu0 0.0
        %8982 = vmatprep.subr.mxu0 0.0
        %8983 = vmatpush2.msra.mxu0 0.0
        %8984 = vmatprep.subr.mxu0 0.0
        %8985 = vmatpush2.msra.mxu0 0.0
        %8986 = vmatprep.subr.mxu0 0.0
        %8987 = vmatpush2.msra.mxu0 0.0
        %8988 = vmatprep.subr.mxu0 0.0
        %8989 = vmatpush2.msra.mxu0 0.0
        %8990 = vmatprep.subr.mxu0 0.0
        %8991 = vmatpush2.msra.mxu0 0.0
        %8992 = vmatprep.subr.mxu0 0.0
        %8993 = vmatpush2.msra.mxu0 0.0
        %8994 = vmatprep.subr.mxu0 0.0
        %8995 = vmatpush2.msra.mxu0 0.0
        %8996 = vmatprep.subr.mxu0 0.0
        %8997 = vmatpush2.msra.mxu0 0.0
        %8998 = vmatprep.subr.mxu0 0.0
        %8999 = vmatpush2.msra.mxu0 0.0
        %9000 = vmatprep.subr.mxu0 0.0
        %9001 = vmatpush2.msra.mxu0 0.0
        %9002 = vmatprep.subr.mxu0 0.0
        %9003 = vmatpush2.msra.mxu0 0.0
        %9004 = vmatprep.subr.mxu0 0.0
        %9005 = vmatpush2.msra.mxu0 0.0
        %9006 = vmatprep.mubr.f32.mxu0 0.0
        %9007 = vmatmul.mubr.f32.gmra.mxu0 %v8931
        %v9008 = vpop.f32.mrf.mxu0
        %v9009 = vadd.f32 %v8916, %v9008
        %v9010 = vpop.f32.mrf.mxu0
        %v9011 = vadd.f32 %v8916, %v9010
        %9012 = vmatprep.mubr.f32.mxu0 0.0
        %9013 = vmatmul.mubr.f32.gmra.mxu0 %v8934
        %v9014 = vpop.f32.mrf.mxu0
        %v9015 = vpop.f32.mrf.mxu0
        %9016 = vmatprep.mubr.f32.mxu0 0.0
        %9017 = vmatmul.mubr.f32.gmra.mxu0 %v8937
        %v9018 = vpop.f32.mrf.mxu0
        %v9019 = vpop.f32.mrf.mxu0
        %9020 = vmatprep.mubr.f32.mxu0 0.0
        %9021 = vmatmul.mubr.f32.gmra.mxu0 %v8940
        %v9022 = vpop.f32.mrf.mxu0
        %v9023 = vpop.f32.mrf.mxu0
        %9024 = vdwg.mxu0
        %9025 = vmatprep.subr.mxu0 0.0
        %9026 = vmatpush1.msra.mxu0 0.0
        %9027 = vmatprep.subr.mxu0 0.0
        %9028 = vmatpush1.msra.mxu0 0.0
        %9029 = vmatprep.subr.mxu0 0.0
        %9030 = vmatpush1.msra.mxu0 0.0
        %9031 = vmatprep.subr.mxu0 0.0
        %9032 = vmatpush1.msra.mxu0 0.0
        %9033 = vmatprep.subr.mxu0 0.0
        %9034 = vmatpush1.msra.mxu0 0.0
        %9035 = vmatprep.subr.mxu0 0.0
        %9036 = vmatpush1.msra.mxu0 0.0
        %9037 = vmatprep.subr.mxu0 0.0
        %9038 = vmatpush1.msra.mxu0 0.0
        %9039 = vmatprep.subr.mxu0 0.0
        %9040 = vmatpush1.msra.mxu0 0.0
        %9041 = vmatprep.subr.mxu0 0.0
        %9042 = vmatpush1.msra.mxu0 0.0
        %9043 = vmatprep.subr.mxu0 0.0
        %9044 = vmatpush1.msra.mxu0 0.0
        %9045 = vmatprep.subr.mxu0 0.0
        %9046 = vmatpush1.msra.mxu0 0.0
        %9047 = vmatprep.subr.mxu0 0.0
        %9048 = vmatpush1.msra.mxu0 0.0
        %9049 = vmatprep.subr.mxu0 %v8904
        %9050 = vmatpush1.msra.mxu0 %v8903
        %9051 = vmatprep.subr.mxu0 %v8900
        %9052 = vmatpush1.msra.mxu0 %v8899
        %9053 = vmatprep.subr.mxu0 %v8896
        %9054 = vmatpush1.msra.mxu0 %v8895
        %9055 = vmatprep.subr.mxu0 %v8892
        %9056 = vmatpush1.msra.mxu0 %v8891
        %9057 = vmatprep.subr.mxu0 0.0
        %9058 = vmatpush2.msra.mxu0 0.0
        %9059 = vmatprep.subr.mxu0 0.0
        %9060 = vmatpush2.msra.mxu0 0.0
        %9061 = vmatprep.subr.mxu0 0.0
        %9062 = vmatpush2.msra.mxu0 0.0
        %9063 = vmatprep.subr.mxu0 0.0
        %9064 = vmatpush2.msra.mxu0 0.0
        %9065 = vmatprep.subr.mxu0 0.0
        %9066 = vmatpush2.msra.mxu0 0.0
        %9067 = vmatprep.subr.mxu0 0.0
        %9068 = vmatpush2.msra.mxu0 0.0
        %9069 = vmatprep.subr.mxu0 0.0
        %9070 = vmatpush2.msra.mxu0 0.0
        %9071 = vmatprep.subr.mxu0 0.0
        %9072 = vmatpush2.msra.mxu0 0.0
        %9073 = vmatprep.subr.mxu0 0.0
        %9074 = vmatpush2.msra.mxu0 0.0
        %9075 = vmatprep.subr.mxu0 0.0
        %9076 = vmatpush2.msra.mxu0 0.0
        %9077 = vmatprep.subr.mxu0 0.0
        %9078 = vmatpush2.msra.mxu0 0.0
        %9079 = vmatprep.subr.mxu0 0.0
        %9080 = vmatpush2.msra.mxu0 0.0
        %9081 = vmatprep.subr.mxu0 0.0
        %9082 = vmatpush2.msra.mxu0 0.0
        %9083 = vmatprep.subr.mxu0 0.0
        %9084 = vmatpush2.msra.mxu0 0.0
        %9085 = vmatprep.subr.mxu0 0.0
        %9086 = vmatpush2.msra.mxu0 0.0
        %9087 = vmatprep.subr.mxu0 0.0
        %9088 = vmatpush2.msra.mxu0 0.0
        %9089 = vmatprep.mubr.f32.mxu0 0.0
        %9090 = vmatmul.mubr.f32.gmra.mxu0 %v8931
        %v9091 = vpop.f32.mrf.mxu0
        %v9092 = vadd.f32 %v8916, %v9091
        %v9093 = vpop.f32.mrf.mxu0
        %v9094 = vadd.f32 %v8916, %v9093
        %9095 = vmatprep.mubr.f32.mxu0 0.0
        %9096 = vmatmul.mubr.f32.gmra.mxu0 %v8934
        %v9097 = vpop.f32.mrf.mxu0
        %v9098 = vpop.f32.mrf.mxu0
        %9099 = vmatprep.mubr.f32.mxu0 0.0
        %9100 = vmatmul.mubr.f32.gmra.mxu0 %v8937
        %v9101 = vpop.f32.mrf.mxu0
        %v9102 = vpop.f32.mrf.mxu0
        %9103 = vmatprep.mubr.f32.mxu0 0.0
        %9104 = vmatmul.mubr.f32.gmra.mxu0 %v8940
        %v9105 = vpop.f32.mrf.mxu0
        %v9106 = vpop.f32.mrf.mxu0
        %9107 = vdwg.mxu0
        %v9108 = vmul.f32 %v9009, 0.92419624
        %v9109 = vmul.f32 %v9011, 0.92419624
        %v9110 = vmul.f32 %v9092, 0.92419624
        %v9111 = vmul.f32 %v9094, 0.92419624
        %vm9112 = vcmp.gt.f32.partialorder %v9108, 20.0
        %vm9113 = vcmp.gt.f32.partialorder %v9109, 20.0
        %vm9114 = vcmp.gt.f32.partialorder %v9110, 20.0
        %vm9115 = vcmp.gt.f32.partialorder %v9111, 20.0
        %v9116 = vmin.f32 %v9108, 20.0
        %v9117 = vmin.f32 %v9109, 20.0
        %v9118 = vmin.f32 %v9110, 20.0
        %v9119 = vmin.f32 %v9111, 20.0
        %v9120 = vmul.f32 %v9116, 1.442695
        %v9121 = vpow.pop %v9120
        %v9122 = vmul.f32 %v9117, 1.442695
        %v9123 = vpow.pop %v9122
        %v9124 = vmul.f32 %v9118, 1.442695
        %v9125 = vpow.pop %v9124
        %v9126 = vmul.f32 %v9119, 1.442695
        %v9127 = vpow.pop %v9126
        %v9128 = vadd.f32 %v9121, 1.0
        %v9129 = vlog2.pop %v9128
        %v9130 = vmul.f32 %v9129, 0.6931472
        %v9131 = vmul.f32 -0.5, %v9121
        %v9132 = vadd.f32 %v9131, 1.0
        %v9133 = vmul.f32 %v9132, %v9121
        %v9134 = vand.u32 2147483647, %v9121
        %vm9135 = vcmp.lt.f32.partialorder %v9134, 0.0004427343
        %v9136 = vsel %vm9135, %v9133, %v9130
        %v9137 = vadd.f32 %v9123, 1.0
        %v9138 = vlog2.pop %v9137
        %v9139 = vmul.f32 %v9138, 0.6931472
        %v9140 = vmul.f32 -0.5, %v9123
        %v9141 = vadd.f32 %v9140, 1.0
        %v9142 = vmul.f32 %v9141, %v9123
        %v9143 = vand.u32 2147483647, %v9123
        %vm9144 = vcmp.lt.f32.partialorder %v9143, 0.0004427343
        %v9145 = vsel %vm9144, %v9142, %v9139
        %v9146 = vadd.f32 %v9125, 1.0
        %v9147 = vlog2.pop %v9146
        %v9148 = vmul.f32 %v9147, 0.6931472
        %v9149 = vmul.f32 -0.5, %v9125
        %v9150 = vadd.f32 %v9149, 1.0
        %v9151 = vmul.f32 %v9150, %v9125
        %v9152 = vand.u32 2147483647, %v9125
        %vm9153 = vcmp.lt.f32.partialorder %v9152, 0.0004427343
        %v9154 = vsel %vm9153, %v9151, %v9148
        %v9155 = vadd.f32 %v9127, 1.0
        %v9156 = vlog2.pop %v9155
        %v9157 = vmul.f32 %v9156, 0.6931472
        %v9158 = vmul.f32 -0.5, %v9127
        %v9159 = vadd.f32 %v9158, 1.0
        %v9160 = vmul.f32 %v9159, %v9127
        %v9161 = vand.u32 2147483647, %v9127
        %vm9162 = vcmp.lt.f32.partialorder %v9161, 0.0004427343
        %v9163 = vsel %vm9162, %v9160, %v9157
        %v9164 = vmul.f32 %v9136, 1.0820212
        %v9165 = vmul.f32 %v9145, 1.0820212
        %v9166 = vmul.f32 %v9154, 1.0820212
        %v9167 = vmul.f32 %v9163, 1.0820212
        %v9168 = vsel %vm9112, %v9009, %v9164
        %v9169 = vsel %vm9113, %v9011, %v9165
        %v9170 = vsel %vm9114, %v9092, %v9166
        %v9171 = vsel %vm9115, %v9094, %v9167
        %v9172 = vadd.f32 %v9168, 0.25
        %v9173 = vadd.f32 %v9169, 0.25
        %v9174 = vadd.f32 %v9170, 0.25
        %v9175 = vadd.f32 %v9171, 0.25
        %v9176 = vmin.f32 %v9172, 100.0
        %v9177 = vmin.f32 %v9173, 100.0
        %v9178 = vmin.f32 %v9174, 100.0
        %v9179 = vmin.f32 %v9175, 100.0
        %v9180 = vrcp.pop %v9176
        %v9181 = vmul.f32 1.0, %v9180
        %v9182 = vrcp.pop %v9177
        %v9183 = vmul.f32 1.0, %v9182
        %v9184 = vrcp.pop %v9178
        %v9185 = vmul.f32 1.0, %v9184
        %v9186 = vrcp.pop %v9179
        %v9187 = vmul.f32 1.0, %v9186
        %v9188 = vlaneseq
        %v9189 = vshrl.u32 %v9188, 7
        %v9190 = vsub.s32 3, %v9189
        %v9191 = vrot.slane %v9181, %v9190
        %v9192 = vlaneseq
        %v9193 = vshrl.u32 %v9192, 7
        %v9194 = vsub.s32 3, %v9193
        %v9195 = vrot.slane %v9183, %v9194
        %v9196 = vlaneseq
        %v9197 = vshrl.u32 %v9196, 7
        %v9198 = vsub.s32 3, %v9197
        %v9199 = vrot.slane %v9185, %v9198
        %v9200 = vlaneseq
        %v9201 = vshrl.u32 %v9200, 7
        %v9202 = vsub.s32 3, %v9201
        %v9203 = vrot.slane %v9187, %v9202
        %v9204 = vmul.f32 %v9009, %v9191
        %v9205 = vmul.f32 %v9011, %v9195
        %v9206 = vmul.f32 %v9092, %v9199
        %v9207 = vmul.f32 %v9094, %v9203
        %v9208 = vadd.f32 %v9204, %v2490
        %v9209 = vadd.f32 %v9205, %v2490
        %v9210 = vadd.f32 %v9206, %v2490
        %v9211 = vadd.f32 %v9207, %v2490
        %v9216 = vcombine.low %v9208, %v9209
        %v9217 = vcombine.low %v9210, %v9211
        %s9220 = scalar_lea.vmem %s244, 48
        %9221 = vst [vmem:[%s9220] sm:$0x77] %v9216
        %9222 = vst [vmem:[%s9220 + $0x8] sm:$0x77] %v9217
        %s9223 = smul.u32 16, %s23
        %p9224 = scmp.lt.s32.totalorder %s22, 1
        %s9225 = scalar_select %p9224, %s22, 1
        %p9226 = scmp.lt.s32.totalorder %s9223, 15
        %s9227 = scalar_select %p9226, %s9223, 15
        %s9228 = smul.addr %s9225, 16
        %s9229 = sadd.s32 %s9227, %s9228
        %s9230 = smul.addr %s9229, 4
        %s9231 = scalar_lea.vmem %s4, %s9230
        // Predicated region
        $region41: #{tpu_custom_call.1} parent=35 // pred_check
          %p9232 = pneg %p141
        $region42: #{tpu_custom_call.1} parent=35 // pred_check_branch
          %9234 = sbr.rel (%p9232) target = $region44
        $region43: #{tpu_custom_call.1} parent=35 // pred_region
          %s9235 = smul.u32 16, %s23
        $region44: #{tpu_custom_call.1} parent=35 // pred_fallthru
          _
      $region36: #{tpu_custom_call.1} parent=5 // pred_fallthru
        _
      %p9236 = scmp.le.s32.totalorder 2, %s13
      // Predicated region
      $region45: #{tpu_custom_call.1} parent=5 // pred_check
        %p9237 = pneg %p9236
      $region46: #{tpu_custom_call.1} parent=5 // pred_check_branch
        %9239 = sbr.rel (%p9237) target = $region48
      $region47: #{tpu_custom_call.1} parent=5 // pred_region
        %s9240 = ssub.s32 %s13, 2
        // Predicated region
        $region49: #{tpu_custom_call.1} parent=47 // pred_check
          %p9241 = pneg %p147
        $region50: #{tpu_custom_call.1} parent=47 // pred_check_branch
          %9243 = sbr.rel (%p9241) target = $region52
        $region51: #{tpu_custom_call.1} parent=47 // pred_region
          %s9244 = smul.u32 16, %s25
          %p9245 = scmp.lt.s32.totalorder %s24, 1
          %s9246 = scalar_select %p9245, %s24, 1
          %p9247 = scmp.lt.s32.totalorder %s9244, 15
          %s9248 = scalar_select %p9247, %s9244, 15
          %s9249 = smul.addr %s9246, 16
          %s9250 = sadd.s32 %s9248, %s9249
          %s9251 = smul.addr %s9250, 4
          %s9252 = scalar_lea.vmem %s4, %s9251
        $region52: #{tpu_custom_call.1} parent=47 // pred_fallthru
          _
      $region48: #{tpu_custom_call.1} parent=5 // pred_fallthru
        _
    $region6: #{tpu_custom_call.1} parent=1 // loop_footer
      %s17 = sadd.s32 1, %s13
    $region7: #{tpu_custom_call.1} parent=1 // loop_footer_branch
      %12 = sbr.rel target = $region3
    $region8: #{tpu_custom_call.1} parent=1 // loop_exit
      _
    %9253 = vsyncpa [#allocation3], 1
    %s9254 = scalar_lea.sflag [#allocation3], 1
    %9255 = vsyncpa %s9254, 1

</llo_original>
